<compile_context>
chip_gen: v6e
topology: v6e:2x2x1
jax: 0.10.0
libtpu: 0.0.40
codegen_flags: <defaults>
</compile_context>

<pallas_src>
import jax
import jax.numpy as jnp
from jax.experimental import pallas as pl
from jax.experimental.pallas import tpu as pltpu


_VMEM_LIMIT = 48 * 1024 * 1024      # stays inside v7x's 64 MiB physical VMEM
_LANE = 128


def _round_up(x, m):
    return (x + m - 1) // m * m


# ---------------------------------------------------------------------------
# Pallas kernel 1: tiled (M,K)@(K,N) + bias + activation  (im2col / convT path)
# ---------------------------------------------------------------------------
def _make_matmul_kernel(act):
    def kernel(a_ref, b_ref, bias_ref, o_ref):
        acc = jnp.dot(a_ref[...], b_ref[...], preferred_element_type=jnp.float32)
        acc = acc + bias_ref[...]
        if act == "relu":
            acc = jnp.maximum(acc, 0.0)
        o_ref[...] = acc.astype(o_ref.dtype)
    return kernel


def _choose_tm(m):
    # Divisor-based tile: no padded garbage rows, no extra HBM pass over A.
    for tm in (512, 256, 128, 64, 32, 16, 8):
        if m % tm == 0:
            return tm, 0
    mp = _round_up(m, 256)
    return 256, mp - m


def matmul_bias_act(a, b, bias, act="none"):
    """(M,K)@(K,N) + bias[N] with fused activation.  bf16 MXU, f32 accumulate."""
    m, k = a.shape
    k2, n = b.shape
    assert k == k2
    tm, pad_m = _choose_tm(m)
    a = a.astype(jnp.bfloat16)
    if pad_m:
        a = jnp.pad(a, ((0, pad_m), (0, 0)))
    mp = m + pad_m
    out = pl.pallas_call(
        _make_matmul_kernel(act),
        out_shape=jax.ShapeDtypeStruct((mp, n), jnp.bfloat16),
        grid=(mp // tm,),
        in_specs=[
            pl.BlockSpec((tm, k), lambda i: (i, 0)),   # A streamed over M
            pl.BlockSpec((k, n), lambda i: (0, 0)),    # B resident across grid
            pl.BlockSpec((1, n), lambda i: (0, 0)),    # bias resident
        ],
        out_specs=pl.BlockSpec((tm, n), lambda i: (i, 0)),
        compiler_params=pltpu.CompilerParams(
            dimension_semantics=("parallel",),
            vmem_limit_bytes=_VMEM_LIMIT,
        ),
    )(a, b.astype(jnp.bfloat16), bias.reshape(1, n).astype(jnp.float32))
    return out[:m] if pad_m else out


# ---------------------------------------------------------------------------
# Pallas kernel 2: streamed stride-1 conv over row bands (no HBM im2col)
# ---------------------------------------------------------------------------
def _make_conv_kernel(kh, kw, th, ow, act, has_residual):
    def kernel(*refs):
        if has_residual:
            x_ref, w_ref, b_ref, r_ref, o_ref = refs
        else:
            x_ref, w_ref, b_ref, o_ref = refs
        # Gather the kh*kw filter taps from the VMEM-resident band; 128-aligned
        # lane widths (channels are padded to a multiple of 128 in prepare).
        cols = [x_ref[0, ki:ki + th, kj:kj + ow, :]
                for ki in range(kh) for kj in range(kw)]
        a = jnp.concatenate(cols, axis=-1)               # (th, ow, kh*kw*Cp)
        a = a.reshape(th * ow, -1)
        acc = jnp.dot(a, w_ref[...], preferred_element_type=jnp.float32)
        acc = acc.reshape(th, ow, -1) + b_ref[...]
        if has_residual:
            acc = acc + r_ref[0].astype(jnp.float32)
        if act == "relu":
            acc = jnp.maximum(acc, 0.0)
        o_ref[0] = acc.astype(o_ref.dtype)
    return kernel


def _pick_band(n, h, w, kh, kw, cp, oc):
    """Largest divisor of H whose per-step VMEM footprint is modest and which
    keeps >=2 grid steps when possible (v7x megacore / pipelining)."""
    wp = w + kw - 1

    def vmem_est(th):
        tb = th + kh - 1
        a_mat = th * w * kh * kw * cp * 2            # in-kernel A value
        band = tb * wp * cp * 2 * 2                  # input band, double buffered
        acc = th * w * oc * 4
        outs = th * w * oc * 2 * 2 * 2               # out + residual, double buffered
        wts = kh * kw * cp * oc * 2 * 2
        return a_mat + band + acc + outs + wts

    feasible = [d for d in range(h, 0, -1)
                if h % d == 0
                and vmem_est(d) <= 24 * 1024 * 1024
                and d * w * kh * kw * cp * 2 <= 4 * 1024 * 1024
                and d * w <= 2048]
    if not feasible:
        return 1
    multi = [d for d in feasible if n * (h // d) >= 2]
    return (multi or feasible)[0]


def conv2d_stream(x, w4, bias, act="none", residual=None, pad_mode="reflect"):
    """Stride-1 "same" conv, NHWC, streamed row bands, fused bias/residual/act."""
    n, h, w, c = x.shape
    kh, kw, ic, oc = w4.shape                    # ic may be lane-padded (>= c)
    assert ic >= c and (ic - c) < _LANE
    ph, pw = (kh - 1) // 2, (kw - 1) // 2
    xp = jnp.pad(x, ((0, 0), (ph, ph), (pw, pw), (0, 0)), mode=pad_mode)
    if ic > c:                                   # lane-pad channels (zero weight rows)
        xp = jnp.pad(xp, ((0, 0), (0, 0), (0, 0), (0, ic - c)))
    wp_ = w + kw - 1
    th = _pick_band(n, h, w, kh, kw, ic, oc)
    nb = h // th
    tb = th + kh - 1
    if nb == 1:
        xb = xp                                  # (N, Hp, Wp, Cp)
    else:                                        # banded copy with kh-1 row halo
        xb = jnp.concatenate(
            [xp[:, i * th:i * th + tb][:, None] for i in range(nb)], axis=1)
        xb = xb.reshape(n * nb, tb, wp_, ic)
    w_mat = w4.reshape(kh * kw * ic, oc)
    bias2 = bias.reshape(1, oc).astype(jnp.float32)

    inputs = [xb, w_mat, bias2]
    in_specs = [
        pl.BlockSpec((1, tb, wp_, ic), lambda g: (g, 0, 0, 0)),
        pl.BlockSpec((kh * kw * ic, oc), lambda g: (0, 0)),
        pl.BlockSpec((1, oc), lambda g: (0, 0)),
    ]
    has_res = residual is not None
    io_alias = {}
    if has_res:
        rb = residual.reshape(n * nb, th, w, oc)
        inputs.append(rb)
        in_specs.append(pl.BlockSpec((1, th, w, oc), lambda g: (g, 0, 0, 0)))
        io_alias = {len(inputs) - 1: 0}          # residual buffer becomes the output

    out = pl.pallas_call(
        _make_conv_kernel(kh, kw, th, w, act, has_res),
        out_shape=jax.ShapeDtypeStruct((n * nb, th, w, oc), jnp.bfloat16),
        grid=(n * nb,),
        in_specs=in_specs,
        out_specs=pl.BlockSpec((1, th, w, oc), lambda g: (g, 0, 0, 0)),
        input_output_aliases=io_alias,
        compiler_params=pltpu.CompilerParams(
            dimension_semantics=("parallel",),
            vmem_limit_bytes=_VMEM_LIMIT,
        ),
    )(*inputs)
    return out.reshape(n, h, w, oc)


# ---------------------------------------------------------------------------
# im2col fallback (stride-2 downsampling convs, tiny-C 7x7 conv)
# ---------------------------------------------------------------------------
def _extract_patches(xp, kh, kw, stride, oh, ow):
    cols = []
    for i in range(kh):
        for j in range(kw):
            cols.append(xp[:, i:i + stride * oh:stride, j:j + stride * ow:stride, :])
    return jnp.concatenate(cols, axis=-1)


def conv2d_im2col(x, w4, bias, stride, padding, act="none", pad_mode="reflect"):
    n, h, w, c = x.shape
    kh, kw, ic, oc = w4.shape
    assert ic == c
    if padding:
        xp = jnp.pad(x, ((0, 0), (padding, padding), (padding, padding), (0, 0)),
                     mode=pad_mode)
    else:
        xp = x
    oh = (h + 2 * padding - kh) // stride + 1
    ow = (w + 2 * padding - kw) // stride + 1
    patches = _extract_patches(xp, kh, kw, stride, oh, ow)
    a = patches.reshape(n * oh * ow, kh * kw * c)
    out = matmul_bias_act(a, w4.reshape(kh * kw * ic, oc), bias, act=act)
    return out.reshape(n, oh, ow, oc)


def conv2d(x, p, stride, padding, act="none", residual=None):
    w4, b = p["w"], p["b"]
    kh, kw, ic, _ = w4.shape
    n, h, w, c = x.shape
    use_stream = (stride == 1 and padding == (kh - 1) // 2
                  and ic % _LANE == 0 and w % 8 == 0)
    if use_stream:
        return conv2d_stream(x, w4, b, act=act, residual=residual)
    if ic > c:                                   # stream-prepped weight, rare fallback
        x = jnp.pad(x, ((0, 0), (0, 0), (0, 0), (0, ic - c)))
    out = conv2d_im2col(x, w4, b, stride, padding, act=act)
    if residual is not None:
        out = out + residual
    return out


def conv_transpose2d(x, p, act="none"):
    """ConvTranspose2d(k=3, s=2, p=1, output_padding=1) via sub-pixel (phase)
    decomposition: one dense matmul on the low-res grid."""
    bm, bb = p["w"], p["b"]                      # (4*IC, 4*OC), (4*OC,)
    n, h, w, c = x.shape
    assert bm.shape[0] == 4 * c
    oc = bm.shape[1] // 4
    xp = jnp.pad(x, ((0, 0), (0, 1), (0, 1), (0, 0)))
    offsets = ((0, 0), (0, 1), (1, 0), (1, 1))
    cols = [xp[:, di:di + h, dj:dj + w, :] for di, dj in offsets]
    a = jnp.concatenate(cols, axis=-1).reshape(n * h * w, 4 * c)
    out = matmul_bias_act(a, bm, bb, act=act)          # (M, 4*OC)
    out = out.reshape(n, h, w, 2, 2, oc)
    out = jnp.transpose(out, (0, 1, 3, 2, 4, 5)).reshape(n, 2 * h, 2 * w, oc)
    return out


# ---------------------------------------------------------------------------
# Generator parameters, one-time weight prep, and forward pass
# ---------------------------------------------------------------------------
def _conv_param(key, oc, ic, k):
    kw_, kb_ = jax.random.split(key)
    scale = 1.0 / jnp.sqrt(ic * k * k)
    return {"w": jax.random.normal(kw_, (oc, ic, k, k), jnp.float32) * scale,
            "b": jax.random.normal(kb_, (oc,), jnp.float32) * scale}


def _convT_param(key, ic, oc, k):
    kw_, kb_ = jax.random.split(key)
    scale = 1.0 / jnp.sqrt(ic * k * k)
    return {"w": jax.random.normal(kw_, (ic, oc, k, k), jnp.float32) * scale,
            "b": jax.random.normal(kb_, (oc,), jnp.float32) * scale}


def init_generator_params(key, input_channels=3, feature_num=64, num_of_residuals=9):
    f = feature_num
    keys = jax.random.split(key, 3 + 2 * num_of_residuals + 2 + 1)
    ki = iter(keys)
    return {
        "init": [
            _conv_param(next(ki), f, input_channels, 7),
            _conv_param(next(ki), 2 * f, f, 3),
            _conv_param(next(ki), 4 * f, 2 * f, 3),
        ],
        "res": [
            [_conv_param(next(ki), 4 * f, 4 * f, 3),
             _conv_param(next(ki), 4 * f, 4 * f, 3)]
            for _ in range(num_of_residuals)
        ],
        "up": [
            _convT_param(next(ki), 4 * f, 2 * f, 3),
            _convT_param(next(ki), 2 * f, f, 3),
        ],
        "final": _conv_param(next(ki), 3, f, 7),
    }


def _stream_ok(ic):
    return ic >= 32          # lane-pad + tap-stream; tiny-C convs stay on im2col


def _prep_conv(p, stream):
    w = p["w"]                                   # PyTorch layout (OC, IC, KH, KW)
    oc, ic, kh, kw = w.shape
    w4 = jnp.transpose(w, (2, 3, 1, 0))          # (KH, KW, IC, OC): rows (ki,kj,ic)
    if stream:
        icp = _round_up(ic, _LANE)
        if icp != ic:
            w4 = jnp.pad(w4, ((0, 0), (0, 0), (0, icp - ic), (0, 0)))
    return {"w": w4.astype(jnp.bfloat16), "b": p["b"].astype(jnp.float32)}


def _prep_convT(p):
    w = p["w"]                                   # (IC, OC, 3, 3)
    ic, oc, kh, kw = w.shape
    offsets = ((0, 0), (0, 1), (1, 0), (1, 1))
    blocks = []
    for di, dj in offsets:
        row = []
        for r, s in offsets:
            ki, kj = r - 2 * di + 1, s - 2 * dj + 1
            if 0 <= ki < kh and 0 <= kj < kw:
                row.append(w[:, :, ki, kj])
            else:
                row.append(jnp.zeros((ic, oc), w.dtype))
        blocks.append(jnp.concatenate(row, axis=1))          # (IC, 4*OC)
    bm = jnp.concatenate(blocks, axis=0).astype(jnp.bfloat16)  # (4*IC, 4*OC)
    return {"w": bm, "b": jnp.tile(p["b"], 4).astype(jnp.float32)}


def prepare_generator_params(params):
    """One-time weight re-layout, hoisted out of the forward pass."""
    p0, p1, p2 = params["init"]
    return {
        "init": [
            _prep_conv(p0, stream=_stream_ok(p0["w"].shape[1])),   # 7x7 s1
            _prep_conv(p1, stream=False),                          # 3x3 s2
            _prep_conv(p2, stream=False),                          # 3x3 s2
        ],
        "res": [[_prep_conv(q, stream=_stream_ok(q["w"].shape[1])) for q in rb]
                for rb in params["res"]],
        "up": [_prep_convT(q) for q in params["up"]],
        "final": _prep_conv(params["final"],
                            stream=_stream_ok(params["final"]["w"].shape[1])),
    }


def generator_forward(prep, x_nchw):
    """CycleGAN Generator: (N, C, H, W) -> (N, 3, H, W) float32 in [-1, 1]."""
    x = jnp.transpose(x_nchw, (0, 2, 3, 1)).astype(jnp.bfloat16)   # NHWC bf16

    p0, p1, p2 = prep["init"]
    x = conv2d(x, p0, stride=1, padding=3, act="relu")
    x = conv2d(x, p1, stride=2, padding=1, act="relu")
    x = conv2d(x, p2, stride=2, padding=1, act="relu")

    # residual blocks: x + Conv(ReLU(Conv(x)))   (residual add fused in kernel)
    for rb in prep["res"]:
        h1 = conv2d(x, rb[0], stride=1, padding=1, act="relu")
        x = conv2d(h1, rb[1], stride=1, padding=1, act="none", residual=x)

    u0, u1 = prep["up"]
    x = conv_transpose2d(x, u0, act="relu")
    x = conv_transpose2d(x, u1, act="relu")

    x = conv2d(x, prep["final"], stride=1, padding=3, act="none")
    # tanh applied on the 3 valid channels in XLA (keeps padded lanes off the EUP)
    return jnp.tanh(jnp.transpose(x, (0, 3, 1, 2)).astype(jnp.float32))


if __name__ == "__main__":
    key = jax.random.PRNGKey(0)
    k_param, k_x = jax.random.split(key)

    # Small config consistent with the module: 3 input channels, feature_num=8,
    # 2 residual blocks, 32x32 images (low-res feature maps stay 8-aligned).
    batch, in_ch, hw = 2, 3, 32
    feature_num, num_res = 8, 2

    params = init_generator_params(k_param, input_channels=in_ch,
                                   feature_num=feature_num,
                                   num_of_residuals=num_res)
    prep = prepare_generator_params(params)      # one-time weight re-layout
    x = jax.random.normal(k_x, (batch, in_ch, hw, hw), jnp.float32)

    fwd = jax.jit(generator_forward)
    y = jax.block_until_ready(fwd(prep, x))

    assert y.shape == (batch, 3, hw, hw), y.shape
    assert bool(jnp.all(jnp.isfinite(y)))
    assert bool(jnp.all(jnp.abs(y) <= 1.0))      # tanh output range
    print("KERNEL_OK")
</pallas_src>

<mosaic_0001>
module attributes {stable_mosaic.version = 11 : i64} {
  func.func @kernel(%arg0: i32, %arg1: memref<512x147xbf16, #tpu.memory_space<vmem>>, %arg2: memref<147x8xbf16, #tpu.memory_space<vmem>>, %arg3: memref<1x8xf32, #tpu.memory_space<vmem>>, %arg4: memref<512x8xbf16, #tpu.memory_space<vmem>>) attributes {dimension_semantics = [#tpu.dimension_semantics<parallel>], iteration_bounds = array<i64: 4>, scalar_prefetch = 0 : i64, scratch_operands = 0 : i64, tpu.core_type = #tpu.core_type<tc>, window_params = [{transform_indices = @transform_0, window_bounds = array<i64: 512, 147>}, {pipeline_mode = #tpu.pipeline_mode<synchronous>, transform_indices = @transform_1, window_bounds = array<i64: 147, 8>}, {pipeline_mode = #tpu.pipeline_mode<synchronous>, transform_indices = @transform_2, window_bounds = array<i64: 1, 8>}, {transform_indices = @transform_3, window_bounds = array<i64: 512, 8>}]} {
    %c0 = arith.constant 0 : index
    %c0_0 = arith.constant 0 : index
    %0 = vector.load %arg1[%c0, %c0_0] : memref<512x147xbf16, #tpu.memory_space<vmem>>, vector<512x147xbf16>
    %c0_1 = arith.constant 0 : index
    %c0_2 = arith.constant 0 : index
    %1 = vector.load %arg2[%c0_1, %c0_2] : memref<147x8xbf16, #tpu.memory_space<vmem>>, vector<147x8xbf16>
    %cst = arith.constant dense<0.000000e+00> : vector<512x8xf32>
    %2 = tpu.matmul %0, %1, %cst {dimension_numbers = #tpu.dot_dimension_numbers<[1], [0], [0], [1], [0, 0, 1, 1], [], []>} : vector<512x147xbf16>, vector<147x8xbf16>, vector<512x8xf32> -> vector<512x8xf32>
    %c0_3 = arith.constant 0 : index
    %c0_4 = arith.constant 0 : index
    %3 = vector.load %arg3[%c0_3, %c0_4] : memref<1x8xf32, #tpu.memory_space<vmem>>, vector<1x8xf32>
    %4 = vector.broadcast %3 : vector<1x8xf32> to vector<512x8xf32>
    %5 = arith.addf %2, %4 : vector<512x8xf32>
    %cst_5 = arith.constant 0.000000e+00 : f32
    %6 = vector.broadcast %cst_5 : f32 to vector<512x8xf32>
    %7 = arith.maximumf %5, %6 : vector<512x8xf32>
    %8 = arith.truncf %7 : vector<512x8xf32> to vector<512x8xbf16>
    %c0_6 = arith.constant 0 : index
    %c0_7 = arith.constant 0 : index
    %9 = vector.load %arg4[%c0_6, %c0_7] : memref<512x8xbf16, #tpu.memory_space<vmem>>, vector<512x8xbf16>
    tpu.vector_store %arg4[%c0_6, %c0_7], %8 {strides = array<i32>} : memref<512x8xbf16, #tpu.memory_space<vmem>>, vector<512x8xbf16>,
    return
  }
  func.func @transform_0(%arg0: i32) -> (i32, i32) {
    %c0_i32 = arith.constant 0 : i32
    %c0_i32_0 = arith.constant 0 : i32
    return %arg0, %c0_i32 : i32, i32
  }
  func.func @transform_1(%arg0: i32) -> (i32, i32) {
    %c0_i32 = arith.constant 0 : i32
    %c0_i32_0 = arith.constant 0 : i32
    %c0_i32_1 = arith.constant 0 : i32
    return %c0_i32, %c0_i32_0 : i32, i32
  }
  func.func @transform_2(%arg0: i32) -> (i32, i32) {
    %c0_i32 = arith.constant 0 : i32
    %c0_i32_0 = arith.constant 0 : i32
    %c0_i32_1 = arith.constant 0 : i32
    return %c0_i32, %c0_i32_0 : i32, i32
  }
  func.func @transform_3(%arg0: i32) -> (i32, i32) {
    %c0_i32 = arith.constant 0 : i32
    %c0_i32_0 = arith.constant 0 : i32
    return %arg0, %c0_i32 : i32, i32
  }
}

module attributes {stable_mosaic.version = 11 : i64} {
  func.func @kernel(%arg0: i32, %arg1: memref<512x72xbf16, #tpu.memory_space<vmem>>, %arg2: memref<72x16xbf16, #tpu.memory_space<vmem>>, %arg3: memref<1x16xf32, #tpu.memory_space<vmem>>, %arg4: memref<512x16xbf16, #tpu.memory_space<vmem>>) attributes {dimension_semantics = [#tpu.dimension_semantics<parallel>], iteration_bounds = array<i64: 1>, scalar_prefetch = 0 : i64, scratch_operands = 0 : i64, tpu.core_type = #tpu.core_type<tc>, window_params = [{transform_indices = @transform_0, window_bounds = array<i64: 512, 72>}, {pipeline_mode = #tpu.pipeline_mode<synchronous>, transform_indices = @transform_1, window_bounds = array<i64: 72, 16>}, {pipeline_mode = #tpu.pipeline_mode<synchronous>, transform_indices = @transform_2, window_bounds = array<i64: 1, 16>}, {transform_indices = @transform_3, window_bounds = array<i64: 512, 16>}]} {
    %c0 = arith.constant 0 : index
    %c0_0 = arith.constant 0 : index
    %0 = vector.load %arg1[%c0, %c0_0] : memref<512x72xbf16, #tpu.memory_space<vmem>>, vector<512x72xbf16>
    %c0_1 = arith.constant 0 : index
    %c0_2 = arith.constant 0 : index
    %1 = vector.load %arg2[%c0_1, %c0_2] : memref<72x16xbf16, #tpu.memory_space<vmem>>, vector<72x16xbf16>
    %cst = arith.constant dense<0.000000e+00> : vector<512x16xf32>
    %2 = tpu.matmul %0, %1, %cst {dimension_numbers = #tpu.dot_dimension_numbers<[1], [0], [0], [1], [0, 0, 1, 1], [], []>} : vector<512x72xbf16>, vector<72x16xbf16>, vector<512x16xf32> -> vector<512x16xf32>
    %c0_3 = arith.constant 0 : index
    %c0_4 = arith.constant 0 : index
    %3 = vector.load %arg3[%c0_3, %c0_4] : memref<1x16xf32, #tpu.memory_space<vmem>>, vector<1x16xf32>
    %4 = vector.broadcast %3 : vector<1x16xf32> to vector<512x16xf32>
    %5 = arith.addf %2, %4 : vector<512x16xf32>
    %cst_5 = arith.constant 0.000000e+00 : f32
    %6 = vector.broadcast %cst_5 : f32 to vector<512x16xf32>
    %7 = arith.maximumf %5, %6 : vector<512x16xf32>
    %8 = arith.truncf %7 : vector<512x16xf32> to vector<512x16xbf16>
    %c0_6 = arith.constant 0 : index
    %c0_7 = arith.constant 0 : index
    %9 = vector.load %arg4[%c0_6, %c0_7] : memref<512x16xbf16, #tpu.memory_space<vmem>>, vector<512x16xbf16>
    tpu.vector_store %arg4[%c0_6, %c0_7], %8 {strides = array<i32>} : memref<512x16xbf16, #tpu.memory_space<vmem>>, vector<512x16xbf16>,
    return
  }
  func.func @transform_0(%arg0: i32) -> (i32, i32) {
    %c0_i32 = arith.constant 0 : i32
    %c0_i32_0 = arith.constant 0 : i32
    return %arg0, %c0_i32 : i32, i32
  }
  func.func @transform_1(%arg0: i32) -> (i32, i32) {
    %c0_i32 = arith.constant 0 : i32
    %c0_i32_0 = arith.constant 0 : i32
    %c0_i32_1 = arith.constant 0 : i32
    return %c0_i32, %c0_i32_0 : i32, i32
  }
  func.func @transform_2(%arg0: i32) -> (i32, i32) {
    %c0_i32 = arith.constant 0 : i32
    %c0_i32_0 = arith.constant 0 : i32
    %c0_i32_1 = arith.constant 0 : i32
    return %c0_i32, %c0_i32_0 : i32, i32
  }
  func.func @transform_3(%arg0: i32) -> (i32, i32) {
    %c0_i32 = arith.constant 0 : i32
    %c0_i32_0 = arith.constant 0 : i32
    return %arg0, %c0_i32 : i32, i32
  }
}

module attributes {stable_mosaic.version = 11 : i64} {
  func.func @kernel(%arg0: i32, %arg1: memref<128x144xbf16, #tpu.memory_space<vmem>>, %arg2: memref<144x32xbf16, #tpu.memory_space<vmem>>, %arg3: memref<1x32xf32, #tpu.memory_space<vmem>>, %arg4: memref<128x32xbf16, #tpu.memory_space<vmem>>) attributes {dimension_semantics = [#tpu.dimension_semantics<parallel>], iteration_bounds = array<i64: 1>, scalar_prefetch = 0 : i64, scratch_operands = 0 : i64, tpu.core_type = #tpu.core_type<tc>, window_params = [{transform_indices = @transform_0, window_bounds = array<i64: 128, 144>}, {pipeline_mode = #tpu.pipeline_mode<synchronous>, transform_indices = @transform_1, window_bounds = array<i64: 144, 32>}, {pipeline_mode = #tpu.pipeline_mode<synchronous>, transform_indices = @transform_2, window_bounds = array<i64: 1, 32>}, {transform_indices = @transform_3, window_bounds = array<i64: 128, 32>}]} {
    %c0 = arith.constant 0 : index
    %c0_0 = arith.constant 0 : index
    %0 = vector.load %arg1[%c0, %c0_0] : memref<128x144xbf16, #tpu.memory_space<vmem>>, vector<128x144xbf16>
    %c0_1 = arith.constant 0 : index
    %c0_2 = arith.constant 0 : index
    %1 = vector.load %arg2[%c0_1, %c0_2] : memref<144x32xbf16, #tpu.memory_space<vmem>>, vector<144x32xbf16>
    %cst = arith.constant dense<0.000000e+00> : vector<128x32xf32>
    %2 = tpu.matmul %0, %1, %cst {dimension_numbers = #tpu.dot_dimension_numbers<[1], [0], [0], [1], [0, 0, 1, 1], [], []>} : vector<128x144xbf16>, vector<144x32xbf16>, vector<128x32xf32> -> vector<128x32xf32>
    %c0_3 = arith.constant 0 : index
    %c0_4 = arith.constant 0 : index
    %3 = vector.load %arg3[%c0_3, %c0_4] : memref<1x32xf32, #tpu.memory_space<vmem>>, vector<1x32xf32>
    %4 = vector.broadcast %3 : vector<1x32xf32> to vector<128x32xf32>
    %5 = arith.addf %2, %4 : vector<128x32xf32>
    %cst_5 = arith.constant 0.000000e+00 : f32
    %6 = vector.broadcast %cst_5 : f32 to vector<128x32xf32>
    %7 = arith.maximumf %5, %6 : vector<128x32xf32>
    %8 = arith.truncf %7 : vector<128x32xf32> to vector<128x32xbf16>
    %c0_6 = arith.constant 0 : index
    %c0_7 = arith.constant 0 : index
    %9 = vector.load %arg4[%c0_6, %c0_7] : memref<128x32xbf16, #tpu.memory_space<vmem>>, vector<128x32xbf16>
    tpu.vector_store %arg4[%c0_6, %c0_7], %8 {strides = array<i32>} : memref<128x32xbf16, #tpu.memory_space<vmem>>, vector<128x32xbf16>,
    return
  }
  func.func @transform_0(%arg0: i32) -> (i32, i32) {
    %c0_i32 = arith.constant 0 : i32
    %c0_i32_0 = arith.constant 0 : i32
    return %arg0, %c0_i32 : i32, i32
  }
  func.func @transform_1(%arg0: i32) -> (i32, i32) {
    %c0_i32 = arith.constant 0 : i32
    %c0_i32_0 = arith.constant 0 : i32
    %c0_i32_1 = arith.constant 0 : i32
    return %c0_i32, %c0_i32_0 : i32, i32
  }
  func.func @transform_2(%arg0: i32) -> (i32, i32) {
    %c0_i32 = arith.constant 0 : i32
    %c0_i32_0 = arith.constant 0 : i32
    %c0_i32_1 = arith.constant 0 : i32
    return %c0_i32, %c0_i32_0 : i32, i32
  }
  func.func @transform_3(%arg0: i32) -> (i32, i32) {
    %c0_i32 = arith.constant 0 : i32
    %c0_i32_0 = arith.constant 0 : i32
    return %arg0, %c0_i32 : i32, i32
  }
}

module attributes {stable_mosaic.version = 11 : i64} {
  func.func @kernel(%arg0: i32, %arg1: memref<1x10x10x128xbf16, #tpu.memory_space<vmem>>, %arg2: memref<1152x32xbf16, #tpu.memory_space<vmem>>, %arg3: memref<1x32xf32, #tpu.memory_space<vmem>>, %arg4: memref<1x8x8x32xbf16, #tpu.memory_space<vmem>>) attributes {dimension_semantics = [#tpu.dimension_semantics<parallel>], iteration_bounds = array<i64: 2>, scalar_prefetch = 0 : i64, scratch_operands = 0 : i64, tpu.core_type = #tpu.core_type<tc>, window_params = [{transform_indices = @transform_0, window_bounds = array<i64: 1, 10, 10, 128>}, {pipeline_mode = #tpu.pipeline_mode<synchronous>, transform_indices = @transform_1, window_bounds = array<i64: 1152, 32>}, {pipeline_mode = #tpu.pipeline_mode<synchronous>, transform_indices = @transform_2, window_bounds = array<i64: 1, 32>}, {transform_indices = @transform_3, window_bounds = array<i64: 1, 8, 8, 32>}]} {
    %c0 = arith.constant 0 : index
    %c0_0 = arith.constant 0 : index
    %c0_1 = arith.constant 0 : index
    %c0_2 = arith.constant 0 : index
    %0 = vector.load %arg1[%c0, %c0_0, %c0_1, %c0_2] : memref<1x10x10x128xbf16, #tpu.memory_space<vmem>>, vector<1x8x8x128xbf16>
    %1 = vector.shape_cast %0 : vector<1x8x8x128xbf16> to vector<8x8x128xbf16>
    %c0_3 = arith.constant 0 : index
    %c0_4 = arith.constant 0 : index
    %c1 = arith.constant 1 : index
    %c0_5 = arith.constant 0 : index
    %2 = vector.load %arg1[%c0_3, %c0_4, %c1, %c0_5] : memref<1x10x10x128xbf16, #tpu.memory_space<vmem>>, vector<1x8x8x128xbf16>
    %3 = vector.shape_cast %2 : vector<1x8x8x128xbf16> to vector<8x8x128xbf16>
    %c0_6 = arith.constant 0 : index
    %c0_7 = arith.constant 0 : index
    %c2 = arith.constant 2 : index
    %c0_8 = arith.constant 0 : index
    %4 = vector.load %arg1[%c0_6, %c0_7, %c2, %c0_8] : memref<1x10x10x128xbf16, #tpu.memory_space<vmem>>, vector<1x8x8x128xbf16>
    %5 = vector.shape_cast %4 : vector<1x8x8x128xbf16> to vector<8x8x128xbf16>
    %c0_9 = arith.constant 0 : index
    %c1_10 = arith.constant 1 : index
    %c0_11 = arith.constant 0 : index
    %c0_12 = arith.constant 0 : index
    %6 = vector.load %arg1[%c0_9, %c1_10, %c0_11, %c0_12] : memref<1x10x10x128xbf16, #tpu.memory_space<vmem>>, vector<1x8x8x128xbf16>
    %7 = vector.shape_cast %6 : vector<1x8x8x128xbf16> to vector<8x8x128xbf16>
    %c0_13 = arith.constant 0 : index
    %c1_14 = arith.constant 1 : index
    %c1_15 = arith.constant 1 : index
    %c0_16 = arith.constant 0 : index
    %8 = vector.load %arg1[%c0_13, %c1_14, %c1_15, %c0_16] : memref<1x10x10x128xbf16, #tpu.memory_space<vmem>>, vector<1x8x8x128xbf16>
    %9 = vector.shape_cast %8 : vector<1x8x8x128xbf16> to vector<8x8x128xbf16>
    %c0_17 = arith.constant 0 : index
    %c1_18 = arith.constant 1 : index
    %c2_19 = arith.constant 2 : index
    %c0_20 = arith.constant 0 : index
    %10 = vector.load %arg1[%c0_17, %c1_18, %c2_19, %c0_20] : memref<1x10x10x128xbf16, #tpu.memory_space<vmem>>, vector<1x8x8x128xbf16>
    %11 = vector.shape_cast %10 : vector<1x8x8x128xbf16> to vector<8x8x128xbf16>
    %c0_21 = arith.constant 0 : index
    %c2_22 = arith.constant 2 : index
    %c0_23 = arith.constant 0 : index
    %c0_24 = arith.constant 0 : index
    %12 = vector.load %arg1[%c0_21, %c2_22, %c0_23, %c0_24] : memref<1x10x10x128xbf16, #tpu.memory_space<vmem>>, vector<1x8x8x128xbf16>
    %13 = vector.shape_cast %12 : vector<1x8x8x128xbf16> to vector<8x8x128xbf16>
    %c0_25 = arith.constant 0 : index
    %c2_26 = arith.constant 2 : index
    %c1_27 = arith.constant 1 : index
    %c0_28 = arith.constant 0 : index
    %14 = vector.load %arg1[%c0_25, %c2_26, %c1_27, %c0_28] : memref<1x10x10x128xbf16, #tpu.memory_space<vmem>>, vector<1x8x8x128xbf16>
    %15 = vector.shape_cast %14 : vector<1x8x8x128xbf16> to vector<8x8x128xbf16>
    %c0_29 = arith.constant 0 : index
    %c2_30 = arith.constant 2 : index
    %c2_31 = arith.constant 2 : index
    %c0_32 = arith.constant 0 : index
    %16 = vector.load %arg1[%c0_29, %c2_30, %c2_31, %c0_32] : memref<1x10x10x128xbf16, #tpu.memory_space<vmem>>, vector<1x8x8x128xbf16>
    %17 = vector.shape_cast %16 : vector<1x8x8x128xbf16> to vector<8x8x128xbf16>
    %18 = tpu.concatenate %1, %3, %5, %7, %9, %11, %13, %15, %17 in 2 : vector<8x8x128xbf16>, vector<8x8x128xbf16>, vector<8x8x128xbf16>, vector<8x8x128xbf16>, vector<8x8x128xbf16>, vector<8x8x128xbf16>, vector<8x8x128xbf16>, vector<8x8x128xbf16>, vector<8x8x128xbf16> -> vector<8x8x1152xbf16>
    %19 = vector.shape_cast %18 : vector<8x8x1152xbf16> to vector<64x1152xbf16>
    %c0_33 = arith.constant 0 : index
    %c0_34 = arith.constant 0 : index
    %20 = vector.load %arg2[%c0_33, %c0_34] : memref<1152x32xbf16, #tpu.memory_space<vmem>>, vector<1152x32xbf16>
    %cst = arith.constant dense<0.000000e+00> : vector<64x32xf32>
    %21 = tpu.matmul %19, %20, %cst {dimension_numbers = #tpu.dot_dimension_numbers<[1], [0], [0], [1], [0, 0, 1, 1], [], []>} : vector<64x1152xbf16>, vector<1152x32xbf16>, vector<64x32xf32> -> vector<64x32xf32>
    %22 = vector.shape_cast %21 : vector<64x32xf32> to vector<8x8x32xf32>
    %c0_35 = arith.constant 0 : index
    %c0_36 = arith.constant 0 : index
    %23 = vector.load %arg3[%c0_35, %c0_36] : memref<1x32xf32, #tpu.memory_space<vmem>>, vector<1x32xf32>
    %24 = vector.shape_cast %23 : vector<1x32xf32> to vector<1x1x32xf32>
    %25 = vector.broadcast %24 : vector<1x1x32xf32> to vector<8x8x32xf32>
    %26 = arith.addf %22, %25 : vector<8x8x32xf32>
    %cst_37 = arith.constant 0.000000e+00 : f32
    %27 = vector.broadcast %cst_37 : f32 to vector<8x8x32xf32>
    %28 = arith.maximumf %26, %27 : vector<8x8x32xf32>
    %29 = arith.truncf %28 : vector<8x8x32xf32> to vector<8x8x32xbf16>
    %c0_38 = arith.constant 0 : index
    %c0_39 = arith.constant 0 : index
    %c0_40 = arith.constant 0 : index
    %c0_41 = arith.constant 0 : index
    %30 = vector.load %arg4[%c0_38, %c0_39, %c0_40, %c0_41] : memref<1x8x8x32xbf16, #tpu.memory_space<vmem>>, vector<1x8x8x32xbf16>
    %31 = vector.shape_cast %30 : vector<1x8x8x32xbf16> to vector<8x8x32xbf16>
    %32 = vector.shape_cast %29 : vector<8x8x32xbf16> to vector<1x8x8x32xbf16>
    tpu.vector_store %arg4[%c0_38, %c0_39, %c0_40, %c0_41], %32 {strides = array<i32>} : memref<1x8x8x32xbf16, #tpu.memory_space<vmem>>, vector<1x8x8x32xbf16>,
    return
  }
  func.func @transform_0(%arg0: i32) -> (i32, i32, i32, i32) {
    %c0_i32 = arith.constant 0 : i32
    %c0_i32_0 = arith.constant 0 : i32
    %c0_i32_1 = arith.constant 0 : i32
    %c0_i32_2 = arith.constant 0 : i32
    return %arg0, %c0_i32, %c0_i32_0, %c0_i32_1 : i32, i32, i32, i32
  }
  func.func @transform_1(%arg0: i32) -> (i32, i32) {
    %c0_i32 = arith.constant 0 : i32
    %c0_i32_0 = arith.constant 0 : i32
    %c0_i32_1 = arith.constant 0 : i32
    return %c0_i32, %c0_i32_0 : i32, i32
  }
  func.func @transform_2(%arg0: i32) -> (i32, i32) {
    %c0_i32 = arith.constant 0 : i32
    %c0_i32_0 = arith.constant 0 : i32
    %c0_i32_1 = arith.constant 0 : i32
    return %c0_i32, %c0_i32_0 : i32, i32
  }
  func.func @transform_3(%arg0: i32) -> (i32, i32, i32, i32) {
    %c0_i32 = arith.constant 0 : i32
    %c0_i32_0 = arith.constant 0 : i32
    %c0_i32_1 = arith.constant 0 : i32
    %c0_i32_2 = arith.constant 0 : i32
    return %arg0, %c0_i32, %c0_i32_0, %c0_i32_1 : i32, i32, i32, i32
  }
}

module attributes {stable_mosaic.version = 11 : i64} {
  func.func @kernel(%arg0: i32, %arg1: memref<1x10x10x128xbf16, #tpu.memory_space<vmem>>, %arg2: memref<1152x32xbf16, #tpu.memory_space<vmem>>, %arg3: memref<1x32xf32, #tpu.memory_space<vmem>>, %arg4: memref<1x8x8x32xbf16, #tpu.memory_space<vmem>>, %arg5: memref<1x8x8x32xbf16, #tpu.memory_space<vmem>>) attributes {dimension_semantics = [#tpu.dimension_semantics<parallel>], iteration_bounds = array<i64: 2>, scalar_prefetch = 0 : i64, scratch_operands = 0 : i64, tpu.core_type = #tpu.core_type<tc>, window_params = [{transform_indices = @transform_0, window_bounds = array<i64: 1, 10, 10, 128>}, {pipeline_mode = #tpu.pipeline_mode<synchronous>, transform_indices = @transform_1, window_bounds = array<i64: 1152, 32>}, {pipeline_mode = #tpu.pipeline_mode<synchronous>, transform_indices = @transform_2, window_bounds = array<i64: 1, 32>}, {transform_indices = @transform_3, window_bounds = array<i64: 1, 8, 8, 32>}, {transform_indices = @transform_4, window_bounds = array<i64: 1, 8, 8, 32>}]} {
    %c0 = arith.constant 0 : index
    %c0_0 = arith.constant 0 : index
    %c0_1 = arith.constant 0 : index
    %c0_2 = arith.constant 0 : index
    %0 = vector.load %arg1[%c0, %c0_0, %c0_1, %c0_2] : memref<1x10x10x128xbf16, #tpu.memory_space<vmem>>, vector<1x8x8x128xbf16>
    %1 = vector.shape_cast %0 : vector<1x8x8x128xbf16> to vector<8x8x128xbf16>
    %c0_3 = arith.constant 0 : index
    %c0_4 = arith.constant 0 : index
    %c1 = arith.constant 1 : index
    %c0_5 = arith.constant 0 : index
    %2 = vector.load %arg1[%c0_3, %c0_4, %c1, %c0_5] : memref<1x10x10x128xbf16, #tpu.memory_space<vmem>>, vector<1x8x8x128xbf16>
    %3 = vector.shape_cast %2 : vector<1x8x8x128xbf16> to vector<8x8x128xbf16>
    %c0_6 = arith.constant 0 : index
    %c0_7 = arith.constant 0 : index
    %c2 = arith.constant 2 : index
    %c0_8 = arith.constant 0 : index
    %4 = vector.load %arg1[%c0_6, %c0_7, %c2, %c0_8] : memref<1x10x10x128xbf16, #tpu.memory_space<vmem>>, vector<1x8x8x128xbf16>
    %5 = vector.shape_cast %4 : vector<1x8x8x128xbf16> to vector<8x8x128xbf16>
    %c0_9 = arith.constant 0 : index
    %c1_10 = arith.constant 1 : index
    %c0_11 = arith.constant 0 : index
    %c0_12 = arith.constant 0 : index
    %6 = vector.load %arg1[%c0_9, %c1_10, %c0_11, %c0_12] : memref<1x10x10x128xbf16, #tpu.memory_space<vmem>>, vector<1x8x8x128xbf16>
    %7 = vector.shape_cast %6 : vector<1x8x8x128xbf16> to vector<8x8x128xbf16>
    %c0_13 = arith.constant 0 : index
    %c1_14 = arith.constant 1 : index
    %c1_15 = arith.constant 1 : index
    %c0_16 = arith.constant 0 : index
    %8 = vector.load %arg1[%c0_13, %c1_14, %c1_15, %c0_16] : memref<1x10x10x128xbf16, #tpu.memory_space<vmem>>, vector<1x8x8x128xbf16>
    %9 = vector.shape_cast %8 : vector<1x8x8x128xbf16> to vector<8x8x128xbf16>
    %c0_17 = arith.constant 0 : index
    %c1_18 = arith.constant 1 : index
    %c2_19 = arith.constant 2 : index
    %c0_20 = arith.constant 0 : index
    %10 = vector.load %arg1[%c0_17, %c1_18, %c2_19, %c0_20] : memref<1x10x10x128xbf16, #tpu.memory_space<vmem>>, vector<1x8x8x128xbf16>
    %11 = vector.shape_cast %10 : vector<1x8x8x128xbf16> to vector<8x8x128xbf16>
    %c0_21 = arith.constant 0 : index
    %c2_22 = arith.constant 2 : index
    %c0_23 = arith.constant 0 : index
    %c0_24 = arith.constant 0 : index
    %12 = vector.load %arg1[%c0_21, %c2_22, %c0_23, %c0_24] : memref<1x10x10x128xbf16, #tpu.memory_space<vmem>>, vector<1x8x8x128xbf16>
    %13 = vector.shape_cast %12 : vector<1x8x8x128xbf16> to vector<8x8x128xbf16>
    %c0_25 = arith.constant 0 : index
    %c2_26 = arith.constant 2 : index
    %c1_27 = arith.constant 1 : index
    %c0_28 = arith.constant 0 : index
    %14 = vector.load %arg1[%c0_25, %c2_26, %c1_27, %c0_28] : memref<1x10x10x128xbf16, #tpu.memory_space<vmem>>, vector<1x8x8x128xbf16>
    %15 = vector.shape_cast %14 : vector<1x8x8x128xbf16> to vector<8x8x128xbf16>
    %c0_29 = arith.constant 0 : index
    %c2_30 = arith.constant 2 : index
    %c2_31 = arith.constant 2 : index
    %c0_32 = arith.constant 0 : index
    %16 = vector.load %arg1[%c0_29, %c2_30, %c2_31, %c0_32] : memref<1x10x10x128xbf16, #tpu.memory_space<vmem>>, vector<1x8x8x128xbf16>
    %17 = vector.shape_cast %16 : vector<1x8x8x128xbf16> to vector<8x8x128xbf16>
    %18 = tpu.concatenate %1, %3, %5, %7, %9, %11, %13, %15, %17 in 2 : vector<8x8x128xbf16>, vector<8x8x128xbf16>, vector<8x8x128xbf16>, vector<8x8x128xbf16>, vector<8x8x128xbf16>, vector<8x8x128xbf16>, vector<8x8x128xbf16>, vector<8x8x128xbf16>, vector<8x8x128xbf16> -> vector<8x8x1152xbf16>
    %19 = vector.shape_cast %18 : vector<8x8x1152xbf16> to vector<64x1152xbf16>
    %c0_33 = arith.constant 0 : index
    %c0_34 = arith.constant 0 : index
    %20 = vector.load %arg2[%c0_33, %c0_34] : memref<1152x32xbf16, #tpu.memory_space<vmem>>, vector<1152x32xbf16>
    %cst = arith.constant dense<0.000000e+00> : vector<64x32xf32>
    %21 = tpu.matmul %19, %20, %cst {dimension_numbers = #tpu.dot_dimension_numbers<[1], [0], [0], [1], [0, 0, 1, 1], [], []>} : vector<64x1152xbf16>, vector<1152x32xbf16>, vector<64x32xf32> -> vector<64x32xf32>
    %22 = vector.shape_cast %21 : vector<64x32xf32> to vector<8x8x32xf32>
    %c0_35 = arith.constant 0 : index
    %c0_36 = arith.constant 0 : index
    %23 = vector.load %arg3[%c0_35, %c0_36] : memref<1x32xf32, #tpu.memory_space<vmem>>, vector<1x32xf32>
    %24 = vector.shape_cast %23 : vector<1x32xf32> to vector<1x1x32xf32>
    %25 = vector.broadcast %24 : vector<1x1x32xf32> to vector<8x8x32xf32>
    %26 = arith.addf %22, %25 : vector<8x8x32xf32>
    %c0_37 = arith.constant 0 : index
    %c0_38 = arith.constant 0 : index
    %c0_39 = arith.constant 0 : index
    %c0_40 = arith.constant 0 : index
    %27 = vector.load %arg4[%c0_37, %c0_38, %c0_39, %c0_40] : memref<1x8x8x32xbf16, #tpu.memory_space<vmem>>, vector<1x8x8x32xbf16>
    %28 = vector.shape_cast %27 : vector<1x8x8x32xbf16> to vector<8x8x32xbf16>
    %29 = arith.extf %28 : vector<8x8x32xbf16> to vector<8x8x32xf32>
    %30 = arith.addf %26, %29 : vector<8x8x32xf32>
    %31 = arith.truncf %30 : vector<8x8x32xf32> to vector<8x8x32xbf16>
    %c0_41 = arith.constant 0 : index
    %c0_42 = arith.constant 0 : index
    %c0_43 = arith.constant 0 : index
    %c0_44 = arith.constant 0 : index
    %32 = vector.load %arg5[%c0_41, %c0_42, %c0_43, %c0_44] : memref<1x8x8x32xbf16, #tpu.memory_space<vmem>>, vector<1x8x8x32xbf16>
    %33 = vector.shape_cast %32 : vector<1x8x8x32xbf16> to vector<8x8x32xbf16>
    %34 = vector.shape_cast %31 : vector<8x8x32xbf16> to vector<1x8x8x32xbf16>
    tpu.vector_store %arg5[%c0_41, %c0_42, %c0_43, %c0_44], %34 {strides = array<i32>} : memref<1x8x8x32xbf16, #tpu.memory_space<vmem>>, vector<1x8x8x32xbf16>,
    return
  }
  func.func @transform_0(%arg0: i32) -> (i32, i32, i32, i32) {
    %c0_i32 = arith.constant 0 : i32
    %c0_i32_0 = arith.constant 0 : i32
    %c0_i32_1 = arith.constant 0 : i32
    %c0_i32_2 = arith.constant 0 : i32
    return %arg0, %c0_i32, %c0_i32_0, %c0_i32_1 : i32, i32, i32, i32
  }
  func.func @transform_1(%arg0: i32) -> (i32, i32) {
    %c0_i32 = arith.constant 0 : i32
    %c0_i32_0 = arith.constant 0 : i32
    %c0_i32_1 = arith.constant 0 : i32
    return %c0_i32, %c0_i32_0 : i32, i32
  }
  func.func @transform_2(%arg0: i32) -> (i32, i32) {
    %c0_i32 = arith.constant 0 : i32
    %c0_i32_0 = arith.constant 0 : i32
    %c0_i32_1 = arith.constant 0 : i32
    return %c0_i32, %c0_i32_0 : i32, i32
  }
  func.func @transform_3(%arg0: i32) -> (i32, i32, i32, i32) {
    %c0_i32 = arith.constant 0 : i32
    %c0_i32_0 = arith.constant 0 : i32
    %c0_i32_1 = arith.constant 0 : i32
    %c0_i32_2 = arith.constant 0 : i32
    return %arg0, %c0_i32, %c0_i32_0, %c0_i32_1 : i32, i32, i32, i32
  }
  func.func @transform_4(%arg0: i32) -> (i32, i32, i32, i32) {
    %c0_i32 = arith.constant 0 : i32
    %c0_i32_0 = arith.constant 0 : i32
    %c0_i32_1 = arith.constant 0 : i32
    %c0_i32_2 = arith.constant 0 : i32
    return %arg0, %c0_i32, %c0_i32_0, %c0_i32_1 : i32, i32, i32, i32
  }
}

module attributes {stable_mosaic.version = 11 : i64} {
  func.func @kernel(%arg0: i32, %arg1: memref<128x128xbf16, #tpu.memory_space<vmem>>, %arg2: memref<128x64xbf16, #tpu.memory_space<vmem>>, %arg3: memref<1x64xf32, #tpu.memory_space<vmem>>, %arg4: memref<128x64xbf16, #tpu.memory_space<vmem>>) attributes {dimension_semantics = [#tpu.dimension_semantics<parallel>], iteration_bounds = array<i64: 1>, scalar_prefetch = 0 : i64, scratch_operands = 0 : i64, tpu.core_type = #tpu.core_type<tc>, window_params = [{transform_indices = @transform_0, window_bounds = array<i64: 128, 128>}, {pipeline_mode = #tpu.pipeline_mode<synchronous>, transform_indices = @transform_1, window_bounds = array<i64: 128, 64>}, {pipeline_mode = #tpu.pipeline_mode<synchronous>, transform_indices = @transform_2, window_bounds = array<i64: 1, 64>}, {transform_indices = @transform_3, window_bounds = array<i64: 128, 64>}]} {
    %c0 = arith.constant 0 : index
    %c0_0 = arith.constant 0 : index
    %0 = vector.load %arg1[%c0, %c0_0] : memref<128x128xbf16, #tpu.memory_space<vmem>>, vector<128x128xbf16>
    %c0_1 = arith.constant 0 : index
    %c0_2 = arith.constant 0 : index
    %1 = vector.load %arg2[%c0_1, %c0_2] : memref<128x64xbf16, #tpu.memory_space<vmem>>, vector<128x64xbf16>
    %cst = arith.constant dense<0.000000e+00> : vector<128x64xf32>
    %2 = tpu.matmul %0, %1, %cst {dimension_numbers = #tpu.dot_dimension_numbers<[1], [0], [0], [1], [0, 0, 1, 1], [], []>} : vector<128x128xbf16>, vector<128x64xbf16>, vector<128x64xf32> -> vector<128x64xf32>
    %c0_3 = arith.constant 0 : index
    %c0_4 = arith.constant 0 : index
    %3 = vector.load %arg3[%c0_3, %c0_4] : memref<1x64xf32, #tpu.memory_space<vmem>>, vector<1x64xf32>
    %4 = vector.broadcast %3 : vector<1x64xf32> to vector<128x64xf32>
    %5 = arith.addf %2, %4 : vector<128x64xf32>
    %cst_5 = arith.constant 0.000000e+00 : f32
    %6 = vector.broadcast %cst_5 : f32 to vector<128x64xf32>
    %7 = arith.maximumf %5, %6 : vector<128x64xf32>
    %8 = arith.truncf %7 : vector<128x64xf32> to vector<128x64xbf16>
    %c0_6 = arith.constant 0 : index
    %c0_7 = arith.constant 0 : index
    %9 = vector.load %arg4[%c0_6, %c0_7] : memref<128x64xbf16, #tpu.memory_space<vmem>>, vector<128x64xbf16>
    tpu.vector_store %arg4[%c0_6, %c0_7], %8 {strides = array<i32>} : memref<128x64xbf16, #tpu.memory_space<vmem>>, vector<128x64xbf16>,
    return
  }
  func.func @transform_0(%arg0: i32) -> (i32, i32) {
    %c0_i32 = arith.constant 0 : i32
    %c0_i32_0 = arith.constant 0 : i32
    return %arg0, %c0_i32 : i32, i32
  }
  func.func @transform_1(%arg0: i32) -> (i32, i32) {
    %c0_i32 = arith.constant 0 : i32
    %c0_i32_0 = arith.constant 0 : i32
    %c0_i32_1 = arith.constant 0 : i32
    return %c0_i32, %c0_i32_0 : i32, i32
  }
  func.func @transform_2(%arg0: i32) -> (i32, i32) {
    %c0_i32 = arith.constant 0 : i32
    %c0_i32_0 = arith.constant 0 : i32
    %c0_i32_1 = arith.constant 0 : i32
    return %c0_i32, %c0_i32_0 : i32, i32
  }
  func.func @transform_3(%arg0: i32) -> (i32, i32) {
    %c0_i32 = arith.constant 0 : i32
    %c0_i32_0 = arith.constant 0 : i32
    return %arg0, %c0_i32 : i32, i32
  }
}

module attributes {stable_mosaic.version = 11 : i64} {
  func.func @kernel(%arg0: i32, %arg1: memref<512x64xbf16, #tpu.memory_space<vmem>>, %arg2: memref<64x32xbf16, #tpu.memory_space<vmem>>, %arg3: memref<1x32xf32, #tpu.memory_space<vmem>>, %arg4: memref<512x32xbf16, #tpu.memory_space<vmem>>) attributes {dimension_semantics = [#tpu.dimension_semantics<parallel>], iteration_bounds = array<i64: 1>, scalar_prefetch = 0 : i64, scratch_operands = 0 : i64, tpu.core_type = #tpu.core_type<tc>, window_params = [{transform_indices = @transform_0, window_bounds = array<i64: 512, 64>}, {pipeline_mode = #tpu.pipeline_mode<synchronous>, transform_indices = @transform_1, window_bounds = array<i64: 64, 32>}, {pipeline_mode = #tpu.pipeline_mode<synchronous>, transform_indices = @transform_2, window_bounds = array<i64: 1, 32>}, {transform_indices = @transform_3, window_bounds = array<i64: 512, 32>}]} {
    %c0 = arith.constant 0 : index
    %c0_0 = arith.constant 0 : index
    %0 = vector.load %arg1[%c0, %c0_0] : memref<512x64xbf16, #tpu.memory_space<vmem>>, vector<512x64xbf16>
    %c0_1 = arith.constant 0 : index
    %c0_2 = arith.constant 0 : index
    %1 = vector.load %arg2[%c0_1, %c0_2] : memref<64x32xbf16, #tpu.memory_space<vmem>>, vector<64x32xbf16>
    %cst = arith.constant dense<0.000000e+00> : vector<512x32xf32>
    %2 = tpu.matmul %0, %1, %cst {dimension_numbers = #tpu.dot_dimension_numbers<[1], [0], [0], [1], [0, 0, 1, 1], [], []>} : vector<512x64xbf16>, vector<64x32xbf16>, vector<512x32xf32> -> vector<512x32xf32>
    %c0_3 = arith.constant 0 : index
    %c0_4 = arith.constant 0 : index
    %3 = vector.load %arg3[%c0_3, %c0_4] : memref<1x32xf32, #tpu.memory_space<vmem>>, vector<1x32xf32>
    %4 = vector.broadcast %3 : vector<1x32xf32> to vector<512x32xf32>
    %5 = arith.addf %2, %4 : vector<512x32xf32>
    %cst_5 = arith.constant 0.000000e+00 : f32
    %6 = vector.broadcast %cst_5 : f32 to vector<512x32xf32>
    %7 = arith.maximumf %5, %6 : vector<512x32xf32>
    %8 = arith.truncf %7 : vector<512x32xf32> to vector<512x32xbf16>
    %c0_6 = arith.constant 0 : index
    %c0_7 = arith.constant 0 : index
    %9 = vector.load %arg4[%c0_6, %c0_7] : memref<512x32xbf16, #tpu.memory_space<vmem>>, vector<512x32xbf16>
    tpu.vector_store %arg4[%c0_6, %c0_7], %8 {strides = array<i32>} : memref<512x32xbf16, #tpu.memory_space<vmem>>, vector<512x32xbf16>,
    return
  }
  func.func @transform_0(%arg0: i32) -> (i32, i32) {
    %c0_i32 = arith.constant 0 : i32
    %c0_i32_0 = arith.constant 0 : i32
    return %arg0, %c0_i32 : i32, i32
  }
  func.func @transform_1(%arg0: i32) -> (i32, i32) {
    %c0_i32 = arith.constant 0 : i32
    %c0_i32_0 = arith.constant 0 : i32
    %c0_i32_1 = arith.constant 0 : i32
    return %c0_i32, %c0_i32_0 : i32, i32
  }
  func.func @transform_2(%arg0: i32) -> (i32, i32) {
    %c0_i32 = arith.constant 0 : i32
    %c0_i32_0 = arith.constant 0 : i32
    %c0_i32_1 = arith.constant 0 : i32
    return %c0_i32, %c0_i32_0 : i32, i32
  }
  func.func @transform_3(%arg0: i32) -> (i32, i32) {
    %c0_i32 = arith.constant 0 : i32
    %c0_i32_0 = arith.constant 0 : i32
    return %arg0, %c0_i32 : i32, i32
  }
}

module attributes {stable_mosaic.version = 11 : i64} {
  func.func @kernel(%arg0: i32, %arg1: memref<512x392xbf16, #tpu.memory_space<vmem>>, %arg2: memref<392x3xbf16, #tpu.memory_space<vmem>>, %arg3: memref<1x3xf32, #tpu.memory_space<vmem>>, %arg4: memref<512x3xbf16, #tpu.memory_space<vmem>>) attributes {dimension_semantics = [#tpu.dimension_semantics<parallel>], iteration_bounds = array<i64: 4>, scalar_prefetch = 0 : i64, scratch_operands = 0 : i64, tpu.core_type = #tpu.core_type<tc>, window_params = [{transform_indices = @transform_0, window_bounds = array<i64: 512, 392>}, {pipeline_mode = #tpu.pipeline_mode<synchronous>, transform_indices = @transform_1, window_bounds = array<i64: 392, 3>}, {pipeline_mode = #tpu.pipeline_mode<synchronous>, transform_indices = @transform_2, window_bounds = array<i64: 1, 3>}, {transform_indices = @transform_3, window_bounds = array<i64: 512, 3>}]} {
    %c0 = arith.constant 0 : index
    %c0_0 = arith.constant 0 : index
    %0 = vector.load %arg1[%c0, %c0_0] : memref<512x392xbf16, #tpu.memory_space<vmem>>, vector<512x392xbf16>
    %c0_1 = arith.constant 0 : index
    %c0_2 = arith.constant 0 : index
    %1 = vector.load %arg2[%c0_1, %c0_2] : memref<392x3xbf16, #tpu.memory_space<vmem>>, vector<392x3xbf16>
    %cst = arith.constant dense<0.000000e+00> : vector<512x3xf32>
    %2 = tpu.matmul %0, %1, %cst {dimension_numbers = #tpu.dot_dimension_numbers<[1], [0], [0], [1], [0, 0, 1, 1], [], []>} : vector<512x392xbf16>, vector<392x3xbf16>, vector<512x3xf32> -> vector<512x3xf32>
    %c0_3 = arith.constant 0 : index
    %c0_4 = arith.constant 0 : index
    %3 = vector.load %arg3[%c0_3, %c0_4] : memref<1x3xf32, #tpu.memory_space<vmem>>, vector<1x3xf32>
    %4 = vector.broadcast %3 : vector<1x3xf32> to vector<512x3xf32>
    %5 = arith.addf %2, %4 : vector<512x3xf32>
    %6 = arith.truncf %5 : vector<512x3xf32> to vector<512x3xbf16>
    %c0_5 = arith.constant 0 : index
    %c0_6 = arith.constant 0 : index
    %7 = vector.load %arg4[%c0_5, %c0_6] : memref<512x3xbf16, #tpu.memory_space<vmem>>, vector<512x3xbf16>
    tpu.vector_store %arg4[%c0_5, %c0_6], %6 {strides = array<i32>} : memref<512x3xbf16, #tpu.memory_space<vmem>>, vector<512x3xbf16>,
    return
  }
  func.func @transform_0(%arg0: i32) -> (i32, i32) {
    %c0_i32 = arith.constant 0 : i32
    %c0_i32_0 = arith.constant 0 : i32
    return %arg0, %c0_i32 : i32, i32
  }
  func.func @transform_1(%arg0: i32) -> (i32, i32) {
    %c0_i32 = arith.constant 0 : i32
    %c0_i32_0 = arith.constant 0 : i32
    %c0_i32_1 = arith.constant 0 : i32
    return %c0_i32, %c0_i32_0 : i32, i32
  }
  func.func @transform_2(%arg0: i32) -> (i32, i32) {
    %c0_i32 = arith.constant 0 : i32
    %c0_i32_0 = arith.constant 0 : i32
    %c0_i32_1 = arith.constant 0 : i32
    return %c0_i32, %c0_i32_0 : i32, i32
  }
  func.func @transform_3(%arg0: i32) -> (i32, i32) {
    %c0_i32 = arith.constant 0 : i32
    %c0_i32_0 = arith.constant 0 : i32
    return %arg0, %c0_i32 : i32, i32
  }
}

</mosaic_0001>

<llo_original>
// kernel: generator_forward.10
$region0: #{generator_forward.10}
  #allocation0 [shape = 'u32[]', space=smem, size = 0x4, offset = 0x4, fixed_abs, tag = 'smem constant byte address 0x4 - core index']
  #allocation1 [shape = 'u32[144,128]{1,0:T(1,128)}', space=vmem, size = 0x12000, scoped, tag = 'internal scratch']
  %s0 = inlined_call_operand.vmem [shape: bf16[2048,147], index: 0, kind: input, shape index: {}]
  %s1 = inlined_call_operand.vmem [shape: bf16[147,8], index: 1, kind: input, shape index: {}]
  %s2 = inlined_call_operand.vmem [shape: f32[1,8], index: 2, kind: input, shape index: {}]
  %s3 = inlined_call_operand.vmem [shape: bf16[2048,8], index: 3, kind: output, shape index: {}]
  %s4 = sld [smem:[#allocation0]]
  $region45: #{generator_forward.10} parent=0
    _
  %s6 = ssub.s32 1, %s4
  %s7 = scalar_select 0, %s6, %s4
  loop: start=0, step=1, limit=6
  $region2: #{generator_forward.10} parent=0 // loop_pre_header
    _
  $region3: #{generator_forward.10} parent=0 // loop_header
    %s9 = sphi 0, %s13
    %p10 = scmp.ge.s32.totalorder %s9, 6
    %s19 = sphi 0, %s21
    %s22 = sphi 0, %s19
    %s23 = sphi 0, %s22
    %s39 = sphi 0, %s23
    %s43 = sphi 0, %s43
    %s45 = sphi 0, %s43
    %s46 = sphi 0, %s45
    %s60 = sphi 0, %s46
    %s64 = sphi 0, %s64
    %s66 = sphi 0, %s64
    %s67 = sphi 0, %s66
    %s81 = sphi 0, %s67
    %s87 = sphi 0, %s89
    %s90 = sphi 0, %s87
    %s91 = sphi 0, %s90
    %s107 = sphi 0, %s91
  $region4: #{generator_forward.10} parent=0 // loop_header_branch
    %12 = sbr.rel (%p10) target = $region8
  $region5: #{generator_forward.10} parent=0 // loop_body
    %s14 = ssub.s32 %s9, 1
    %s15 = ssub.s32 %s9, 2
    %s16 = sadd.s32 %s9, 1
    %s17 = ssub.s32 %s9, %s16
    %p18 = scmp.eq.s32.totalorder %s17, 0
    %s20 = sadd.s32 %s19, 1
    %s21 = scalar_select %p18, %s19, %s20
    %p24 = pneg %p18
    %p25 = scmp.eq.s32.totalorder %s9, 3
    %p26 = por %p24, %p25
    %p27 = scmp.ne.s32.totalorder %s19, %s22
    %p28 = scmp.eq.s32.totalorder %s9, 0
    %p29 = por %p27, %p28
    %p30 = scmp.ne.s32.totalorder %s19, %s22
    %p31 = scmp.eq.s32.totalorder %s14, 3
    %p32 = por %p30, %p31
    %p33 = scmp.ne.s32.totalorder %s22, %s23
    %p34 = scmp.eq.s32.totalorder %s14, 0
    %p35 = por %p33, %p34
    %p36 = scmp.ne.s32.totalorder %s22, %s23
    %p37 = scmp.eq.s32.totalorder %s15, 3
    %p38 = por %p36, %p37
    %p40 = scmp.ne.s32.totalorder %s23, %s39
    %p41 = scmp.eq.s32.totalorder %s15, 0
    %p42 = por %p40, %p41
    %s44 = sadd.s32 %s43, 1
    %p47 = scmp.eq.s32.totalorder %s9, 3
    %p48 = scmp.ne.s32.totalorder %s43, %s45
    %p49 = scmp.eq.s32.totalorder %s9, 0
    %p50 = por %p48, %p49
    %p51 = scmp.ne.s32.totalorder %s43, %s45
    %p52 = scmp.eq.s32.totalorder %s14, 3
    %p53 = por %p51, %p52
    %p54 = scmp.ne.s32.totalorder %s45, %s46
    %p55 = scmp.eq.s32.totalorder %s14, 0
    %p56 = por %p54, %p55
    %p57 = scmp.ne.s32.totalorder %s45, %s46
    %p58 = scmp.eq.s32.totalorder %s15, 3
    %p59 = por %p57, %p58
    %p61 = scmp.ne.s32.totalorder %s46, %s60
    %p62 = scmp.eq.s32.totalorder %s15, 0
    %p63 = por %p61, %p62
    %s65 = sadd.s32 %s64, 1
    %p68 = scmp.eq.s32.totalorder %s9, 3
    %p69 = scmp.ne.s32.totalorder %s64, %s66
    %p70 = scmp.eq.s32.totalorder %s9, 0
    %p71 = por %p69, %p70
    %p72 = scmp.ne.s32.totalorder %s64, %s66
    %p73 = scmp.eq.s32.totalorder %s14, 3
    %p74 = por %p72, %p73
    %p75 = scmp.ne.s32.totalorder %s66, %s67
    %p76 = scmp.eq.s32.totalorder %s14, 0
    %p77 = por %p75, %p76
    %p78 = scmp.ne.s32.totalorder %s66, %s67
    %p79 = scmp.eq.s32.totalorder %s15, 3
    %p80 = por %p78, %p79
    %p82 = scmp.ne.s32.totalorder %s67, %s81
    %p83 = scmp.eq.s32.totalorder %s15, 0
    %p84 = por %p82, %p83
    %s85 = ssub.s32 %s9, %s16
    %p86 = scmp.eq.s32.totalorder %s85, 0
    %s88 = sadd.s32 %s87, 1
    %s89 = scalar_select %p86, %s87, %s88
    %p92 = pneg %p86
    %p93 = scmp.eq.s32.totalorder %s9, 3
    %p94 = por %p92, %p93
    %p95 = scmp.ne.s32.totalorder %s87, %s90
    %p96 = scmp.eq.s32.totalorder %s9, 0
    %p97 = por %p95, %p96
    %p98 = scmp.ne.s32.totalorder %s87, %s90
    %p99 = scmp.eq.s32.totalorder %s14, 3
    %p100 = por %p98, %p99
    %p101 = scmp.ne.s32.totalorder %s90, %s91
    %p102 = scmp.eq.s32.totalorder %s14, 0
    %p103 = por %p101, %p102
    %p104 = scmp.ne.s32.totalorder %s90, %s91
    %p105 = scmp.eq.s32.totalorder %s15, 3
    %p106 = por %p104, %p105
    %p108 = scmp.ne.s32.totalorder %s91, %s107
    %p109 = scmp.eq.s32.totalorder %s15, 0
    %p110 = por %p108, %p109
    %p111 = scmp.le.s32.totalorder 1, %s9
    %p112 = scmp.lt.s32.totalorder %s9, 5
    %p113 = pnand %p111, %p112
    %p114 = pneg %p113
    // Predicated region
    $region9: #{generator_forward.10} parent=5 // pred_check
      _
    $region10: #{generator_forward.10} parent=5 // pred_check_branch
      %116 = sbr.rel (%p113) target = $region12
    $region11: #{generator_forward.10} parent=5 // pred_region
      %s117 = ssub.s32 %s9, 1
      // Predicated region
      $region13: #{generator_forward.10} parent=11 // pred_check
        %p118 = pneg %p56
      $region14: #{generator_forward.10} parent=11 // pred_check_branch
        %120 = sbr.rel (%p118) target = $region16
      $region15: #{generator_forward.10} parent=11 // pred_region
        _
      $region16: #{generator_forward.10} parent=11 // pred_fallthru
        _
      // Predicated region
      $region17: #{generator_forward.10} parent=11 // pred_check
        %p121 = pneg %p77
      $region18: #{generator_forward.10} parent=11 // pred_check_branch
        %123 = sbr.rel (%p121) target = $region20
      $region19: #{generator_forward.10} parent=11 // pred_region
        _
      $region20: #{generator_forward.10} parent=11 // pred_fallthru
        _
    $region12: #{generator_forward.10} parent=5 // pred_fallthru
      _
    %p124 = scmp.lt.s32.totalorder %s9, 4
    // Predicated region
    $region21: #{generator_forward.10} parent=5 // pred_check
      %p125 = pneg %p124
    $region22: #{generator_forward.10} parent=5 // pred_check_branch
      %127 = sbr.rel (%p125) target = $region24
    $region23: #{generator_forward.10} parent=5 // pred_region
      // Predicated region
      $region25: #{generator_forward.10} parent=23 // pred_check
        %p128 = pneg %p29
      $region26: #{generator_forward.10} parent=23 // pred_check_branch
        %130 = sbr.rel (%p128) target = $region28
      $region27: #{generator_forward.10} parent=23 // pred_region
        %s131 = smul.u32 64, %s9
        %p132 = scmp.lt.s32.totalorder %s131, 255
        %s133 = scalar_select %p132, %s131, 255
        %s134 = smul.addr %s133, 2
        %s135 = smul.addr %s134, 4
        %s136 = scalar_lea.vmem %s0, %s135
        %s137 = smul.u32 64, %s9
      $region28: #{generator_forward.10} parent=23 // pred_fallthru
        _
    $region24: #{generator_forward.10} parent=5 // pred_fallthru
      _
    %p138 = scmp.le.s32.totalorder 1, %s9
    %p139 = scmp.lt.s32.totalorder %s9, 5
    %p140 = pnand %p138, %p139
    %p141 = pneg %p140
    // Predicated region
    $region29: #{generator_forward.10} parent=5 // pred_check
      _
    $region30: #{generator_forward.10} parent=5 // pred_check_branch
      %143 = sbr.rel (%p140) target = $region32
    $region31: #{generator_forward.10} parent=5 // pred_region
      %s144 = ssub.s32 %s9, 1
      %s145 = smul.u32 64, %s14
      %p146 = scmp.lt.s32.totalorder %s145, 255
      %s147 = scalar_select %p146, %s145, 255
      %s148 = smul.addr %s147, 2
      %s149 = smul.addr %s148, 4
      %s150 = scalar_lea.vmem %s0, %s149
      %p151 = pneg %p35
      %p152 = pneg %p32
      %p153 = pneg %p56
      %p154 = pneg %p53
      %p155 = pneg %p77
      %p156 = pneg %p74
      %p157 = pneg %p103
      %p158 = pneg %p100
      %s159 = smul.u32 64, %s14
      %p160 = scmp.lt.s32.totalorder %s159, 255
      %s161 = scalar_select %p160, %s159, 255
      %s162 = smul.addr %s161, 4
      %s163 = scalar_lea.vmem %s3, %s162
      %s164 = smul.u32 64, %s14
      %p165 = scmp.lt.s32.totalorder %s164, 255
      %s166 = scalar_select %p165, %s164, 255
      %s167 = smul.addr %s166, 2
      %s168 = smul.addr %s167, 4
      %s169 = scalar_lea.vmem %s0, %s168
      %s170 = smul.u32 64, %s14
      %s171 = smul.u32 64, %s14
      %p172 = scmp.lt.s32.totalorder %s171, 255
      %s173 = scalar_select %p172, %s171, 255
      %s174 = smul.addr %s173, 4
      %s175 = scalar_lea.vmem %s3, %s174
      %s176 = smul.u32 64, %s14
      %v178 = vld [vmem:[%s169] sm:$0xff]
      %v179 = vld [vmem:[%s169 + $0x8] sm:$0xff]
      %v180 = vld [vmem:[%s169 + $0x10] sm:$0xff]
      %v181 = vld [vmem:[%s169 + $0x18] sm:$0xff]
      %v182 = vld [vmem:[%s169 + $0x20] sm:$0xff]
      %v183 = vld [vmem:[%s169 + $0x28] sm:$0xff]
      %v184 = vld [vmem:[%s169 + $0x30] sm:$0xff]
      %v185 = vld [vmem:[%s169 + $0x38] sm:$0xff]
      %v186 = vld [vmem:[%s169 + $0x40] sm:$0xff]
      %v187 = vld [vmem:[%s169 + $0x48] sm:$0xff]
      %v188 = vld [vmem:[%s169 + $0x50] sm:$0xff]
      %v189 = vld [vmem:[%s169 + $0x58] sm:$0xff]
      %v190 = vld [vmem:[%s169 + $0x60] sm:$0xff]
      %v191 = vld [vmem:[%s169 + $0x68] sm:$0xff]
      %v192 = vld [vmem:[%s169 + $0x70] sm:$0xff]
      %v193 = vld [vmem:[%s169 + $0x78] sm:$0xff]
      %v194 = vld [vmem:[%s169 + $0x80] sm:$0xff]
      %v195 = vld [vmem:[%s169 + $0x88] sm:$0xff]
      %v196 = vld [vmem:[%s169 + $0x90] sm:$0xff]
      %v197 = vld [vmem:[%s169 + $0x98] sm:$0xff]
      %v198 = vld [vmem:[%s169 + $0xa0] sm:$0xff]
      %v199 = vld [vmem:[%s169 + $0xa8] sm:$0xff]
      %v200 = vld [vmem:[%s169 + $0xb0] sm:$0xff]
      %v201 = vld [vmem:[%s169 + $0xb8] sm:$0xff]
      %v202 = vld [vmem:[%s169 + $0xc0] sm:$0xff]
      %v203 = vld [vmem:[%s169 + $0xc8] sm:$0xff]
      %v204 = vld [vmem:[%s169 + $0xd0] sm:$0xff]
      %v205 = vld [vmem:[%s169 + $0xd8] sm:$0xff]
      %v206 = vld [vmem:[%s169 + $0xe0] sm:$0xff]
      %v207 = vld [vmem:[%s169 + $0xe8] sm:$0xff]
      %v208 = vld [vmem:[%s169 + $0xf0] sm:$0xff]
      %v209 = vld [vmem:[%s169 + $0xf8] sm:$0xff]
      %v210 = vld [vmem:[%s169 + $0x100] sm:$0xff]
      %v211 = vld [vmem:[%s169 + $0x108] sm:$0xff]
      %v212 = vld [vmem:[%s169 + $0x110] sm:$0xff]
      %v213 = vld [vmem:[%s169 + $0x118] sm:$0xff]
      %v214 = vld [vmem:[%s169 + $0x120] sm:$0xff]
      %v215 = vld [vmem:[%s169 + $0x128] sm:$0xff]
      %v216 = vld [vmem:[%s169 + $0x130] sm:$0xff]
      %v217 = vld [vmem:[%s169 + $0x138] sm:$0xff]
      %v218 = vld [vmem:[%s169 + $0x140] sm:$0xff]
      %v219 = vld [vmem:[%s169 + $0x148] sm:$0xff]
      %v220 = vld [vmem:[%s169 + $0x150] sm:$0xff]
      %v221 = vld [vmem:[%s169 + $0x158] sm:$0xff]
      %v222 = vld [vmem:[%s169 + $0x160] sm:$0xff]
      %v223 = vld [vmem:[%s169 + $0x168] sm:$0xff]
      %v224 = vld [vmem:[%s169 + $0x170] sm:$0xff]
      %v225 = vld [vmem:[%s169 + $0x178] sm:$0xff]
      %v226 = vld [vmem:[%s169 + $0x180] sm:$0xff]
      %v227 = vld [vmem:[%s169 + $0x188] sm:$0xff]
      %v228 = vld [vmem:[%s169 + $0x190] sm:$0xff]
      %v229 = vld [vmem:[%s169 + $0x198] sm:$0xff]
      %v230 = vld [vmem:[%s169 + $0x1a0] sm:$0xff]
      %v231 = vld [vmem:[%s169 + $0x1a8] sm:$0xff]
      %v232 = vld [vmem:[%s169 + $0x1b0] sm:$0xff]
      %v233 = vld [vmem:[%s169 + $0x1b8] sm:$0xff]
      %v234 = vld [vmem:[%s169 + $0x1c0] sm:$0xff]
      %v235 = vld [vmem:[%s169 + $0x1c8] sm:$0xff]
      %v236 = vld [vmem:[%s169 + $0x1d0] sm:$0xff]
      %v237 = vld [vmem:[%s169 + $0x1d8] sm:$0xff]
      %v238 = vld [vmem:[%s169 + $0x1e0] sm:$0xff]
      %v239 = vld [vmem:[%s169 + $0x1e8] sm:$0xff]
      %v240 = vld [vmem:[%s169 + $0x1f0] sm:$0xff]
      %v241 = vld [vmem:[%s169 + $0x1f8] sm:$0xff]
      %v242 = vld [vmem:[%s1] sm:$0xf]
      %v243 = vld [vmem:[%s1 + $0x4] sm:$0xf]
      %v244 = vld [vmem:[%s1 + $0x8] sm:$0xf]
      %v245 = vld [vmem:[%s1 + $0xc] sm:$0xf]
      %v246 = vld [vmem:[%s1 + $0x10] sm:$0xf]
      %v247 = vld [vmem:[%s1 + $0x14] sm:$0xf]
      %v248 = vld [vmem:[%s1 + $0x18] sm:$0xf]
      %v249 = vld [vmem:[%s1 + $0x1c] sm:$0xf]
      %v250 = vld [vmem:[%s1 + $0x20] sm:$0xf]
      %v251 = vld [vmem:[%s1 + $0x24] sm:$0xf]
      %v252 = vld [vmem:[%s1 + $0x28] sm:$0xf]
      %v253 = vld [vmem:[%s1 + $0x2c] sm:$0xf]
      %v254 = vld [vmem:[%s1 + $0x30] sm:$0xf]
      %v255 = vld [vmem:[%s1 + $0x34] sm:$0xf]
      %v256 = vld [vmem:[%s1 + $0x38] sm:$0xf]
      %v257 = vld [vmem:[%s1 + $0x3c] sm:$0xf]
      %v258 = vld [vmem:[%s1 + $0x40] sm:$0xf]
      %v259 = vld [vmem:[%s1 + $0x44] sm:$0xf]
      %v260 = vld [vmem:[%s1 + $0x48] sm:$0x3]
      %v261 = vld [vmem:[%s2] sm:$0x1]
      %v263 = vlaneseq
      %v264 = vshrl.u32 %v263, 7
      %v265 = vsub.s32 0, %v264
      %v266 = vrot.slane %v261, %v265
      %v332 = vunpack.c.l.b16 %v178
      %v333 = vunpack.c.h.b16 %v178
      %v334 = vunpack.c.l.b16 %v179
      %v335 = vunpack.c.h.b16 %v179
      %v336 = vunpack.c.l.b16 %v180
      %v337 = vunpack.c.h.b16 %v180
      %v338 = vunpack.c.l.b16 %v181
      %v339 = vunpack.c.h.b16 %v181
      %v340 = vunpack.c.l.b16 %v182
      %v341 = vunpack.c.h.b16 %v182
      %v342 = vunpack.c.l.b16 %v183
      %v343 = vunpack.c.h.b16 %v183
      %v344 = vunpack.c.l.b16 %v184
      %v345 = vunpack.c.h.b16 %v184
      %v346 = vunpack.c.l.b16 %v185
      %v347 = vunpack.c.h.b16 %v185
      %v348 = vunpack.c.l.b16 %v186
      %v349 = vunpack.c.h.b16 %v186
      %v350 = vunpack.c.l.b16 %v187
      %v351 = vunpack.c.h.b16 %v187
      %v352 = vunpack.c.l.b16 %v188
      %v353 = vunpack.c.h.b16 %v188
      %v354 = vunpack.c.l.b16 %v189
      %v355 = vunpack.c.h.b16 %v189
      %v356 = vunpack.c.l.b16 %v190
      %v357 = vunpack.c.h.b16 %v190
      %v358 = vunpack.c.l.b16 %v191
      %v359 = vunpack.c.h.b16 %v191
      %v360 = vunpack.c.l.b16 %v192
      %v361 = vunpack.c.h.b16 %v192
      %v362 = vunpack.c.l.b16 %v193
      %v363 = vunpack.c.h.b16 %v193
      %v364 = vunpack.c.l.b16 %v194
      %v365 = vunpack.c.h.b16 %v194
      %v366 = vunpack.c.l.b16 %v195
      %v367 = vunpack.c.h.b16 %v195
      %v368 = vunpack.c.l.b16 %v196
      %v369 = vunpack.c.h.b16 %v196
      %v370 = vunpack.c.l.b16 %v197
      %v371 = vunpack.c.h.b16 %v197
      %v372 = vunpack.c.l.b16 %v198
      %v373 = vunpack.c.h.b16 %v198
      %v374 = vunpack.c.l.b16 %v199
      %v375 = vunpack.c.h.b16 %v199
      %v376 = vunpack.c.l.b16 %v200
      %v377 = vunpack.c.h.b16 %v200
      %v378 = vunpack.c.l.b16 %v201
      %v379 = vunpack.c.h.b16 %v201
      %v380 = vunpack.c.l.b16 %v202
      %v381 = vunpack.c.h.b16 %v202
      %v382 = vunpack.c.l.b16 %v203
      %v383 = vunpack.c.h.b16 %v203
      %v384 = vunpack.c.l.b16 %v204
      %v385 = vunpack.c.h.b16 %v204
      %v386 = vunpack.c.l.b16 %v205
      %v387 = vunpack.c.h.b16 %v205
      %v388 = vunpack.c.l.b16 %v206
      %v389 = vunpack.c.h.b16 %v206
      %v390 = vunpack.c.l.b16 %v207
      %v391 = vunpack.c.h.b16 %v207
      %v392 = vunpack.c.l.b16 %v208
      %v393 = vunpack.c.h.b16 %v208
      %v394 = vunpack.c.l.b16 %v209
      %v395 = vunpack.c.h.b16 %v209
      %v396 = vunpack.c.l.b16 %v210
      %v397 = vunpack.c.h.b16 %v210
      %v398 = vunpack.c.l.b16 %v211
      %v399 = vunpack.c.h.b16 %v211
      %v400 = vunpack.c.l.b16 %v212
      %v401 = vunpack.c.h.b16 %v212
      %v402 = vunpack.c.l.b16 %v213
      %v403 = vunpack.c.h.b16 %v213
      %v404 = vunpack.c.l.b16 %v214
      %v405 = vunpack.c.h.b16 %v214
      %v406 = vunpack.c.l.b16 %v215
      %v407 = vunpack.c.h.b16 %v215
      %v408 = vunpack.c.l.b16 %v216
      %v409 = vunpack.c.h.b16 %v216
      %v410 = vunpack.c.l.b16 %v217
      %v411 = vunpack.c.h.b16 %v217
      %v412 = vunpack.c.l.b16 %v218
      %v413 = vunpack.c.h.b16 %v218
      %v414 = vunpack.c.l.b16 %v219
      %v415 = vunpack.c.h.b16 %v219
      %v416 = vunpack.c.l.b16 %v220
      %v417 = vunpack.c.h.b16 %v220
      %v418 = vunpack.c.l.b16 %v221
      %v419 = vunpack.c.h.b16 %v221
      %v420 = vunpack.c.l.b16 %v222
      %v421 = vunpack.c.h.b16 %v222
      %v422 = vunpack.c.l.b16 %v223
      %v423 = vunpack.c.h.b16 %v223
      %v424 = vunpack.c.l.b16 %v224
      %v425 = vunpack.c.h.b16 %v224
      %v426 = vunpack.c.l.b16 %v225
      %v427 = vunpack.c.h.b16 %v225
      %v428 = vunpack.c.l.b16 %v226
      %v429 = vunpack.c.h.b16 %v226
      %v430 = vunpack.c.l.b16 %v227
      %v431 = vunpack.c.h.b16 %v227
      %v432 = vunpack.c.l.b16 %v228
      %v433 = vunpack.c.h.b16 %v228
      %v434 = vunpack.c.l.b16 %v229
      %v435 = vunpack.c.h.b16 %v229
      %v436 = vunpack.c.l.b16 %v230
      %v437 = vunpack.c.h.b16 %v230
      %v438 = vunpack.c.l.b16 %v231
      %v439 = vunpack.c.h.b16 %v231
      %v440 = vunpack.c.l.b16 %v232
      %v441 = vunpack.c.h.b16 %v232
      %v442 = vunpack.c.l.b16 %v233
      %v443 = vunpack.c.h.b16 %v233
      %v444 = vunpack.c.l.b16 %v234
      %v445 = vunpack.c.h.b16 %v234
      %v446 = vunpack.c.l.b16 %v235
      %v447 = vunpack.c.h.b16 %v235
      %v448 = vunpack.c.l.b16 %v236
      %v449 = vunpack.c.h.b16 %v236
      %v450 = vunpack.c.l.b16 %v237
      %v451 = vunpack.c.h.b16 %v237
      %v452 = vunpack.c.l.b16 %v238
      %v453 = vunpack.c.h.b16 %v238
      %v454 = vunpack.c.l.b16 %v239
      %v455 = vunpack.c.h.b16 %v239
      %v456 = vunpack.c.l.b16 %v240
      %v457 = vunpack.c.h.b16 %v240
      %v458 = vunpack.c.l.b16 %v241
      %v459 = vunpack.c.h.b16 %v241
      %v460 = vpack.c.b16 %v334, %v332
      %v461 = vpack.c.b16 %v335, %v333
      %v462 = vpack.c.b16 %v338, %v336
      %v463 = vpack.c.b16 %v339, %v337
      %v464 = vpack.c.b16 %v342, %v340
      %v465 = vpack.c.b16 %v343, %v341
      %v466 = vpack.c.b16 %v346, %v344
      %v467 = vpack.c.b16 %v347, %v345
      %v468 = vpack.c.b16 %v350, %v348
      %v469 = vpack.c.b16 %v351, %v349
      %v470 = vpack.c.b16 %v354, %v352
      %v471 = vpack.c.b16 %v355, %v353
      %v472 = vpack.c.b16 %v358, %v356
      %v473 = vpack.c.b16 %v359, %v357
      %v474 = vpack.c.b16 %v362, %v360
      %v475 = vpack.c.b16 %v363, %v361
      %v476 = vpack.c.b16 %v366, %v364
      %v477 = vpack.c.b16 %v367, %v365
      %v478 = vpack.c.b16 %v370, %v368
      %v479 = vpack.c.b16 %v371, %v369
      %v480 = vpack.c.b16 %v374, %v372
      %v481 = vpack.c.b16 %v375, %v373
      %v482 = vpack.c.b16 %v378, %v376
      %v483 = vpack.c.b16 %v379, %v377
      %v484 = vpack.c.b16 %v382, %v380
      %v485 = vpack.c.b16 %v383, %v381
      %v486 = vpack.c.b16 %v386, %v384
      %v487 = vpack.c.b16 %v387, %v385
      %v488 = vpack.c.b16 %v390, %v388
      %v489 = vpack.c.b16 %v391, %v389
      %v490 = vpack.c.b16 %v394, %v392
      %v491 = vpack.c.b16 %v395, %v393
      %v492 = vpack.c.b16 %v398, %v396
      %v493 = vpack.c.b16 %v399, %v397
      %v494 = vpack.c.b16 %v402, %v400
      %v495 = vpack.c.b16 %v403, %v401
      %v496 = vpack.c.b16 %v406, %v404
      %v497 = vpack.c.b16 %v407, %v405
      %v498 = vpack.c.b16 %v410, %v408
      %v499 = vpack.c.b16 %v411, %v409
      %v500 = vpack.c.b16 %v414, %v412
      %v501 = vpack.c.b16 %v415, %v413
      %v502 = vpack.c.b16 %v418, %v416
      %v503 = vpack.c.b16 %v419, %v417
      %v504 = vpack.c.b16 %v422, %v420
      %v505 = vpack.c.b16 %v423, %v421
      %v506 = vpack.c.b16 %v426, %v424
      %v507 = vpack.c.b16 %v427, %v425
      %v508 = vpack.c.b16 %v430, %v428
      %v509 = vpack.c.b16 %v431, %v429
      %v510 = vpack.c.b16 %v434, %v432
      %v511 = vpack.c.b16 %v435, %v433
      %v512 = vpack.c.b16 %v438, %v436
      %v513 = vpack.c.b16 %v439, %v437
      %v514 = vpack.c.b16 %v442, %v440
      %v515 = vpack.c.b16 %v443, %v441
      %v516 = vpack.c.b16 %v446, %v444
      %v517 = vpack.c.b16 %v447, %v445
      %v518 = vpack.c.b16 %v450, %v448
      %v519 = vpack.c.b16 %v451, %v449
      %v520 = vpack.c.b16 %v454, %v452
      %v521 = vpack.c.b16 %v455, %v453
      %v522 = vpack.c.b16 %v458, %v456
      %v523 = vpack.c.b16 %v459, %v457
      %v575 = vunpack.c.l.b16 %v242
      %v576 = vunpack.c.l.b16 %v243
      %v577 = vunpack.c.l.b16 %v244
      %v578 = vunpack.c.l.b16 %v245
      %v579 = vunpack.c.l.b16 %v246
      %v580 = vunpack.c.l.b16 %v247
      %v581 = vunpack.c.l.b16 %v248
      %v582 = vunpack.c.l.b16 %v249
      %v583 = vunpack.c.l.b16 %v250
      %v584 = vunpack.c.l.b16 %v251
      %v585 = vunpack.c.l.b16 %v252
      %v586 = vunpack.c.l.b16 %v253
      %v587 = vunpack.c.l.b16 %v254
      %v588 = vunpack.c.l.b16 %v255
      %v589 = vunpack.c.l.b16 %v256
      %v590 = vunpack.c.l.b16 %v257
      %v591 = vunpack.c.l.b16 %v258
      %v592 = vunpack.c.l.b16 %v259
      %v593 = vunpack.c.l.b16 %v260
      %v594 = vpack.c.b16 %v576, %v575
      %v595 = vpack.c.b16 %v578, %v577
      %v596 = vpack.c.b16 %v580, %v579
      %v597 = vpack.c.b16 %v582, %v581
      %v598 = vpack.c.b16 %v584, %v583
      %v599 = vpack.c.b16 %v586, %v585
      %v600 = vpack.c.b16 %v588, %v587
      %v601 = vpack.c.b16 %v590, %v589
      %v602 = vpack.c.b16 %v592, %v591
      %v603 = vpack.c.b16 %v593, %v593
      %vm613 = vcmask 154624
      %v615 = vsel %vm613, %v461, 0
      %v618 = vsel %vm613, %v463, 0
      %v621 = vsel %vm613, %v465, 0
      %v624 = vsel %vm613, %v467, 0
      %v627 = vsel %vm613, %v469, 0
      %v630 = vsel %vm613, %v471, 0
      %v633 = vsel %vm613, %v473, 0
      %v636 = vsel %vm613, %v475, 0
      %v639 = vsel %vm613, %v477, 0
      %v642 = vsel %vm613, %v479, 0
      %v645 = vsel %vm613, %v481, 0
      %v648 = vsel %vm613, %v483, 0
      %v651 = vsel %vm613, %v485, 0
      %v654 = vsel %vm613, %v487, 0
      %v657 = vsel %vm613, %v489, 0
      %v660 = vsel %vm613, %v491, 0
      %v663 = vsel %vm613, %v493, 0
      %v666 = vsel %vm613, %v495, 0
      %v669 = vsel %vm613, %v497, 0
      %v672 = vsel %vm613, %v499, 0
      %v675 = vsel %vm613, %v501, 0
      %v678 = vsel %vm613, %v503, 0
      %v681 = vsel %vm613, %v505, 0
      %v684 = vsel %vm613, %v507, 0
      %v687 = vsel %vm613, %v509, 0
      %v690 = vsel %vm613, %v511, 0
      %v693 = vsel %vm613, %v513, 0
      %v696 = vsel %vm613, %v515, 0
      %v699 = vsel %vm613, %v517, 0
      %v702 = vsel %vm613, %v519, 0
      %v705 = vsel %vm613, %v521, 0
      %v708 = vsel %vm613, %v523, 0
      %vm710 = vcmask 1040384
      %vm711 = vcmask 1041408
      %v712 = vsel %vm710, 4294967295, 65535
      %v713 = vsel %vm711, %v712, 0
      %v715 = vand.u32 %v603, %v713
      %717 = vmatprep.subr.bf16.mxu0 0
      %718 = vmatpush1.bf16.msra.mxu0 %v601
      %719 = vmatprep.subr.bf16.mxu0 0
      %720 = vmatpush1.bf16.msra.mxu0 %v600
      %721 = vmatprep.subr.bf16.mxu0 0
      %722 = vmatpush1.bf16.msra.mxu0 %v599
      %723 = vmatprep.subr.bf16.mxu0 0
      %724 = vmatpush1.bf16.msra.mxu0 %v598
      %725 = vmatprep.subr.bf16.mxu0 0
      %726 = vmatpush1.bf16.msra.mxu0 %v597
      %727 = vmatprep.subr.bf16.mxu0 0
      %728 = vmatpush1.bf16.msra.mxu0 %v596
      %729 = vmatprep.subr.bf16.mxu0 0
      %730 = vmatpush1.bf16.msra.mxu0 %v595
      %731 = vmatprep.subr.bf16.mxu0 0
      %732 = vmatpush1.bf16.msra.mxu0 %v594
      %733 = vmatprep.subr.bf16.mxu0 0
      %734 = vmatpush2.bf16.msra.mxu0 0
      %735 = vmatprep.subr.bf16.mxu0 0
      %736 = vmatpush2.bf16.msra.mxu0 0
      %737 = vmatprep.subr.bf16.mxu0 0
      %738 = vmatpush2.bf16.msra.mxu0 0
      %739 = vmatprep.subr.bf16.mxu0 0
      %740 = vmatpush2.bf16.msra.mxu0 0
      %741 = vmatprep.subr.bf16.mxu0 0
      %742 = vmatpush2.bf16.msra.mxu0 0
      %743 = vmatprep.subr.bf16.mxu0 0
      %744 = vmatpush2.bf16.msra.mxu0 0
      %745 = vmatprep.subr.bf16.mxu0 0
      %746 = vmatpush2.bf16.msra.mxu0 %v715
      %747 = vmatprep.subr.bf16.mxu0 0
      %748 = vmatpush2.bf16.msra.mxu0 %v602
      %749 = vmatprep.mubr.bf16.mxu0 %v615
      %750 = vmatmul.mubr.bf16.gmra.mxu0 %v460
      %v751 = vpop.f32.mrf.mxu0
      %v752 = vadd.f32 %v266, %v751
      %v753 = vpop.f32.mrf.mxu0
      %v754 = vpop.f32.mrf.mxu0
      %v755 = vadd.f32 %v266, %v754
      %v756 = vpop.f32.mrf.mxu0
      %757 = vmatprep.mubr.bf16.mxu0 %v618
      %758 = vmatmul.mubr.bf16.gmra.mxu0 %v462
      %v759 = vpop.f32.mrf.mxu0
      %v760 = vadd.f32 %v266, %v759
      %v761 = vpop.f32.mrf.mxu0
      %v762 = vpop.f32.mrf.mxu0
      %v763 = vadd.f32 %v266, %v762
      %v764 = vpop.f32.mrf.mxu0
      %765 = vmatprep.mubr.bf16.mxu0 %v621
      %766 = vmatmul.mubr.bf16.gmra.mxu0 %v464
      %v767 = vpop.f32.mrf.mxu0
      %v768 = vadd.f32 %v266, %v767
      %v769 = vpop.f32.mrf.mxu0
      %v770 = vpop.f32.mrf.mxu0
      %v771 = vadd.f32 %v266, %v770
      %v772 = vpop.f32.mrf.mxu0
      %773 = vmatprep.mubr.bf16.mxu0 %v624
      %774 = vmatmul.mubr.bf16.gmra.mxu0 %v466
      %v775 = vpop.f32.mrf.mxu0
      %v776 = vadd.f32 %v266, %v775
      %v777 = vpop.f32.mrf.mxu0
      %v778 = vpop.f32.mrf.mxu0
      %v779 = vadd.f32 %v266, %v778
      %v780 = vpop.f32.mrf.mxu0
      %781 = vmatprep.mubr.bf16.mxu0 %v627
      %782 = vmatmul.mubr.bf16.gmra.mxu0 %v468
      %v783 = vpop.f32.mrf.mxu0
      %v784 = vadd.f32 %v266, %v783
      %v785 = vpop.f32.mrf.mxu0
      %v786 = vpop.f32.mrf.mxu0
      %v787 = vadd.f32 %v266, %v786
      %v788 = vpop.f32.mrf.mxu0
      %789 = vmatprep.mubr.bf16.mxu0 %v630
      %790 = vmatmul.mubr.bf16.gmra.mxu0 %v470
      %v791 = vpop.f32.mrf.mxu0
      %v792 = vadd.f32 %v266, %v791
      %v793 = vpop.f32.mrf.mxu0
      %v794 = vpop.f32.mrf.mxu0
      %v795 = vadd.f32 %v266, %v794
      %v796 = vpop.f32.mrf.mxu0
      %797 = vmatprep.mubr.bf16.mxu0 %v633
      %798 = vmatmul.mubr.bf16.gmra.mxu0 %v472
      %v799 = vpop.f32.mrf.mxu0
      %v800 = vadd.f32 %v266, %v799
      %v801 = vpop.f32.mrf.mxu0
      %v802 = vpop.f32.mrf.mxu0
      %v803 = vadd.f32 %v266, %v802
      %v804 = vpop.f32.mrf.mxu0
      %805 = vmatprep.mubr.bf16.mxu0 %v636
      %806 = vmatmul.mubr.bf16.gmra.mxu0 %v474
      %v807 = vpop.f32.mrf.mxu0
      %v808 = vadd.f32 %v266, %v807
      %v809 = vpop.f32.mrf.mxu0
      %v810 = vpop.f32.mrf.mxu0
      %v811 = vadd.f32 %v266, %v810
      %v812 = vpop.f32.mrf.mxu0
      %813 = vmatprep.mubr.bf16.mxu0 %v639
      %814 = vmatmul.mubr.bf16.gmra.mxu0 %v476
      %v815 = vpop.f32.mrf.mxu0
      %v816 = vadd.f32 %v266, %v815
      %v817 = vpop.f32.mrf.mxu0
      %v818 = vpop.f32.mrf.mxu0
      %v819 = vadd.f32 %v266, %v818
      %v820 = vpop.f32.mrf.mxu0
      %821 = vmatprep.mubr.bf16.mxu0 %v642
      %822 = vmatmul.mubr.bf16.gmra.mxu0 %v478
      %v823 = vpop.f32.mrf.mxu0
      %v824 = vadd.f32 %v266, %v823
      %v825 = vpop.f32.mrf.mxu0
      %v826 = vpop.f32.mrf.mxu0
      %v827 = vadd.f32 %v266, %v826
      %v828 = vpop.f32.mrf.mxu0
      %829 = vmatprep.mubr.bf16.mxu0 %v645
      %830 = vmatmul.mubr.bf16.gmra.mxu0 %v480
      %v831 = vpop.f32.mrf.mxu0
      %v832 = vadd.f32 %v266, %v831
      %v833 = vpop.f32.mrf.mxu0
      %v834 = vpop.f32.mrf.mxu0
      %v835 = vadd.f32 %v266, %v834
      %v836 = vpop.f32.mrf.mxu0
      %837 = vmatprep.mubr.bf16.mxu0 %v648
      %838 = vmatmul.mubr.bf16.gmra.mxu0 %v482
      %v839 = vpop.f32.mrf.mxu0
      %v840 = vadd.f32 %v266, %v839
      %v841 = vpop.f32.mrf.mxu0
      %v842 = vpop.f32.mrf.mxu0
      %v843 = vadd.f32 %v266, %v842
      %v844 = vpop.f32.mrf.mxu0
      %845 = vmatprep.mubr.bf16.mxu0 %v651
      %846 = vmatmul.mubr.bf16.gmra.mxu0 %v484
      %v847 = vpop.f32.mrf.mxu0
      %v848 = vadd.f32 %v266, %v847
      %v849 = vpop.f32.mrf.mxu0
      %v850 = vpop.f32.mrf.mxu0
      %v851 = vadd.f32 %v266, %v850
      %v852 = vpop.f32.mrf.mxu0
      %853 = vmatprep.mubr.bf16.mxu0 %v654
      %854 = vmatmul.mubr.bf16.gmra.mxu0 %v486
      %v855 = vpop.f32.mrf.mxu0
      %v856 = vadd.f32 %v266, %v855
      %v857 = vpop.f32.mrf.mxu0
      %v858 = vpop.f32.mrf.mxu0
      %v859 = vadd.f32 %v266, %v858
      %v860 = vpop.f32.mrf.mxu0
      %861 = vmatprep.mubr.bf16.mxu0 %v657
      %862 = vmatmul.mubr.bf16.gmra.mxu0 %v488
      %v863 = vpop.f32.mrf.mxu0
      %v864 = vadd.f32 %v266, %v863
      %v865 = vpop.f32.mrf.mxu0
      %v866 = vpop.f32.mrf.mxu0
      %v867 = vadd.f32 %v266, %v866
      %v868 = vpop.f32.mrf.mxu0
      %869 = vmatprep.mubr.bf16.mxu0 %v660
      %870 = vmatmul.mubr.bf16.gmra.mxu0 %v490
      %v871 = vpop.f32.mrf.mxu0
      %v872 = vadd.f32 %v266, %v871
      %v873 = vpop.f32.mrf.mxu0
      %v874 = vpop.f32.mrf.mxu0
      %v875 = vadd.f32 %v266, %v874
      %v876 = vpop.f32.mrf.mxu0
      %877 = vmatprep.mubr.bf16.mxu0 %v663
      %878 = vmatmul.mubr.bf16.gmra.mxu0 %v492
      %v879 = vpop.f32.mrf.mxu0
      %v880 = vadd.f32 %v266, %v879
      %v881 = vpop.f32.mrf.mxu0
      %v882 = vpop.f32.mrf.mxu0
      %v883 = vadd.f32 %v266, %v882
      %v884 = vpop.f32.mrf.mxu0
      %885 = vmatprep.mubr.bf16.mxu0 %v666
      %886 = vmatmul.mubr.bf16.gmra.mxu0 %v494
      %v887 = vpop.f32.mrf.mxu0
      %v888 = vadd.f32 %v266, %v887
      %v889 = vpop.f32.mrf.mxu0
      %v890 = vpop.f32.mrf.mxu0
      %v891 = vadd.f32 %v266, %v890
      %v892 = vpop.f32.mrf.mxu0
      %893 = vmatprep.mubr.bf16.mxu0 %v669
      %894 = vmatmul.mubr.bf16.gmra.mxu0 %v496
      %v895 = vpop.f32.mrf.mxu0
      %v896 = vadd.f32 %v266, %v895
      %v897 = vpop.f32.mrf.mxu0
      %v898 = vpop.f32.mrf.mxu0
      %v899 = vadd.f32 %v266, %v898
      %v900 = vpop.f32.mrf.mxu0
      %901 = vmatprep.mubr.bf16.mxu0 %v672
      %902 = vmatmul.mubr.bf16.gmra.mxu0 %v498
      %v903 = vpop.f32.mrf.mxu0
      %v904 = vadd.f32 %v266, %v903
      %v905 = vpop.f32.mrf.mxu0
      %v906 = vpop.f32.mrf.mxu0
      %v907 = vadd.f32 %v266, %v906
      %v908 = vpop.f32.mrf.mxu0
      %909 = vmatprep.mubr.bf16.mxu0 %v675
      %910 = vmatmul.mubr.bf16.gmra.mxu0 %v500
      %v911 = vpop.f32.mrf.mxu0
      %v912 = vadd.f32 %v266, %v911
      %v913 = vpop.f32.mrf.mxu0
      %v914 = vpop.f32.mrf.mxu0
      %v915 = vadd.f32 %v266, %v914
      %v916 = vpop.f32.mrf.mxu0
      %917 = vmatprep.mubr.bf16.mxu0 %v678
      %918 = vmatmul.mubr.bf16.gmra.mxu0 %v502
      %v919 = vpop.f32.mrf.mxu0
      %v920 = vadd.f32 %v266, %v919
      %v921 = vpop.f32.mrf.mxu0
      %v922 = vpop.f32.mrf.mxu0
      %v923 = vadd.f32 %v266, %v922
      %v924 = vpop.f32.mrf.mxu0
      %925 = vmatprep.mubr.bf16.mxu0 %v681
      %926 = vmatmul.mubr.bf16.gmra.mxu0 %v504
      %v927 = vpop.f32.mrf.mxu0
      %v928 = vadd.f32 %v266, %v927
      %v929 = vpop.f32.mrf.mxu0
      %v930 = vpop.f32.mrf.mxu0
      %v931 = vadd.f32 %v266, %v930
      %v932 = vpop.f32.mrf.mxu0
      %933 = vmatprep.mubr.bf16.mxu0 %v684
      %934 = vmatmul.mubr.bf16.gmra.mxu0 %v506
      %v935 = vpop.f32.mrf.mxu0
      %v936 = vadd.f32 %v266, %v935
      %v937 = vpop.f32.mrf.mxu0
      %v938 = vpop.f32.mrf.mxu0
      %v939 = vadd.f32 %v266, %v938
      %v940 = vpop.f32.mrf.mxu0
      %941 = vmatprep.mubr.bf16.mxu0 %v687
      %942 = vmatmul.mubr.bf16.gmra.mxu0 %v508
      %v943 = vpop.f32.mrf.mxu0
      %v944 = vadd.f32 %v266, %v943
      %v945 = vpop.f32.mrf.mxu0
      %v946 = vpop.f32.mrf.mxu0
      %v947 = vadd.f32 %v266, %v946
      %v948 = vpop.f32.mrf.mxu0
      %949 = vmatprep.mubr.bf16.mxu0 %v690
      %950 = vmatmul.mubr.bf16.gmra.mxu0 %v510
      %v951 = vpop.f32.mrf.mxu0
      %v952 = vadd.f32 %v266, %v951
      %v953 = vpop.f32.mrf.mxu0
      %v954 = vpop.f32.mrf.mxu0
      %v955 = vadd.f32 %v266, %v954
      %v956 = vpop.f32.mrf.mxu0
      %957 = vmatprep.mubr.bf16.mxu0 %v693
      %958 = vmatmul.mubr.bf16.gmra.mxu0 %v512
      %v959 = vpop.f32.mrf.mxu0
      %v960 = vadd.f32 %v266, %v959
      %v961 = vpop.f32.mrf.mxu0
      %v962 = vpop.f32.mrf.mxu0
      %v963 = vadd.f32 %v266, %v962
      %v964 = vpop.f32.mrf.mxu0
      %965 = vmatprep.mubr.bf16.mxu0 %v696
      %966 = vmatmul.mubr.bf16.gmra.mxu0 %v514
      %v967 = vpop.f32.mrf.mxu0
      %v968 = vadd.f32 %v266, %v967
      %v969 = vpop.f32.mrf.mxu0
      %v970 = vpop.f32.mrf.mxu0
      %v971 = vadd.f32 %v266, %v970
      %v972 = vpop.f32.mrf.mxu0
      %973 = vmatprep.mubr.bf16.mxu0 %v699
      %974 = vmatmul.mubr.bf16.gmra.mxu0 %v516
      %v975 = vpop.f32.mrf.mxu0
      %v976 = vadd.f32 %v266, %v975
      %v977 = vpop.f32.mrf.mxu0
      %v978 = vpop.f32.mrf.mxu0
      %v979 = vadd.f32 %v266, %v978
      %v980 = vpop.f32.mrf.mxu0
      %981 = vmatprep.mubr.bf16.mxu0 %v702
      %982 = vmatmul.mubr.bf16.gmra.mxu0 %v518
      %v983 = vpop.f32.mrf.mxu0
      %v984 = vadd.f32 %v266, %v983
      %v985 = vpop.f32.mrf.mxu0
      %v986 = vpop.f32.mrf.mxu0
      %v987 = vadd.f32 %v266, %v986
      %v988 = vpop.f32.mrf.mxu0
      %989 = vmatprep.mubr.bf16.mxu0 %v705
      %990 = vmatmul.mubr.bf16.gmra.mxu0 %v520
      %v991 = vpop.f32.mrf.mxu0
      %v992 = vadd.f32 %v266, %v991
      %v993 = vpop.f32.mrf.mxu0
      %v994 = vpop.f32.mrf.mxu0
      %v995 = vadd.f32 %v266, %v994
      %v996 = vpop.f32.mrf.mxu0
      %997 = vmatprep.mubr.bf16.mxu0 %v708
      %998 = vmatmul.mubr.bf16.gmra.mxu0 %v522
      %v999 = vpop.f32.mrf.mxu0
      %v1000 = vadd.f32 %v266, %v999
      %v1001 = vpop.f32.mrf.mxu0
      %v1002 = vpop.f32.mrf.mxu0
      %v1003 = vadd.f32 %v266, %v1002
      %v1004 = vpop.f32.mrf.mxu0
      %1005 = vdwg.mxu0
      %v1006 = vmax.f32 %v752, 0.0
      %v1007 = vmax.f32 %v755, 0.0
      %v1008 = vmax.f32 %v760, 0.0
      %v1009 = vmax.f32 %v763, 0.0
      %v1010 = vmax.f32 %v768, 0.0
      %v1011 = vmax.f32 %v771, 0.0
      %v1012 = vmax.f32 %v776, 0.0
      %v1013 = vmax.f32 %v779, 0.0
      %v1014 = vmax.f32 %v784, 0.0
      %v1015 = vmax.f32 %v787, 0.0
      %v1016 = vmax.f32 %v792, 0.0
      %v1017 = vmax.f32 %v795, 0.0
      %v1018 = vmax.f32 %v800, 0.0
      %v1019 = vmax.f32 %v803, 0.0
      %v1020 = vmax.f32 %v808, 0.0
      %v1021 = vmax.f32 %v811, 0.0
      %v1022 = vmax.f32 %v816, 0.0
      %v1023 = vmax.f32 %v819, 0.0
      %v1024 = vmax.f32 %v824, 0.0
      %v1025 = vmax.f32 %v827, 0.0
      %v1026 = vmax.f32 %v832, 0.0
      %v1027 = vmax.f32 %v835, 0.0
      %v1028 = vmax.f32 %v840, 0.0
      %v1029 = vmax.f32 %v843, 0.0
      %v1030 = vmax.f32 %v848, 0.0
      %v1031 = vmax.f32 %v851, 0.0
      %v1032 = vmax.f32 %v856, 0.0
      %v1033 = vmax.f32 %v859, 0.0
      %v1034 = vmax.f32 %v864, 0.0
      %v1035 = vmax.f32 %v867, 0.0
      %v1036 = vmax.f32 %v872, 0.0
      %v1037 = vmax.f32 %v875, 0.0
      %v1038 = vmax.f32 %v880, 0.0
      %v1039 = vmax.f32 %v883, 0.0
      %v1040 = vmax.f32 %v888, 0.0
      %v1041 = vmax.f32 %v891, 0.0
      %v1042 = vmax.f32 %v896, 0.0
      %v1043 = vmax.f32 %v899, 0.0
      %v1044 = vmax.f32 %v904, 0.0
      %v1045 = vmax.f32 %v907, 0.0
      %v1046 = vmax.f32 %v912, 0.0
      %v1047 = vmax.f32 %v915, 0.0
      %v1048 = vmax.f32 %v920, 0.0
      %v1049 = vmax.f32 %v923, 0.0
      %v1050 = vmax.f32 %v928, 0.0
      %v1051 = vmax.f32 %v931, 0.0
      %v1052 = vmax.f32 %v936, 0.0
      %v1053 = vmax.f32 %v939, 0.0
      %v1054 = vmax.f32 %v944, 0.0
      %v1055 = vmax.f32 %v947, 0.0
      %v1056 = vmax.f32 %v952, 0.0
      %v1057 = vmax.f32 %v955, 0.0
      %v1058 = vmax.f32 %v960, 0.0
      %v1059 = vmax.f32 %v963, 0.0
      %v1060 = vmax.f32 %v968, 0.0
      %v1061 = vmax.f32 %v971, 0.0
      %v1062 = vmax.f32 %v976, 0.0
      %v1063 = vmax.f32 %v979, 0.0
      %v1064 = vmax.f32 %v984, 0.0
      %v1065 = vmax.f32 %v987, 0.0
      %v1066 = vmax.f32 %v992, 0.0
      %v1067 = vmax.f32 %v995, 0.0
      %v1068 = vmax.f32 %v1000, 0.0
      %v1069 = vmax.f32 %v1003, 0.0
      %v1070 = vpack.c.bf16 %v1007, %v1006
      %v1071 = vpack.c.bf16 %v1009, %v1008
      %v1072 = vpack.c.bf16 %v1011, %v1010
      %v1073 = vpack.c.bf16 %v1013, %v1012
      %v1074 = vpack.c.bf16 %v1015, %v1014
      %v1075 = vpack.c.bf16 %v1017, %v1016
      %v1076 = vpack.c.bf16 %v1019, %v1018
      %v1077 = vpack.c.bf16 %v1021, %v1020
      %v1078 = vpack.c.bf16 %v1023, %v1022
      %v1079 = vpack.c.bf16 %v1025, %v1024
      %v1080 = vpack.c.bf16 %v1027, %v1026
      %v1081 = vpack.c.bf16 %v1029, %v1028
      %v1082 = vpack.c.bf16 %v1031, %v1030
      %v1083 = vpack.c.bf16 %v1033, %v1032
      %v1084 = vpack.c.bf16 %v1035, %v1034
      %v1085 = vpack.c.bf16 %v1037, %v1036
      %v1086 = vpack.c.bf16 %v1039, %v1038
      %v1087 = vpack.c.bf16 %v1041, %v1040
      %v1088 = vpack.c.bf16 %v1043, %v1042
      %v1089 = vpack.c.bf16 %v1045, %v1044
      %v1090 = vpack.c.bf16 %v1047, %v1046
      %v1091 = vpack.c.bf16 %v1049, %v1048
      %v1092 = vpack.c.bf16 %v1051, %v1050
      %v1093 = vpack.c.bf16 %v1053, %v1052
      %v1094 = vpack.c.bf16 %v1055, %v1054
      %v1095 = vpack.c.bf16 %v1057, %v1056
      %v1096 = vpack.c.bf16 %v1059, %v1058
      %v1097 = vpack.c.bf16 %v1061, %v1060
      %v1098 = vpack.c.bf16 %v1063, %v1062
      %v1099 = vpack.c.bf16 %v1065, %v1064
      %v1100 = vpack.c.bf16 %v1067, %v1066
      %v1101 = vpack.c.bf16 %v1069, %v1068
      %v1134 = vunpack.c.l.b16 %v1070
      %v1135 = vunpack.c.h.b16 %v1070
      %v1136 = vunpack.c.l.b16 %v1071
      %v1137 = vunpack.c.h.b16 %v1071
      %v1138 = vunpack.c.l.b16 %v1072
      %v1139 = vunpack.c.h.b16 %v1072
      %v1140 = vunpack.c.l.b16 %v1073
      %v1141 = vunpack.c.h.b16 %v1073
      %v1142 = vunpack.c.l.b16 %v1074
      %v1143 = vunpack.c.h.b16 %v1074
      %v1144 = vunpack.c.l.b16 %v1075
      %v1145 = vunpack.c.h.b16 %v1075
      %v1146 = vunpack.c.l.b16 %v1076
      %v1147 = vunpack.c.h.b16 %v1076
      %v1148 = vunpack.c.l.b16 %v1077
      %v1149 = vunpack.c.h.b16 %v1077
      %v1150 = vunpack.c.l.b16 %v1078
      %v1151 = vunpack.c.h.b16 %v1078
      %v1152 = vunpack.c.l.b16 %v1079
      %v1153 = vunpack.c.h.b16 %v1079
      %v1154 = vunpack.c.l.b16 %v1080
      %v1155 = vunpack.c.h.b16 %v1080
      %v1156 = vunpack.c.l.b16 %v1081
      %v1157 = vunpack.c.h.b16 %v1081
      %v1158 = vunpack.c.l.b16 %v1082
      %v1159 = vunpack.c.h.b16 %v1082
      %v1160 = vunpack.c.l.b16 %v1083
      %v1161 = vunpack.c.h.b16 %v1083
      %v1162 = vunpack.c.l.b16 %v1084
      %v1163 = vunpack.c.h.b16 %v1084
      %v1164 = vunpack.c.l.b16 %v1085
      %v1165 = vunpack.c.h.b16 %v1085
      %v1166 = vunpack.c.l.b16 %v1086
      %v1167 = vunpack.c.h.b16 %v1086
      %v1168 = vunpack.c.l.b16 %v1087
      %v1169 = vunpack.c.h.b16 %v1087
      %v1170 = vunpack.c.l.b16 %v1088
      %v1171 = vunpack.c.h.b16 %v1088
      %v1172 = vunpack.c.l.b16 %v1089
      %v1173 = vunpack.c.h.b16 %v1089
      %v1174 = vunpack.c.l.b16 %v1090
      %v1175 = vunpack.c.h.b16 %v1090
      %v1176 = vunpack.c.l.b16 %v1091
      %v1177 = vunpack.c.h.b16 %v1091
      %v1178 = vunpack.c.l.b16 %v1092
      %v1179 = vunpack.c.h.b16 %v1092
      %v1180 = vunpack.c.l.b16 %v1093
      %v1181 = vunpack.c.h.b16 %v1093
      %v1182 = vunpack.c.l.b16 %v1094
      %v1183 = vunpack.c.h.b16 %v1094
      %v1184 = vunpack.c.l.b16 %v1095
      %v1185 = vunpack.c.h.b16 %v1095
      %v1186 = vunpack.c.l.b16 %v1096
      %v1187 = vunpack.c.h.b16 %v1096
      %v1188 = vunpack.c.l.b16 %v1097
      %v1189 = vunpack.c.h.b16 %v1097
      %v1190 = vunpack.c.l.b16 %v1098
      %v1191 = vunpack.c.h.b16 %v1098
      %v1192 = vunpack.c.l.b16 %v1099
      %v1193 = vunpack.c.h.b16 %v1099
      %v1194 = vunpack.c.l.b16 %v1100
      %v1195 = vunpack.c.h.b16 %v1100
      %v1196 = vunpack.c.l.b16 %v1101
      %v1197 = vunpack.c.h.b16 %v1101
      %v1198 = vpack.c.b16 %v1134, %v1134
      %v1199 = vpack.c.b16 %v1135, %v1135
      %v1200 = vpack.c.b16 %v1136, %v1136
      %v1201 = vpack.c.b16 %v1137, %v1137
      %v1202 = vpack.c.b16 %v1138, %v1138
      %v1203 = vpack.c.b16 %v1139, %v1139
      %v1204 = vpack.c.b16 %v1140, %v1140
      %v1205 = vpack.c.b16 %v1141, %v1141
      %v1206 = vpack.c.b16 %v1142, %v1142
      %v1207 = vpack.c.b16 %v1143, %v1143
      %v1208 = vpack.c.b16 %v1144, %v1144
      %v1209 = vpack.c.b16 %v1145, %v1145
      %v1210 = vpack.c.b16 %v1146, %v1146
      %v1211 = vpack.c.b16 %v1147, %v1147
      %v1212 = vpack.c.b16 %v1148, %v1148
      %v1213 = vpack.c.b16 %v1149, %v1149
      %v1214 = vpack.c.b16 %v1150, %v1150
      %v1215 = vpack.c.b16 %v1151, %v1151
      %v1216 = vpack.c.b16 %v1152, %v1152
      %v1217 = vpack.c.b16 %v1153, %v1153
      %v1218 = vpack.c.b16 %v1154, %v1154
      %v1219 = vpack.c.b16 %v1155, %v1155
      %v1220 = vpack.c.b16 %v1156, %v1156
      %v1221 = vpack.c.b16 %v1157, %v1157
      %v1222 = vpack.c.b16 %v1158, %v1158
      %v1223 = vpack.c.b16 %v1159, %v1159
      %v1224 = vpack.c.b16 %v1160, %v1160
      %v1225 = vpack.c.b16 %v1161, %v1161
      %v1226 = vpack.c.b16 %v1162, %v1162
      %v1227 = vpack.c.b16 %v1163, %v1163
      %v1228 = vpack.c.b16 %v1164, %v1164
      %v1229 = vpack.c.b16 %v1165, %v1165
      %v1230 = vpack.c.b16 %v1166, %v1166
      %v1231 = vpack.c.b16 %v1167, %v1167
      %v1232 = vpack.c.b16 %v1168, %v1168
      %v1233 = vpack.c.b16 %v1169, %v1169
      %v1234 = vpack.c.b16 %v1170, %v1170
      %v1235 = vpack.c.b16 %v1171, %v1171
      %v1236 = vpack.c.b16 %v1172, %v1172
      %v1237 = vpack.c.b16 %v1173, %v1173
      %v1238 = vpack.c.b16 %v1174, %v1174
      %v1239 = vpack.c.b16 %v1175, %v1175
      %v1240 = vpack.c.b16 %v1176, %v1176
      %v1241 = vpack.c.b16 %v1177, %v1177
      %v1242 = vpack.c.b16 %v1178, %v1178
      %v1243 = vpack.c.b16 %v1179, %v1179
      %v1244 = vpack.c.b16 %v1180, %v1180
      %v1245 = vpack.c.b16 %v1181, %v1181
      %v1246 = vpack.c.b16 %v1182, %v1182
      %v1247 = vpack.c.b16 %v1183, %v1183
      %v1248 = vpack.c.b16 %v1184, %v1184
      %v1249 = vpack.c.b16 %v1185, %v1185
      %v1250 = vpack.c.b16 %v1186, %v1186
      %v1251 = vpack.c.b16 %v1187, %v1187
      %v1252 = vpack.c.b16 %v1188, %v1188
      %v1253 = vpack.c.b16 %v1189, %v1189
      %v1254 = vpack.c.b16 %v1190, %v1190
      %v1255 = vpack.c.b16 %v1191, %v1191
      %v1256 = vpack.c.b16 %v1192, %v1192
      %v1257 = vpack.c.b16 %v1193, %v1193
      %v1258 = vpack.c.b16 %v1194, %v1194
      %v1259 = vpack.c.b16 %v1195, %v1195
      %v1260 = vpack.c.b16 %v1196, %v1196
      %v1261 = vpack.c.b16 %v1197, %v1197
      %vm1326 = vcmask 60416
      %1327 = vst.msk [vmem:[%s175] sm:$0xf] %vm1326, %v1198
      %1328 = vst.msk [vmem:[%s175 + $0x4] sm:$0xf] %vm1326, %v1199
      %1329 = vst.msk [vmem:[%s175 + $0x8] sm:$0xf] %vm1326, %v1200
      %1330 = vst.msk [vmem:[%s175 + $0xc] sm:$0xf] %vm1326, %v1201
      %1331 = vst.msk [vmem:[%s175 + $0x10] sm:$0xf] %vm1326, %v1202
      %1332 = vst.msk [vmem:[%s175 + $0x14] sm:$0xf] %vm1326, %v1203
      %1333 = vst.msk [vmem:[%s175 + $0x18] sm:$0xf] %vm1326, %v1204
      %1334 = vst.msk [vmem:[%s175 + $0x1c] sm:$0xf] %vm1326, %v1205
      %1335 = vst.msk [vmem:[%s175 + $0x20] sm:$0xf] %vm1326, %v1206
      %1336 = vst.msk [vmem:[%s175 + $0x24] sm:$0xf] %vm1326, %v1207
      %1337 = vst.msk [vmem:[%s175 + $0x28] sm:$0xf] %vm1326, %v1208
      %1338 = vst.msk [vmem:[%s175 + $0x2c] sm:$0xf] %vm1326, %v1209
      %1339 = vst.msk [vmem:[%s175 + $0x30] sm:$0xf] %vm1326, %v1210
      %1340 = vst.msk [vmem:[%s175 + $0x34] sm:$0xf] %vm1326, %v1211
      %1341 = vst.msk [vmem:[%s175 + $0x38] sm:$0xf] %vm1326, %v1212
      %1342 = vst.msk [vmem:[%s175 + $0x3c] sm:$0xf] %vm1326, %v1213
      %1343 = vst.msk [vmem:[%s175 + $0x40] sm:$0xf] %vm1326, %v1214
      %1344 = vst.msk [vmem:[%s175 + $0x44] sm:$0xf] %vm1326, %v1215
      %1345 = vst.msk [vmem:[%s175 + $0x48] sm:$0xf] %vm1326, %v1216
      %1346 = vst.msk [vmem:[%s175 + $0x4c] sm:$0xf] %vm1326, %v1217
      %1347 = vst.msk [vmem:[%s175 + $0x50] sm:$0xf] %vm1326, %v1218
      %1348 = vst.msk [vmem:[%s175 + $0x54] sm:$0xf] %vm1326, %v1219
      %1349 = vst.msk [vmem:[%s175 + $0x58] sm:$0xf] %vm1326, %v1220
      %1350 = vst.msk [vmem:[%s175 + $0x5c] sm:$0xf] %vm1326, %v1221
      %1351 = vst.msk [vmem:[%s175 + $0x60] sm:$0xf] %vm1326, %v1222
      %1352 = vst.msk [vmem:[%s175 + $0x64] sm:$0xf] %vm1326, %v1223
      %1353 = vst.msk [vmem:[%s175 + $0x68] sm:$0xf] %vm1326, %v1224
      %1354 = vst.msk [vmem:[%s175 + $0x6c] sm:$0xf] %vm1326, %v1225
      %1355 = vst.msk [vmem:[%s175 + $0x70] sm:$0xf] %vm1326, %v1226
      %1356 = vst.msk [vmem:[%s175 + $0x74] sm:$0xf] %vm1326, %v1227
      %1357 = vst.msk [vmem:[%s175 + $0x78] sm:$0xf] %vm1326, %v1228
      %1358 = vst.msk [vmem:[%s175 + $0x7c] sm:$0xf] %vm1326, %v1229
      %1359 = vst.msk [vmem:[%s175 + $0x80] sm:$0xf] %vm1326, %v1230
      %1360 = vst.msk [vmem:[%s175 + $0x84] sm:$0xf] %vm1326, %v1231
      %1361 = vst.msk [vmem:[%s175 + $0x88] sm:$0xf] %vm1326, %v1232
      %1362 = vst.msk [vmem:[%s175 + $0x8c] sm:$0xf] %vm1326, %v1233
      %1363 = vst.msk [vmem:[%s175 + $0x90] sm:$0xf] %vm1326, %v1234
      %1364 = vst.msk [vmem:[%s175 + $0x94] sm:$0xf] %vm1326, %v1235
      %1365 = vst.msk [vmem:[%s175 + $0x98] sm:$0xf] %vm1326, %v1236
      %1366 = vst.msk [vmem:[%s175 + $0x9c] sm:$0xf] %vm1326, %v1237
      %1367 = vst.msk [vmem:[%s175 + $0xa0] sm:$0xf] %vm1326, %v1238
      %1368 = vst.msk [vmem:[%s175 + $0xa4] sm:$0xf] %vm1326, %v1239
      %1369 = vst.msk [vmem:[%s175 + $0xa8] sm:$0xf] %vm1326, %v1240
      %1370 = vst.msk [vmem:[%s175 + $0xac] sm:$0xf] %vm1326, %v1241
      %1371 = vst.msk [vmem:[%s175 + $0xb0] sm:$0xf] %vm1326, %v1242
      %1372 = vst.msk [vmem:[%s175 + $0xb4] sm:$0xf] %vm1326, %v1243
      %1373 = vst.msk [vmem:[%s175 + $0xb8] sm:$0xf] %vm1326, %v1244
      %1374 = vst.msk [vmem:[%s175 + $0xbc] sm:$0xf] %vm1326, %v1245
      %1375 = vst.msk [vmem:[%s175 + $0xc0] sm:$0xf] %vm1326, %v1246
      %1376 = vst.msk [vmem:[%s175 + $0xc4] sm:$0xf] %vm1326, %v1247
      %1377 = vst.msk [vmem:[%s175 + $0xc8] sm:$0xf] %vm1326, %v1248
      %1378 = vst.msk [vmem:[%s175 + $0xcc] sm:$0xf] %vm1326, %v1249
      %1379 = vst.msk [vmem:[%s175 + $0xd0] sm:$0xf] %vm1326, %v1250
      %1380 = vst.msk [vmem:[%s175 + $0xd4] sm:$0xf] %vm1326, %v1251
      %1381 = vst.msk [vmem:[%s175 + $0xd8] sm:$0xf] %vm1326, %v1252
      %1382 = vst.msk [vmem:[%s175 + $0xdc] sm:$0xf] %vm1326, %v1253
      %1383 = vst.msk [vmem:[%s175 + $0xe0] sm:$0xf] %vm1326, %v1254
      %1384 = vst.msk [vmem:[%s175 + $0xe4] sm:$0xf] %vm1326, %v1255
      %1385 = vst.msk [vmem:[%s175 + $0xe8] sm:$0xf] %vm1326, %v1256
      %1386 = vst.msk [vmem:[%s175 + $0xec] sm:$0xf] %vm1326, %v1257
      %1387 = vst.msk [vmem:[%s175 + $0xf0] sm:$0xf] %vm1326, %v1258
      %1388 = vst.msk [vmem:[%s175 + $0xf4] sm:$0xf] %vm1326, %v1259
      %1389 = vst.msk [vmem:[%s175 + $0xf8] sm:$0xf] %vm1326, %v1260
      %1390 = vst.msk [vmem:[%s175 + $0xfc] sm:$0xf] %vm1326, %v1261
      %s1391 = smul.u32 64, %s14
      %p1392 = scmp.lt.s32.totalorder %s1391, 255
      %s1393 = scalar_select %p1392, %s1391, 255
      %s1394 = smul.addr %s1393, 4
      %s1395 = scalar_lea.vmem %s3, %s1394
      // Predicated region
      $region33: #{generator_forward.10} parent=31 // pred_check
        %p1396 = pneg %p100
      $region34: #{generator_forward.10} parent=31 // pred_check_branch
        %1398 = sbr.rel (%p1396) target = $region36
      $region35: #{generator_forward.10} parent=31 // pred_region
        %s1399 = smul.u32 64, %s14
      $region36: #{generator_forward.10} parent=31 // pred_fallthru
        _
    $region32: #{generator_forward.10} parent=5 // pred_fallthru
      _
    %p1400 = scmp.le.s32.totalorder 2, %s9
    // Predicated region
    $region37: #{generator_forward.10} parent=5 // pred_check
      %p1401 = pneg %p1400
    $region38: #{generator_forward.10} parent=5 // pred_check_branch
      %1403 = sbr.rel (%p1401) target = $region40
    $region39: #{generator_forward.10} parent=5 // pred_region
      %s1404 = ssub.s32 %s9, 2
      // Predicated region
      $region41: #{generator_forward.10} parent=39 // pred_check
        %p1405 = pneg %p106
      $region42: #{generator_forward.10} parent=39 // pred_check_branch
        %1407 = sbr.rel (%p1405) target = $region44
      $region43: #{generator_forward.10} parent=39 // pred_region
        %s1408 = smul.u32 64, %s15
        %p1409 = scmp.lt.s32.totalorder %s1408, 255
        %s1410 = scalar_select %p1409, %s1408, 255
        %s1411 = smul.addr %s1410, 4
        %s1412 = scalar_lea.vmem %s3, %s1411
      $region44: #{generator_forward.10} parent=39 // pred_fallthru
        _
    $region40: #{generator_forward.10} parent=5 // pred_fallthru
      _
  $region6: #{generator_forward.10} parent=0 // loop_footer
    %s13 = sadd.s32 1, %s9
  $region7: #{generator_forward.10} parent=0 // loop_footer_branch
    %8 = sbr.rel target = $region3
  $region8: #{generator_forward.10} parent=0 // loop_exit
    _

// kernel: generator_forward.11
$region0: #{generator_forward.11}
  #allocation0 [shape = 'u32[]', space=smem, size = 0x4, offset = 0x4, fixed_abs, tag = 'smem constant byte address 0x4 - core index']
  #allocation1 [shape = 'u32[144,128]{1,0:T(1,128)}', space=vmem, size = 0x12000, scoped, tag = 'internal scratch']
  %s0 = inlined_call_operand.vmem [shape: bf16[512,72], index: 0, kind: input, shape index: {}]
  %s1 = inlined_call_operand.vmem [shape: bf16[72,16], index: 1, kind: input, shape index: {}]
  %s2 = inlined_call_operand.vmem [shape: f32[1,16], index: 2, kind: input, shape index: {}]
  %s3 = inlined_call_operand.vmem [shape: bf16[512,16], index: 3, kind: output, shape index: {}]
  %s4 = sld [smem:[#allocation0]]
  $region22: #{generator_forward.11} parent=0
    _
  %s6 = ssub.s32 1, %s4
  %s7 = scalar_select 0, %s6, %s4
  // Predicated region
  $region2: #{generator_forward.11} parent=0 // pred_check
    _
  $region3: #{generator_forward.11} parent=0 // pred_check_branch
    %9 = sbr.rel (0) target = $region5
  $region4: #{generator_forward.11} parent=0 // pred_region
    _
  $region5: #{generator_forward.11} parent=0 // pred_fallthru
    _
  // Predicated region
  $region6: #{generator_forward.11} parent=0 // pred_check
    _
  $region7: #{generator_forward.11} parent=0 // pred_check_branch
    %11 = sbr.rel (0) target = $region9
  $region8: #{generator_forward.11} parent=0 // pred_region
    _
  $region9: #{generator_forward.11} parent=0 // pred_fallthru
    _
  // Predicated region
  $region10: #{generator_forward.11} parent=0 // pred_check
    _
  $region11: #{generator_forward.11} parent=0 // pred_check_branch
    %13 = sbr.rel (0) target = $region13
  $region12: #{generator_forward.11} parent=0 // pred_region
    _
  $region13: #{generator_forward.11} parent=0 // pred_fallthru
    _
  %v15 = vld [vmem:[%s0] sm:$0xf]
  %v16 = vld [vmem:[%s0 + $0x4] sm:$0xf]
  %v17 = vld [vmem:[%s0 + $0x8] sm:$0xf]
  %v18 = vld [vmem:[%s0 + $0xc] sm:$0xf]
  %v19 = vld [vmem:[%s0 + $0x10] sm:$0xf]
  %v20 = vld [vmem:[%s0 + $0x14] sm:$0xf]
  %v21 = vld [vmem:[%s0 + $0x18] sm:$0xf]
  %v22 = vld [vmem:[%s0 + $0x1c] sm:$0xf]
  %v23 = vld [vmem:[%s0 + $0x20] sm:$0xf]
  %v24 = vld [vmem:[%s0 + $0x24] sm:$0xf]
  %v25 = vld [vmem:[%s0 + $0x28] sm:$0xf]
  %v26 = vld [vmem:[%s0 + $0x2c] sm:$0xf]
  %v27 = vld [vmem:[%s0 + $0x30] sm:$0xf]
  %v28 = vld [vmem:[%s0 + $0x34] sm:$0xf]
  %v29 = vld [vmem:[%s0 + $0x38] sm:$0xf]
  %v30 = vld [vmem:[%s0 + $0x3c] sm:$0xf]
  %v31 = vld [vmem:[%s0 + $0x40] sm:$0xf]
  %v32 = vld [vmem:[%s0 + $0x44] sm:$0xf]
  %v33 = vld [vmem:[%s0 + $0x48] sm:$0xf]
  %v34 = vld [vmem:[%s0 + $0x4c] sm:$0xf]
  %v35 = vld [vmem:[%s0 + $0x50] sm:$0xf]
  %v36 = vld [vmem:[%s0 + $0x54] sm:$0xf]
  %v37 = vld [vmem:[%s0 + $0x58] sm:$0xf]
  %v38 = vld [vmem:[%s0 + $0x5c] sm:$0xf]
  %v39 = vld [vmem:[%s0 + $0x60] sm:$0xf]
  %v40 = vld [vmem:[%s0 + $0x64] sm:$0xf]
  %v41 = vld [vmem:[%s0 + $0x68] sm:$0xf]
  %v42 = vld [vmem:[%s0 + $0x6c] sm:$0xf]
  %v43 = vld [vmem:[%s0 + $0x70] sm:$0xf]
  %v44 = vld [vmem:[%s0 + $0x74] sm:$0xf]
  %v45 = vld [vmem:[%s0 + $0x78] sm:$0xf]
  %v46 = vld [vmem:[%s0 + $0x7c] sm:$0xf]
  %v47 = vld [vmem:[%s0 + $0x80] sm:$0xf]
  %v48 = vld [vmem:[%s0 + $0x84] sm:$0xf]
  %v49 = vld [vmem:[%s0 + $0x88] sm:$0xf]
  %v50 = vld [vmem:[%s0 + $0x8c] sm:$0xf]
  %v51 = vld [vmem:[%s0 + $0x90] sm:$0xf]
  %v52 = vld [vmem:[%s0 + $0x94] sm:$0xf]
  %v53 = vld [vmem:[%s0 + $0x98] sm:$0xf]
  %v54 = vld [vmem:[%s0 + $0x9c] sm:$0xf]
  %v55 = vld [vmem:[%s0 + $0xa0] sm:$0xf]
  %v56 = vld [vmem:[%s0 + $0xa4] sm:$0xf]
  %v57 = vld [vmem:[%s0 + $0xa8] sm:$0xf]
  %v58 = vld [vmem:[%s0 + $0xac] sm:$0xf]
  %v59 = vld [vmem:[%s0 + $0xb0] sm:$0xf]
  %v60 = vld [vmem:[%s0 + $0xb4] sm:$0xf]
  %v61 = vld [vmem:[%s0 + $0xb8] sm:$0xf]
  %v62 = vld [vmem:[%s0 + $0xbc] sm:$0xf]
  %v63 = vld [vmem:[%s0 + $0xc0] sm:$0xf]
  %v64 = vld [vmem:[%s0 + $0xc4] sm:$0xf]
  %v65 = vld [vmem:[%s0 + $0xc8] sm:$0xf]
  %v66 = vld [vmem:[%s0 + $0xcc] sm:$0xf]
  %v67 = vld [vmem:[%s0 + $0xd0] sm:$0xf]
  %v68 = vld [vmem:[%s0 + $0xd4] sm:$0xf]
  %v69 = vld [vmem:[%s0 + $0xd8] sm:$0xf]
  %v70 = vld [vmem:[%s0 + $0xdc] sm:$0xf]
  %v71 = vld [vmem:[%s0 + $0xe0] sm:$0xf]
  %v72 = vld [vmem:[%s0 + $0xe4] sm:$0xf]
  %v73 = vld [vmem:[%s0 + $0xe8] sm:$0xf]
  %v74 = vld [vmem:[%s0 + $0xec] sm:$0xf]
  %v75 = vld [vmem:[%s0 + $0xf0] sm:$0xf]
  %v76 = vld [vmem:[%s0 + $0xf4] sm:$0xf]
  %v77 = vld [vmem:[%s0 + $0xf8] sm:$0xf]
  %v78 = vld [vmem:[%s0 + $0xfc] sm:$0xf]
  %v79 = vld [vmem:[%s1] sm:$0xf]
  %v80 = vld [vmem:[%s1 + $0x4] sm:$0xf]
  %v81 = vld [vmem:[%s1 + $0x8] sm:$0xf]
  %v82 = vld [vmem:[%s1 + $0xc] sm:$0xf]
  %v83 = vld [vmem:[%s1 + $0x10] sm:$0xf]
  %v84 = vld [vmem:[%s1 + $0x14] sm:$0xf]
  %v85 = vld [vmem:[%s1 + $0x18] sm:$0xf]
  %v86 = vld [vmem:[%s1 + $0x1c] sm:$0xf]
  %v87 = vld [vmem:[%s1 + $0x20] sm:$0xf]
  %v88 = vld [vmem:[%s2] sm:$0x1]
  %v90 = vlaneseq
  %v91 = vshrl.u32 %v90, 7
  %v92 = vsub.s32 0, %v91
  %v93 = vrot.slane %v88, %v92
  %v159 = vunpack.c.l.b16 %v15
  %v160 = vunpack.c.l.b16 %v16
  %v161 = vunpack.c.l.b16 %v17
  %v162 = vunpack.c.l.b16 %v18
  %v163 = vunpack.c.l.b16 %v19
  %v164 = vunpack.c.l.b16 %v20
  %v165 = vunpack.c.l.b16 %v21
  %v166 = vunpack.c.l.b16 %v22
  %v167 = vunpack.c.l.b16 %v23
  %v168 = vunpack.c.l.b16 %v24
  %v169 = vunpack.c.l.b16 %v25
  %v170 = vunpack.c.l.b16 %v26
  %v171 = vunpack.c.l.b16 %v27
  %v172 = vunpack.c.l.b16 %v28
  %v173 = vunpack.c.l.b16 %v29
  %v174 = vunpack.c.l.b16 %v30
  %v175 = vunpack.c.l.b16 %v31
  %v176 = vunpack.c.l.b16 %v32
  %v177 = vunpack.c.l.b16 %v33
  %v178 = vunpack.c.l.b16 %v34
  %v179 = vunpack.c.l.b16 %v35
  %v180 = vunpack.c.l.b16 %v36
  %v181 = vunpack.c.l.b16 %v37
  %v182 = vunpack.c.l.b16 %v38
  %v183 = vunpack.c.l.b16 %v39
  %v184 = vunpack.c.l.b16 %v40
  %v185 = vunpack.c.l.b16 %v41
  %v186 = vunpack.c.l.b16 %v42
  %v187 = vunpack.c.l.b16 %v43
  %v188 = vunpack.c.l.b16 %v44
  %v189 = vunpack.c.l.b16 %v45
  %v190 = vunpack.c.l.b16 %v46
  %v191 = vunpack.c.l.b16 %v47
  %v192 = vunpack.c.l.b16 %v48
  %v193 = vunpack.c.l.b16 %v49
  %v194 = vunpack.c.l.b16 %v50
  %v195 = vunpack.c.l.b16 %v51
  %v196 = vunpack.c.l.b16 %v52
  %v197 = vunpack.c.l.b16 %v53
  %v198 = vunpack.c.l.b16 %v54
  %v199 = vunpack.c.l.b16 %v55
  %v200 = vunpack.c.l.b16 %v56
  %v201 = vunpack.c.l.b16 %v57
  %v202 = vunpack.c.l.b16 %v58
  %v203 = vunpack.c.l.b16 %v59
  %v204 = vunpack.c.l.b16 %v60
  %v205 = vunpack.c.l.b16 %v61
  %v206 = vunpack.c.l.b16 %v62
  %v207 = vunpack.c.l.b16 %v63
  %v208 = vunpack.c.l.b16 %v64
  %v209 = vunpack.c.l.b16 %v65
  %v210 = vunpack.c.l.b16 %v66
  %v211 = vunpack.c.l.b16 %v67
  %v212 = vunpack.c.l.b16 %v68
  %v213 = vunpack.c.l.b16 %v69
  %v214 = vunpack.c.l.b16 %v70
  %v215 = vunpack.c.l.b16 %v71
  %v216 = vunpack.c.l.b16 %v72
  %v217 = vunpack.c.l.b16 %v73
  %v218 = vunpack.c.l.b16 %v74
  %v219 = vunpack.c.l.b16 %v75
  %v220 = vunpack.c.l.b16 %v76
  %v221 = vunpack.c.l.b16 %v77
  %v222 = vunpack.c.l.b16 %v78
  %v223 = vpack.c.b16 %v160, %v159
  %v224 = vpack.c.b16 %v162, %v161
  %v225 = vpack.c.b16 %v164, %v163
  %v226 = vpack.c.b16 %v166, %v165
  %v227 = vpack.c.b16 %v168, %v167
  %v228 = vpack.c.b16 %v170, %v169
  %v229 = vpack.c.b16 %v172, %v171
  %v230 = vpack.c.b16 %v174, %v173
  %v231 = vpack.c.b16 %v176, %v175
  %v232 = vpack.c.b16 %v178, %v177
  %v233 = vpack.c.b16 %v180, %v179
  %v234 = vpack.c.b16 %v182, %v181
  %v235 = vpack.c.b16 %v184, %v183
  %v236 = vpack.c.b16 %v186, %v185
  %v237 = vpack.c.b16 %v188, %v187
  %v238 = vpack.c.b16 %v190, %v189
  %v239 = vpack.c.b16 %v192, %v191
  %v240 = vpack.c.b16 %v194, %v193
  %v241 = vpack.c.b16 %v196, %v195
  %v242 = vpack.c.b16 %v198, %v197
  %v243 = vpack.c.b16 %v200, %v199
  %v244 = vpack.c.b16 %v202, %v201
  %v245 = vpack.c.b16 %v204, %v203
  %v246 = vpack.c.b16 %v206, %v205
  %v247 = vpack.c.b16 %v208, %v207
  %v248 = vpack.c.b16 %v210, %v209
  %v249 = vpack.c.b16 %v212, %v211
  %v250 = vpack.c.b16 %v214, %v213
  %v251 = vpack.c.b16 %v216, %v215
  %v252 = vpack.c.b16 %v218, %v217
  %v253 = vpack.c.b16 %v220, %v219
  %v254 = vpack.c.b16 %v222, %v221
  %v264 = vunpack.c.l.b16 %v79
  %v265 = vunpack.c.l.b16 %v80
  %v266 = vunpack.c.l.b16 %v81
  %v267 = vunpack.c.l.b16 %v82
  %v268 = vunpack.c.l.b16 %v83
  %v269 = vunpack.c.l.b16 %v84
  %v270 = vunpack.c.l.b16 %v85
  %v271 = vunpack.c.l.b16 %v86
  %v272 = vunpack.c.l.b16 %v87
  %v273 = vpack.c.b16 %v265, %v264
  %v274 = vpack.c.b16 %v267, %v266
  %v275 = vpack.c.b16 %v269, %v268
  %v276 = vpack.c.b16 %v271, %v270
  %v277 = vpack.c.b16 %v272, %v272
  %vm282 = vcmask 588800
  %v284 = vsel %vm282, %v223, 0
  %v287 = vsel %vm282, %v224, 0
  %v290 = vsel %vm282, %v225, 0
  %v293 = vsel %vm282, %v226, 0
  %v296 = vsel %vm282, %v227, 0
  %v299 = vsel %vm282, %v228, 0
  %v302 = vsel %vm282, %v229, 0
  %v305 = vsel %vm282, %v230, 0
  %v308 = vsel %vm282, %v231, 0
  %v311 = vsel %vm282, %v232, 0
  %v314 = vsel %vm282, %v233, 0
  %v317 = vsel %vm282, %v234, 0
  %v320 = vsel %vm282, %v235, 0
  %v323 = vsel %vm282, %v236, 0
  %v326 = vsel %vm282, %v237, 0
  %v329 = vsel %vm282, %v238, 0
  %v332 = vsel %vm282, %v239, 0
  %v335 = vsel %vm282, %v240, 0
  %v338 = vsel %vm282, %v241, 0
  %v341 = vsel %vm282, %v242, 0
  %v344 = vsel %vm282, %v243, 0
  %v347 = vsel %vm282, %v244, 0
  %v350 = vsel %vm282, %v245, 0
  %v353 = vsel %vm282, %v246, 0
  %v356 = vsel %vm282, %v247, 0
  %v359 = vsel %vm282, %v248, 0
  %v362 = vsel %vm282, %v249, 0
  %v365 = vsel %vm282, %v250, 0
  %v368 = vsel %vm282, %v251, 0
  %v371 = vsel %vm282, %v252, 0
  %v374 = vsel %vm282, %v253, 0
  %v377 = vsel %vm282, %v254, 0
  %vm379 = vcmask 1043456
  %v381 = vsel %vm379, %v277, 0
  %383 = vmatprep.subr.bf16.mxu0 0
  %384 = vmatpush1.bf16.msra.mxu0 0
  %385 = vmatprep.subr.bf16.mxu0 0
  %386 = vmatpush1.bf16.msra.mxu0 0
  %387 = vmatprep.subr.bf16.mxu0 0
  %388 = vmatpush1.bf16.msra.mxu0 0
  %389 = vmatprep.subr.bf16.mxu0 0
  %390 = vmatpush1.bf16.msra.mxu0 %v381
  %391 = vmatprep.subr.bf16.mxu0 0
  %392 = vmatpush1.bf16.msra.mxu0 %v276
  %393 = vmatprep.subr.bf16.mxu0 0
  %394 = vmatpush1.bf16.msra.mxu0 %v275
  %395 = vmatprep.subr.bf16.mxu0 0
  %396 = vmatpush1.bf16.msra.mxu0 %v274
  %397 = vmatprep.subr.bf16.mxu0 0
  %398 = vmatpush1.bf16.msra.mxu0 %v273
  %399 = vmatprep.subr.bf16.mxu0 0
  %400 = vmatpush2.bf16.msra.mxu0 0
  %401 = vmatprep.subr.bf16.mxu0 0
  %402 = vmatpush2.bf16.msra.mxu0 0
  %403 = vmatprep.subr.bf16.mxu0 0
  %404 = vmatpush2.bf16.msra.mxu0 0
  %405 = vmatprep.subr.bf16.mxu0 0
  %406 = vmatpush2.bf16.msra.mxu0 0
  %407 = vmatprep.subr.bf16.mxu0 0
  %408 = vmatpush2.bf16.msra.mxu0 0
  %409 = vmatprep.subr.bf16.mxu0 0
  %410 = vmatpush2.bf16.msra.mxu0 0
  %411 = vmatprep.subr.bf16.mxu0 0
  %412 = vmatpush2.bf16.msra.mxu0 0
  %413 = vmatprep.subr.bf16.mxu0 0
  %414 = vmatpush2.bf16.msra.mxu0 0
  %415 = vmatprep.mubr.bf16.mxu0 0
  %416 = vmatmul.mubr.bf16.gmra.mxu0 %v284
  %v417 = vpop.f32.mrf.mxu0
  %v418 = vadd.f32 %v93, %v417
  %v419 = vpop.f32.mrf.mxu0
  %v420 = vpop.f32.mrf.mxu0
  %v421 = vadd.f32 %v93, %v420
  %v422 = vpop.f32.mrf.mxu0
  %423 = vmatprep.mubr.bf16.mxu0 0
  %424 = vmatmul.mubr.bf16.gmra.mxu0 %v287
  %v425 = vpop.f32.mrf.mxu0
  %v426 = vadd.f32 %v93, %v425
  %v427 = vpop.f32.mrf.mxu0
  %v428 = vpop.f32.mrf.mxu0
  %v429 = vadd.f32 %v93, %v428
  %v430 = vpop.f32.mrf.mxu0
  %431 = vmatprep.mubr.bf16.mxu0 0
  %432 = vmatmul.mubr.bf16.gmra.mxu0 %v290
  %v433 = vpop.f32.mrf.mxu0
  %v434 = vadd.f32 %v93, %v433
  %v435 = vpop.f32.mrf.mxu0
  %v436 = vpop.f32.mrf.mxu0
  %v437 = vadd.f32 %v93, %v436
  %v438 = vpop.f32.mrf.mxu0
  %439 = vmatprep.mubr.bf16.mxu0 0
  %440 = vmatmul.mubr.bf16.gmra.mxu0 %v293
  %v441 = vpop.f32.mrf.mxu0
  %v442 = vadd.f32 %v93, %v441
  %v443 = vpop.f32.mrf.mxu0
  %v444 = vpop.f32.mrf.mxu0
  %v445 = vadd.f32 %v93, %v444
  %v446 = vpop.f32.mrf.mxu0
  %447 = vmatprep.mubr.bf16.mxu0 0
  %448 = vmatmul.mubr.bf16.gmra.mxu0 %v296
  %v449 = vpop.f32.mrf.mxu0
  %v450 = vadd.f32 %v93, %v449
  %v451 = vpop.f32.mrf.mxu0
  %v452 = vpop.f32.mrf.mxu0
  %v453 = vadd.f32 %v93, %v452
  %v454 = vpop.f32.mrf.mxu0
  %455 = vmatprep.mubr.bf16.mxu0 0
  %456 = vmatmul.mubr.bf16.gmra.mxu0 %v299
  %v457 = vpop.f32.mrf.mxu0
  %v458 = vadd.f32 %v93, %v457
  %v459 = vpop.f32.mrf.mxu0
  %v460 = vpop.f32.mrf.mxu0
  %v461 = vadd.f32 %v93, %v460
  %v462 = vpop.f32.mrf.mxu0
  %463 = vmatprep.mubr.bf16.mxu0 0
  %464 = vmatmul.mubr.bf16.gmra.mxu0 %v302
  %v465 = vpop.f32.mrf.mxu0
  %v466 = vadd.f32 %v93, %v465
  %v467 = vpop.f32.mrf.mxu0
  %v468 = vpop.f32.mrf.mxu0
  %v469 = vadd.f32 %v93, %v468
  %v470 = vpop.f32.mrf.mxu0
  %471 = vmatprep.mubr.bf16.mxu0 0
  %472 = vmatmul.mubr.bf16.gmra.mxu0 %v305
  %v473 = vpop.f32.mrf.mxu0
  %v474 = vadd.f32 %v93, %v473
  %v475 = vpop.f32.mrf.mxu0
  %v476 = vpop.f32.mrf.mxu0
  %v477 = vadd.f32 %v93, %v476
  %v478 = vpop.f32.mrf.mxu0
  %479 = vmatprep.mubr.bf16.mxu0 0
  %480 = vmatmul.mubr.bf16.gmra.mxu0 %v308
  %v481 = vpop.f32.mrf.mxu0
  %v482 = vadd.f32 %v93, %v481
  %v483 = vpop.f32.mrf.mxu0
  %v484 = vpop.f32.mrf.mxu0
  %v485 = vadd.f32 %v93, %v484
  %v486 = vpop.f32.mrf.mxu0
  %487 = vmatprep.mubr.bf16.mxu0 0
  %488 = vmatmul.mubr.bf16.gmra.mxu0 %v311
  %v489 = vpop.f32.mrf.mxu0
  %v490 = vadd.f32 %v93, %v489
  %v491 = vpop.f32.mrf.mxu0
  %v492 = vpop.f32.mrf.mxu0
  %v493 = vadd.f32 %v93, %v492
  %v494 = vpop.f32.mrf.mxu0
  %495 = vmatprep.mubr.bf16.mxu0 0
  %496 = vmatmul.mubr.bf16.gmra.mxu0 %v314
  %v497 = vpop.f32.mrf.mxu0
  %v498 = vadd.f32 %v93, %v497
  %v499 = vpop.f32.mrf.mxu0
  %v500 = vpop.f32.mrf.mxu0
  %v501 = vadd.f32 %v93, %v500
  %v502 = vpop.f32.mrf.mxu0
  %503 = vmatprep.mubr.bf16.mxu0 0
  %504 = vmatmul.mubr.bf16.gmra.mxu0 %v317
  %v505 = vpop.f32.mrf.mxu0
  %v506 = vadd.f32 %v93, %v505
  %v507 = vpop.f32.mrf.mxu0
  %v508 = vpop.f32.mrf.mxu0
  %v509 = vadd.f32 %v93, %v508
  %v510 = vpop.f32.mrf.mxu0
  %511 = vmatprep.mubr.bf16.mxu0 0
  %512 = vmatmul.mubr.bf16.gmra.mxu0 %v320
  %v513 = vpop.f32.mrf.mxu0
  %v514 = vadd.f32 %v93, %v513
  %v515 = vpop.f32.mrf.mxu0
  %v516 = vpop.f32.mrf.mxu0
  %v517 = vadd.f32 %v93, %v516
  %v518 = vpop.f32.mrf.mxu0
  %519 = vmatprep.mubr.bf16.mxu0 0
  %520 = vmatmul.mubr.bf16.gmra.mxu0 %v323
  %v521 = vpop.f32.mrf.mxu0
  %v522 = vadd.f32 %v93, %v521
  %v523 = vpop.f32.mrf.mxu0
  %v524 = vpop.f32.mrf.mxu0
  %v525 = vadd.f32 %v93, %v524
  %v526 = vpop.f32.mrf.mxu0
  %527 = vmatprep.mubr.bf16.mxu0 0
  %528 = vmatmul.mubr.bf16.gmra.mxu0 %v326
  %v529 = vpop.f32.mrf.mxu0
  %v530 = vadd.f32 %v93, %v529
  %v531 = vpop.f32.mrf.mxu0
  %v532 = vpop.f32.mrf.mxu0
  %v533 = vadd.f32 %v93, %v532
  %v534 = vpop.f32.mrf.mxu0
  %535 = vmatprep.mubr.bf16.mxu0 0
  %536 = vmatmul.mubr.bf16.gmra.mxu0 %v329
  %v537 = vpop.f32.mrf.mxu0
  %v538 = vadd.f32 %v93, %v537
  %v539 = vpop.f32.mrf.mxu0
  %v540 = vpop.f32.mrf.mxu0
  %v541 = vadd.f32 %v93, %v540
  %v542 = vpop.f32.mrf.mxu0
  %543 = vmatprep.mubr.bf16.mxu0 0
  %544 = vmatmul.mubr.bf16.gmra.mxu0 %v332
  %v545 = vpop.f32.mrf.mxu0
  %v546 = vadd.f32 %v93, %v545
  %v547 = vpop.f32.mrf.mxu0
  %v548 = vpop.f32.mrf.mxu0
  %v549 = vadd.f32 %v93, %v548
  %v550 = vpop.f32.mrf.mxu0
  %551 = vmatprep.mubr.bf16.mxu0 0
  %552 = vmatmul.mubr.bf16.gmra.mxu0 %v335
  %v553 = vpop.f32.mrf.mxu0
  %v554 = vadd.f32 %v93, %v553
  %v555 = vpop.f32.mrf.mxu0
  %v556 = vpop.f32.mrf.mxu0
  %v557 = vadd.f32 %v93, %v556
  %v558 = vpop.f32.mrf.mxu0
  %559 = vmatprep.mubr.bf16.mxu0 0
  %560 = vmatmul.mubr.bf16.gmra.mxu0 %v338
  %v561 = vpop.f32.mrf.mxu0
  %v562 = vadd.f32 %v93, %v561
  %v563 = vpop.f32.mrf.mxu0
  %v564 = vpop.f32.mrf.mxu0
  %v565 = vadd.f32 %v93, %v564
  %v566 = vpop.f32.mrf.mxu0
  %567 = vmatprep.mubr.bf16.mxu0 0
  %568 = vmatmul.mubr.bf16.gmra.mxu0 %v341
  %v569 = vpop.f32.mrf.mxu0
  %v570 = vadd.f32 %v93, %v569
  %v571 = vpop.f32.mrf.mxu0
  %v572 = vpop.f32.mrf.mxu0
  %v573 = vadd.f32 %v93, %v572
  %v574 = vpop.f32.mrf.mxu0
  %575 = vmatprep.mubr.bf16.mxu0 0
  %576 = vmatmul.mubr.bf16.gmra.mxu0 %v344
  %v577 = vpop.f32.mrf.mxu0
  %v578 = vadd.f32 %v93, %v577
  %v579 = vpop.f32.mrf.mxu0
  %v580 = vpop.f32.mrf.mxu0
  %v581 = vadd.f32 %v93, %v580
  %v582 = vpop.f32.mrf.mxu0
  %583 = vmatprep.mubr.bf16.mxu0 0
  %584 = vmatmul.mubr.bf16.gmra.mxu0 %v347
  %v585 = vpop.f32.mrf.mxu0
  %v586 = vadd.f32 %v93, %v585
  %v587 = vpop.f32.mrf.mxu0
  %v588 = vpop.f32.mrf.mxu0
  %v589 = vadd.f32 %v93, %v588
  %v590 = vpop.f32.mrf.mxu0
  %591 = vmatprep.mubr.bf16.mxu0 0
  %592 = vmatmul.mubr.bf16.gmra.mxu0 %v350
  %v593 = vpop.f32.mrf.mxu0
  %v594 = vadd.f32 %v93, %v593
  %v595 = vpop.f32.mrf.mxu0
  %v596 = vpop.f32.mrf.mxu0
  %v597 = vadd.f32 %v93, %v596
  %v598 = vpop.f32.mrf.mxu0
  %599 = vmatprep.mubr.bf16.mxu0 0
  %600 = vmatmul.mubr.bf16.gmra.mxu0 %v353
  %v601 = vpop.f32.mrf.mxu0
  %v602 = vadd.f32 %v93, %v601
  %v603 = vpop.f32.mrf.mxu0
  %v604 = vpop.f32.mrf.mxu0
  %v605 = vadd.f32 %v93, %v604
  %v606 = vpop.f32.mrf.mxu0
  %607 = vmatprep.mubr.bf16.mxu0 0
  %608 = vmatmul.mubr.bf16.gmra.mxu0 %v356
  %v609 = vpop.f32.mrf.mxu0
  %v610 = vadd.f32 %v93, %v609
  %v611 = vpop.f32.mrf.mxu0
  %v612 = vpop.f32.mrf.mxu0
  %v613 = vadd.f32 %v93, %v612
  %v614 = vpop.f32.mrf.mxu0
  %615 = vmatprep.mubr.bf16.mxu0 0
  %616 = vmatmul.mubr.bf16.gmra.mxu0 %v359
  %v617 = vpop.f32.mrf.mxu0
  %v618 = vadd.f32 %v93, %v617
  %v619 = vpop.f32.mrf.mxu0
  %v620 = vpop.f32.mrf.mxu0
  %v621 = vadd.f32 %v93, %v620
  %v622 = vpop.f32.mrf.mxu0
  %623 = vmatprep.mubr.bf16.mxu0 0
  %624 = vmatmul.mubr.bf16.gmra.mxu0 %v362
  %v625 = vpop.f32.mrf.mxu0
  %v626 = vadd.f32 %v93, %v625
  %v627 = vpop.f32.mrf.mxu0
  %v628 = vpop.f32.mrf.mxu0
  %v629 = vadd.f32 %v93, %v628
  %v630 = vpop.f32.mrf.mxu0
  %631 = vmatprep.mubr.bf16.mxu0 0
  %632 = vmatmul.mubr.bf16.gmra.mxu0 %v365
  %v633 = vpop.f32.mrf.mxu0
  %v634 = vadd.f32 %v93, %v633
  %v635 = vpop.f32.mrf.mxu0
  %v636 = vpop.f32.mrf.mxu0
  %v637 = vadd.f32 %v93, %v636
  %v638 = vpop.f32.mrf.mxu0
  %639 = vmatprep.mubr.bf16.mxu0 0
  %640 = vmatmul.mubr.bf16.gmra.mxu0 %v368
  %v641 = vpop.f32.mrf.mxu0
  %v642 = vadd.f32 %v93, %v641
  %v643 = vpop.f32.mrf.mxu0
  %v644 = vpop.f32.mrf.mxu0
  %v645 = vadd.f32 %v93, %v644
  %v646 = vpop.f32.mrf.mxu0
  %647 = vmatprep.mubr.bf16.mxu0 0
  %648 = vmatmul.mubr.bf16.gmra.mxu0 %v371
  %v649 = vpop.f32.mrf.mxu0
  %v650 = vadd.f32 %v93, %v649
  %v651 = vpop.f32.mrf.mxu0
  %v652 = vpop.f32.mrf.mxu0
  %v653 = vadd.f32 %v93, %v652
  %v654 = vpop.f32.mrf.mxu0
  %655 = vmatprep.mubr.bf16.mxu0 0
  %656 = vmatmul.mubr.bf16.gmra.mxu0 %v374
  %v657 = vpop.f32.mrf.mxu0
  %v658 = vadd.f32 %v93, %v657
  %v659 = vpop.f32.mrf.mxu0
  %v660 = vpop.f32.mrf.mxu0
  %v661 = vadd.f32 %v93, %v660
  %v662 = vpop.f32.mrf.mxu0
  %663 = vmatprep.mubr.bf16.mxu0 0
  %664 = vmatmul.mubr.bf16.gmra.mxu0 %v377
  %v665 = vpop.f32.mrf.mxu0
  %v666 = vadd.f32 %v93, %v665
  %v667 = vpop.f32.mrf.mxu0
  %v668 = vpop.f32.mrf.mxu0
  %v669 = vadd.f32 %v93, %v668
  %v670 = vpop.f32.mrf.mxu0
  %671 = vdwg.mxu0
  %v672 = vmax.f32 %v418, 0.0
  %v673 = vmax.f32 %v421, 0.0
  %v674 = vmax.f32 %v426, 0.0
  %v675 = vmax.f32 %v429, 0.0
  %v676 = vmax.f32 %v434, 0.0
  %v677 = vmax.f32 %v437, 0.0
  %v678 = vmax.f32 %v442, 0.0
  %v679 = vmax.f32 %v445, 0.0
  %v680 = vmax.f32 %v450, 0.0
  %v681 = vmax.f32 %v453, 0.0
  %v682 = vmax.f32 %v458, 0.0
  %v683 = vmax.f32 %v461, 0.0
  %v684 = vmax.f32 %v466, 0.0
  %v685 = vmax.f32 %v469, 0.0
  %v686 = vmax.f32 %v474, 0.0
  %v687 = vmax.f32 %v477, 0.0
  %v688 = vmax.f32 %v482, 0.0
  %v689 = vmax.f32 %v485, 0.0
  %v690 = vmax.f32 %v490, 0.0
  %v691 = vmax.f32 %v493, 0.0
  %v692 = vmax.f32 %v498, 0.0
  %v693 = vmax.f32 %v501, 0.0
  %v694 = vmax.f32 %v506, 0.0
  %v695 = vmax.f32 %v509, 0.0
  %v696 = vmax.f32 %v514, 0.0
  %v697 = vmax.f32 %v517, 0.0
  %v698 = vmax.f32 %v522, 0.0
  %v699 = vmax.f32 %v525, 0.0
  %v700 = vmax.f32 %v530, 0.0
  %v701 = vmax.f32 %v533, 0.0
  %v702 = vmax.f32 %v538, 0.0
  %v703 = vmax.f32 %v541, 0.0
  %v704 = vmax.f32 %v546, 0.0
  %v705 = vmax.f32 %v549, 0.0
  %v706 = vmax.f32 %v554, 0.0
  %v707 = vmax.f32 %v557, 0.0
  %v708 = vmax.f32 %v562, 0.0
  %v709 = vmax.f32 %v565, 0.0
  %v710 = vmax.f32 %v570, 0.0
  %v711 = vmax.f32 %v573, 0.0
  %v712 = vmax.f32 %v578, 0.0
  %v713 = vmax.f32 %v581, 0.0
  %v714 = vmax.f32 %v586, 0.0
  %v715 = vmax.f32 %v589, 0.0
  %v716 = vmax.f32 %v594, 0.0
  %v717 = vmax.f32 %v597, 0.0
  %v718 = vmax.f32 %v602, 0.0
  %v719 = vmax.f32 %v605, 0.0
  %v720 = vmax.f32 %v610, 0.0
  %v721 = vmax.f32 %v613, 0.0
  %v722 = vmax.f32 %v618, 0.0
  %v723 = vmax.f32 %v621, 0.0
  %v724 = vmax.f32 %v626, 0.0
  %v725 = vmax.f32 %v629, 0.0
  %v726 = vmax.f32 %v634, 0.0
  %v727 = vmax.f32 %v637, 0.0
  %v728 = vmax.f32 %v642, 0.0
  %v729 = vmax.f32 %v645, 0.0
  %v730 = vmax.f32 %v650, 0.0
  %v731 = vmax.f32 %v653, 0.0
  %v732 = vmax.f32 %v658, 0.0
  %v733 = vmax.f32 %v661, 0.0
  %v734 = vmax.f32 %v666, 0.0
  %v735 = vmax.f32 %v669, 0.0
  %v736 = vpack.c.bf16 %v673, %v672
  %v737 = vpack.c.bf16 %v675, %v674
  %v738 = vpack.c.bf16 %v677, %v676
  %v739 = vpack.c.bf16 %v679, %v678
  %v740 = vpack.c.bf16 %v681, %v680
  %v741 = vpack.c.bf16 %v683, %v682
  %v742 = vpack.c.bf16 %v685, %v684
  %v743 = vpack.c.bf16 %v687, %v686
  %v744 = vpack.c.bf16 %v689, %v688
  %v745 = vpack.c.bf16 %v691, %v690
  %v746 = vpack.c.bf16 %v693, %v692
  %v747 = vpack.c.bf16 %v695, %v694
  %v748 = vpack.c.bf16 %v697, %v696
  %v749 = vpack.c.bf16 %v699, %v698
  %v750 = vpack.c.bf16 %v701, %v700
  %v751 = vpack.c.bf16 %v703, %v702
  %v752 = vpack.c.bf16 %v705, %v704
  %v753 = vpack.c.bf16 %v707, %v706
  %v754 = vpack.c.bf16 %v709, %v708
  %v755 = vpack.c.bf16 %v711, %v710
  %v756 = vpack.c.bf16 %v713, %v712
  %v757 = vpack.c.bf16 %v715, %v714
  %v758 = vpack.c.bf16 %v717, %v716
  %v759 = vpack.c.bf16 %v719, %v718
  %v760 = vpack.c.bf16 %v721, %v720
  %v761 = vpack.c.bf16 %v723, %v722
  %v762 = vpack.c.bf16 %v725, %v724
  %v763 = vpack.c.bf16 %v727, %v726
  %v764 = vpack.c.bf16 %v729, %v728
  %v765 = vpack.c.bf16 %v731, %v730
  %v766 = vpack.c.bf16 %v733, %v732
  %v767 = vpack.c.bf16 %v735, %v734
  %v800 = vunpack.c.l.b16 %v736
  %v801 = vunpack.c.h.b16 %v736
  %v802 = vunpack.c.l.b16 %v737
  %v803 = vunpack.c.h.b16 %v737
  %v804 = vunpack.c.l.b16 %v738
  %v805 = vunpack.c.h.b16 %v738
  %v806 = vunpack.c.l.b16 %v739
  %v807 = vunpack.c.h.b16 %v739
  %v808 = vunpack.c.l.b16 %v740
  %v809 = vunpack.c.h.b16 %v740
  %v810 = vunpack.c.l.b16 %v741
  %v811 = vunpack.c.h.b16 %v741
  %v812 = vunpack.c.l.b16 %v742
  %v813 = vunpack.c.h.b16 %v742
  %v814 = vunpack.c.l.b16 %v743
  %v815 = vunpack.c.h.b16 %v743
  %v816 = vunpack.c.l.b16 %v744
  %v817 = vunpack.c.h.b16 %v744
  %v818 = vunpack.c.l.b16 %v745
  %v819 = vunpack.c.h.b16 %v745
  %v820 = vunpack.c.l.b16 %v746
  %v821 = vunpack.c.h.b16 %v746
  %v822 = vunpack.c.l.b16 %v747
  %v823 = vunpack.c.h.b16 %v747
  %v824 = vunpack.c.l.b16 %v748
  %v825 = vunpack.c.h.b16 %v748
  %v826 = vunpack.c.l.b16 %v749
  %v827 = vunpack.c.h.b16 %v749
  %v828 = vunpack.c.l.b16 %v750
  %v829 = vunpack.c.h.b16 %v750
  %v830 = vunpack.c.l.b16 %v751
  %v831 = vunpack.c.h.b16 %v751
  %v832 = vunpack.c.l.b16 %v752
  %v833 = vunpack.c.h.b16 %v752
  %v834 = vunpack.c.l.b16 %v753
  %v835 = vunpack.c.h.b16 %v753
  %v836 = vunpack.c.l.b16 %v754
  %v837 = vunpack.c.h.b16 %v754
  %v838 = vunpack.c.l.b16 %v755
  %v839 = vunpack.c.h.b16 %v755
  %v840 = vunpack.c.l.b16 %v756
  %v841 = vunpack.c.h.b16 %v756
  %v842 = vunpack.c.l.b16 %v757
  %v843 = vunpack.c.h.b16 %v757
  %v844 = vunpack.c.l.b16 %v758
  %v845 = vunpack.c.h.b16 %v758
  %v846 = vunpack.c.l.b16 %v759
  %v847 = vunpack.c.h.b16 %v759
  %v848 = vunpack.c.l.b16 %v760
  %v849 = vunpack.c.h.b16 %v760
  %v850 = vunpack.c.l.b16 %v761
  %v851 = vunpack.c.h.b16 %v761
  %v852 = vunpack.c.l.b16 %v762
  %v853 = vunpack.c.h.b16 %v762
  %v854 = vunpack.c.l.b16 %v763
  %v855 = vunpack.c.h.b16 %v763
  %v856 = vunpack.c.l.b16 %v764
  %v857 = vunpack.c.h.b16 %v764
  %v858 = vunpack.c.l.b16 %v765
  %v859 = vunpack.c.h.b16 %v765
  %v860 = vunpack.c.l.b16 %v766
  %v861 = vunpack.c.h.b16 %v766
  %v862 = vunpack.c.l.b16 %v767
  %v863 = vunpack.c.h.b16 %v767
  %v864 = vpack.c.b16 %v800, %v800
  %v865 = vpack.c.b16 %v801, %v801
  %v866 = vpack.c.b16 %v802, %v802
  %v867 = vpack.c.b16 %v803, %v803
  %v868 = vpack.c.b16 %v804, %v804
  %v869 = vpack.c.b16 %v805, %v805
  %v870 = vpack.c.b16 %v806, %v806
  %v871 = vpack.c.b16 %v807, %v807
  %v872 = vpack.c.b16 %v808, %v808
  %v873 = vpack.c.b16 %v809, %v809
  %v874 = vpack.c.b16 %v810, %v810
  %v875 = vpack.c.b16 %v811, %v811
  %v876 = vpack.c.b16 %v812, %v812
  %v877 = vpack.c.b16 %v813, %v813
  %v878 = vpack.c.b16 %v814, %v814
  %v879 = vpack.c.b16 %v815, %v815
  %v880 = vpack.c.b16 %v816, %v816
  %v881 = vpack.c.b16 %v817, %v817
  %v882 = vpack.c.b16 %v818, %v818
  %v883 = vpack.c.b16 %v819, %v819
  %v884 = vpack.c.b16 %v820, %v820
  %v885 = vpack.c.b16 %v821, %v821
  %v886 = vpack.c.b16 %v822, %v822
  %v887 = vpack.c.b16 %v823, %v823
  %v888 = vpack.c.b16 %v824, %v824
  %v889 = vpack.c.b16 %v825, %v825
  %v890 = vpack.c.b16 %v826, %v826
  %v891 = vpack.c.b16 %v827, %v827
  %v892 = vpack.c.b16 %v828, %v828
  %v893 = vpack.c.b16 %v829, %v829
  %v894 = vpack.c.b16 %v830, %v830
  %v895 = vpack.c.b16 %v831, %v831
  %v896 = vpack.c.b16 %v832, %v832
  %v897 = vpack.c.b16 %v833, %v833
  %v898 = vpack.c.b16 %v834, %v834
  %v899 = vpack.c.b16 %v835, %v835
  %v900 = vpack.c.b16 %v836, %v836
  %v901 = vpack.c.b16 %v837, %v837
  %v902 = vpack.c.b16 %v838, %v838
  %v903 = vpack.c.b16 %v839, %v839
  %v904 = vpack.c.b16 %v840, %v840
  %v905 = vpack.c.b16 %v841, %v841
  %v906 = vpack.c.b16 %v842, %v842
  %v907 = vpack.c.b16 %v843, %v843
  %v908 = vpack.c.b16 %v844, %v844
  %v909 = vpack.c.b16 %v845, %v845
  %v910 = vpack.c.b16 %v846, %v846
  %v911 = vpack.c.b16 %v847, %v847
  %v912 = vpack.c.b16 %v848, %v848
  %v913 = vpack.c.b16 %v849, %v849
  %v914 = vpack.c.b16 %v850, %v850
  %v915 = vpack.c.b16 %v851, %v851
  %v916 = vpack.c.b16 %v852, %v852
  %v917 = vpack.c.b16 %v853, %v853
  %v918 = vpack.c.b16 %v854, %v854
  %v919 = vpack.c.b16 %v855, %v855
  %v920 = vpack.c.b16 %v856, %v856
  %v921 = vpack.c.b16 %v857, %v857
  %v922 = vpack.c.b16 %v858, %v858
  %v923 = vpack.c.b16 %v859, %v859
  %v924 = vpack.c.b16 %v860, %v860
  %v925 = vpack.c.b16 %v861, %v861
  %v926 = vpack.c.b16 %v862, %v862
  %v927 = vpack.c.b16 %v863, %v863
  %vm992 = vcmask 125952
  %993 = vst.msk [vmem:[%s3] sm:$0xf] %vm992, %v864
  %994 = vst.msk [vmem:[%s3 + $0x4] sm:$0xf] %vm992, %v865
  %995 = vst.msk [vmem:[%s3 + $0x8] sm:$0xf] %vm992, %v866
  %996 = vst.msk [vmem:[%s3 + $0xc] sm:$0xf] %vm992, %v867
  %997 = vst.msk [vmem:[%s3 + $0x10] sm:$0xf] %vm992, %v868
  %998 = vst.msk [vmem:[%s3 + $0x14] sm:$0xf] %vm992, %v869
  %999 = vst.msk [vmem:[%s3 + $0x18] sm:$0xf] %vm992, %v870
  %1000 = vst.msk [vmem:[%s3 + $0x1c] sm:$0xf] %vm992, %v871
  %1001 = vst.msk [vmem:[%s3 + $0x20] sm:$0xf] %vm992, %v872
  %1002 = vst.msk [vmem:[%s3 + $0x24] sm:$0xf] %vm992, %v873
  %1003 = vst.msk [vmem:[%s3 + $0x28] sm:$0xf] %vm992, %v874
  %1004 = vst.msk [vmem:[%s3 + $0x2c] sm:$0xf] %vm992, %v875
  %1005 = vst.msk [vmem:[%s3 + $0x30] sm:$0xf] %vm992, %v876
  %1006 = vst.msk [vmem:[%s3 + $0x34] sm:$0xf] %vm992, %v877
  %1007 = vst.msk [vmem:[%s3 + $0x38] sm:$0xf] %vm992, %v878
  %1008 = vst.msk [vmem:[%s3 + $0x3c] sm:$0xf] %vm992, %v879
  %1009 = vst.msk [vmem:[%s3 + $0x40] sm:$0xf] %vm992, %v880
  %1010 = vst.msk [vmem:[%s3 + $0x44] sm:$0xf] %vm992, %v881
  %1011 = vst.msk [vmem:[%s3 + $0x48] sm:$0xf] %vm992, %v882
  %1012 = vst.msk [vmem:[%s3 + $0x4c] sm:$0xf] %vm992, %v883
  %1013 = vst.msk [vmem:[%s3 + $0x50] sm:$0xf] %vm992, %v884
  %1014 = vst.msk [vmem:[%s3 + $0x54] sm:$0xf] %vm992, %v885
  %1015 = vst.msk [vmem:[%s3 + $0x58] sm:$0xf] %vm992, %v886
  %1016 = vst.msk [vmem:[%s3 + $0x5c] sm:$0xf] %vm992, %v887
  %1017 = vst.msk [vmem:[%s3 + $0x60] sm:$0xf] %vm992, %v888
  %1018 = vst.msk [vmem:[%s3 + $0x64] sm:$0xf] %vm992, %v889
  %1019 = vst.msk [vmem:[%s3 + $0x68] sm:$0xf] %vm992, %v890
  %1020 = vst.msk [vmem:[%s3 + $0x6c] sm:$0xf] %vm992, %v891
  %1021 = vst.msk [vmem:[%s3 + $0x70] sm:$0xf] %vm992, %v892
  %1022 = vst.msk [vmem:[%s3 + $0x74] sm:$0xf] %vm992, %v893
  %1023 = vst.msk [vmem:[%s3 + $0x78] sm:$0xf] %vm992, %v894
  %1024 = vst.msk [vmem:[%s3 + $0x7c] sm:$0xf] %vm992, %v895
  %1025 = vst.msk [vmem:[%s3 + $0x80] sm:$0xf] %vm992, %v896
  %1026 = vst.msk [vmem:[%s3 + $0x84] sm:$0xf] %vm992, %v897
  %1027 = vst.msk [vmem:[%s3 + $0x88] sm:$0xf] %vm992, %v898
  %1028 = vst.msk [vmem:[%s3 + $0x8c] sm:$0xf] %vm992, %v899
  %1029 = vst.msk [vmem:[%s3 + $0x90] sm:$0xf] %vm992, %v900
  %1030 = vst.msk [vmem:[%s3 + $0x94] sm:$0xf] %vm992, %v901
  %1031 = vst.msk [vmem:[%s3 + $0x98] sm:$0xf] %vm992, %v902
  %1032 = vst.msk [vmem:[%s3 + $0x9c] sm:$0xf] %vm992, %v903
  %1033 = vst.msk [vmem:[%s3 + $0xa0] sm:$0xf] %vm992, %v904
  %1034 = vst.msk [vmem:[%s3 + $0xa4] sm:$0xf] %vm992, %v905
  %1035 = vst.msk [vmem:[%s3 + $0xa8] sm:$0xf] %vm992, %v906
  %1036 = vst.msk [vmem:[%s3 + $0xac] sm:$0xf] %vm992, %v907
  %1037 = vst.msk [vmem:[%s3 + $0xb0] sm:$0xf] %vm992, %v908
  %1038 = vst.msk [vmem:[%s3 + $0xb4] sm:$0xf] %vm992, %v909
  %1039 = vst.msk [vmem:[%s3 + $0xb8] sm:$0xf] %vm992, %v910
  %1040 = vst.msk [vmem:[%s3 + $0xbc] sm:$0xf] %vm992, %v911
  %1041 = vst.msk [vmem:[%s3 + $0xc0] sm:$0xf] %vm992, %v912
  %1042 = vst.msk [vmem:[%s3 + $0xc4] sm:$0xf] %vm992, %v913
  %1043 = vst.msk [vmem:[%s3 + $0xc8] sm:$0xf] %vm992, %v914
  %1044 = vst.msk [vmem:[%s3 + $0xcc] sm:$0xf] %vm992, %v915
  %1045 = vst.msk [vmem:[%s3 + $0xd0] sm:$0xf] %vm992, %v916
  %1046 = vst.msk [vmem:[%s3 + $0xd4] sm:$0xf] %vm992, %v917
  %1047 = vst.msk [vmem:[%s3 + $0xd8] sm:$0xf] %vm992, %v918
  %1048 = vst.msk [vmem:[%s3 + $0xdc] sm:$0xf] %vm992, %v919
  %1049 = vst.msk [vmem:[%s3 + $0xe0] sm:$0xf] %vm992, %v920
  %1050 = vst.msk [vmem:[%s3 + $0xe4] sm:$0xf] %vm992, %v921
  %1051 = vst.msk [vmem:[%s3 + $0xe8] sm:$0xf] %vm992, %v922
  %1052 = vst.msk [vmem:[%s3 + $0xec] sm:$0xf] %vm992, %v923
  %1053 = vst.msk [vmem:[%s3 + $0xf0] sm:$0xf] %vm992, %v924
  %1054 = vst.msk [vmem:[%s3 + $0xf4] sm:$0xf] %vm992, %v925
  %1055 = vst.msk [vmem:[%s3 + $0xf8] sm:$0xf] %vm992, %v926
  %1056 = vst.msk [vmem:[%s3 + $0xfc] sm:$0xf] %vm992, %v927
  // Predicated region
  $region14: #{generator_forward.11} parent=0 // pred_check
    _
  $region15: #{generator_forward.11} parent=0 // pred_check_branch
    %1058 = sbr.rel (0) target = $region17
  $region16: #{generator_forward.11} parent=0 // pred_region
    _
  $region17: #{generator_forward.11} parent=0 // pred_fallthru
    _
  // Predicated region
  $region18: #{generator_forward.11} parent=0 // pred_check
    _
  $region19: #{generator_forward.11} parent=0 // pred_check_branch
    %1060 = sbr.rel (0) target = $region21
  $region20: #{generator_forward.11} parent=0 // pred_region
    _
  $region21: #{generator_forward.11} parent=0 // pred_fallthru
    _

// kernel: generator_forward.12
$region0: #{generator_forward.12}
  #allocation0 [shape = 'u32[]', space=smem, size = 0x4, offset = 0x4, fixed_abs, tag = 'smem constant byte address 0x4 - core index']
  #allocation1 [shape = 'u32[144,128]{1,0:T(1,128)}', space=vmem, size = 0x12000, scoped, tag = 'internal scratch']
  %s0 = inlined_call_operand.vmem [shape: bf16[128,144], index: 0, kind: input, shape index: {}]
  %s1 = inlined_call_operand.vmem [shape: bf16[144,32], index: 1, kind: input, shape index: {}]
  %s2 = inlined_call_operand.vmem [shape: f32[1,32], index: 2, kind: input, shape index: {}]
  %s3 = inlined_call_operand.vmem [shape: bf16[128,32], index: 3, kind: output, shape index: {}]
  %s4 = sld [smem:[#allocation0]]
  $region22: #{generator_forward.12} parent=0
    _
  %s6 = ssub.s32 1, %s4
  %s7 = scalar_select 0, %s6, %s4
  // Predicated region
  $region2: #{generator_forward.12} parent=0 // pred_check
    _
  $region3: #{generator_forward.12} parent=0 // pred_check_branch
    %9 = sbr.rel (0) target = $region5
  $region4: #{generator_forward.12} parent=0 // pred_region
    _
  $region5: #{generator_forward.12} parent=0 // pred_fallthru
    _
  // Predicated region
  $region6: #{generator_forward.12} parent=0 // pred_check
    _
  $region7: #{generator_forward.12} parent=0 // pred_check_branch
    %11 = sbr.rel (0) target = $region9
  $region8: #{generator_forward.12} parent=0 // pred_region
    _
  $region9: #{generator_forward.12} parent=0 // pred_fallthru
    _
  // Predicated region
  $region10: #{generator_forward.12} parent=0 // pred_check
    _
  $region11: #{generator_forward.12} parent=0 // pred_check_branch
    %13 = sbr.rel (0) target = $region13
  $region12: #{generator_forward.12} parent=0 // pred_region
    _
  $region13: #{generator_forward.12} parent=0 // pred_fallthru
    _
  %v15 = vld [vmem:[%s0] sm:$0xff]
  %v16 = vld [vmem:[%s0 + $0x8] sm:$0xff]
  %v17 = vld [vmem:[%s0 + $0x10] sm:$0xff]
  %v18 = vld [vmem:[%s0 + $0x18] sm:$0xff]
  %v19 = vld [vmem:[%s0 + $0x20] sm:$0xff]
  %v20 = vld [vmem:[%s0 + $0x28] sm:$0xff]
  %v21 = vld [vmem:[%s0 + $0x30] sm:$0xff]
  %v22 = vld [vmem:[%s0 + $0x38] sm:$0xff]
  %v23 = vld [vmem:[%s0 + $0x40] sm:$0xff]
  %v24 = vld [vmem:[%s0 + $0x48] sm:$0xff]
  %v25 = vld [vmem:[%s0 + $0x50] sm:$0xff]
  %v26 = vld [vmem:[%s0 + $0x58] sm:$0xff]
  %v27 = vld [vmem:[%s0 + $0x60] sm:$0xff]
  %v28 = vld [vmem:[%s0 + $0x68] sm:$0xff]
  %v29 = vld [vmem:[%s0 + $0x70] sm:$0xff]
  %v30 = vld [vmem:[%s0 + $0x78] sm:$0xff]
  %v31 = vld [vmem:[%s1] sm:$0xf]
  %v32 = vld [vmem:[%s1 + $0x4] sm:$0xf]
  %v33 = vld [vmem:[%s1 + $0x8] sm:$0xf]
  %v34 = vld [vmem:[%s1 + $0xc] sm:$0xf]
  %v35 = vld [vmem:[%s1 + $0x10] sm:$0xf]
  %v36 = vld [vmem:[%s1 + $0x14] sm:$0xf]
  %v37 = vld [vmem:[%s1 + $0x18] sm:$0xf]
  %v38 = vld [vmem:[%s1 + $0x1c] sm:$0xf]
  %v39 = vld [vmem:[%s1 + $0x20] sm:$0xf]
  %v40 = vld [vmem:[%s1 + $0x24] sm:$0xf]
  %v41 = vld [vmem:[%s1 + $0x28] sm:$0xf]
  %v42 = vld [vmem:[%s1 + $0x2c] sm:$0xf]
  %v43 = vld [vmem:[%s1 + $0x30] sm:$0xf]
  %v44 = vld [vmem:[%s1 + $0x34] sm:$0xf]
  %v45 = vld [vmem:[%s1 + $0x38] sm:$0xf]
  %v46 = vld [vmem:[%s1 + $0x3c] sm:$0xf]
  %v47 = vld [vmem:[%s1 + $0x40] sm:$0xf]
  %v48 = vld [vmem:[%s1 + $0x44] sm:$0xf]
  %v49 = vld [vmem:[%s2] sm:$0x1]
  %v51 = vlaneseq
  %v52 = vshrl.u32 %v51, 7
  %v53 = vsub.s32 0, %v52
  %v54 = vrot.slane %v49, %v53
  %v72 = vunpack.c.l.b16 %v15
  %v73 = vunpack.c.h.b16 %v15
  %v74 = vunpack.c.l.b16 %v16
  %v75 = vunpack.c.h.b16 %v16
  %v76 = vunpack.c.l.b16 %v17
  %v77 = vunpack.c.h.b16 %v17
  %v78 = vunpack.c.l.b16 %v18
  %v79 = vunpack.c.h.b16 %v18
  %v80 = vunpack.c.l.b16 %v19
  %v81 = vunpack.c.h.b16 %v19
  %v82 = vunpack.c.l.b16 %v20
  %v83 = vunpack.c.h.b16 %v20
  %v84 = vunpack.c.l.b16 %v21
  %v85 = vunpack.c.h.b16 %v21
  %v86 = vunpack.c.l.b16 %v22
  %v87 = vunpack.c.h.b16 %v22
  %v88 = vunpack.c.l.b16 %v23
  %v89 = vunpack.c.h.b16 %v23
  %v90 = vunpack.c.l.b16 %v24
  %v91 = vunpack.c.h.b16 %v24
  %v92 = vunpack.c.l.b16 %v25
  %v93 = vunpack.c.h.b16 %v25
  %v94 = vunpack.c.l.b16 %v26
  %v95 = vunpack.c.h.b16 %v26
  %v96 = vunpack.c.l.b16 %v27
  %v97 = vunpack.c.h.b16 %v27
  %v98 = vunpack.c.l.b16 %v28
  %v99 = vunpack.c.h.b16 %v28
  %v100 = vunpack.c.l.b16 %v29
  %v101 = vunpack.c.h.b16 %v29
  %v102 = vunpack.c.l.b16 %v30
  %v103 = vunpack.c.h.b16 %v30
  %v104 = vpack.c.b16 %v74, %v72
  %v105 = vpack.c.b16 %v75, %v73
  %v106 = vpack.c.b16 %v78, %v76
  %v107 = vpack.c.b16 %v79, %v77
  %v108 = vpack.c.b16 %v82, %v80
  %v109 = vpack.c.b16 %v83, %v81
  %v110 = vpack.c.b16 %v86, %v84
  %v111 = vpack.c.b16 %v87, %v85
  %v112 = vpack.c.b16 %v90, %v88
  %v113 = vpack.c.b16 %v91, %v89
  %v114 = vpack.c.b16 %v94, %v92
  %v115 = vpack.c.b16 %v95, %v93
  %v116 = vpack.c.b16 %v98, %v96
  %v117 = vpack.c.b16 %v99, %v97
  %v118 = vpack.c.b16 %v102, %v100
  %v119 = vpack.c.b16 %v103, %v101
  %v146 = vunpack.c.l.b16 %v31
  %v147 = vunpack.c.l.b16 %v32
  %v148 = vunpack.c.l.b16 %v33
  %v149 = vunpack.c.l.b16 %v34
  %v150 = vunpack.c.l.b16 %v35
  %v151 = vunpack.c.l.b16 %v36
  %v152 = vunpack.c.l.b16 %v37
  %v153 = vunpack.c.l.b16 %v38
  %v154 = vunpack.c.l.b16 %v39
  %v155 = vunpack.c.l.b16 %v40
  %v156 = vunpack.c.l.b16 %v41
  %v157 = vunpack.c.l.b16 %v42
  %v158 = vunpack.c.l.b16 %v43
  %v159 = vunpack.c.l.b16 %v44
  %v160 = vunpack.c.l.b16 %v45
  %v161 = vunpack.c.l.b16 %v46
  %v162 = vunpack.c.l.b16 %v47
  %v163 = vunpack.c.l.b16 %v48
  %v164 = vpack.c.b16 %v147, %v146
  %v165 = vpack.c.b16 %v149, %v148
  %v166 = vpack.c.b16 %v151, %v150
  %v167 = vpack.c.b16 %v153, %v152
  %v168 = vpack.c.b16 %v155, %v154
  %v169 = vpack.c.b16 %v157, %v156
  %v170 = vpack.c.b16 %v159, %v158
  %v171 = vpack.c.b16 %v161, %v160
  %v172 = vpack.c.b16 %v163, %v162
  %vm182 = vcmask 130048
  %v184 = vsel %vm182, %v105, 0
  %v187 = vsel %vm182, %v107, 0
  %v190 = vsel %vm182, %v109, 0
  %v193 = vsel %vm182, %v111, 0
  %v196 = vsel %vm182, %v113, 0
  %v199 = vsel %vm182, %v115, 0
  %v202 = vsel %vm182, %v117, 0
  %v205 = vsel %vm182, %v119, 0
  %207 = vmatprep.subr.bf16.mxu0 0
  %208 = vmatpush1.bf16.msra.mxu0 %v171
  %209 = vmatprep.subr.bf16.mxu0 0
  %210 = vmatpush1.bf16.msra.mxu0 %v170
  %211 = vmatprep.subr.bf16.mxu0 0
  %212 = vmatpush1.bf16.msra.mxu0 %v169
  %213 = vmatprep.subr.bf16.mxu0 0
  %214 = vmatpush1.bf16.msra.mxu0 %v168
  %215 = vmatprep.subr.bf16.mxu0 0
  %216 = vmatpush1.bf16.msra.mxu0 %v167
  %217 = vmatprep.subr.bf16.mxu0 0
  %218 = vmatpush1.bf16.msra.mxu0 %v166
  %219 = vmatprep.subr.bf16.mxu0 0
  %220 = vmatpush1.bf16.msra.mxu0 %v165
  %221 = vmatprep.subr.bf16.mxu0 0
  %222 = vmatpush1.bf16.msra.mxu0 %v164
  %223 = vmatprep.subr.bf16.mxu0 0
  %224 = vmatpush2.bf16.msra.mxu0 0
  %225 = vmatprep.subr.bf16.mxu0 0
  %226 = vmatpush2.bf16.msra.mxu0 0
  %227 = vmatprep.subr.bf16.mxu0 0
  %228 = vmatpush2.bf16.msra.mxu0 0
  %229 = vmatprep.subr.bf16.mxu0 0
  %230 = vmatpush2.bf16.msra.mxu0 0
  %231 = vmatprep.subr.bf16.mxu0 0
  %232 = vmatpush2.bf16.msra.mxu0 0
  %233 = vmatprep.subr.bf16.mxu0 0
  %234 = vmatpush2.bf16.msra.mxu0 0
  %235 = vmatprep.subr.bf16.mxu0 0
  %236 = vmatpush2.bf16.msra.mxu0 0
  %237 = vmatprep.subr.bf16.mxu0 0
  %238 = vmatpush2.bf16.msra.mxu0 %v172
  %239 = vmatprep.mubr.bf16.mxu0 %v184
  %240 = vmatmul.mubr.bf16.gmra.mxu0 %v104
  %v241 = vpop.f32.mrf.mxu0
  %v242 = vadd.f32 %v54, %v241
  %v243 = vpop.f32.mrf.mxu0
  %v244 = vpop.f32.mrf.mxu0
  %v245 = vadd.f32 %v54, %v244
  %v246 = vpop.f32.mrf.mxu0
  %247 = vmatprep.mubr.bf16.mxu0 %v187
  %248 = vmatmul.mubr.bf16.gmra.mxu0 %v106
  %v249 = vpop.f32.mrf.mxu0
  %v250 = vadd.f32 %v54, %v249
  %v251 = vpop.f32.mrf.mxu0
  %v252 = vpop.f32.mrf.mxu0
  %v253 = vadd.f32 %v54, %v252
  %v254 = vpop.f32.mrf.mxu0
  %255 = vmatprep.mubr.bf16.mxu0 %v190
  %256 = vmatmul.mubr.bf16.gmra.mxu0 %v108
  %v257 = vpop.f32.mrf.mxu0
  %v258 = vadd.f32 %v54, %v257
  %v259 = vpop.f32.mrf.mxu0
  %v260 = vpop.f32.mrf.mxu0
  %v261 = vadd.f32 %v54, %v260
  %v262 = vpop.f32.mrf.mxu0
  %263 = vmatprep.mubr.bf16.mxu0 %v193
  %264 = vmatmul.mubr.bf16.gmra.mxu0 %v110
  %v265 = vpop.f32.mrf.mxu0
  %v266 = vadd.f32 %v54, %v265
  %v267 = vpop.f32.mrf.mxu0
  %v268 = vpop.f32.mrf.mxu0
  %v269 = vadd.f32 %v54, %v268
  %v270 = vpop.f32.mrf.mxu0
  %271 = vmatprep.mubr.bf16.mxu0 %v196
  %272 = vmatmul.mubr.bf16.gmra.mxu0 %v112
  %v273 = vpop.f32.mrf.mxu0
  %v274 = vadd.f32 %v54, %v273
  %v275 = vpop.f32.mrf.mxu0
  %v276 = vpop.f32.mrf.mxu0
  %v277 = vadd.f32 %v54, %v276
  %v278 = vpop.f32.mrf.mxu0
  %279 = vmatprep.mubr.bf16.mxu0 %v199
  %280 = vmatmul.mubr.bf16.gmra.mxu0 %v114
  %v281 = vpop.f32.mrf.mxu0
  %v282 = vadd.f32 %v54, %v281
  %v283 = vpop.f32.mrf.mxu0
  %v284 = vpop.f32.mrf.mxu0
  %v285 = vadd.f32 %v54, %v284
  %v286 = vpop.f32.mrf.mxu0
  %287 = vmatprep.mubr.bf16.mxu0 %v202
  %288 = vmatmul.mubr.bf16.gmra.mxu0 %v116
  %v289 = vpop.f32.mrf.mxu0
  %v290 = vadd.f32 %v54, %v289
  %v291 = vpop.f32.mrf.mxu0
  %v292 = vpop.f32.mrf.mxu0
  %v293 = vadd.f32 %v54, %v292
  %v294 = vpop.f32.mrf.mxu0
  %295 = vmatprep.mubr.bf16.mxu0 %v205
  %296 = vmatmul.mubr.bf16.gmra.mxu0 %v118
  %v297 = vpop.f32.mrf.mxu0
  %v298 = vadd.f32 %v54, %v297
  %v299 = vpop.f32.mrf.mxu0
  %v300 = vpop.f32.mrf.mxu0
  %v301 = vadd.f32 %v54, %v300
  %v302 = vpop.f32.mrf.mxu0
  %303 = vdwg.mxu0
  %v304 = vmax.f32 %v242, 0.0
  %v305 = vmax.f32 %v245, 0.0
  %v306 = vmax.f32 %v250, 0.0
  %v307 = vmax.f32 %v253, 0.0
  %v308 = vmax.f32 %v258, 0.0
  %v309 = vmax.f32 %v261, 0.0
  %v310 = vmax.f32 %v266, 0.0
  %v311 = vmax.f32 %v269, 0.0
  %v312 = vmax.f32 %v274, 0.0
  %v313 = vmax.f32 %v277, 0.0
  %v314 = vmax.f32 %v282, 0.0
  %v315 = vmax.f32 %v285, 0.0
  %v316 = vmax.f32 %v290, 0.0
  %v317 = vmax.f32 %v293, 0.0
  %v318 = vmax.f32 %v298, 0.0
  %v319 = vmax.f32 %v301, 0.0
  %v320 = vpack.c.bf16 %v305, %v304
  %v321 = vpack.c.bf16 %v307, %v306
  %v322 = vpack.c.bf16 %v309, %v308
  %v323 = vpack.c.bf16 %v311, %v310
  %v324 = vpack.c.bf16 %v313, %v312
  %v325 = vpack.c.bf16 %v315, %v314
  %v326 = vpack.c.bf16 %v317, %v316
  %v327 = vpack.c.bf16 %v319, %v318
  %v336 = vunpack.c.l.b16 %v320
  %v337 = vunpack.c.h.b16 %v320
  %v338 = vunpack.c.l.b16 %v321
  %v339 = vunpack.c.h.b16 %v321
  %v340 = vunpack.c.l.b16 %v322
  %v341 = vunpack.c.h.b16 %v322
  %v342 = vunpack.c.l.b16 %v323
  %v343 = vunpack.c.h.b16 %v323
  %v344 = vunpack.c.l.b16 %v324
  %v345 = vunpack.c.h.b16 %v324
  %v346 = vunpack.c.l.b16 %v325
  %v347 = vunpack.c.h.b16 %v325
  %v348 = vunpack.c.l.b16 %v326
  %v349 = vunpack.c.h.b16 %v326
  %v350 = vunpack.c.l.b16 %v327
  %v351 = vunpack.c.h.b16 %v327
  %v352 = vpack.c.b16 %v336, %v336
  %v353 = vpack.c.b16 %v337, %v337
  %v354 = vpack.c.b16 %v338, %v338
  %v355 = vpack.c.b16 %v339, %v339
  %v356 = vpack.c.b16 %v340, %v340
  %v357 = vpack.c.b16 %v341, %v341
  %v358 = vpack.c.b16 %v342, %v342
  %v359 = vpack.c.b16 %v343, %v343
  %v360 = vpack.c.b16 %v344, %v344
  %v361 = vpack.c.b16 %v345, %v345
  %v362 = vpack.c.b16 %v346, %v346
  %v363 = vpack.c.b16 %v347, %v347
  %v364 = vpack.c.b16 %v348, %v348
  %v365 = vpack.c.b16 %v349, %v349
  %v366 = vpack.c.b16 %v350, %v350
  %v367 = vpack.c.b16 %v351, %v351
  %vm384 = vcmask 257024
  %385 = vst.msk [vmem:[%s3] sm:$0xf] %vm384, %v352
  %386 = vst.msk [vmem:[%s3 + $0x4] sm:$0xf] %vm384, %v353
  %387 = vst.msk [vmem:[%s3 + $0x8] sm:$0xf] %vm384, %v354
  %388 = vst.msk [vmem:[%s3 + $0xc] sm:$0xf] %vm384, %v355
  %389 = vst.msk [vmem:[%s3 + $0x10] sm:$0xf] %vm384, %v356
  %390 = vst.msk [vmem:[%s3 + $0x14] sm:$0xf] %vm384, %v357
  %391 = vst.msk [vmem:[%s3 + $0x18] sm:$0xf] %vm384, %v358
  %392 = vst.msk [vmem:[%s3 + $0x1c] sm:$0xf] %vm384, %v359
  %393 = vst.msk [vmem:[%s3 + $0x20] sm:$0xf] %vm384, %v360
  %394 = vst.msk [vmem:[%s3 + $0x24] sm:$0xf] %vm384, %v361
  %395 = vst.msk [vmem:[%s3 + $0x28] sm:$0xf] %vm384, %v362
  %396 = vst.msk [vmem:[%s3 + $0x2c] sm:$0xf] %vm384, %v363
  %397 = vst.msk [vmem:[%s3 + $0x30] sm:$0xf] %vm384, %v364
  %398 = vst.msk [vmem:[%s3 + $0x34] sm:$0xf] %vm384, %v365
  %399 = vst.msk [vmem:[%s3 + $0x38] sm:$0xf] %vm384, %v366
  %400 = vst.msk [vmem:[%s3 + $0x3c] sm:$0xf] %vm384, %v367
  // Predicated region
  $region14: #{generator_forward.12} parent=0 // pred_check
    _
  $region15: #{generator_forward.12} parent=0 // pred_check_branch
    %402 = sbr.rel (0) target = $region17
  $region16: #{generator_forward.12} parent=0 // pred_region
    _
  $region17: #{generator_forward.12} parent=0 // pred_fallthru
    _
  // Predicated region
  $region18: #{generator_forward.12} parent=0 // pred_check
    _
  $region19: #{generator_forward.12} parent=0 // pred_check_branch
    %404 = sbr.rel (0) target = $region21
  $region20: #{generator_forward.12} parent=0 // pred_region
    _
  $region21: #{generator_forward.12} parent=0 // pred_fallthru
    _

// kernel: generator_forward.13
$region0: #{generator_forward.13}
  #allocation0 [shape = 'u32[]', space=smem, size = 0x4, offset = 0x4, fixed_abs, tag = 'smem constant byte address 0x4 - core index']
  #allocation1 [shape = 'u32[144,128]{1,0:T(1,128)}', space=vmem, size = 0x12000, scoped, tag = 'internal scratch']
  %s0 = inlined_call_operand.vmem [shape: bf16[2,10,10,128], index: 0, kind: input, shape index: {}]
  %s1 = inlined_call_operand.vmem [shape: bf16[1152,32], index: 1, kind: input, shape index: {}]
  %s2 = inlined_call_operand.vmem [shape: f32[1,32], index: 2, kind: input, shape index: {}]
  %s3 = inlined_call_operand.vmem [shape: bf16[2,8,8,32], index: 3, kind: output, shape index: {}]
  %s4 = sld [smem:[#allocation0]]
  $region45: #{generator_forward.13} parent=0
    _
  %s6 = ssub.s32 1, %s4
  %s7 = scalar_select 0, %s6, %s4
  loop: start=0, step=1, limit=4
  $region2: #{generator_forward.13} parent=0 // loop_pre_header
    _
  $region3: #{generator_forward.13} parent=0 // loop_header
    %s9 = sphi 0, %s13
    %p10 = scmp.ge.s32.totalorder %s9, 4
    %s19 = sphi 0, %s21
    %s22 = sphi 0, %s19
    %s23 = sphi 0, %s22
    %s39 = sphi 0, %s23
    %s43 = sphi 0, %s43
    %s45 = sphi 0, %s43
    %s46 = sphi 0, %s45
    %s60 = sphi 0, %s46
    %s64 = sphi 0, %s64
    %s66 = sphi 0, %s64
    %s67 = sphi 0, %s66
    %s81 = sphi 0, %s67
    %s87 = sphi 0, %s89
    %s90 = sphi 0, %s87
    %s91 = sphi 0, %s90
    %s107 = sphi 0, %s91
  $region4: #{generator_forward.13} parent=0 // loop_header_branch
    %12 = sbr.rel (%p10) target = $region8
  $region5: #{generator_forward.13} parent=0 // loop_body
    %s14 = ssub.s32 %s9, 1
    %s15 = ssub.s32 %s9, 2
    %s16 = sadd.s32 %s9, 1
    %s17 = ssub.s32 %s9, %s16
    %p18 = scmp.eq.s32.totalorder %s17, 0
    %s20 = sadd.s32 %s19, 1
    %s21 = scalar_select %p18, %s19, %s20
    %p24 = pneg %p18
    %p25 = scmp.eq.s32.totalorder %s9, 1
    %p26 = por %p24, %p25
    %p27 = scmp.ne.s32.totalorder %s19, %s22
    %p28 = scmp.eq.s32.totalorder %s9, 0
    %p29 = por %p27, %p28
    %p30 = scmp.ne.s32.totalorder %s19, %s22
    %p31 = scmp.eq.s32.totalorder %s14, 1
    %p32 = por %p30, %p31
    %p33 = scmp.ne.s32.totalorder %s22, %s23
    %p34 = scmp.eq.s32.totalorder %s14, 0
    %p35 = por %p33, %p34
    %p36 = scmp.ne.s32.totalorder %s22, %s23
    %p37 = scmp.eq.s32.totalorder %s15, 1
    %p38 = por %p36, %p37
    %p40 = scmp.ne.s32.totalorder %s23, %s39
    %p41 = scmp.eq.s32.totalorder %s15, 0
    %p42 = por %p40, %p41
    %s44 = sadd.s32 %s43, 1
    %p47 = scmp.eq.s32.totalorder %s9, 1
    %p48 = scmp.ne.s32.totalorder %s43, %s45
    %p49 = scmp.eq.s32.totalorder %s9, 0
    %p50 = por %p48, %p49
    %p51 = scmp.ne.s32.totalorder %s43, %s45
    %p52 = scmp.eq.s32.totalorder %s14, 1
    %p53 = por %p51, %p52
    %p54 = scmp.ne.s32.totalorder %s45, %s46
    %p55 = scmp.eq.s32.totalorder %s14, 0
    %p56 = por %p54, %p55
    %p57 = scmp.ne.s32.totalorder %s45, %s46
    %p58 = scmp.eq.s32.totalorder %s15, 1
    %p59 = por %p57, %p58
    %p61 = scmp.ne.s32.totalorder %s46, %s60
    %p62 = scmp.eq.s32.totalorder %s15, 0
    %p63 = por %p61, %p62
    %s65 = sadd.s32 %s64, 1
    %p68 = scmp.eq.s32.totalorder %s9, 1
    %p69 = scmp.ne.s32.totalorder %s64, %s66
    %p70 = scmp.eq.s32.totalorder %s9, 0
    %p71 = por %p69, %p70
    %p72 = scmp.ne.s32.totalorder %s64, %s66
    %p73 = scmp.eq.s32.totalorder %s14, 1
    %p74 = por %p72, %p73
    %p75 = scmp.ne.s32.totalorder %s66, %s67
    %p76 = scmp.eq.s32.totalorder %s14, 0
    %p77 = por %p75, %p76
    %p78 = scmp.ne.s32.totalorder %s66, %s67
    %p79 = scmp.eq.s32.totalorder %s15, 1
    %p80 = por %p78, %p79
    %p82 = scmp.ne.s32.totalorder %s67, %s81
    %p83 = scmp.eq.s32.totalorder %s15, 0
    %p84 = por %p82, %p83
    %s85 = ssub.s32 %s9, %s16
    %p86 = scmp.eq.s32.totalorder %s85, 0
    %s88 = sadd.s32 %s87, 1
    %s89 = scalar_select %p86, %s87, %s88
    %p92 = pneg %p86
    %p93 = scmp.eq.s32.totalorder %s9, 1
    %p94 = por %p92, %p93
    %p95 = scmp.ne.s32.totalorder %s87, %s90
    %p96 = scmp.eq.s32.totalorder %s9, 0
    %p97 = por %p95, %p96
    %p98 = scmp.ne.s32.totalorder %s87, %s90
    %p99 = scmp.eq.s32.totalorder %s14, 1
    %p100 = por %p98, %p99
    %p101 = scmp.ne.s32.totalorder %s90, %s91
    %p102 = scmp.eq.s32.totalorder %s14, 0
    %p103 = por %p101, %p102
    %p104 = scmp.ne.s32.totalorder %s90, %s91
    %p105 = scmp.eq.s32.totalorder %s15, 1
    %p106 = por %p104, %p105
    %p108 = scmp.ne.s32.totalorder %s91, %s107
    %p109 = scmp.eq.s32.totalorder %s15, 0
    %p110 = por %p108, %p109
    %p111 = scmp.le.s32.totalorder 1, %s9
    %p112 = scmp.lt.s32.totalorder %s9, 3
    %p113 = pnand %p111, %p112
    %p114 = pneg %p113
    // Predicated region
    $region9: #{generator_forward.13} parent=5 // pred_check
      _
    $region10: #{generator_forward.13} parent=5 // pred_check_branch
      %116 = sbr.rel (%p113) target = $region12
    $region11: #{generator_forward.13} parent=5 // pred_region
      %s117 = ssub.s32 %s9, 1
      // Predicated region
      $region13: #{generator_forward.13} parent=11 // pred_check
        %p118 = pneg %p56
      $region14: #{generator_forward.13} parent=11 // pred_check_branch
        %120 = sbr.rel (%p118) target = $region16
      $region15: #{generator_forward.13} parent=11 // pred_region
        _
      $region16: #{generator_forward.13} parent=11 // pred_fallthru
        _
      // Predicated region
      $region17: #{generator_forward.13} parent=11 // pred_check
        %p121 = pneg %p77
      $region18: #{generator_forward.13} parent=11 // pred_check_branch
        %123 = sbr.rel (%p121) target = $region20
      $region19: #{generator_forward.13} parent=11 // pred_region
        _
      $region20: #{generator_forward.13} parent=11 // pred_fallthru
        _
    $region12: #{generator_forward.13} parent=5 // pred_fallthru
      _
    %p124 = scmp.lt.s32.totalorder %s9, 2
    // Predicated region
    $region21: #{generator_forward.13} parent=5 // pred_check
      %p125 = pneg %p124
    $region22: #{generator_forward.13} parent=5 // pred_check_branch
      %127 = sbr.rel (%p125) target = $region24
    $region23: #{generator_forward.13} parent=5 // pred_region
      // Predicated region
      $region25: #{generator_forward.13} parent=23 // pred_check
        %p128 = pneg %p29
      $region26: #{generator_forward.13} parent=23 // pred_check_branch
        %130 = sbr.rel (%p128) target = $region28
      $region27: #{generator_forward.13} parent=23 // pred_region
        %p131 = scmp.lt.s32.totalorder %s9, 1
        %s132 = scalar_select %p131, %s9, 1
        %s133 = smul.addr %s132, 20
        %s134 = smul.addr %s133, 4
        %s135 = scalar_lea.vmem %s0, %s134
      $region28: #{generator_forward.13} parent=23 // pred_fallthru
        _
    $region24: #{generator_forward.13} parent=5 // pred_fallthru
      _
    %p136 = scmp.le.s32.totalorder 1, %s9
    %p137 = scmp.lt.s32.totalorder %s9, 3
    %p138 = pnand %p136, %p137
    %p139 = pneg %p138
    // Predicated region
    $region29: #{generator_forward.13} parent=5 // pred_check
      _
    $region30: #{generator_forward.13} parent=5 // pred_check_branch
      %141 = sbr.rel (%p138) target = $region32
    $region31: #{generator_forward.13} parent=5 // pred_region
      %s142 = ssub.s32 %s9, 1
      %p143 = scmp.lt.s32.totalorder %s14, 1
      %s144 = scalar_select %p143, %s14, 1
      %s145 = smul.addr %s144, 20
      %s146 = smul.addr %s145, 4
      %s147 = scalar_lea.vmem %s0, %s146
      %p148 = pneg %p35
      %p149 = pneg %p32
      %p150 = pneg %p56
      %p151 = pneg %p53
      %p152 = pneg %p77
      %p153 = pneg %p74
      %p154 = pneg %p103
      %p155 = pneg %p100
      %p156 = scmp.lt.s32.totalorder %s14, 1
      %s157 = scalar_select %p156, %s14, 1
      %s158 = smul.addr %s157, 8
      %s159 = smul.addr %s158, 4
      %s160 = scalar_lea.vmem %s3, %s159
      %p161 = scmp.lt.s32.totalorder %s14, 1
      %s162 = scalar_select %p161, %s14, 1
      %s163 = smul.addr %s162, 20
      %s164 = smul.addr %s163, 4
      %s165 = scalar_lea.vmem %s0, %s164
      %p166 = scmp.lt.s32.totalorder %s14, 1
      %s167 = scalar_select %p166, %s14, 1
      %s168 = smul.addr %s167, 8
      %s169 = smul.addr %s168, 4
      %s170 = scalar_lea.vmem %s3, %s169
      %v172 = vld [vmem:[%s165] sm:$0xf]
      %v173 = vld [vmem:[%s165 + $0x8] sm:$0xf]
      %v174 = vld [vmem:[%s165 + $0x10] sm:$0xf]
      %v175 = vld [vmem:[%s165 + $0x18] sm:$0xf]
      %v176 = vld [vmem:[%s165 + $0x20] sm:$0xf]
      %v177 = vld [vmem:[%s165 + $0x28] sm:$0xf]
      %v178 = vld [vmem:[%s165 + $0x30] sm:$0xf]
      %v179 = vld [vmem:[%s165 + $0x38] sm:$0xf]
      %v180 = vld [vmem:[%s165 + $0x4] sm:$0x1]
      %v181 = vld [vmem:[%s165 + $0xc] sm:$0x1]
      %v182 = vld [vmem:[%s165 + $0x14] sm:$0x1]
      %v183 = vld [vmem:[%s165 + $0x1c] sm:$0x1]
      %v184 = vld [vmem:[%s165 + $0x24] sm:$0x1]
      %v185 = vld [vmem:[%s165 + $0x2c] sm:$0x1]
      %v186 = vld [vmem:[%s165 + $0x34] sm:$0x1]
      %v187 = vld [vmem:[%s165 + $0x3c] sm:$0x1]
      %v188 = vld [vmem:[%s165] sm:$0xe]
      %v189 = vld [vmem:[%s165 + $0x8] sm:$0xe]
      %v190 = vld [vmem:[%s165 + $0x10] sm:$0xe]
      %v191 = vld [vmem:[%s165 + $0x18] sm:$0xe]
      %v192 = vld [vmem:[%s165 + $0x20] sm:$0xe]
      %v193 = vld [vmem:[%s165 + $0x28] sm:$0xe]
      %v194 = vld [vmem:[%s165 + $0x30] sm:$0xe]
      %v195 = vld [vmem:[%s165 + $0x38] sm:$0xe]
      %s196 = scalar_lea.vmem %s165, 8
      %v197 = vld [vmem:[%s196] sm:$0xf]
      %v198 = vld [vmem:[%s196 + $0x8] sm:$0xf]
      %v199 = vld [vmem:[%s196 + $0x10] sm:$0xf]
      %v200 = vld [vmem:[%s196 + $0x18] sm:$0xf]
      %v201 = vld [vmem:[%s196 + $0x20] sm:$0xf]
      %v202 = vld [vmem:[%s196 + $0x28] sm:$0xf]
      %v203 = vld [vmem:[%s196 + $0x30] sm:$0xf]
      %v204 = vld [vmem:[%s196 + $0x38] sm:$0xf]
      %v205 = vld [vmem:[%s196 + $0x4] sm:$0x1]
      %v206 = vld [vmem:[%s196 + $0xc] sm:$0x1]
      %v207 = vld [vmem:[%s196 + $0x14] sm:$0x1]
      %v208 = vld [vmem:[%s196 + $0x1c] sm:$0x1]
      %v209 = vld [vmem:[%s196 + $0x24] sm:$0x1]
      %v210 = vld [vmem:[%s196 + $0x2c] sm:$0x1]
      %v211 = vld [vmem:[%s196 + $0x34] sm:$0x1]
      %v212 = vld [vmem:[%s196 + $0x3c] sm:$0x1]
      %v213 = vld [vmem:[%s196] sm:$0xe]
      %v214 = vld [vmem:[%s196 + $0x8] sm:$0xe]
      %v215 = vld [vmem:[%s196 + $0x10] sm:$0xe]
      %v216 = vld [vmem:[%s196 + $0x18] sm:$0xe]
      %v217 = vld [vmem:[%s196 + $0x20] sm:$0xe]
      %v218 = vld [vmem:[%s196 + $0x28] sm:$0xe]
      %v219 = vld [vmem:[%s196 + $0x30] sm:$0xe]
      %v220 = vld [vmem:[%s196 + $0x38] sm:$0xe]
      %s221 = scalar_lea.vmem %s165, 16
      %v222 = vld [vmem:[%s221] sm:$0xf]
      %v223 = vld [vmem:[%s221 + $0x8] sm:$0xf]
      %v224 = vld [vmem:[%s221 + $0x10] sm:$0xf]
      %v225 = vld [vmem:[%s221 + $0x18] sm:$0xf]
      %v226 = vld [vmem:[%s221 + $0x20] sm:$0xf]
      %v227 = vld [vmem:[%s221 + $0x28] sm:$0xf]
      %v228 = vld [vmem:[%s221 + $0x30] sm:$0xf]
      %v229 = vld [vmem:[%s221 + $0x38] sm:$0xf]
      %v230 = vld [vmem:[%s221 + $0x4] sm:$0x1]
      %v231 = vld [vmem:[%s221 + $0xc] sm:$0x1]
      %v232 = vld [vmem:[%s221 + $0x14] sm:$0x1]
      %v233 = vld [vmem:[%s221 + $0x1c] sm:$0x1]
      %v234 = vld [vmem:[%s221 + $0x24] sm:$0x1]
      %v235 = vld [vmem:[%s221 + $0x2c] sm:$0x1]
      %v236 = vld [vmem:[%s221 + $0x34] sm:$0x1]
      %v237 = vld [vmem:[%s221 + $0x3c] sm:$0x1]
      %v238 = vld [vmem:[%s221] sm:$0xe]
      %v239 = vld [vmem:[%s221 + $0x8] sm:$0xe]
      %v240 = vld [vmem:[%s221 + $0x10] sm:$0xe]
      %v241 = vld [vmem:[%s221 + $0x18] sm:$0xe]
      %v242 = vld [vmem:[%s221 + $0x20] sm:$0xe]
      %v243 = vld [vmem:[%s221 + $0x28] sm:$0xe]
      %v244 = vld [vmem:[%s221 + $0x30] sm:$0xe]
      %v245 = vld [vmem:[%s221 + $0x38] sm:$0xe]
      %v262 = vunpack.c.l.b16 %v172
      %v263 = vunpack.c.l.b16 %v180
      %v264 = vunpack.c.l.b16 %v173
      %v265 = vunpack.c.l.b16 %v181
      %v266 = vunpack.c.l.b16 %v174
      %v267 = vunpack.c.l.b16 %v182
      %v268 = vunpack.c.l.b16 %v175
      %v269 = vunpack.c.l.b16 %v183
      %v270 = vunpack.c.l.b16 %v176
      %v271 = vunpack.c.l.b16 %v184
      %v272 = vunpack.c.l.b16 %v177
      %v273 = vunpack.c.l.b16 %v185
      %v274 = vunpack.c.l.b16 %v178
      %v275 = vunpack.c.l.b16 %v186
      %v276 = vunpack.c.l.b16 %v179
      %v277 = vunpack.c.l.b16 %v187
      %v278 = vpack.c.b16 %v263, %v262
      %v279 = vpack.c.b16 %v265, %v264
      %v280 = vpack.c.b16 %v267, %v266
      %v281 = vpack.c.b16 %v269, %v268
      %v282 = vpack.c.b16 %v271, %v270
      %v283 = vpack.c.b16 %v273, %v272
      %v284 = vpack.c.b16 %v275, %v274
      %v285 = vpack.c.b16 %v277, %v276
      %v287 = vshrl.u32 %v278, 16
      %v289 = vshll.u32 %v278, 16
      %v291 = vrot.slane %v289, 1
      %v292 = vor.u32 %v287, %v291
      %v294 = vshrl.u32 %v279, 16
      %v296 = vshll.u32 %v279, 16
      %v298 = vrot.slane %v296, 1
      %v299 = vor.u32 %v294, %v298
      %v301 = vshrl.u32 %v280, 16
      %v303 = vshll.u32 %v280, 16
      %v305 = vrot.slane %v303, 1
      %v306 = vor.u32 %v301, %v305
      %v308 = vshrl.u32 %v281, 16
      %v310 = vshll.u32 %v281, 16
      %v312 = vrot.slane %v310, 1
      %v313 = vor.u32 %v308, %v312
      %v315 = vshrl.u32 %v282, 16
      %v317 = vshll.u32 %v282, 16
      %v319 = vrot.slane %v317, 1
      %v320 = vor.u32 %v315, %v319
      %v322 = vshrl.u32 %v283, 16
      %v324 = vshll.u32 %v283, 16
      %v326 = vrot.slane %v324, 1
      %v327 = vor.u32 %v322, %v326
      %v329 = vshrl.u32 %v284, 16
      %v331 = vshll.u32 %v284, 16
      %v333 = vrot.slane %v331, 1
      %v334 = vor.u32 %v329, %v333
      %v336 = vshrl.u32 %v285, 16
      %v338 = vshll.u32 %v285, 16
      %v340 = vrot.slane %v338, 1
      %v341 = vor.u32 %v336, %v340
      %v350 = vunpack.c.l.b16 %v188
      %v351 = vunpack.c.l.b16 %v189
      %v352 = vunpack.c.l.b16 %v190
      %v353 = vunpack.c.l.b16 %v191
      %v354 = vunpack.c.l.b16 %v192
      %v355 = vunpack.c.l.b16 %v193
      %v356 = vunpack.c.l.b16 %v194
      %v357 = vunpack.c.l.b16 %v195
      %v358 = vpack.c.b16 %v263, %v350
      %v359 = vpack.c.b16 %v265, %v351
      %v360 = vpack.c.b16 %v267, %v352
      %v361 = vpack.c.b16 %v269, %v353
      %v362 = vpack.c.b16 %v271, %v354
      %v363 = vpack.c.b16 %v273, %v355
      %v364 = vpack.c.b16 %v275, %v356
      %v365 = vpack.c.b16 %v277, %v357
      %v366 = vrot.slane %v358, 1
      %v367 = vrot.slane %v359, 1
      %v368 = vrot.slane %v360, 1
      %v369 = vrot.slane %v361, 1
      %v370 = vrot.slane %v362, 1
      %v371 = vrot.slane %v363, 1
      %v372 = vrot.slane %v364, 1
      %v373 = vrot.slane %v365, 1
      %v390 = vunpack.c.l.b16 %v197
      %v391 = vunpack.c.l.b16 %v205
      %v392 = vunpack.c.l.b16 %v198
      %v393 = vunpack.c.l.b16 %v206
      %v394 = vunpack.c.l.b16 %v199
      %v395 = vunpack.c.l.b16 %v207
      %v396 = vunpack.c.l.b16 %v200
      %v397 = vunpack.c.l.b16 %v208
      %v398 = vunpack.c.l.b16 %v201
      %v399 = vunpack.c.l.b16 %v209
      %v400 = vunpack.c.l.b16 %v202
      %v401 = vunpack.c.l.b16 %v210
      %v402 = vunpack.c.l.b16 %v203
      %v403 = vunpack.c.l.b16 %v211
      %v404 = vunpack.c.l.b16 %v204
      %v405 = vunpack.c.l.b16 %v212
      %v406 = vpack.c.b16 %v391, %v390
      %v407 = vpack.c.b16 %v393, %v392
      %v408 = vpack.c.b16 %v395, %v394
      %v409 = vpack.c.b16 %v397, %v396
      %v410 = vpack.c.b16 %v399, %v398
      %v411 = vpack.c.b16 %v401, %v400
      %v412 = vpack.c.b16 %v403, %v402
      %v413 = vpack.c.b16 %v405, %v404
      %v415 = vshrl.u32 %v406, 16
      %v417 = vshll.u32 %v406, 16
      %v419 = vrot.slane %v417, 1
      %v420 = vor.u32 %v415, %v419
      %v422 = vshrl.u32 %v407, 16
      %v424 = vshll.u32 %v407, 16
      %v426 = vrot.slane %v424, 1
      %v427 = vor.u32 %v422, %v426
      %v429 = vshrl.u32 %v408, 16
      %v431 = vshll.u32 %v408, 16
      %v433 = vrot.slane %v431, 1
      %v434 = vor.u32 %v429, %v433
      %v436 = vshrl.u32 %v409, 16
      %v438 = vshll.u32 %v409, 16
      %v440 = vrot.slane %v438, 1
      %v441 = vor.u32 %v436, %v440
      %v443 = vshrl.u32 %v410, 16
      %v445 = vshll.u32 %v410, 16
      %v447 = vrot.slane %v445, 1
      %v448 = vor.u32 %v443, %v447
      %v450 = vshrl.u32 %v411, 16
      %v452 = vshll.u32 %v411, 16
      %v454 = vrot.slane %v452, 1
      %v455 = vor.u32 %v450, %v454
      %v457 = vshrl.u32 %v412, 16
      %v459 = vshll.u32 %v412, 16
      %v461 = vrot.slane %v459, 1
      %v462 = vor.u32 %v457, %v461
      %v464 = vshrl.u32 %v413, 16
      %v466 = vshll.u32 %v413, 16
      %v468 = vrot.slane %v466, 1
      %v469 = vor.u32 %v464, %v468
      %v478 = vunpack.c.l.b16 %v213
      %v479 = vunpack.c.l.b16 %v214
      %v480 = vunpack.c.l.b16 %v215
      %v481 = vunpack.c.l.b16 %v216
      %v482 = vunpack.c.l.b16 %v217
      %v483 = vunpack.c.l.b16 %v218
      %v484 = vunpack.c.l.b16 %v219
      %v485 = vunpack.c.l.b16 %v220
      %v486 = vpack.c.b16 %v391, %v478
      %v487 = vpack.c.b16 %v393, %v479
      %v488 = vpack.c.b16 %v395, %v480
      %v489 = vpack.c.b16 %v397, %v481
      %v490 = vpack.c.b16 %v399, %v482
      %v491 = vpack.c.b16 %v401, %v483
      %v492 = vpack.c.b16 %v403, %v484
      %v493 = vpack.c.b16 %v405, %v485
      %v494 = vrot.slane %v486, 1
      %v495 = vrot.slane %v487, 1
      %v496 = vrot.slane %v488, 1
      %v497 = vrot.slane %v489, 1
      %v498 = vrot.slane %v490, 1
      %v499 = vrot.slane %v491, 1
      %v500 = vrot.slane %v492, 1
      %v501 = vrot.slane %v493, 1
      %v518 = vunpack.c.l.b16 %v222
      %v519 = vunpack.c.l.b16 %v230
      %v520 = vunpack.c.l.b16 %v223
      %v521 = vunpack.c.l.b16 %v231
      %v522 = vunpack.c.l.b16 %v224
      %v523 = vunpack.c.l.b16 %v232
      %v524 = vunpack.c.l.b16 %v225
      %v525 = vunpack.c.l.b16 %v233
      %v526 = vunpack.c.l.b16 %v226
      %v527 = vunpack.c.l.b16 %v234
      %v528 = vunpack.c.l.b16 %v227
      %v529 = vunpack.c.l.b16 %v235
      %v530 = vunpack.c.l.b16 %v228
      %v531 = vunpack.c.l.b16 %v236
      %v532 = vunpack.c.l.b16 %v229
      %v533 = vunpack.c.l.b16 %v237
      %v534 = vpack.c.b16 %v519, %v518
      %v535 = vpack.c.b16 %v521, %v520
      %v536 = vpack.c.b16 %v523, %v522
      %v537 = vpack.c.b16 %v525, %v524
      %v538 = vpack.c.b16 %v527, %v526
      %v539 = vpack.c.b16 %v529, %v528
      %v540 = vpack.c.b16 %v531, %v530
      %v541 = vpack.c.b16 %v533, %v532
      %v543 = vshrl.u32 %v534, 16
      %v545 = vshll.u32 %v534, 16
      %v547 = vrot.slane %v545, 1
      %v548 = vor.u32 %v543, %v547
      %v550 = vshrl.u32 %v535, 16
      %v552 = vshll.u32 %v535, 16
      %v554 = vrot.slane %v552, 1
      %v555 = vor.u32 %v550, %v554
      %v557 = vshrl.u32 %v536, 16
      %v559 = vshll.u32 %v536, 16
      %v561 = vrot.slane %v559, 1
      %v562 = vor.u32 %v557, %v561
      %v564 = vshrl.u32 %v537, 16
      %v566 = vshll.u32 %v537, 16
      %v568 = vrot.slane %v566, 1
      %v569 = vor.u32 %v564, %v568
      %v571 = vshrl.u32 %v538, 16
      %v573 = vshll.u32 %v538, 16
      %v575 = vrot.slane %v573, 1
      %v576 = vor.u32 %v571, %v575
      %v578 = vshrl.u32 %v539, 16
      %v580 = vshll.u32 %v539, 16
      %v582 = vrot.slane %v580, 1
      %v583 = vor.u32 %v578, %v582
      %v585 = vshrl.u32 %v540, 16
      %v587 = vshll.u32 %v540, 16
      %v589 = vrot.slane %v587, 1
      %v590 = vor.u32 %v585, %v589
      %v592 = vshrl.u32 %v541, 16
      %v594 = vshll.u32 %v541, 16
      %v596 = vrot.slane %v594, 1
      %v597 = vor.u32 %v592, %v596
      %v606 = vunpack.c.l.b16 %v238
      %v607 = vunpack.c.l.b16 %v239
      %v608 = vunpack.c.l.b16 %v240
      %v609 = vunpack.c.l.b16 %v241
      %v610 = vunpack.c.l.b16 %v242
      %v611 = vunpack.c.l.b16 %v243
      %v612 = vunpack.c.l.b16 %v244
      %v613 = vunpack.c.l.b16 %v245
      %v614 = vpack.c.b16 %v519, %v606
      %v615 = vpack.c.b16 %v521, %v607
      %v616 = vpack.c.b16 %v523, %v608
      %v617 = vpack.c.b16 %v525, %v609
      %v618 = vpack.c.b16 %v527, %v610
      %v619 = vpack.c.b16 %v529, %v611
      %v620 = vpack.c.b16 %v531, %v612
      %v621 = vpack.c.b16 %v533, %v613
      %v622 = vrot.slane %v614, 1
      %v623 = vrot.slane %v615, 1
      %v624 = vrot.slane %v616, 1
      %v625 = vrot.slane %v617, 1
      %v626 = vrot.slane %v618, 1
      %v627 = vrot.slane %v619, 1
      %v628 = vrot.slane %v620, 1
      %v629 = vrot.slane %v621, 1
      %v630 = vunpack.c.l.b16 %v292
      %v631 = vunpack.c.l.b16 %v366
      %v632 = vunpack.c.l.b16 %v420
      %v633 = vunpack.c.l.b16 %v494
      %v634 = vunpack.c.l.b16 %v548
      %v635 = vunpack.c.l.b16 %v622
      %v636 = vunpack.c.l.b16 %v299
      %v637 = vunpack.c.l.b16 %v367
      %v638 = vunpack.c.l.b16 %v427
      %v639 = vunpack.c.l.b16 %v495
      %v640 = vunpack.c.l.b16 %v555
      %v641 = vunpack.c.l.b16 %v623
      %v642 = vunpack.c.l.b16 %v306
      %v643 = vunpack.c.l.b16 %v368
      %v644 = vunpack.c.l.b16 %v434
      %v645 = vunpack.c.l.b16 %v496
      %v646 = vunpack.c.l.b16 %v562
      %v647 = vunpack.c.l.b16 %v624
      %v648 = vunpack.c.l.b16 %v313
      %v649 = vunpack.c.l.b16 %v369
      %v650 = vunpack.c.l.b16 %v441
      %v651 = vunpack.c.l.b16 %v497
      %v652 = vunpack.c.l.b16 %v569
      %v653 = vunpack.c.l.b16 %v625
      %v654 = vunpack.c.l.b16 %v320
      %v655 = vunpack.c.l.b16 %v370
      %v656 = vunpack.c.l.b16 %v448
      %v657 = vunpack.c.l.b16 %v498
      %v658 = vunpack.c.l.b16 %v576
      %v659 = vunpack.c.l.b16 %v626
      %v660 = vunpack.c.l.b16 %v327
      %v661 = vunpack.c.l.b16 %v371
      %v662 = vunpack.c.l.b16 %v455
      %v663 = vunpack.c.l.b16 %v499
      %v664 = vunpack.c.l.b16 %v583
      %v665 = vunpack.c.l.b16 %v627
      %v666 = vunpack.c.l.b16 %v334
      %v667 = vunpack.c.l.b16 %v372
      %v668 = vunpack.c.l.b16 %v462
      %v669 = vunpack.c.l.b16 %v500
      %v670 = vunpack.c.l.b16 %v590
      %v671 = vunpack.c.l.b16 %v628
      %v672 = vunpack.c.l.b16 %v341
      %v673 = vunpack.c.l.b16 %v373
      %v674 = vunpack.c.l.b16 %v469
      %v675 = vunpack.c.l.b16 %v501
      %v676 = vunpack.c.l.b16 %v597
      %v677 = vunpack.c.l.b16 %v629
      %v678 = vld [vmem:[%s1] sm:$0xf]
      %v679 = vld [vmem:[%s1 + $0x4] sm:$0xf]
      %v680 = vld [vmem:[%s1 + $0x8] sm:$0xf]
      %v681 = vld [vmem:[%s1 + $0xc] sm:$0xf]
      %v682 = vld [vmem:[%s1 + $0x10] sm:$0xf]
      %v683 = vld [vmem:[%s1 + $0x14] sm:$0xf]
      %v684 = vld [vmem:[%s1 + $0x18] sm:$0xf]
      %v685 = vld [vmem:[%s1 + $0x1c] sm:$0xf]
      %v686 = vld [vmem:[%s1 + $0x20] sm:$0xf]
      %v687 = vld [vmem:[%s1 + $0x24] sm:$0xf]
      %v688 = vld [vmem:[%s1 + $0x28] sm:$0xf]
      %v689 = vld [vmem:[%s1 + $0x2c] sm:$0xf]
      %v690 = vld [vmem:[%s1 + $0x30] sm:$0xf]
      %v691 = vld [vmem:[%s1 + $0x34] sm:$0xf]
      %v692 = vld [vmem:[%s1 + $0x38] sm:$0xf]
      %v693 = vld [vmem:[%s1 + $0x3c] sm:$0xf]
      %v694 = vld [vmem:[%s1 + $0x40] sm:$0xf]
      %v695 = vld [vmem:[%s1 + $0x44] sm:$0xf]
      %v696 = vld [vmem:[%s1 + $0x48] sm:$0xf]
      %v697 = vld [vmem:[%s1 + $0x4c] sm:$0xf]
      %v698 = vld [vmem:[%s1 + $0x50] sm:$0xf]
      %v699 = vld [vmem:[%s1 + $0x54] sm:$0xf]
      %v700 = vld [vmem:[%s1 + $0x58] sm:$0xf]
      %v701 = vld [vmem:[%s1 + $0x5c] sm:$0xf]
      %v702 = vld [vmem:[%s1 + $0x60] sm:$0xf]
      %v703 = vld [vmem:[%s1 + $0x64] sm:$0xf]
      %v704 = vld [vmem:[%s1 + $0x68] sm:$0xf]
      %v705 = vld [vmem:[%s1 + $0x6c] sm:$0xf]
      %v706 = vld [vmem:[%s1 + $0x70] sm:$0xf]
      %v707 = vld [vmem:[%s1 + $0x74] sm:$0xf]
      %v708 = vld [vmem:[%s1 + $0x78] sm:$0xf]
      %v709 = vld [vmem:[%s1 + $0x7c] sm:$0xf]
      %v710 = vld [vmem:[%s1 + $0x80] sm:$0xf]
      %v711 = vld [vmem:[%s1 + $0x84] sm:$0xf]
      %v712 = vld [vmem:[%s1 + $0x88] sm:$0xf]
      %v713 = vld [vmem:[%s1 + $0x8c] sm:$0xf]
      %v714 = vld [vmem:[%s1 + $0x90] sm:$0xf]
      %v715 = vld [vmem:[%s1 + $0x94] sm:$0xf]
      %v716 = vld [vmem:[%s1 + $0x98] sm:$0xf]
      %v717 = vld [vmem:[%s1 + $0x9c] sm:$0xf]
      %v718 = vld [vmem:[%s1 + $0xa0] sm:$0xf]
      %v719 = vld [vmem:[%s1 + $0xa4] sm:$0xf]
      %v720 = vld [vmem:[%s1 + $0xa8] sm:$0xf]
      %v721 = vld [vmem:[%s1 + $0xac] sm:$0xf]
      %v722 = vld [vmem:[%s1 + $0xb0] sm:$0xf]
      %v723 = vld [vmem:[%s1 + $0xb4] sm:$0xf]
      %v724 = vld [vmem:[%s1 + $0xb8] sm:$0xf]
      %v725 = vld [vmem:[%s1 + $0xbc] sm:$0xf]
      %v726 = vld [vmem:[%s1 + $0xc0] sm:$0xf]
      %v727 = vld [vmem:[%s1 + $0xc4] sm:$0xf]
      %v728 = vld [vmem:[%s1 + $0xc8] sm:$0xf]
      %v729 = vld [vmem:[%s1 + $0xcc] sm:$0xf]
      %v730 = vld [vmem:[%s1 + $0xd0] sm:$0xf]
      %v731 = vld [vmem:[%s1 + $0xd4] sm:$0xf]
      %v732 = vld [vmem:[%s1 + $0xd8] sm:$0xf]
      %v733 = vld [vmem:[%s1 + $0xdc] sm:$0xf]
      %v734 = vld [vmem:[%s1 + $0xe0] sm:$0xf]
      %v735 = vld [vmem:[%s1 + $0xe4] sm:$0xf]
      %v736 = vld [vmem:[%s1 + $0xe8] sm:$0xf]
      %v737 = vld [vmem:[%s1 + $0xec] sm:$0xf]
      %v738 = vld [vmem:[%s1 + $0xf0] sm:$0xf]
      %v739 = vld [vmem:[%s1 + $0xf4] sm:$0xf]
      %v740 = vld [vmem:[%s1 + $0xf8] sm:$0xf]
      %v741 = vld [vmem:[%s1 + $0xfc] sm:$0xf]
      %v742 = vld [vmem:[%s1 + $0x100] sm:$0xf]
      %v743 = vld [vmem:[%s1 + $0x104] sm:$0xf]
      %v744 = vld [vmem:[%s1 + $0x108] sm:$0xf]
      %v745 = vld [vmem:[%s1 + $0x10c] sm:$0xf]
      %v746 = vld [vmem:[%s1 + $0x110] sm:$0xf]
      %v747 = vld [vmem:[%s1 + $0x114] sm:$0xf]
      %v748 = vld [vmem:[%s1 + $0x118] sm:$0xf]
      %v749 = vld [vmem:[%s1 + $0x11c] sm:$0xf]
      %v750 = vld [vmem:[%s1 + $0x120] sm:$0xf]
      %v751 = vld [vmem:[%s1 + $0x124] sm:$0xf]
      %v752 = vld [vmem:[%s1 + $0x128] sm:$0xf]
      %v753 = vld [vmem:[%s1 + $0x12c] sm:$0xf]
      %v754 = vld [vmem:[%s1 + $0x130] sm:$0xf]
      %v755 = vld [vmem:[%s1 + $0x134] sm:$0xf]
      %v756 = vld [vmem:[%s1 + $0x138] sm:$0xf]
      %v757 = vld [vmem:[%s1 + $0x13c] sm:$0xf]
      %v758 = vld [vmem:[%s1 + $0x140] sm:$0xf]
      %v759 = vld [vmem:[%s1 + $0x144] sm:$0xf]
      %v760 = vld [vmem:[%s1 + $0x148] sm:$0xf]
      %v761 = vld [vmem:[%s1 + $0x14c] sm:$0xf]
      %v762 = vld [vmem:[%s1 + $0x150] sm:$0xf]
      %v763 = vld [vmem:[%s1 + $0x154] sm:$0xf]
      %v764 = vld [vmem:[%s1 + $0x158] sm:$0xf]
      %v765 = vld [vmem:[%s1 + $0x15c] sm:$0xf]
      %v766 = vld [vmem:[%s1 + $0x160] sm:$0xf]
      %v767 = vld [vmem:[%s1 + $0x164] sm:$0xf]
      %v768 = vld [vmem:[%s1 + $0x168] sm:$0xf]
      %v769 = vld [vmem:[%s1 + $0x16c] sm:$0xf]
      %v770 = vld [vmem:[%s1 + $0x170] sm:$0xf]
      %v771 = vld [vmem:[%s1 + $0x174] sm:$0xf]
      %v772 = vld [vmem:[%s1 + $0x178] sm:$0xf]
      %v773 = vld [vmem:[%s1 + $0x17c] sm:$0xf]
      %v774 = vld [vmem:[%s1 + $0x180] sm:$0xf]
      %v775 = vld [vmem:[%s1 + $0x184] sm:$0xf]
      %v776 = vld [vmem:[%s1 + $0x188] sm:$0xf]
      %v777 = vld [vmem:[%s1 + $0x18c] sm:$0xf]
      %v778 = vld [vmem:[%s1 + $0x190] sm:$0xf]
      %v779 = vld [vmem:[%s1 + $0x194] sm:$0xf]
      %v780 = vld [vmem:[%s1 + $0x198] sm:$0xf]
      %v781 = vld [vmem:[%s1 + $0x19c] sm:$0xf]
      %v782 = vld [vmem:[%s1 + $0x1a0] sm:$0xf]
      %v783 = vld [vmem:[%s1 + $0x1a4] sm:$0xf]
      %v784 = vld [vmem:[%s1 + $0x1a8] sm:$0xf]
      %v785 = vld [vmem:[%s1 + $0x1ac] sm:$0xf]
      %v786 = vld [vmem:[%s1 + $0x1b0] sm:$0xf]
      %v787 = vld [vmem:[%s1 + $0x1b4] sm:$0xf]
      %v788 = vld [vmem:[%s1 + $0x1b8] sm:$0xf]
      %v789 = vld [vmem:[%s1 + $0x1bc] sm:$0xf]
      %v790 = vld [vmem:[%s1 + $0x1c0] sm:$0xf]
      %v791 = vld [vmem:[%s1 + $0x1c4] sm:$0xf]
      %v792 = vld [vmem:[%s1 + $0x1c8] sm:$0xf]
      %v793 = vld [vmem:[%s1 + $0x1cc] sm:$0xf]
      %v794 = vld [vmem:[%s1 + $0x1d0] sm:$0xf]
      %v795 = vld [vmem:[%s1 + $0x1d4] sm:$0xf]
      %v796 = vld [vmem:[%s1 + $0x1d8] sm:$0xf]
      %v797 = vld [vmem:[%s1 + $0x1dc] sm:$0xf]
      %v798 = vld [vmem:[%s1 + $0x1e0] sm:$0xf]
      %v799 = vld [vmem:[%s1 + $0x1e4] sm:$0xf]
      %v800 = vld [vmem:[%s1 + $0x1e8] sm:$0xf]
      %v801 = vld [vmem:[%s1 + $0x1ec] sm:$0xf]
      %v802 = vld [vmem:[%s1 + $0x1f0] sm:$0xf]
      %v803 = vld [vmem:[%s1 + $0x1f4] sm:$0xf]
      %v804 = vld [vmem:[%s1 + $0x1f8] sm:$0xf]
      %v805 = vld [vmem:[%s1 + $0x1fc] sm:$0xf]
      %v806 = vld [vmem:[%s1 + $0x200] sm:$0xf]
      %v807 = vld [vmem:[%s1 + $0x204] sm:$0xf]
      %v808 = vld [vmem:[%s1 + $0x208] sm:$0xf]
      %v809 = vld [vmem:[%s1 + $0x20c] sm:$0xf]
      %v810 = vld [vmem:[%s1 + $0x210] sm:$0xf]
      %v811 = vld [vmem:[%s1 + $0x214] sm:$0xf]
      %v812 = vld [vmem:[%s1 + $0x218] sm:$0xf]
      %v813 = vld [vmem:[%s1 + $0x21c] sm:$0xf]
      %v814 = vld [vmem:[%s1 + $0x220] sm:$0xf]
      %v815 = vld [vmem:[%s1 + $0x224] sm:$0xf]
      %v816 = vld [vmem:[%s1 + $0x228] sm:$0xf]
      %v817 = vld [vmem:[%s1 + $0x22c] sm:$0xf]
      %v818 = vld [vmem:[%s1 + $0x230] sm:$0xf]
      %v819 = vld [vmem:[%s1 + $0x234] sm:$0xf]
      %v820 = vld [vmem:[%s1 + $0x238] sm:$0xf]
      %v821 = vld [vmem:[%s1 + $0x23c] sm:$0xf]
      %v822 = vpack.c.b16 %v264, %v262
      %v823 = vpack.c.b16 %v636, %v630
      %v824 = vpack.c.b16 %v637, %v631
      %v825 = vpack.c.b16 %v392, %v390
      %v826 = vpack.c.b16 %v638, %v632
      %v827 = vpack.c.b16 %v639, %v633
      %v828 = vpack.c.b16 %v520, %v518
      %v829 = vpack.c.b16 %v640, %v634
      %v830 = vpack.c.b16 %v641, %v635
      %v831 = vpack.c.b16 %v268, %v266
      %v832 = vpack.c.b16 %v648, %v642
      %v833 = vpack.c.b16 %v649, %v643
      %v834 = vpack.c.b16 %v396, %v394
      %v835 = vpack.c.b16 %v650, %v644
      %v836 = vpack.c.b16 %v651, %v645
      %v837 = vpack.c.b16 %v524, %v522
      %v838 = vpack.c.b16 %v652, %v646
      %v839 = vpack.c.b16 %v653, %v647
      %v840 = vpack.c.b16 %v272, %v270
      %v841 = vpack.c.b16 %v660, %v654
      %v842 = vpack.c.b16 %v661, %v655
      %v843 = vpack.c.b16 %v400, %v398
      %v844 = vpack.c.b16 %v662, %v656
      %v845 = vpack.c.b16 %v663, %v657
      %v846 = vpack.c.b16 %v528, %v526
      %v847 = vpack.c.b16 %v664, %v658
      %v848 = vpack.c.b16 %v665, %v659
      %v849 = vpack.c.b16 %v276, %v274
      %v850 = vpack.c.b16 %v672, %v666
      %v851 = vpack.c.b16 %v673, %v667
      %v852 = vpack.c.b16 %v404, %v402
      %v853 = vpack.c.b16 %v674, %v668
      %v854 = vpack.c.b16 %v675, %v669
      %v855 = vpack.c.b16 %v532, %v530
      %v856 = vpack.c.b16 %v676, %v670
      %v857 = vpack.c.b16 %v677, %v671
      %v1038 = vunpack.c.l.b16 %v678
      %v1039 = vunpack.c.l.b16 %v679
      %v1040 = vunpack.c.l.b16 %v680
      %v1041 = vunpack.c.l.b16 %v681
      %v1042 = vunpack.c.l.b16 %v682
      %v1043 = vunpack.c.l.b16 %v683
      %v1044 = vunpack.c.l.b16 %v684
      %v1045 = vunpack.c.l.b16 %v685
      %v1046 = vunpack.c.l.b16 %v686
      %v1047 = vunpack.c.l.b16 %v687
      %v1048 = vunpack.c.l.b16 %v688
      %v1049 = vunpack.c.l.b16 %v689
      %v1050 = vunpack.c.l.b16 %v690
      %v1051 = vunpack.c.l.b16 %v691
      %v1052 = vunpack.c.l.b16 %v692
      %v1053 = vunpack.c.l.b16 %v693
      %v1054 = vunpack.c.l.b16 %v694
      %v1055 = vunpack.c.l.b16 %v695
      %v1056 = vunpack.c.l.b16 %v696
      %v1057 = vunpack.c.l.b16 %v697
      %v1058 = vunpack.c.l.b16 %v698
      %v1059 = vunpack.c.l.b16 %v699
      %v1060 = vunpack.c.l.b16 %v700
      %v1061 = vunpack.c.l.b16 %v701
      %v1062 = vunpack.c.l.b16 %v702
      %v1063 = vunpack.c.l.b16 %v703
      %v1064 = vunpack.c.l.b16 %v704
      %v1065 = vunpack.c.l.b16 %v705
      %v1066 = vunpack.c.l.b16 %v706
      %v1067 = vunpack.c.l.b16 %v707
      %v1068 = vunpack.c.l.b16 %v708
      %v1069 = vunpack.c.l.b16 %v709
      %v1070 = vunpack.c.l.b16 %v710
      %v1071 = vunpack.c.l.b16 %v711
      %v1072 = vunpack.c.l.b16 %v712
      %v1073 = vunpack.c.l.b16 %v713
      %v1074 = vunpack.c.l.b16 %v714
      %v1075 = vunpack.c.l.b16 %v715
      %v1076 = vunpack.c.l.b16 %v716
      %v1077 = vunpack.c.l.b16 %v717
      %v1078 = vunpack.c.l.b16 %v718
      %v1079 = vunpack.c.l.b16 %v719
      %v1080 = vunpack.c.l.b16 %v720
      %v1081 = vunpack.c.l.b16 %v721
      %v1082 = vunpack.c.l.b16 %v722
      %v1083 = vunpack.c.l.b16 %v723
      %v1084 = vunpack.c.l.b16 %v724
      %v1085 = vunpack.c.l.b16 %v725
      %v1086 = vunpack.c.l.b16 %v726
      %v1087 = vunpack.c.l.b16 %v727
      %v1088 = vunpack.c.l.b16 %v728
      %v1089 = vunpack.c.l.b16 %v729
      %v1090 = vunpack.c.l.b16 %v730
      %v1091 = vunpack.c.l.b16 %v731
      %v1092 = vunpack.c.l.b16 %v732
      %v1093 = vunpack.c.l.b16 %v733
      %v1094 = vunpack.c.l.b16 %v734
      %v1095 = vunpack.c.l.b16 %v735
      %v1096 = vunpack.c.l.b16 %v736
      %v1097 = vunpack.c.l.b16 %v737
      %v1098 = vunpack.c.l.b16 %v738
      %v1099 = vunpack.c.l.b16 %v739
      %v1100 = vunpack.c.l.b16 %v740
      %v1101 = vunpack.c.l.b16 %v741
      %v1102 = vunpack.c.l.b16 %v742
      %v1103 = vunpack.c.l.b16 %v743
      %v1104 = vunpack.c.l.b16 %v744
      %v1105 = vunpack.c.l.b16 %v745
      %v1106 = vunpack.c.l.b16 %v746
      %v1107 = vunpack.c.l.b16 %v747
      %v1108 = vunpack.c.l.b16 %v748
      %v1109 = vunpack.c.l.b16 %v749
      %v1110 = vunpack.c.l.b16 %v750
      %v1111 = vunpack.c.l.b16 %v751
      %v1112 = vunpack.c.l.b16 %v752
      %v1113 = vunpack.c.l.b16 %v753
      %v1114 = vunpack.c.l.b16 %v754
      %v1115 = vunpack.c.l.b16 %v755
      %v1116 = vunpack.c.l.b16 %v756
      %v1117 = vunpack.c.l.b16 %v757
      %v1118 = vunpack.c.l.b16 %v758
      %v1119 = vunpack.c.l.b16 %v759
      %v1120 = vunpack.c.l.b16 %v760
      %v1121 = vunpack.c.l.b16 %v761
      %v1122 = vunpack.c.l.b16 %v762
      %v1123 = vunpack.c.l.b16 %v763
      %v1124 = vunpack.c.l.b16 %v764
      %v1125 = vunpack.c.l.b16 %v765
      %v1126 = vunpack.c.l.b16 %v766
      %v1127 = vunpack.c.l.b16 %v767
      %v1128 = vunpack.c.l.b16 %v768
      %v1129 = vunpack.c.l.b16 %v769
      %v1130 = vunpack.c.l.b16 %v770
      %v1131 = vunpack.c.l.b16 %v771
      %v1132 = vunpack.c.l.b16 %v772
      %v1133 = vunpack.c.l.b16 %v773
      %v1134 = vunpack.c.l.b16 %v774
      %v1135 = vunpack.c.l.b16 %v775
      %v1136 = vunpack.c.l.b16 %v776
      %v1137 = vunpack.c.l.b16 %v777
      %v1138 = vunpack.c.l.b16 %v778
      %v1139 = vunpack.c.l.b16 %v779
      %v1140 = vunpack.c.l.b16 %v780
      %v1141 = vunpack.c.l.b16 %v781
      %v1142 = vunpack.c.l.b16 %v782
      %v1143 = vunpack.c.l.b16 %v783
      %v1144 = vunpack.c.l.b16 %v784
      %v1145 = vunpack.c.l.b16 %v785
      %v1146 = vunpack.c.l.b16 %v786
      %v1147 = vunpack.c.l.b16 %v787
      %v1148 = vunpack.c.l.b16 %v788
      %v1149 = vunpack.c.l.b16 %v789
      %v1150 = vunpack.c.l.b16 %v790
      %v1151 = vunpack.c.l.b16 %v791
      %v1152 = vunpack.c.l.b16 %v792
      %v1153 = vunpack.c.l.b16 %v793
      %v1154 = vunpack.c.l.b16 %v794
      %v1155 = vunpack.c.l.b16 %v795
      %v1156 = vunpack.c.l.b16 %v796
      %v1157 = vunpack.c.l.b16 %v797
      %v1158 = vunpack.c.l.b16 %v798
      %v1159 = vunpack.c.l.b16 %v799
      %v1160 = vunpack.c.l.b16 %v800
      %v1161 = vunpack.c.l.b16 %v801
      %v1162 = vunpack.c.l.b16 %v802
      %v1163 = vunpack.c.l.b16 %v803
      %v1164 = vunpack.c.l.b16 %v804
      %v1165 = vunpack.c.l.b16 %v805
      %v1166 = vunpack.c.l.b16 %v806
      %v1167 = vunpack.c.l.b16 %v807
      %v1168 = vunpack.c.l.b16 %v808
      %v1169 = vunpack.c.l.b16 %v809
      %v1170 = vunpack.c.l.b16 %v810
      %v1171 = vunpack.c.l.b16 %v811
      %v1172 = vunpack.c.l.b16 %v812
      %v1173 = vunpack.c.l.b16 %v813
      %v1174 = vunpack.c.l.b16 %v814
      %v1175 = vunpack.c.l.b16 %v815
      %v1176 = vunpack.c.l.b16 %v816
      %v1177 = vunpack.c.l.b16 %v817
      %v1178 = vunpack.c.l.b16 %v818
      %v1179 = vunpack.c.l.b16 %v819
      %v1180 = vunpack.c.l.b16 %v820
      %v1181 = vunpack.c.l.b16 %v821
      %v1182 = vpack.c.b16 %v1039, %v1038
      %v1183 = vpack.c.b16 %v1041, %v1040
      %v1184 = vpack.c.b16 %v1043, %v1042
      %v1185 = vpack.c.b16 %v1045, %v1044
      %v1186 = vpack.c.b16 %v1047, %v1046
      %v1187 = vpack.c.b16 %v1049, %v1048
      %v1188 = vpack.c.b16 %v1051, %v1050
      %v1189 = vpack.c.b16 %v1053, %v1052
      %v1190 = vpack.c.b16 %v1055, %v1054
      %v1191 = vpack.c.b16 %v1057, %v1056
      %v1192 = vpack.c.b16 %v1059, %v1058
      %v1193 = vpack.c.b16 %v1061, %v1060
      %v1194 = vpack.c.b16 %v1063, %v1062
      %v1195 = vpack.c.b16 %v1065, %v1064
      %v1196 = vpack.c.b16 %v1067, %v1066
      %v1197 = vpack.c.b16 %v1069, %v1068
      %v1198 = vpack.c.b16 %v1071, %v1070
      %v1199 = vpack.c.b16 %v1073, %v1072
      %v1200 = vpack.c.b16 %v1075, %v1074
      %v1201 = vpack.c.b16 %v1077, %v1076
      %v1202 = vpack.c.b16 %v1079, %v1078
      %v1203 = vpack.c.b16 %v1081, %v1080
      %v1204 = vpack.c.b16 %v1083, %v1082
      %v1205 = vpack.c.b16 %v1085, %v1084
      %v1206 = vpack.c.b16 %v1087, %v1086
      %v1207 = vpack.c.b16 %v1089, %v1088
      %v1208 = vpack.c.b16 %v1091, %v1090
      %v1209 = vpack.c.b16 %v1093, %v1092
      %v1210 = vpack.c.b16 %v1095, %v1094
      %v1211 = vpack.c.b16 %v1097, %v1096
      %v1212 = vpack.c.b16 %v1099, %v1098
      %v1213 = vpack.c.b16 %v1101, %v1100
      %v1214 = vpack.c.b16 %v1103, %v1102
      %v1215 = vpack.c.b16 %v1105, %v1104
      %v1216 = vpack.c.b16 %v1107, %v1106
      %v1217 = vpack.c.b16 %v1109, %v1108
      %v1218 = vpack.c.b16 %v1111, %v1110
      %v1219 = vpack.c.b16 %v1113, %v1112
      %v1220 = vpack.c.b16 %v1115, %v1114
      %v1221 = vpack.c.b16 %v1117, %v1116
      %v1222 = vpack.c.b16 %v1119, %v1118
      %v1223 = vpack.c.b16 %v1121, %v1120
      %v1224 = vpack.c.b16 %v1123, %v1122
      %v1225 = vpack.c.b16 %v1125, %v1124
      %v1226 = vpack.c.b16 %v1127, %v1126
      %v1227 = vpack.c.b16 %v1129, %v1128
      %v1228 = vpack.c.b16 %v1131, %v1130
      %v1229 = vpack.c.b16 %v1133, %v1132
      %v1230 = vpack.c.b16 %v1135, %v1134
      %v1231 = vpack.c.b16 %v1137, %v1136
      %v1232 = vpack.c.b16 %v1139, %v1138
      %v1233 = vpack.c.b16 %v1141, %v1140
      %v1234 = vpack.c.b16 %v1143, %v1142
      %v1235 = vpack.c.b16 %v1145, %v1144
      %v1236 = vpack.c.b16 %v1147, %v1146
      %v1237 = vpack.c.b16 %v1149, %v1148
      %v1238 = vpack.c.b16 %v1151, %v1150
      %v1239 = vpack.c.b16 %v1153, %v1152
      %v1240 = vpack.c.b16 %v1155, %v1154
      %v1241 = vpack.c.b16 %v1157, %v1156
      %v1242 = vpack.c.b16 %v1159, %v1158
      %v1243 = vpack.c.b16 %v1161, %v1160
      %v1244 = vpack.c.b16 %v1163, %v1162
      %v1245 = vpack.c.b16 %v1165, %v1164
      %v1246 = vpack.c.b16 %v1167, %v1166
      %v1247 = vpack.c.b16 %v1169, %v1168
      %v1248 = vpack.c.b16 %v1171, %v1170
      %v1249 = vpack.c.b16 %v1173, %v1172
      %v1250 = vpack.c.b16 %v1175, %v1174
      %v1251 = vpack.c.b16 %v1177, %v1176
      %v1252 = vpack.c.b16 %v1179, %v1178
      %v1253 = vpack.c.b16 %v1181, %v1180
      %1326 = vmatprep.subr.bf16.mxu0 0
      %1327 = vmatpush1.bf16.msra.mxu0 %v1189
      %1328 = vmatprep.subr.bf16.mxu0 0
      %1329 = vmatpush1.bf16.msra.mxu0 %v1188
      %1330 = vmatprep.subr.bf16.mxu0 0
      %1331 = vmatpush1.bf16.msra.mxu0 %v1187
      %1332 = vmatprep.subr.bf16.mxu0 0
      %1333 = vmatpush1.bf16.msra.mxu0 %v1186
      %1334 = vmatprep.subr.bf16.mxu0 0
      %1335 = vmatpush1.bf16.msra.mxu0 %v1185
      %1336 = vmatprep.subr.bf16.mxu0 0
      %1337 = vmatpush1.bf16.msra.mxu0 %v1184
      %1338 = vmatprep.subr.bf16.mxu0 0
      %1339 = vmatpush1.bf16.msra.mxu0 %v1183
      %1340 = vmatprep.subr.bf16.mxu0 0
      %1341 = vmatpush1.bf16.msra.mxu0 %v1182
      %1342 = vmatprep.subr.bf16.mxu0 0
      %1343 = vmatpush2.bf16.msra.mxu0 %v1197
      %1344 = vmatprep.subr.bf16.mxu0 0
      %1345 = vmatpush2.bf16.msra.mxu0 %v1196
      %1346 = vmatprep.subr.bf16.mxu0 0
      %1347 = vmatpush2.bf16.msra.mxu0 %v1195
      %1348 = vmatprep.subr.bf16.mxu0 0
      %1349 = vmatpush2.bf16.msra.mxu0 %v1194
      %1350 = vmatprep.subr.bf16.mxu0 0
      %1351 = vmatpush2.bf16.msra.mxu0 %v1193
      %1352 = vmatprep.subr.bf16.mxu0 0
      %1353 = vmatpush2.bf16.msra.mxu0 %v1192
      %1354 = vmatprep.subr.bf16.mxu0 0
      %1355 = vmatpush2.bf16.msra.mxu0 %v1191
      %1356 = vmatprep.subr.bf16.mxu0 0
      %1357 = vmatpush2.bf16.msra.mxu0 %v1190
      %1358 = vmatprep.mubr.bf16.mxu0 %v823
      %1359 = vmatmul.mubr.bf16.gmra.mxu0 %v822
      %v1360 = vpop.f32.mrf.mxu0
      %v1361 = vadd.f32 0.0, %v1360
      %v1362 = vpop.f32.mrf.mxu0
      %v1363 = vpop.f32.mrf.mxu0
      %v1364 = vadd.f32 0.0, %v1363
      %v1365 = vpop.f32.mrf.mxu0
      %1366 = vmatprep.mubr.bf16.mxu0 %v832
      %1367 = vmatmul.mubr.bf16.gmra.mxu0 %v831
      %v1368 = vpop.f32.mrf.mxu0
      %v1369 = vadd.f32 0.0, %v1368
      %v1370 = vpop.f32.mrf.mxu0
      %v1371 = vpop.f32.mrf.mxu0
      %v1372 = vadd.f32 0.0, %v1371
      %v1373 = vpop.f32.mrf.mxu0
      %1374 = vmatprep.mubr.bf16.mxu0 %v841
      %1375 = vmatmul.mubr.bf16.gmra.mxu0 %v840
      %v1376 = vpop.f32.mrf.mxu0
      %v1377 = vadd.f32 0.0, %v1376
      %v1378 = vpop.f32.mrf.mxu0
      %v1379 = vpop.f32.mrf.mxu0
      %v1380 = vadd.f32 0.0, %v1379
      %v1381 = vpop.f32.mrf.mxu0
      %1382 = vmatprep.mubr.bf16.mxu0 %v850
      %1383 = vmatmul.mubr.bf16.gmra.mxu0 %v849
      %v1384 = vpop.f32.mrf.mxu0
      %v1385 = vadd.f32 0.0, %v1384
      %v1386 = vpop.f32.mrf.mxu0
      %v1387 = vpop.f32.mrf.mxu0
      %v1388 = vadd.f32 0.0, %v1387
      %v1389 = vpop.f32.mrf.mxu0
      %1390 = vdwg.mxu0
      %1391 = vmatprep.subr.bf16.mxu0 0
      %1392 = vmatpush1.bf16.msra.mxu0 %v1205
      %1393 = vmatprep.subr.bf16.mxu0 0
      %1394 = vmatpush1.bf16.msra.mxu0 %v1204
      %1395 = vmatprep.subr.bf16.mxu0 0
      %1396 = vmatpush1.bf16.msra.mxu0 %v1203
      %1397 = vmatprep.subr.bf16.mxu0 0
      %1398 = vmatpush1.bf16.msra.mxu0 %v1202
      %1399 = vmatprep.subr.bf16.mxu0 0
      %1400 = vmatpush1.bf16.msra.mxu0 %v1201
      %1401 = vmatprep.subr.bf16.mxu0 0
      %1402 = vmatpush1.bf16.msra.mxu0 %v1200
      %1403 = vmatprep.subr.bf16.mxu0 0
      %1404 = vmatpush1.bf16.msra.mxu0 %v1199
      %1405 = vmatprep.subr.bf16.mxu0 0
      %1406 = vmatpush1.bf16.msra.mxu0 %v1198
      %1407 = vmatprep.subr.bf16.mxu0 0
      %1408 = vmatpush2.bf16.msra.mxu0 %v1213
      %1409 = vmatprep.subr.bf16.mxu0 0
      %1410 = vmatpush2.bf16.msra.mxu0 %v1212
      %1411 = vmatprep.subr.bf16.mxu0 0
      %1412 = vmatpush2.bf16.msra.mxu0 %v1211
      %1413 = vmatprep.subr.bf16.mxu0 0
      %1414 = vmatpush2.bf16.msra.mxu0 %v1210
      %1415 = vmatprep.subr.bf16.mxu0 0
      %1416 = vmatpush2.bf16.msra.mxu0 %v1209
      %1417 = vmatprep.subr.bf16.mxu0 0
      %1418 = vmatpush2.bf16.msra.mxu0 %v1208
      %1419 = vmatprep.subr.bf16.mxu0 0
      %1420 = vmatpush2.bf16.msra.mxu0 %v1207
      %1421 = vmatprep.subr.bf16.mxu0 0
      %1422 = vmatpush2.bf16.msra.mxu0 %v1206
      %1423 = vmatprep.mubr.bf16.mxu0 %v825
      %1424 = vmatmul.mubr.bf16.gmra.mxu0 %v824
      %v1425 = vpop.f32.mrf.mxu0
      %v1426 = vadd.f32 %v1361, %v1425
      %v1427 = vpop.f32.mrf.mxu0
      %v1428 = vpop.f32.mrf.mxu0
      %v1429 = vadd.f32 %v1364, %v1428
      %v1430 = vpop.f32.mrf.mxu0
      %1431 = vmatprep.mubr.bf16.mxu0 %v834
      %1432 = vmatmul.mubr.bf16.gmra.mxu0 %v833
      %v1433 = vpop.f32.mrf.mxu0
      %v1434 = vadd.f32 %v1369, %v1433
      %v1435 = vpop.f32.mrf.mxu0
      %v1436 = vpop.f32.mrf.mxu0
      %v1437 = vadd.f32 %v1372, %v1436
      %v1438 = vpop.f32.mrf.mxu0
      %1439 = vmatprep.mubr.bf16.mxu0 %v843
      %1440 = vmatmul.mubr.bf16.gmra.mxu0 %v842
      %v1441 = vpop.f32.mrf.mxu0
      %v1442 = vadd.f32 %v1377, %v1441
      %v1443 = vpop.f32.mrf.mxu0
      %v1444 = vpop.f32.mrf.mxu0
      %v1445 = vadd.f32 %v1380, %v1444
      %v1446 = vpop.f32.mrf.mxu0
      %1447 = vmatprep.mubr.bf16.mxu0 %v852
      %1448 = vmatmul.mubr.bf16.gmra.mxu0 %v851
      %v1449 = vpop.f32.mrf.mxu0
      %v1450 = vadd.f32 %v1385, %v1449
      %v1451 = vpop.f32.mrf.mxu0
      %v1452 = vpop.f32.mrf.mxu0
      %v1453 = vadd.f32 %v1388, %v1452
      %v1454 = vpop.f32.mrf.mxu0
      %1455 = vdwg.mxu0
      %1456 = vmatprep.subr.bf16.mxu0 0
      %1457 = vmatpush1.bf16.msra.mxu0 %v1221
      %1458 = vmatprep.subr.bf16.mxu0 0
      %1459 = vmatpush1.bf16.msra.mxu0 %v1220
      %1460 = vmatprep.subr.bf16.mxu0 0
      %1461 = vmatpush1.bf16.msra.mxu0 %v1219
      %1462 = vmatprep.subr.bf16.mxu0 0
      %1463 = vmatpush1.bf16.msra.mxu0 %v1218
      %1464 = vmatprep.subr.bf16.mxu0 0
      %1465 = vmatpush1.bf16.msra.mxu0 %v1217
      %1466 = vmatprep.subr.bf16.mxu0 0
      %1467 = vmatpush1.bf16.msra.mxu0 %v1216
      %1468 = vmatprep.subr.bf16.mxu0 0
      %1469 = vmatpush1.bf16.msra.mxu0 %v1215
      %1470 = vmatprep.subr.bf16.mxu0 0
      %1471 = vmatpush1.bf16.msra.mxu0 %v1214
      %1472 = vmatprep.subr.bf16.mxu0 0
      %1473 = vmatpush2.bf16.msra.mxu0 %v1229
      %1474 = vmatprep.subr.bf16.mxu0 0
      %1475 = vmatpush2.bf16.msra.mxu0 %v1228
      %1476 = vmatprep.subr.bf16.mxu0 0
      %1477 = vmatpush2.bf16.msra.mxu0 %v1227
      %1478 = vmatprep.subr.bf16.mxu0 0
      %1479 = vmatpush2.bf16.msra.mxu0 %v1226
      %1480 = vmatprep.subr.bf16.mxu0 0
      %1481 = vmatpush2.bf16.msra.mxu0 %v1225
      %1482 = vmatprep.subr.bf16.mxu0 0
      %1483 = vmatpush2.bf16.msra.mxu0 %v1224
      %1484 = vmatprep.subr.bf16.mxu0 0
      %1485 = vmatpush2.bf16.msra.mxu0 %v1223
      %1486 = vmatprep.subr.bf16.mxu0 0
      %1487 = vmatpush2.bf16.msra.mxu0 %v1222
      %1488 = vmatprep.mubr.bf16.mxu0 %v827
      %1489 = vmatmul.mubr.bf16.gmra.mxu0 %v826
      %v1490 = vpop.f32.mrf.mxu0
      %v1491 = vadd.f32 %v1426, %v1490
      %v1492 = vpop.f32.mrf.mxu0
      %v1493 = vpop.f32.mrf.mxu0
      %v1494 = vadd.f32 %v1429, %v1493
      %v1495 = vpop.f32.mrf.mxu0
      %1496 = vmatprep.mubr.bf16.mxu0 %v836
      %1497 = vmatmul.mubr.bf16.gmra.mxu0 %v835
      %v1498 = vpop.f32.mrf.mxu0
      %v1499 = vadd.f32 %v1434, %v1498
      %v1500 = vpop.f32.mrf.mxu0
      %v1501 = vpop.f32.mrf.mxu0
      %v1502 = vadd.f32 %v1437, %v1501
      %v1503 = vpop.f32.mrf.mxu0
      %1504 = vmatprep.mubr.bf16.mxu0 %v845
      %1505 = vmatmul.mubr.bf16.gmra.mxu0 %v844
      %v1506 = vpop.f32.mrf.mxu0
      %v1507 = vadd.f32 %v1442, %v1506
      %v1508 = vpop.f32.mrf.mxu0
      %v1509 = vpop.f32.mrf.mxu0
      %v1510 = vadd.f32 %v1445, %v1509
      %v1511 = vpop.f32.mrf.mxu0
      %1512 = vmatprep.mubr.bf16.mxu0 %v854
      %1513 = vmatmul.mubr.bf16.gmra.mxu0 %v853
      %v1514 = vpop.f32.mrf.mxu0
      %v1515 = vadd.f32 %v1450, %v1514
      %v1516 = vpop.f32.mrf.mxu0
      %v1517 = vpop.f32.mrf.mxu0
      %v1518 = vadd.f32 %v1453, %v1517
      %v1519 = vpop.f32.mrf.mxu0
      %1520 = vdwg.mxu0
      %1521 = vmatprep.subr.bf16.mxu0 0
      %1522 = vmatpush1.bf16.msra.mxu0 %v1237
      %1523 = vmatprep.subr.bf16.mxu0 0
      %1524 = vmatpush1.bf16.msra.mxu0 %v1236
      %1525 = vmatprep.subr.bf16.mxu0 0
      %1526 = vmatpush1.bf16.msra.mxu0 %v1235
      %1527 = vmatprep.subr.bf16.mxu0 0
      %1528 = vmatpush1.bf16.msra.mxu0 %v1234
      %1529 = vmatprep.subr.bf16.mxu0 0
      %1530 = vmatpush1.bf16.msra.mxu0 %v1233
      %1531 = vmatprep.subr.bf16.mxu0 0
      %1532 = vmatpush1.bf16.msra.mxu0 %v1232
      %1533 = vmatprep.subr.bf16.mxu0 0
      %1534 = vmatpush1.bf16.msra.mxu0 %v1231
      %1535 = vmatprep.subr.bf16.mxu0 0
      %1536 = vmatpush1.bf16.msra.mxu0 %v1230
      %1537 = vmatprep.subr.bf16.mxu0 0
      %1538 = vmatpush2.bf16.msra.mxu0 %v1245
      %1539 = vmatprep.subr.bf16.mxu0 0
      %1540 = vmatpush2.bf16.msra.mxu0 %v1244
      %1541 = vmatprep.subr.bf16.mxu0 0
      %1542 = vmatpush2.bf16.msra.mxu0 %v1243
      %1543 = vmatprep.subr.bf16.mxu0 0
      %1544 = vmatpush2.bf16.msra.mxu0 %v1242
      %1545 = vmatprep.subr.bf16.mxu0 0
      %1546 = vmatpush2.bf16.msra.mxu0 %v1241
      %1547 = vmatprep.subr.bf16.mxu0 0
      %1548 = vmatpush2.bf16.msra.mxu0 %v1240
      %1549 = vmatprep.subr.bf16.mxu0 0
      %1550 = vmatpush2.bf16.msra.mxu0 %v1239
      %1551 = vmatprep.subr.bf16.mxu0 0
      %1552 = vmatpush2.bf16.msra.mxu0 %v1238
      %1553 = vmatprep.mubr.bf16.mxu0 %v829
      %1554 = vmatmul.mubr.bf16.gmra.mxu0 %v828
      %v1555 = vpop.f32.mrf.mxu0
      %v1556 = vadd.f32 %v1491, %v1555
      %v1557 = vpop.f32.mrf.mxu0
      %v1558 = vpop.f32.mrf.mxu0
      %v1559 = vadd.f32 %v1494, %v1558
      %v1560 = vpop.f32.mrf.mxu0
      %1561 = vmatprep.mubr.bf16.mxu0 %v838
      %1562 = vmatmul.mubr.bf16.gmra.mxu0 %v837
      %v1563 = vpop.f32.mrf.mxu0
      %v1564 = vadd.f32 %v1499, %v1563
      %v1565 = vpop.f32.mrf.mxu0
      %v1566 = vpop.f32.mrf.mxu0
      %v1567 = vadd.f32 %v1502, %v1566
      %v1568 = vpop.f32.mrf.mxu0
      %1569 = vmatprep.mubr.bf16.mxu0 %v847
      %1570 = vmatmul.mubr.bf16.gmra.mxu0 %v846
      %v1571 = vpop.f32.mrf.mxu0
      %v1572 = vadd.f32 %v1507, %v1571
      %v1573 = vpop.f32.mrf.mxu0
      %v1574 = vpop.f32.mrf.mxu0
      %v1575 = vadd.f32 %v1510, %v1574
      %v1576 = vpop.f32.mrf.mxu0
      %1577 = vmatprep.mubr.bf16.mxu0 %v856
      %1578 = vmatmul.mubr.bf16.gmra.mxu0 %v855
      %v1579 = vpop.f32.mrf.mxu0
      %v1580 = vadd.f32 %v1515, %v1579
      %v1581 = vpop.f32.mrf.mxu0
      %v1582 = vpop.f32.mrf.mxu0
      %v1583 = vadd.f32 %v1518, %v1582
      %v1584 = vpop.f32.mrf.mxu0
      %1585 = vdwg.mxu0
      %1586 = vmatprep.subr.bf16.mxu0 0
      %1587 = vmatpush1.bf16.msra.mxu0 %v1253
      %1588 = vmatprep.subr.bf16.mxu0 0
      %1589 = vmatpush1.bf16.msra.mxu0 %v1252
      %1590 = vmatprep.subr.bf16.mxu0 0
      %1591 = vmatpush1.bf16.msra.mxu0 %v1251
      %1592 = vmatprep.subr.bf16.mxu0 0
      %1593 = vmatpush1.bf16.msra.mxu0 %v1250
      %1594 = vmatprep.subr.bf16.mxu0 0
      %1595 = vmatpush1.bf16.msra.mxu0 %v1249
      %1596 = vmatprep.subr.bf16.mxu0 0
      %1597 = vmatpush1.bf16.msra.mxu0 %v1248
      %1598 = vmatprep.subr.bf16.mxu0 0
      %1599 = vmatpush1.bf16.msra.mxu0 %v1247
      %1600 = vmatprep.subr.bf16.mxu0 0
      %1601 = vmatpush1.bf16.msra.mxu0 %v1246
      %1602 = vmatprep.subr.bf16.mxu0 0
      %1603 = vmatpush2.bf16.msra.mxu0 0
      %1604 = vmatprep.subr.bf16.mxu0 0
      %1605 = vmatpush2.bf16.msra.mxu0 0
      %1606 = vmatprep.subr.bf16.mxu0 0
      %1607 = vmatpush2.bf16.msra.mxu0 0
      %1608 = vmatprep.subr.bf16.mxu0 0
      %1609 = vmatpush2.bf16.msra.mxu0 0
      %1610 = vmatprep.subr.bf16.mxu0 0
      %1611 = vmatpush2.bf16.msra.mxu0 0
      %1612 = vmatprep.subr.bf16.mxu0 0
      %1613 = vmatpush2.bf16.msra.mxu0 0
      %1614 = vmatprep.subr.bf16.mxu0 0
      %1615 = vmatpush2.bf16.msra.mxu0 0
      %1616 = vmatprep.subr.bf16.mxu0 0
      %1617 = vmatpush2.bf16.msra.mxu0 0
      %1618 = vmatprep.mubr.bf16.mxu0 0
      %1619 = vmatmul.mubr.bf16.gmra.mxu0 %v830
      %v1620 = vpop.f32.mrf.mxu0
      %v1621 = vadd.f32 %v1556, %v1620
      %v1622 = vpop.f32.mrf.mxu0
      %v1623 = vpop.f32.mrf.mxu0
      %v1624 = vadd.f32 %v1559, %v1623
      %v1625 = vpop.f32.mrf.mxu0
      %1626 = vmatprep.mubr.bf16.mxu0 0
      %1627 = vmatmul.mubr.bf16.gmra.mxu0 %v839
      %v1628 = vpop.f32.mrf.mxu0
      %v1629 = vadd.f32 %v1564, %v1628
      %v1630 = vpop.f32.mrf.mxu0
      %v1631 = vpop.f32.mrf.mxu0
      %v1632 = vadd.f32 %v1567, %v1631
      %v1633 = vpop.f32.mrf.mxu0
      %1634 = vmatprep.mubr.bf16.mxu0 0
      %1635 = vmatmul.mubr.bf16.gmra.mxu0 %v848
      %v1636 = vpop.f32.mrf.mxu0
      %v1637 = vadd.f32 %v1572, %v1636
      %v1638 = vpop.f32.mrf.mxu0
      %v1639 = vpop.f32.mrf.mxu0
      %v1640 = vadd.f32 %v1575, %v1639
      %v1641 = vpop.f32.mrf.mxu0
      %1642 = vmatprep.mubr.bf16.mxu0 0
      %1643 = vmatmul.mubr.bf16.gmra.mxu0 %v857
      %v1644 = vpop.f32.mrf.mxu0
      %v1645 = vadd.f32 %v1580, %v1644
      %v1646 = vpop.f32.mrf.mxu0
      %v1647 = vpop.f32.mrf.mxu0
      %v1648 = vadd.f32 %v1583, %v1647
      %v1649 = vpop.f32.mrf.mxu0
      %1650 = vdwg.mxu0
      %v1651 = vld [vmem:[%s2] sm:$0x1]
      %v1653 = vlaneseq
      %v1654 = vshrl.u32 %v1653, 7
      %v1655 = vsub.s32 0, %v1654
      %v1656 = vrot.slane %v1651, %v1655
      %v1658 = vadd.f32 %v1621, %v1656
      %v1659 = vadd.f32 %v1624, %v1656
      %v1660 = vadd.f32 %v1629, %v1656
      %v1661 = vadd.f32 %v1632, %v1656
      %v1662 = vadd.f32 %v1637, %v1656
      %v1663 = vadd.f32 %v1640, %v1656
      %v1664 = vadd.f32 %v1645, %v1656
      %v1665 = vadd.f32 %v1648, %v1656
      %v1666 = vmax.f32 %v1658, 0.0
      %v1667 = vmax.f32 %v1659, 0.0
      %v1668 = vmax.f32 %v1660, 0.0
      %v1669 = vmax.f32 %v1661, 0.0
      %v1670 = vmax.f32 %v1662, 0.0
      %v1671 = vmax.f32 %v1663, 0.0
      %v1672 = vmax.f32 %v1664, 0.0
      %v1673 = vmax.f32 %v1665, 0.0
      %v1674 = vpack.c.bf16 %v1666, %v1666
      %v1675 = vpack.c.bf16 %v1667, %v1667
      %v1676 = vpack.c.bf16 %v1668, %v1668
      %v1677 = vpack.c.bf16 %v1669, %v1669
      %v1678 = vpack.c.bf16 %v1670, %v1670
      %v1679 = vpack.c.bf16 %v1671, %v1671
      %v1680 = vpack.c.bf16 %v1672, %v1672
      %v1681 = vpack.c.bf16 %v1673, %v1673
      %vm1682 = vcmask 257024
      %1683 = vst.msk [vmem:[%s170] sm:$0xf] %vm1682, %v1674
      %1684 = vst.msk [vmem:[%s170 + $0x4] sm:$0xf] %vm1682, %v1675
      %1685 = vst.msk [vmem:[%s170 + $0x8] sm:$0xf] %vm1682, %v1676
      %1686 = vst.msk [vmem:[%s170 + $0xc] sm:$0xf] %vm1682, %v1677
      %1687 = vst.msk [vmem:[%s170 + $0x10] sm:$0xf] %vm1682, %v1678
      %1688 = vst.msk [vmem:[%s170 + $0x14] sm:$0xf] %vm1682, %v1679
      %1689 = vst.msk [vmem:[%s170 + $0x18] sm:$0xf] %vm1682, %v1680
      %1690 = vst.msk [vmem:[%s170 + $0x1c] sm:$0xf] %vm1682, %v1681
      %p1691 = scmp.lt.s32.totalorder %s14, 1
      %s1692 = scalar_select %p1691, %s14, 1
      %s1693 = smul.addr %s1692, 8
      %s1694 = smul.addr %s1693, 4
      %s1695 = scalar_lea.vmem %s3, %s1694
      // Predicated region
      $region33: #{generator_forward.13} parent=31 // pred_check
        %p1696 = pneg %p100
      $region34: #{generator_forward.13} parent=31 // pred_check_branch
        %1698 = sbr.rel (%p1696) target = $region36
      $region35: #{generator_forward.13} parent=31 // pred_region
        _
      $region36: #{generator_forward.13} parent=31 // pred_fallthru
        _
    $region32: #{generator_forward.13} parent=5 // pred_fallthru
      _
    %p1699 = scmp.le.s32.totalorder 2, %s9
    // Predicated region
    $region37: #{generator_forward.13} parent=5 // pred_check
      %p1700 = pneg %p1699
    $region38: #{generator_forward.13} parent=5 // pred_check_branch
      %1702 = sbr.rel (%p1700) target = $region40
    $region39: #{generator_forward.13} parent=5 // pred_region
      %s1703 = ssub.s32 %s9, 2
      // Predicated region
      $region41: #{generator_forward.13} parent=39 // pred_check
        %p1704 = pneg %p106
      $region42: #{generator_forward.13} parent=39 // pred_check_branch
        %1706 = sbr.rel (%p1704) target = $region44
      $region43: #{generator_forward.13} parent=39 // pred_region
        %p1707 = scmp.lt.s32.totalorder %s15, 1
        %s1708 = scalar_select %p1707, %s15, 1
        %s1709 = smul.addr %s1708, 8
        %s1710 = smul.addr %s1709, 4
        %s1711 = scalar_lea.vmem %s3, %s1710
      $region44: #{generator_forward.13} parent=39 // pred_fallthru
        _
    $region40: #{generator_forward.13} parent=5 // pred_fallthru
      _
  $region6: #{generator_forward.13} parent=0 // loop_footer
    %s13 = sadd.s32 1, %s9
  $region7: #{generator_forward.13} parent=0 // loop_footer_branch
    %8 = sbr.rel target = $region3
  $region8: #{generator_forward.13} parent=0 // loop_exit
    _

// kernel: generator_forward.17
$region0: #{generator_forward.17}
  #allocation0 [shape = 'u32[]', space=smem, size = 0x4, offset = 0x4, fixed_abs, tag = 'smem constant byte address 0x4 - core index']
  #allocation1 [shape = 'u32[144,128]{1,0:T(1,128)}', space=vmem, size = 0x12000, scoped, tag = 'internal scratch']
  %s0 = inlined_call_operand.vmem [shape: bf16[128,128], index: 0, kind: input, shape index: {}]
  %s1 = inlined_call_operand.vmem [shape: bf16[128,64], index: 1, kind: input, shape index: {}]
  %s2 = inlined_call_operand.vmem [shape: f32[1,64], index: 2, kind: input, shape index: {}]
  %s3 = inlined_call_operand.vmem [shape: bf16[128,64], index: 3, kind: output, shape index: {}]
  %s4 = sld [smem:[#allocation0]]
  $region22: #{generator_forward.17} parent=0
    _
  %s6 = ssub.s32 1, %s4
  %s7 = scalar_select 0, %s6, %s4
  // Predicated region
  $region2: #{generator_forward.17} parent=0 // pred_check
    _
  $region3: #{generator_forward.17} parent=0 // pred_check_branch
    %9 = sbr.rel (0) target = $region5
  $region4: #{generator_forward.17} parent=0 // pred_region
    _
  $region5: #{generator_forward.17} parent=0 // pred_fallthru
    _
  // Predicated region
  $region6: #{generator_forward.17} parent=0 // pred_check
    _
  $region7: #{generator_forward.17} parent=0 // pred_check_branch
    %11 = sbr.rel (0) target = $region9
  $region8: #{generator_forward.17} parent=0 // pred_region
    _
  $region9: #{generator_forward.17} parent=0 // pred_fallthru
    _
  // Predicated region
  $region10: #{generator_forward.17} parent=0 // pred_check
    _
  $region11: #{generator_forward.17} parent=0 // pred_check_branch
    %13 = sbr.rel (0) target = $region13
  $region12: #{generator_forward.17} parent=0 // pred_region
    _
  $region13: #{generator_forward.17} parent=0 // pred_fallthru
    _
  %v15 = vld [vmem:[%s0] sm:$0xf]
  %v16 = vld [vmem:[%s0 + $0x4] sm:$0xf]
  %v17 = vld [vmem:[%s0 + $0x8] sm:$0xf]
  %v18 = vld [vmem:[%s0 + $0xc] sm:$0xf]
  %v19 = vld [vmem:[%s0 + $0x10] sm:$0xf]
  %v20 = vld [vmem:[%s0 + $0x14] sm:$0xf]
  %v21 = vld [vmem:[%s0 + $0x18] sm:$0xf]
  %v22 = vld [vmem:[%s0 + $0x1c] sm:$0xf]
  %v23 = vld [vmem:[%s0 + $0x20] sm:$0xf]
  %v24 = vld [vmem:[%s0 + $0x24] sm:$0xf]
  %v25 = vld [vmem:[%s0 + $0x28] sm:$0xf]
  %v26 = vld [vmem:[%s0 + $0x2c] sm:$0xf]
  %v27 = vld [vmem:[%s0 + $0x30] sm:$0xf]
  %v28 = vld [vmem:[%s0 + $0x34] sm:$0xf]
  %v29 = vld [vmem:[%s0 + $0x38] sm:$0xf]
  %v30 = vld [vmem:[%s0 + $0x3c] sm:$0xf]
  %v31 = vld [vmem:[%s1] sm:$0xf]
  %v32 = vld [vmem:[%s1 + $0x4] sm:$0xf]
  %v33 = vld [vmem:[%s1 + $0x8] sm:$0xf]
  %v34 = vld [vmem:[%s1 + $0xc] sm:$0xf]
  %v35 = vld [vmem:[%s1 + $0x10] sm:$0xf]
  %v36 = vld [vmem:[%s1 + $0x14] sm:$0xf]
  %v37 = vld [vmem:[%s1 + $0x18] sm:$0xf]
  %v38 = vld [vmem:[%s1 + $0x1c] sm:$0xf]
  %v39 = vld [vmem:[%s1 + $0x20] sm:$0xf]
  %v40 = vld [vmem:[%s1 + $0x24] sm:$0xf]
  %v41 = vld [vmem:[%s1 + $0x28] sm:$0xf]
  %v42 = vld [vmem:[%s1 + $0x2c] sm:$0xf]
  %v43 = vld [vmem:[%s1 + $0x30] sm:$0xf]
  %v44 = vld [vmem:[%s1 + $0x34] sm:$0xf]
  %v45 = vld [vmem:[%s1 + $0x38] sm:$0xf]
  %v46 = vld [vmem:[%s1 + $0x3c] sm:$0xf]
  %v47 = vld [vmem:[%s2] sm:$0x1]
  %v49 = vlaneseq
  %v50 = vshrl.u32 %v49, 7
  %v51 = vsub.s32 0, %v50
  %v52 = vrot.slane %v47, %v51
  %v70 = vunpack.c.l.b16 %v15
  %v71 = vunpack.c.l.b16 %v16
  %v72 = vunpack.c.l.b16 %v17
  %v73 = vunpack.c.l.b16 %v18
  %v74 = vunpack.c.l.b16 %v19
  %v75 = vunpack.c.l.b16 %v20
  %v76 = vunpack.c.l.b16 %v21
  %v77 = vunpack.c.l.b16 %v22
  %v78 = vunpack.c.l.b16 %v23
  %v79 = vunpack.c.l.b16 %v24
  %v80 = vunpack.c.l.b16 %v25
  %v81 = vunpack.c.l.b16 %v26
  %v82 = vunpack.c.l.b16 %v27
  %v83 = vunpack.c.l.b16 %v28
  %v84 = vunpack.c.l.b16 %v29
  %v85 = vunpack.c.l.b16 %v30
  %v86 = vpack.c.b16 %v71, %v70
  %v87 = vpack.c.b16 %v73, %v72
  %v88 = vpack.c.b16 %v75, %v74
  %v89 = vpack.c.b16 %v77, %v76
  %v90 = vpack.c.b16 %v79, %v78
  %v91 = vpack.c.b16 %v81, %v80
  %v92 = vpack.c.b16 %v83, %v82
  %v93 = vpack.c.b16 %v85, %v84
  %v118 = vunpack.c.l.b16 %v31
  %v119 = vunpack.c.l.b16 %v32
  %v120 = vunpack.c.l.b16 %v33
  %v121 = vunpack.c.l.b16 %v34
  %v122 = vunpack.c.l.b16 %v35
  %v123 = vunpack.c.l.b16 %v36
  %v124 = vunpack.c.l.b16 %v37
  %v125 = vunpack.c.l.b16 %v38
  %v126 = vunpack.c.l.b16 %v39
  %v127 = vunpack.c.l.b16 %v40
  %v128 = vunpack.c.l.b16 %v41
  %v129 = vunpack.c.l.b16 %v42
  %v130 = vunpack.c.l.b16 %v43
  %v131 = vunpack.c.l.b16 %v44
  %v132 = vunpack.c.l.b16 %v45
  %v133 = vunpack.c.l.b16 %v46
  %v134 = vpack.c.b16 %v119, %v118
  %v135 = vpack.c.b16 %v121, %v120
  %v136 = vpack.c.b16 %v123, %v122
  %v137 = vpack.c.b16 %v125, %v124
  %v138 = vpack.c.b16 %v127, %v126
  %v139 = vpack.c.b16 %v129, %v128
  %v140 = vpack.c.b16 %v131, %v130
  %v141 = vpack.c.b16 %v133, %v132
  %150 = vmatprep.subr.bf16.mxu0 0
  %151 = vmatpush1.bf16.msra.mxu0 %v141
  %152 = vmatprep.subr.bf16.mxu0 0
  %153 = vmatpush1.bf16.msra.mxu0 %v140
  %154 = vmatprep.subr.bf16.mxu0 0
  %155 = vmatpush1.bf16.msra.mxu0 %v139
  %156 = vmatprep.subr.bf16.mxu0 0
  %157 = vmatpush1.bf16.msra.mxu0 %v138
  %158 = vmatprep.subr.bf16.mxu0 0
  %159 = vmatpush1.bf16.msra.mxu0 %v137
  %160 = vmatprep.subr.bf16.mxu0 0
  %161 = vmatpush1.bf16.msra.mxu0 %v136
  %162 = vmatprep.subr.bf16.mxu0 0
  %163 = vmatpush1.bf16.msra.mxu0 %v135
  %164 = vmatprep.subr.bf16.mxu0 0
  %165 = vmatpush1.bf16.msra.mxu0 %v134
  %166 = vmatprep.subr.bf16.mxu0 0
  %167 = vmatpush2.bf16.msra.mxu0 0
  %168 = vmatprep.subr.bf16.mxu0 0
  %169 = vmatpush2.bf16.msra.mxu0 0
  %170 = vmatprep.subr.bf16.mxu0 0
  %171 = vmatpush2.bf16.msra.mxu0 0
  %172 = vmatprep.subr.bf16.mxu0 0
  %173 = vmatpush2.bf16.msra.mxu0 0
  %174 = vmatprep.subr.bf16.mxu0 0
  %175 = vmatpush2.bf16.msra.mxu0 0
  %176 = vmatprep.subr.bf16.mxu0 0
  %177 = vmatpush2.bf16.msra.mxu0 0
  %178 = vmatprep.subr.bf16.mxu0 0
  %179 = vmatpush2.bf16.msra.mxu0 0
  %180 = vmatprep.subr.bf16.mxu0 0
  %181 = vmatpush2.bf16.msra.mxu0 0
  %182 = vmatprep.mubr.bf16.mxu0 0
  %183 = vmatmul.mubr.bf16.gmra.mxu0 %v86
  %v184 = vpop.f32.mrf.mxu0
  %v185 = vadd.f32 %v52, %v184
  %v186 = vpop.f32.mrf.mxu0
  %v187 = vpop.f32.mrf.mxu0
  %v188 = vadd.f32 %v52, %v187
  %v189 = vpop.f32.mrf.mxu0
  %190 = vmatprep.mubr.bf16.mxu0 0
  %191 = vmatmul.mubr.bf16.gmra.mxu0 %v87
  %v192 = vpop.f32.mrf.mxu0
  %v193 = vadd.f32 %v52, %v192
  %v194 = vpop.f32.mrf.mxu0
  %v195 = vpop.f32.mrf.mxu0
  %v196 = vadd.f32 %v52, %v195
  %v197 = vpop.f32.mrf.mxu0
  %198 = vmatprep.mubr.bf16.mxu0 0
  %199 = vmatmul.mubr.bf16.gmra.mxu0 %v88
  %v200 = vpop.f32.mrf.mxu0
  %v201 = vadd.f32 %v52, %v200
  %v202 = vpop.f32.mrf.mxu0
  %v203 = vpop.f32.mrf.mxu0
  %v204 = vadd.f32 %v52, %v203
  %v205 = vpop.f32.mrf.mxu0
  %206 = vmatprep.mubr.bf16.mxu0 0
  %207 = vmatmul.mubr.bf16.gmra.mxu0 %v89
  %v208 = vpop.f32.mrf.mxu0
  %v209 = vadd.f32 %v52, %v208
  %v210 = vpop.f32.mrf.mxu0
  %v211 = vpop.f32.mrf.mxu0
  %v212 = vadd.f32 %v52, %v211
  %v213 = vpop.f32.mrf.mxu0
  %214 = vmatprep.mubr.bf16.mxu0 0
  %215 = vmatmul.mubr.bf16.gmra.mxu0 %v90
  %v216 = vpop.f32.mrf.mxu0
  %v217 = vadd.f32 %v52, %v216
  %v218 = vpop.f32.mrf.mxu0
  %v219 = vpop.f32.mrf.mxu0
  %v220 = vadd.f32 %v52, %v219
  %v221 = vpop.f32.mrf.mxu0
  %222 = vmatprep.mubr.bf16.mxu0 0
  %223 = vmatmul.mubr.bf16.gmra.mxu0 %v91
  %v224 = vpop.f32.mrf.mxu0
  %v225 = vadd.f32 %v52, %v224
  %v226 = vpop.f32.mrf.mxu0
  %v227 = vpop.f32.mrf.mxu0
  %v228 = vadd.f32 %v52, %v227
  %v229 = vpop.f32.mrf.mxu0
  %230 = vmatprep.mubr.bf16.mxu0 0
  %231 = vmatmul.mubr.bf16.gmra.mxu0 %v92
  %v232 = vpop.f32.mrf.mxu0
  %v233 = vadd.f32 %v52, %v232
  %v234 = vpop.f32.mrf.mxu0
  %v235 = vpop.f32.mrf.mxu0
  %v236 = vadd.f32 %v52, %v235
  %v237 = vpop.f32.mrf.mxu0
  %238 = vmatprep.mubr.bf16.mxu0 0
  %239 = vmatmul.mubr.bf16.gmra.mxu0 %v93
  %v240 = vpop.f32.mrf.mxu0
  %v241 = vadd.f32 %v52, %v240
  %v242 = vpop.f32.mrf.mxu0
  %v243 = vpop.f32.mrf.mxu0
  %v244 = vadd.f32 %v52, %v243
  %v245 = vpop.f32.mrf.mxu0
  %246 = vdwg.mxu0
  %v247 = vmax.f32 %v185, 0.0
  %v248 = vmax.f32 %v188, 0.0
  %v249 = vmax.f32 %v193, 0.0
  %v250 = vmax.f32 %v196, 0.0
  %v251 = vmax.f32 %v201, 0.0
  %v252 = vmax.f32 %v204, 0.0
  %v253 = vmax.f32 %v209, 0.0
  %v254 = vmax.f32 %v212, 0.0
  %v255 = vmax.f32 %v217, 0.0
  %v256 = vmax.f32 %v220, 0.0
  %v257 = vmax.f32 %v225, 0.0
  %v258 = vmax.f32 %v228, 0.0
  %v259 = vmax.f32 %v233, 0.0
  %v260 = vmax.f32 %v236, 0.0
  %v261 = vmax.f32 %v241, 0.0
  %v262 = vmax.f32 %v244, 0.0
  %v263 = vpack.c.bf16 %v248, %v247
  %v264 = vpack.c.bf16 %v250, %v249
  %v265 = vpack.c.bf16 %v252, %v251
  %v266 = vpack.c.bf16 %v254, %v253
  %v267 = vpack.c.bf16 %v256, %v255
  %v268 = vpack.c.bf16 %v258, %v257
  %v269 = vpack.c.bf16 %v260, %v259
  %v270 = vpack.c.bf16 %v262, %v261
  %v279 = vunpack.c.l.b16 %v263
  %v280 = vunpack.c.h.b16 %v263
  %v281 = vunpack.c.l.b16 %v264
  %v282 = vunpack.c.h.b16 %v264
  %v283 = vunpack.c.l.b16 %v265
  %v284 = vunpack.c.h.b16 %v265
  %v285 = vunpack.c.l.b16 %v266
  %v286 = vunpack.c.h.b16 %v266
  %v287 = vunpack.c.l.b16 %v267
  %v288 = vunpack.c.h.b16 %v267
  %v289 = vunpack.c.l.b16 %v268
  %v290 = vunpack.c.h.b16 %v268
  %v291 = vunpack.c.l.b16 %v269
  %v292 = vunpack.c.h.b16 %v269
  %v293 = vunpack.c.l.b16 %v270
  %v294 = vunpack.c.h.b16 %v270
  %v295 = vpack.c.b16 %v279, %v279
  %v296 = vpack.c.b16 %v280, %v280
  %v297 = vpack.c.b16 %v281, %v281
  %v298 = vpack.c.b16 %v282, %v282
  %v299 = vpack.c.b16 %v283, %v283
  %v300 = vpack.c.b16 %v284, %v284
  %v301 = vpack.c.b16 %v285, %v285
  %v302 = vpack.c.b16 %v286, %v286
  %v303 = vpack.c.b16 %v287, %v287
  %v304 = vpack.c.b16 %v288, %v288
  %v305 = vpack.c.b16 %v289, %v289
  %v306 = vpack.c.b16 %v290, %v290
  %v307 = vpack.c.b16 %v291, %v291
  %v308 = vpack.c.b16 %v292, %v292
  %v309 = vpack.c.b16 %v293, %v293
  %v310 = vpack.c.b16 %v294, %v294
  %vm327 = vcmask 519168
  %328 = vst.msk [vmem:[%s3] sm:$0xf] %vm327, %v295
  %329 = vst.msk [vmem:[%s3 + $0x4] sm:$0xf] %vm327, %v296
  %330 = vst.msk [vmem:[%s3 + $0x8] sm:$0xf] %vm327, %v297
  %331 = vst.msk [vmem:[%s3 + $0xc] sm:$0xf] %vm327, %v298
  %332 = vst.msk [vmem:[%s3 + $0x10] sm:$0xf] %vm327, %v299
  %333 = vst.msk [vmem:[%s3 + $0x14] sm:$0xf] %vm327, %v300
  %334 = vst.msk [vmem:[%s3 + $0x18] sm:$0xf] %vm327, %v301
  %335 = vst.msk [vmem:[%s3 + $0x1c] sm:$0xf] %vm327, %v302
  %336 = vst.msk [vmem:[%s3 + $0x20] sm:$0xf] %vm327, %v303
  %337 = vst.msk [vmem:[%s3 + $0x24] sm:$0xf] %vm327, %v304
  %338 = vst.msk [vmem:[%s3 + $0x28] sm:$0xf] %vm327, %v305
  %339 = vst.msk [vmem:[%s3 + $0x2c] sm:$0xf] %vm327, %v306
  %340 = vst.msk [vmem:[%s3 + $0x30] sm:$0xf] %vm327, %v307
  %341 = vst.msk [vmem:[%s3 + $0x34] sm:$0xf] %vm327, %v308
  %342 = vst.msk [vmem:[%s3 + $0x38] sm:$0xf] %vm327, %v309
  %343 = vst.msk [vmem:[%s3 + $0x3c] sm:$0xf] %vm327, %v310
  // Predicated region
  $region14: #{generator_forward.17} parent=0 // pred_check
    _
  $region15: #{generator_forward.17} parent=0 // pred_check_branch
    %345 = sbr.rel (0) target = $region17
  $region16: #{generator_forward.17} parent=0 // pred_region
    _
  $region17: #{generator_forward.17} parent=0 // pred_fallthru
    _
  // Predicated region
  $region18: #{generator_forward.17} parent=0 // pred_check
    _
  $region19: #{generator_forward.17} parent=0 // pred_check_branch
    %347 = sbr.rel (0) target = $region21
  $region20: #{generator_forward.17} parent=0 // pred_region
    _
  $region21: #{generator_forward.17} parent=0 // pred_fallthru
    _

// kernel: generator_forward.14
$region0: #{generator_forward.14}
  #allocation0 [shape = 'u32[]', space=smem, size = 0x4, offset = 0x4, fixed_abs, tag = 'smem constant byte address 0x4 - core index']
  #allocation1 [shape = 'u32[144,128]{1,0:T(1,128)}', space=vmem, size = 0x12000, scoped, tag = 'internal scratch']
  %s0 = inlined_call_operand.vmem [shape: bf16[2,10,10,128], index: 0, kind: input, shape index: {}]
  %s1 = inlined_call_operand.vmem [shape: bf16[1152,32], index: 1, kind: input, shape index: {}]
  %s2 = inlined_call_operand.vmem [shape: f32[1,32], index: 2, kind: input, shape index: {}]
  %s3 = inlined_call_operand.vmem [shape: bf16[2,8,8,32], index: 3, kind: input, shape index: {}, may-alias: {3,4}]
  %s4 = inlined_call_operand.vmem [shape: bf16[2,8,8,32], index: 4, kind: output, shape index: {}, may-alias: {3,4}]
  %s5 = sld [smem:[#allocation0]]
  $region49: #{generator_forward.14} parent=0
    _
  %s7 = ssub.s32 1, %s5
  %s8 = scalar_select 0, %s7, %s5
  loop: start=0, step=1, limit=4
  $region2: #{generator_forward.14} parent=0 // loop_pre_header
    _
  $region3: #{generator_forward.14} parent=0 // loop_header
    %s10 = sphi 0, %s14
    %p11 = scmp.ge.s32.totalorder %s10, 4
    %s20 = sphi 0, %s22
    %s23 = sphi 0, %s20
    %s24 = sphi 0, %s23
    %s40 = sphi 0, %s24
    %s44 = sphi 0, %s44
    %s46 = sphi 0, %s44
    %s47 = sphi 0, %s46
    %s61 = sphi 0, %s47
    %s65 = sphi 0, %s65
    %s67 = sphi 0, %s65
    %s68 = sphi 0, %s67
    %s82 = sphi 0, %s68
    %s88 = sphi 0, %s90
    %s91 = sphi 0, %s88
    %s92 = sphi 0, %s91
    %s108 = sphi 0, %s92
    %s114 = sphi 0, %s116
    %s117 = sphi 0, %s114
    %s118 = sphi 0, %s117
    %s134 = sphi 0, %s118
  $region4: #{generator_forward.14} parent=0 // loop_header_branch
    %13 = sbr.rel (%p11) target = $region8
  $region5: #{generator_forward.14} parent=0 // loop_body
    %s15 = ssub.s32 %s10, 1
    %s16 = ssub.s32 %s10, 2
    %s17 = sadd.s32 %s10, 1
    %s18 = ssub.s32 %s10, %s17
    %p19 = scmp.eq.s32.totalorder %s18, 0
    %s21 = sadd.s32 %s20, 1
    %s22 = scalar_select %p19, %s20, %s21
    %p25 = pneg %p19
    %p26 = scmp.eq.s32.totalorder %s10, 1
    %p27 = por %p25, %p26
    %p28 = scmp.ne.s32.totalorder %s20, %s23
    %p29 = scmp.eq.s32.totalorder %s10, 0
    %p30 = por %p28, %p29
    %p31 = scmp.ne.s32.totalorder %s20, %s23
    %p32 = scmp.eq.s32.totalorder %s15, 1
    %p33 = por %p31, %p32
    %p34 = scmp.ne.s32.totalorder %s23, %s24
    %p35 = scmp.eq.s32.totalorder %s15, 0
    %p36 = por %p34, %p35
    %p37 = scmp.ne.s32.totalorder %s23, %s24
    %p38 = scmp.eq.s32.totalorder %s16, 1
    %p39 = por %p37, %p38
    %p41 = scmp.ne.s32.totalorder %s24, %s40
    %p42 = scmp.eq.s32.totalorder %s16, 0
    %p43 = por %p41, %p42
    %s45 = sadd.s32 %s44, 1
    %p48 = scmp.eq.s32.totalorder %s10, 1
    %p49 = scmp.ne.s32.totalorder %s44, %s46
    %p50 = scmp.eq.s32.totalorder %s10, 0
    %p51 = por %p49, %p50
    %p52 = scmp.ne.s32.totalorder %s44, %s46
    %p53 = scmp.eq.s32.totalorder %s15, 1
    %p54 = por %p52, %p53
    %p55 = scmp.ne.s32.totalorder %s46, %s47
    %p56 = scmp.eq.s32.totalorder %s15, 0
    %p57 = por %p55, %p56
    %p58 = scmp.ne.s32.totalorder %s46, %s47
    %p59 = scmp.eq.s32.totalorder %s16, 1
    %p60 = por %p58, %p59
    %p62 = scmp.ne.s32.totalorder %s47, %s61
    %p63 = scmp.eq.s32.totalorder %s16, 0
    %p64 = por %p62, %p63
    %s66 = sadd.s32 %s65, 1
    %p69 = scmp.eq.s32.totalorder %s10, 1
    %p70 = scmp.ne.s32.totalorder %s65, %s67
    %p71 = scmp.eq.s32.totalorder %s10, 0
    %p72 = por %p70, %p71
    %p73 = scmp.ne.s32.totalorder %s65, %s67
    %p74 = scmp.eq.s32.totalorder %s15, 1
    %p75 = por %p73, %p74
    %p76 = scmp.ne.s32.totalorder %s67, %s68
    %p77 = scmp.eq.s32.totalorder %s15, 0
    %p78 = por %p76, %p77
    %p79 = scmp.ne.s32.totalorder %s67, %s68
    %p80 = scmp.eq.s32.totalorder %s16, 1
    %p81 = por %p79, %p80
    %p83 = scmp.ne.s32.totalorder %s68, %s82
    %p84 = scmp.eq.s32.totalorder %s16, 0
    %p85 = por %p83, %p84
    %s86 = ssub.s32 %s10, %s17
    %p87 = scmp.eq.s32.totalorder %s86, 0
    %s89 = sadd.s32 %s88, 1
    %s90 = scalar_select %p87, %s88, %s89
    %p93 = pneg %p87
    %p94 = scmp.eq.s32.totalorder %s10, 1
    %p95 = por %p93, %p94
    %p96 = scmp.ne.s32.totalorder %s88, %s91
    %p97 = scmp.eq.s32.totalorder %s10, 0
    %p98 = por %p96, %p97
    %p99 = scmp.ne.s32.totalorder %s88, %s91
    %p100 = scmp.eq.s32.totalorder %s15, 1
    %p101 = por %p99, %p100
    %p102 = scmp.ne.s32.totalorder %s91, %s92
    %p103 = scmp.eq.s32.totalorder %s15, 0
    %p104 = por %p102, %p103
    %p105 = scmp.ne.s32.totalorder %s91, %s92
    %p106 = scmp.eq.s32.totalorder %s16, 1
    %p107 = por %p105, %p106
    %p109 = scmp.ne.s32.totalorder %s92, %s108
    %p110 = scmp.eq.s32.totalorder %s16, 0
    %p111 = por %p109, %p110
    %s112 = ssub.s32 %s10, %s17
    %p113 = scmp.eq.s32.totalorder %s112, 0
    %s115 = sadd.s32 %s114, 1
    %s116 = scalar_select %p113, %s114, %s115
    %p119 = pneg %p113
    %p120 = scmp.eq.s32.totalorder %s10, 1
    %p121 = por %p119, %p120
    %p122 = scmp.ne.s32.totalorder %s114, %s117
    %p123 = scmp.eq.s32.totalorder %s10, 0
    %p124 = por %p122, %p123
    %p125 = scmp.ne.s32.totalorder %s114, %s117
    %p126 = scmp.eq.s32.totalorder %s15, 1
    %p127 = por %p125, %p126
    %p128 = scmp.ne.s32.totalorder %s117, %s118
    %p129 = scmp.eq.s32.totalorder %s15, 0
    %p130 = por %p128, %p129
    %p131 = scmp.ne.s32.totalorder %s117, %s118
    %p132 = scmp.eq.s32.totalorder %s16, 1
    %p133 = por %p131, %p132
    %p135 = scmp.ne.s32.totalorder %s118, %s134
    %p136 = scmp.eq.s32.totalorder %s16, 0
    %p137 = por %p135, %p136
    %p138 = scmp.le.s32.totalorder 1, %s10
    %p139 = scmp.lt.s32.totalorder %s10, 3
    %p140 = pnand %p138, %p139
    %p141 = pneg %p140
    // Predicated region
    $region9: #{generator_forward.14} parent=5 // pred_check
      _
    $region10: #{generator_forward.14} parent=5 // pred_check_branch
      %143 = sbr.rel (%p140) target = $region12
    $region11: #{generator_forward.14} parent=5 // pred_region
      %s144 = ssub.s32 %s10, 1
      // Predicated region
      $region13: #{generator_forward.14} parent=11 // pred_check
        %p145 = pneg %p57
      $region14: #{generator_forward.14} parent=11 // pred_check_branch
        %147 = sbr.rel (%p145) target = $region16
      $region15: #{generator_forward.14} parent=11 // pred_region
        _
      $region16: #{generator_forward.14} parent=11 // pred_fallthru
        _
      // Predicated region
      $region17: #{generator_forward.14} parent=11 // pred_check
        %p148 = pneg %p78
      $region18: #{generator_forward.14} parent=11 // pred_check_branch
        %150 = sbr.rel (%p148) target = $region20
      $region19: #{generator_forward.14} parent=11 // pred_region
        _
      $region20: #{generator_forward.14} parent=11 // pred_fallthru
        _
    $region12: #{generator_forward.14} parent=5 // pred_fallthru
      _
    %p151 = scmp.lt.s32.totalorder %s10, 2
    // Predicated region
    $region21: #{generator_forward.14} parent=5 // pred_check
      %p152 = pneg %p151
    $region22: #{generator_forward.14} parent=5 // pred_check_branch
      %154 = sbr.rel (%p152) target = $region24
    $region23: #{generator_forward.14} parent=5 // pred_region
      // Predicated region
      $region25: #{generator_forward.14} parent=23 // pred_check
        %p155 = pneg %p30
      $region26: #{generator_forward.14} parent=23 // pred_check_branch
        %157 = sbr.rel (%p155) target = $region28
      $region27: #{generator_forward.14} parent=23 // pred_region
        %p158 = scmp.lt.s32.totalorder %s10, 1
        %s159 = scalar_select %p158, %s10, 1
        %s160 = smul.addr %s159, 20
        %s161 = smul.addr %s160, 4
        %s162 = scalar_lea.vmem %s0, %s161
      $region28: #{generator_forward.14} parent=23 // pred_fallthru
        _
      // Predicated region
      $region29: #{generator_forward.14} parent=23 // pred_check
        %p163 = pneg %p98
      $region30: #{generator_forward.14} parent=23 // pred_check_branch
        %165 = sbr.rel (%p163) target = $region32
      $region31: #{generator_forward.14} parent=23 // pred_region
        %p166 = scmp.lt.s32.totalorder %s10, 1
        %s167 = scalar_select %p166, %s10, 1
        %s168 = smul.addr %s167, 8
        %s169 = smul.addr %s168, 4
        %s170 = scalar_lea.vmem %s3, %s169
      $region32: #{generator_forward.14} parent=23 // pred_fallthru
        _
    $region24: #{generator_forward.14} parent=5 // pred_fallthru
      _
    %p171 = scmp.le.s32.totalorder 1, %s10
    %p172 = scmp.lt.s32.totalorder %s10, 3
    %p173 = pnand %p171, %p172
    %p174 = pneg %p173
    // Predicated region
    $region33: #{generator_forward.14} parent=5 // pred_check
      _
    $region34: #{generator_forward.14} parent=5 // pred_check_branch
      %176 = sbr.rel (%p173) target = $region36
    $region35: #{generator_forward.14} parent=5 // pred_region
      %s177 = ssub.s32 %s10, 1
      %p178 = scmp.lt.s32.totalorder %s15, 1
      %s179 = scalar_select %p178, %s15, 1
      %s180 = smul.addr %s179, 20
      %s181 = smul.addr %s180, 4
      %s182 = scalar_lea.vmem %s0, %s181
      %p183 = pneg %p36
      %p184 = pneg %p33
      %p185 = pneg %p57
      %p186 = pneg %p54
      %p187 = pneg %p78
      %p188 = pneg %p75
      %p189 = scmp.lt.s32.totalorder %s15, 1
      %s190 = scalar_select %p189, %s15, 1
      %s191 = smul.addr %s190, 8
      %s192 = smul.addr %s191, 4
      %s193 = scalar_lea.vmem %s3, %s192
      %p194 = pneg %p104
      %p195 = pneg %p101
      %p196 = pneg %p130
      %p197 = pneg %p127
      %p198 = scmp.lt.s32.totalorder %s15, 1
      %s199 = scalar_select %p198, %s15, 1
      %s200 = smul.addr %s199, 8
      %s201 = smul.addr %s200, 4
      %s202 = scalar_lea.vmem %s4, %s201
      %p203 = scmp.lt.s32.totalorder %s15, 1
      %s204 = scalar_select %p203, %s15, 1
      %s205 = smul.addr %s204, 20
      %s206 = smul.addr %s205, 4
      %s207 = scalar_lea.vmem %s0, %s206
      %p208 = scmp.lt.s32.totalorder %s15, 1
      %s209 = scalar_select %p208, %s15, 1
      %s210 = smul.addr %s209, 8
      %s211 = smul.addr %s210, 4
      %s212 = scalar_lea.vmem %s3, %s211
      %p213 = scmp.lt.s32.totalorder %s15, 1
      %s214 = scalar_select %p213, %s15, 1
      %s215 = smul.addr %s214, 8
      %s216 = smul.addr %s215, 4
      %s217 = scalar_lea.vmem %s4, %s216
      %v219 = vld [vmem:[%s207] sm:$0xf]
      %v220 = vld [vmem:[%s207 + $0x8] sm:$0xf]
      %v221 = vld [vmem:[%s207 + $0x10] sm:$0xf]
      %v222 = vld [vmem:[%s207 + $0x18] sm:$0xf]
      %v223 = vld [vmem:[%s207 + $0x20] sm:$0xf]
      %v224 = vld [vmem:[%s207 + $0x28] sm:$0xf]
      %v225 = vld [vmem:[%s207 + $0x30] sm:$0xf]
      %v226 = vld [vmem:[%s207 + $0x38] sm:$0xf]
      %v227 = vld [vmem:[%s207 + $0x4] sm:$0x1]
      %v228 = vld [vmem:[%s207 + $0xc] sm:$0x1]
      %v229 = vld [vmem:[%s207 + $0x14] sm:$0x1]
      %v230 = vld [vmem:[%s207 + $0x1c] sm:$0x1]
      %v231 = vld [vmem:[%s207 + $0x24] sm:$0x1]
      %v232 = vld [vmem:[%s207 + $0x2c] sm:$0x1]
      %v233 = vld [vmem:[%s207 + $0x34] sm:$0x1]
      %v234 = vld [vmem:[%s207 + $0x3c] sm:$0x1]
      %v235 = vld [vmem:[%s207] sm:$0xe]
      %v236 = vld [vmem:[%s207 + $0x8] sm:$0xe]
      %v237 = vld [vmem:[%s207 + $0x10] sm:$0xe]
      %v238 = vld [vmem:[%s207 + $0x18] sm:$0xe]
      %v239 = vld [vmem:[%s207 + $0x20] sm:$0xe]
      %v240 = vld [vmem:[%s207 + $0x28] sm:$0xe]
      %v241 = vld [vmem:[%s207 + $0x30] sm:$0xe]
      %v242 = vld [vmem:[%s207 + $0x38] sm:$0xe]
      %s243 = scalar_lea.vmem %s207, 8
      %v244 = vld [vmem:[%s243] sm:$0xf]
      %v245 = vld [vmem:[%s243 + $0x8] sm:$0xf]
      %v246 = vld [vmem:[%s243 + $0x10] sm:$0xf]
      %v247 = vld [vmem:[%s243 + $0x18] sm:$0xf]
      %v248 = vld [vmem:[%s243 + $0x20] sm:$0xf]
      %v249 = vld [vmem:[%s243 + $0x28] sm:$0xf]
      %v250 = vld [vmem:[%s243 + $0x30] sm:$0xf]
      %v251 = vld [vmem:[%s243 + $0x38] sm:$0xf]
      %v252 = vld [vmem:[%s243 + $0x4] sm:$0x1]
      %v253 = vld [vmem:[%s243 + $0xc] sm:$0x1]
      %v254 = vld [vmem:[%s243 + $0x14] sm:$0x1]
      %v255 = vld [vmem:[%s243 + $0x1c] sm:$0x1]
      %v256 = vld [vmem:[%s243 + $0x24] sm:$0x1]
      %v257 = vld [vmem:[%s243 + $0x2c] sm:$0x1]
      %v258 = vld [vmem:[%s243 + $0x34] sm:$0x1]
      %v259 = vld [vmem:[%s243 + $0x3c] sm:$0x1]
      %v260 = vld [vmem:[%s243] sm:$0xe]
      %v261 = vld [vmem:[%s243 + $0x8] sm:$0xe]
      %v262 = vld [vmem:[%s243 + $0x10] sm:$0xe]
      %v263 = vld [vmem:[%s243 + $0x18] sm:$0xe]
      %v264 = vld [vmem:[%s243 + $0x20] sm:$0xe]
      %v265 = vld [vmem:[%s243 + $0x28] sm:$0xe]
      %v266 = vld [vmem:[%s243 + $0x30] sm:$0xe]
      %v267 = vld [vmem:[%s243 + $0x38] sm:$0xe]
      %s268 = scalar_lea.vmem %s207, 16
      %v269 = vld [vmem:[%s268] sm:$0xf]
      %v270 = vld [vmem:[%s268 + $0x8] sm:$0xf]
      %v271 = vld [vmem:[%s268 + $0x10] sm:$0xf]
      %v272 = vld [vmem:[%s268 + $0x18] sm:$0xf]
      %v273 = vld [vmem:[%s268 + $0x20] sm:$0xf]
      %v274 = vld [vmem:[%s268 + $0x28] sm:$0xf]
      %v275 = vld [vmem:[%s268 + $0x30] sm:$0xf]
      %v276 = vld [vmem:[%s268 + $0x38] sm:$0xf]
      %v277 = vld [vmem:[%s268 + $0x4] sm:$0x1]
      %v278 = vld [vmem:[%s268 + $0xc] sm:$0x1]
      %v279 = vld [vmem:[%s268 + $0x14] sm:$0x1]
      %v280 = vld [vmem:[%s268 + $0x1c] sm:$0x1]
      %v281 = vld [vmem:[%s268 + $0x24] sm:$0x1]
      %v282 = vld [vmem:[%s268 + $0x2c] sm:$0x1]
      %v283 = vld [vmem:[%s268 + $0x34] sm:$0x1]
      %v284 = vld [vmem:[%s268 + $0x3c] sm:$0x1]
      %v285 = vld [vmem:[%s268] sm:$0xe]
      %v286 = vld [vmem:[%s268 + $0x8] sm:$0xe]
      %v287 = vld [vmem:[%s268 + $0x10] sm:$0xe]
      %v288 = vld [vmem:[%s268 + $0x18] sm:$0xe]
      %v289 = vld [vmem:[%s268 + $0x20] sm:$0xe]
      %v290 = vld [vmem:[%s268 + $0x28] sm:$0xe]
      %v291 = vld [vmem:[%s268 + $0x30] sm:$0xe]
      %v292 = vld [vmem:[%s268 + $0x38] sm:$0xe]
      %v309 = vunpack.c.l.b16 %v219
      %v310 = vunpack.c.l.b16 %v227
      %v311 = vunpack.c.l.b16 %v220
      %v312 = vunpack.c.l.b16 %v228
      %v313 = vunpack.c.l.b16 %v221
      %v314 = vunpack.c.l.b16 %v229
      %v315 = vunpack.c.l.b16 %v222
      %v316 = vunpack.c.l.b16 %v230
      %v317 = vunpack.c.l.b16 %v223
      %v318 = vunpack.c.l.b16 %v231
      %v319 = vunpack.c.l.b16 %v224
      %v320 = vunpack.c.l.b16 %v232
      %v321 = vunpack.c.l.b16 %v225
      %v322 = vunpack.c.l.b16 %v233
      %v323 = vunpack.c.l.b16 %v226
      %v324 = vunpack.c.l.b16 %v234
      %v325 = vpack.c.b16 %v310, %v309
      %v326 = vpack.c.b16 %v312, %v311
      %v327 = vpack.c.b16 %v314, %v313
      %v328 = vpack.c.b16 %v316, %v315
      %v329 = vpack.c.b16 %v318, %v317
      %v330 = vpack.c.b16 %v320, %v319
      %v331 = vpack.c.b16 %v322, %v321
      %v332 = vpack.c.b16 %v324, %v323
      %v334 = vshrl.u32 %v325, 16
      %v336 = vshll.u32 %v325, 16
      %v338 = vrot.slane %v336, 1
      %v339 = vor.u32 %v334, %v338
      %v341 = vshrl.u32 %v326, 16
      %v343 = vshll.u32 %v326, 16
      %v345 = vrot.slane %v343, 1
      %v346 = vor.u32 %v341, %v345
      %v348 = vshrl.u32 %v327, 16
      %v350 = vshll.u32 %v327, 16
      %v352 = vrot.slane %v350, 1
      %v353 = vor.u32 %v348, %v352
      %v355 = vshrl.u32 %v328, 16
      %v357 = vshll.u32 %v328, 16
      %v359 = vrot.slane %v357, 1
      %v360 = vor.u32 %v355, %v359
      %v362 = vshrl.u32 %v329, 16
      %v364 = vshll.u32 %v329, 16
      %v366 = vrot.slane %v364, 1
      %v367 = vor.u32 %v362, %v366
      %v369 = vshrl.u32 %v330, 16
      %v371 = vshll.u32 %v330, 16
      %v373 = vrot.slane %v371, 1
      %v374 = vor.u32 %v369, %v373
      %v376 = vshrl.u32 %v331, 16
      %v378 = vshll.u32 %v331, 16
      %v380 = vrot.slane %v378, 1
      %v381 = vor.u32 %v376, %v380
      %v383 = vshrl.u32 %v332, 16
      %v385 = vshll.u32 %v332, 16
      %v387 = vrot.slane %v385, 1
      %v388 = vor.u32 %v383, %v387
      %v397 = vunpack.c.l.b16 %v235
      %v398 = vunpack.c.l.b16 %v236
      %v399 = vunpack.c.l.b16 %v237
      %v400 = vunpack.c.l.b16 %v238
      %v401 = vunpack.c.l.b16 %v239
      %v402 = vunpack.c.l.b16 %v240
      %v403 = vunpack.c.l.b16 %v241
      %v404 = vunpack.c.l.b16 %v242
      %v405 = vpack.c.b16 %v310, %v397
      %v406 = vpack.c.b16 %v312, %v398
      %v407 = vpack.c.b16 %v314, %v399
      %v408 = vpack.c.b16 %v316, %v400
      %v409 = vpack.c.b16 %v318, %v401
      %v410 = vpack.c.b16 %v320, %v402
      %v411 = vpack.c.b16 %v322, %v403
      %v412 = vpack.c.b16 %v324, %v404
      %v413 = vrot.slane %v405, 1
      %v414 = vrot.slane %v406, 1
      %v415 = vrot.slane %v407, 1
      %v416 = vrot.slane %v408, 1
      %v417 = vrot.slane %v409, 1
      %v418 = vrot.slane %v410, 1
      %v419 = vrot.slane %v411, 1
      %v420 = vrot.slane %v412, 1
      %v437 = vunpack.c.l.b16 %v244
      %v438 = vunpack.c.l.b16 %v252
      %v439 = vunpack.c.l.b16 %v245
      %v440 = vunpack.c.l.b16 %v253
      %v441 = vunpack.c.l.b16 %v246
      %v442 = vunpack.c.l.b16 %v254
      %v443 = vunpack.c.l.b16 %v247
      %v444 = vunpack.c.l.b16 %v255
      %v445 = vunpack.c.l.b16 %v248
      %v446 = vunpack.c.l.b16 %v256
      %v447 = vunpack.c.l.b16 %v249
      %v448 = vunpack.c.l.b16 %v257
      %v449 = vunpack.c.l.b16 %v250
      %v450 = vunpack.c.l.b16 %v258
      %v451 = vunpack.c.l.b16 %v251
      %v452 = vunpack.c.l.b16 %v259
      %v453 = vpack.c.b16 %v438, %v437
      %v454 = vpack.c.b16 %v440, %v439
      %v455 = vpack.c.b16 %v442, %v441
      %v456 = vpack.c.b16 %v444, %v443
      %v457 = vpack.c.b16 %v446, %v445
      %v458 = vpack.c.b16 %v448, %v447
      %v459 = vpack.c.b16 %v450, %v449
      %v460 = vpack.c.b16 %v452, %v451
      %v462 = vshrl.u32 %v453, 16
      %v464 = vshll.u32 %v453, 16
      %v466 = vrot.slane %v464, 1
      %v467 = vor.u32 %v462, %v466
      %v469 = vshrl.u32 %v454, 16
      %v471 = vshll.u32 %v454, 16
      %v473 = vrot.slane %v471, 1
      %v474 = vor.u32 %v469, %v473
      %v476 = vshrl.u32 %v455, 16
      %v478 = vshll.u32 %v455, 16
      %v480 = vrot.slane %v478, 1
      %v481 = vor.u32 %v476, %v480
      %v483 = vshrl.u32 %v456, 16
      %v485 = vshll.u32 %v456, 16
      %v487 = vrot.slane %v485, 1
      %v488 = vor.u32 %v483, %v487
      %v490 = vshrl.u32 %v457, 16
      %v492 = vshll.u32 %v457, 16
      %v494 = vrot.slane %v492, 1
      %v495 = vor.u32 %v490, %v494
      %v497 = vshrl.u32 %v458, 16
      %v499 = vshll.u32 %v458, 16
      %v501 = vrot.slane %v499, 1
      %v502 = vor.u32 %v497, %v501
      %v504 = vshrl.u32 %v459, 16
      %v506 = vshll.u32 %v459, 16
      %v508 = vrot.slane %v506, 1
      %v509 = vor.u32 %v504, %v508
      %v511 = vshrl.u32 %v460, 16
      %v513 = vshll.u32 %v460, 16
      %v515 = vrot.slane %v513, 1
      %v516 = vor.u32 %v511, %v515
      %v525 = vunpack.c.l.b16 %v260
      %v526 = vunpack.c.l.b16 %v261
      %v527 = vunpack.c.l.b16 %v262
      %v528 = vunpack.c.l.b16 %v263
      %v529 = vunpack.c.l.b16 %v264
      %v530 = vunpack.c.l.b16 %v265
      %v531 = vunpack.c.l.b16 %v266
      %v532 = vunpack.c.l.b16 %v267
      %v533 = vpack.c.b16 %v438, %v525
      %v534 = vpack.c.b16 %v440, %v526
      %v535 = vpack.c.b16 %v442, %v527
      %v536 = vpack.c.b16 %v444, %v528
      %v537 = vpack.c.b16 %v446, %v529
      %v538 = vpack.c.b16 %v448, %v530
      %v539 = vpack.c.b16 %v450, %v531
      %v540 = vpack.c.b16 %v452, %v532
      %v541 = vrot.slane %v533, 1
      %v542 = vrot.slane %v534, 1
      %v543 = vrot.slane %v535, 1
      %v544 = vrot.slane %v536, 1
      %v545 = vrot.slane %v537, 1
      %v546 = vrot.slane %v538, 1
      %v547 = vrot.slane %v539, 1
      %v548 = vrot.slane %v540, 1
      %v565 = vunpack.c.l.b16 %v269
      %v566 = vunpack.c.l.b16 %v277
      %v567 = vunpack.c.l.b16 %v270
      %v568 = vunpack.c.l.b16 %v278
      %v569 = vunpack.c.l.b16 %v271
      %v570 = vunpack.c.l.b16 %v279
      %v571 = vunpack.c.l.b16 %v272
      %v572 = vunpack.c.l.b16 %v280
      %v573 = vunpack.c.l.b16 %v273
      %v574 = vunpack.c.l.b16 %v281
      %v575 = vunpack.c.l.b16 %v274
      %v576 = vunpack.c.l.b16 %v282
      %v577 = vunpack.c.l.b16 %v275
      %v578 = vunpack.c.l.b16 %v283
      %v579 = vunpack.c.l.b16 %v276
      %v580 = vunpack.c.l.b16 %v284
      %v581 = vpack.c.b16 %v566, %v565
      %v582 = vpack.c.b16 %v568, %v567
      %v583 = vpack.c.b16 %v570, %v569
      %v584 = vpack.c.b16 %v572, %v571
      %v585 = vpack.c.b16 %v574, %v573
      %v586 = vpack.c.b16 %v576, %v575
      %v587 = vpack.c.b16 %v578, %v577
      %v588 = vpack.c.b16 %v580, %v579
      %v590 = vshrl.u32 %v581, 16
      %v592 = vshll.u32 %v581, 16
      %v594 = vrot.slane %v592, 1
      %v595 = vor.u32 %v590, %v594
      %v597 = vshrl.u32 %v582, 16
      %v599 = vshll.u32 %v582, 16
      %v601 = vrot.slane %v599, 1
      %v602 = vor.u32 %v597, %v601
      %v604 = vshrl.u32 %v583, 16
      %v606 = vshll.u32 %v583, 16
      %v608 = vrot.slane %v606, 1
      %v609 = vor.u32 %v604, %v608
      %v611 = vshrl.u32 %v584, 16
      %v613 = vshll.u32 %v584, 16
      %v615 = vrot.slane %v613, 1
      %v616 = vor.u32 %v611, %v615
      %v618 = vshrl.u32 %v585, 16
      %v620 = vshll.u32 %v585, 16
      %v622 = vrot.slane %v620, 1
      %v623 = vor.u32 %v618, %v622
      %v625 = vshrl.u32 %v586, 16
      %v627 = vshll.u32 %v586, 16
      %v629 = vrot.slane %v627, 1
      %v630 = vor.u32 %v625, %v629
      %v632 = vshrl.u32 %v587, 16
      %v634 = vshll.u32 %v587, 16
      %v636 = vrot.slane %v634, 1
      %v637 = vor.u32 %v632, %v636
      %v639 = vshrl.u32 %v588, 16
      %v641 = vshll.u32 %v588, 16
      %v643 = vrot.slane %v641, 1
      %v644 = vor.u32 %v639, %v643
      %v653 = vunpack.c.l.b16 %v285
      %v654 = vunpack.c.l.b16 %v286
      %v655 = vunpack.c.l.b16 %v287
      %v656 = vunpack.c.l.b16 %v288
      %v657 = vunpack.c.l.b16 %v289
      %v658 = vunpack.c.l.b16 %v290
      %v659 = vunpack.c.l.b16 %v291
      %v660 = vunpack.c.l.b16 %v292
      %v661 = vpack.c.b16 %v566, %v653
      %v662 = vpack.c.b16 %v568, %v654
      %v663 = vpack.c.b16 %v570, %v655
      %v664 = vpack.c.b16 %v572, %v656
      %v665 = vpack.c.b16 %v574, %v657
      %v666 = vpack.c.b16 %v576, %v658
      %v667 = vpack.c.b16 %v578, %v659
      %v668 = vpack.c.b16 %v580, %v660
      %v669 = vrot.slane %v661, 1
      %v670 = vrot.slane %v662, 1
      %v671 = vrot.slane %v663, 1
      %v672 = vrot.slane %v664, 1
      %v673 = vrot.slane %v665, 1
      %v674 = vrot.slane %v666, 1
      %v675 = vrot.slane %v667, 1
      %v676 = vrot.slane %v668, 1
      %v677 = vunpack.c.l.b16 %v339
      %v678 = vunpack.c.l.b16 %v413
      %v679 = vunpack.c.l.b16 %v467
      %v680 = vunpack.c.l.b16 %v541
      %v681 = vunpack.c.l.b16 %v595
      %v682 = vunpack.c.l.b16 %v669
      %v683 = vunpack.c.l.b16 %v346
      %v684 = vunpack.c.l.b16 %v414
      %v685 = vunpack.c.l.b16 %v474
      %v686 = vunpack.c.l.b16 %v542
      %v687 = vunpack.c.l.b16 %v602
      %v688 = vunpack.c.l.b16 %v670
      %v689 = vunpack.c.l.b16 %v353
      %v690 = vunpack.c.l.b16 %v415
      %v691 = vunpack.c.l.b16 %v481
      %v692 = vunpack.c.l.b16 %v543
      %v693 = vunpack.c.l.b16 %v609
      %v694 = vunpack.c.l.b16 %v671
      %v695 = vunpack.c.l.b16 %v360
      %v696 = vunpack.c.l.b16 %v416
      %v697 = vunpack.c.l.b16 %v488
      %v698 = vunpack.c.l.b16 %v544
      %v699 = vunpack.c.l.b16 %v616
      %v700 = vunpack.c.l.b16 %v672
      %v701 = vunpack.c.l.b16 %v367
      %v702 = vunpack.c.l.b16 %v417
      %v703 = vunpack.c.l.b16 %v495
      %v704 = vunpack.c.l.b16 %v545
      %v705 = vunpack.c.l.b16 %v623
      %v706 = vunpack.c.l.b16 %v673
      %v707 = vunpack.c.l.b16 %v374
      %v708 = vunpack.c.l.b16 %v418
      %v709 = vunpack.c.l.b16 %v502
      %v710 = vunpack.c.l.b16 %v546
      %v711 = vunpack.c.l.b16 %v630
      %v712 = vunpack.c.l.b16 %v674
      %v713 = vunpack.c.l.b16 %v381
      %v714 = vunpack.c.l.b16 %v419
      %v715 = vunpack.c.l.b16 %v509
      %v716 = vunpack.c.l.b16 %v547
      %v717 = vunpack.c.l.b16 %v637
      %v718 = vunpack.c.l.b16 %v675
      %v719 = vunpack.c.l.b16 %v388
      %v720 = vunpack.c.l.b16 %v420
      %v721 = vunpack.c.l.b16 %v516
      %v722 = vunpack.c.l.b16 %v548
      %v723 = vunpack.c.l.b16 %v644
      %v724 = vunpack.c.l.b16 %v676
      %v725 = vld [vmem:[%s1] sm:$0xf]
      %v726 = vld [vmem:[%s1 + $0x4] sm:$0xf]
      %v727 = vld [vmem:[%s1 + $0x8] sm:$0xf]
      %v728 = vld [vmem:[%s1 + $0xc] sm:$0xf]
      %v729 = vld [vmem:[%s1 + $0x10] sm:$0xf]
      %v730 = vld [vmem:[%s1 + $0x14] sm:$0xf]
      %v731 = vld [vmem:[%s1 + $0x18] sm:$0xf]
      %v732 = vld [vmem:[%s1 + $0x1c] sm:$0xf]
      %v733 = vld [vmem:[%s1 + $0x20] sm:$0xf]
      %v734 = vld [vmem:[%s1 + $0x24] sm:$0xf]
      %v735 = vld [vmem:[%s1 + $0x28] sm:$0xf]
      %v736 = vld [vmem:[%s1 + $0x2c] sm:$0xf]
      %v737 = vld [vmem:[%s1 + $0x30] sm:$0xf]
      %v738 = vld [vmem:[%s1 + $0x34] sm:$0xf]
      %v739 = vld [vmem:[%s1 + $0x38] sm:$0xf]
      %v740 = vld [vmem:[%s1 + $0x3c] sm:$0xf]
      %v741 = vld [vmem:[%s1 + $0x40] sm:$0xf]
      %v742 = vld [vmem:[%s1 + $0x44] sm:$0xf]
      %v743 = vld [vmem:[%s1 + $0x48] sm:$0xf]
      %v744 = vld [vmem:[%s1 + $0x4c] sm:$0xf]
      %v745 = vld [vmem:[%s1 + $0x50] sm:$0xf]
      %v746 = vld [vmem:[%s1 + $0x54] sm:$0xf]
      %v747 = vld [vmem:[%s1 + $0x58] sm:$0xf]
      %v748 = vld [vmem:[%s1 + $0x5c] sm:$0xf]
      %v749 = vld [vmem:[%s1 + $0x60] sm:$0xf]
      %v750 = vld [vmem:[%s1 + $0x64] sm:$0xf]
      %v751 = vld [vmem:[%s1 + $0x68] sm:$0xf]
      %v752 = vld [vmem:[%s1 + $0x6c] sm:$0xf]
      %v753 = vld [vmem:[%s1 + $0x70] sm:$0xf]
      %v754 = vld [vmem:[%s1 + $0x74] sm:$0xf]
      %v755 = vld [vmem:[%s1 + $0x78] sm:$0xf]
      %v756 = vld [vmem:[%s1 + $0x7c] sm:$0xf]
      %v757 = vld [vmem:[%s1 + $0x80] sm:$0xf]
      %v758 = vld [vmem:[%s1 + $0x84] sm:$0xf]
      %v759 = vld [vmem:[%s1 + $0x88] sm:$0xf]
      %v760 = vld [vmem:[%s1 + $0x8c] sm:$0xf]
      %v761 = vld [vmem:[%s1 + $0x90] sm:$0xf]
      %v762 = vld [vmem:[%s1 + $0x94] sm:$0xf]
      %v763 = vld [vmem:[%s1 + $0x98] sm:$0xf]
      %v764 = vld [vmem:[%s1 + $0x9c] sm:$0xf]
      %v765 = vld [vmem:[%s1 + $0xa0] sm:$0xf]
      %v766 = vld [vmem:[%s1 + $0xa4] sm:$0xf]
      %v767 = vld [vmem:[%s1 + $0xa8] sm:$0xf]
      %v768 = vld [vmem:[%s1 + $0xac] sm:$0xf]
      %v769 = vld [vmem:[%s1 + $0xb0] sm:$0xf]
      %v770 = vld [vmem:[%s1 + $0xb4] sm:$0xf]
      %v771 = vld [vmem:[%s1 + $0xb8] sm:$0xf]
      %v772 = vld [vmem:[%s1 + $0xbc] sm:$0xf]
      %v773 = vld [vmem:[%s1 + $0xc0] sm:$0xf]
      %v774 = vld [vmem:[%s1 + $0xc4] sm:$0xf]
      %v775 = vld [vmem:[%s1 + $0xc8] sm:$0xf]
      %v776 = vld [vmem:[%s1 + $0xcc] sm:$0xf]
      %v777 = vld [vmem:[%s1 + $0xd0] sm:$0xf]
      %v778 = vld [vmem:[%s1 + $0xd4] sm:$0xf]
      %v779 = vld [vmem:[%s1 + $0xd8] sm:$0xf]
      %v780 = vld [vmem:[%s1 + $0xdc] sm:$0xf]
      %v781 = vld [vmem:[%s1 + $0xe0] sm:$0xf]
      %v782 = vld [vmem:[%s1 + $0xe4] sm:$0xf]
      %v783 = vld [vmem:[%s1 + $0xe8] sm:$0xf]
      %v784 = vld [vmem:[%s1 + $0xec] sm:$0xf]
      %v785 = vld [vmem:[%s1 + $0xf0] sm:$0xf]
      %v786 = vld [vmem:[%s1 + $0xf4] sm:$0xf]
      %v787 = vld [vmem:[%s1 + $0xf8] sm:$0xf]
      %v788 = vld [vmem:[%s1 + $0xfc] sm:$0xf]
      %v789 = vld [vmem:[%s1 + $0x100] sm:$0xf]
      %v790 = vld [vmem:[%s1 + $0x104] sm:$0xf]
      %v791 = vld [vmem:[%s1 + $0x108] sm:$0xf]
      %v792 = vld [vmem:[%s1 + $0x10c] sm:$0xf]
      %v793 = vld [vmem:[%s1 + $0x110] sm:$0xf]
      %v794 = vld [vmem:[%s1 + $0x114] sm:$0xf]
      %v795 = vld [vmem:[%s1 + $0x118] sm:$0xf]
      %v796 = vld [vmem:[%s1 + $0x11c] sm:$0xf]
      %v797 = vld [vmem:[%s1 + $0x120] sm:$0xf]
      %v798 = vld [vmem:[%s1 + $0x124] sm:$0xf]
      %v799 = vld [vmem:[%s1 + $0x128] sm:$0xf]
      %v800 = vld [vmem:[%s1 + $0x12c] sm:$0xf]
      %v801 = vld [vmem:[%s1 + $0x130] sm:$0xf]
      %v802 = vld [vmem:[%s1 + $0x134] sm:$0xf]
      %v803 = vld [vmem:[%s1 + $0x138] sm:$0xf]
      %v804 = vld [vmem:[%s1 + $0x13c] sm:$0xf]
      %v805 = vld [vmem:[%s1 + $0x140] sm:$0xf]
      %v806 = vld [vmem:[%s1 + $0x144] sm:$0xf]
      %v807 = vld [vmem:[%s1 + $0x148] sm:$0xf]
      %v808 = vld [vmem:[%s1 + $0x14c] sm:$0xf]
      %v809 = vld [vmem:[%s1 + $0x150] sm:$0xf]
      %v810 = vld [vmem:[%s1 + $0x154] sm:$0xf]
      %v811 = vld [vmem:[%s1 + $0x158] sm:$0xf]
      %v812 = vld [vmem:[%s1 + $0x15c] sm:$0xf]
      %v813 = vld [vmem:[%s1 + $0x160] sm:$0xf]
      %v814 = vld [vmem:[%s1 + $0x164] sm:$0xf]
      %v815 = vld [vmem:[%s1 + $0x168] sm:$0xf]
      %v816 = vld [vmem:[%s1 + $0x16c] sm:$0xf]
      %v817 = vld [vmem:[%s1 + $0x170] sm:$0xf]
      %v818 = vld [vmem:[%s1 + $0x174] sm:$0xf]
      %v819 = vld [vmem:[%s1 + $0x178] sm:$0xf]
      %v820 = vld [vmem:[%s1 + $0x17c] sm:$0xf]
      %v821 = vld [vmem:[%s1 + $0x180] sm:$0xf]
      %v822 = vld [vmem:[%s1 + $0x184] sm:$0xf]
      %v823 = vld [vmem:[%s1 + $0x188] sm:$0xf]
      %v824 = vld [vmem:[%s1 + $0x18c] sm:$0xf]
      %v825 = vld [vmem:[%s1 + $0x190] sm:$0xf]
      %v826 = vld [vmem:[%s1 + $0x194] sm:$0xf]
      %v827 = vld [vmem:[%s1 + $0x198] sm:$0xf]
      %v828 = vld [vmem:[%s1 + $0x19c] sm:$0xf]
      %v829 = vld [vmem:[%s1 + $0x1a0] sm:$0xf]
      %v830 = vld [vmem:[%s1 + $0x1a4] sm:$0xf]
      %v831 = vld [vmem:[%s1 + $0x1a8] sm:$0xf]
      %v832 = vld [vmem:[%s1 + $0x1ac] sm:$0xf]
      %v833 = vld [vmem:[%s1 + $0x1b0] sm:$0xf]
      %v834 = vld [vmem:[%s1 + $0x1b4] sm:$0xf]
      %v835 = vld [vmem:[%s1 + $0x1b8] sm:$0xf]
      %v836 = vld [vmem:[%s1 + $0x1bc] sm:$0xf]
      %v837 = vld [vmem:[%s1 + $0x1c0] sm:$0xf]
      %v838 = vld [vmem:[%s1 + $0x1c4] sm:$0xf]
      %v839 = vld [vmem:[%s1 + $0x1c8] sm:$0xf]
      %v840 = vld [vmem:[%s1 + $0x1cc] sm:$0xf]
      %v841 = vld [vmem:[%s1 + $0x1d0] sm:$0xf]
      %v842 = vld [vmem:[%s1 + $0x1d4] sm:$0xf]
      %v843 = vld [vmem:[%s1 + $0x1d8] sm:$0xf]
      %v844 = vld [vmem:[%s1 + $0x1dc] sm:$0xf]
      %v845 = vld [vmem:[%s1 + $0x1e0] sm:$0xf]
      %v846 = vld [vmem:[%s1 + $0x1e4] sm:$0xf]
      %v847 = vld [vmem:[%s1 + $0x1e8] sm:$0xf]
      %v848 = vld [vmem:[%s1 + $0x1ec] sm:$0xf]
      %v849 = vld [vmem:[%s1 + $0x1f0] sm:$0xf]
      %v850 = vld [vmem:[%s1 + $0x1f4] sm:$0xf]
      %v851 = vld [vmem:[%s1 + $0x1f8] sm:$0xf]
      %v852 = vld [vmem:[%s1 + $0x1fc] sm:$0xf]
      %v853 = vld [vmem:[%s1 + $0x200] sm:$0xf]
      %v854 = vld [vmem:[%s1 + $0x204] sm:$0xf]
      %v855 = vld [vmem:[%s1 + $0x208] sm:$0xf]
      %v856 = vld [vmem:[%s1 + $0x20c] sm:$0xf]
      %v857 = vld [vmem:[%s1 + $0x210] sm:$0xf]
      %v858 = vld [vmem:[%s1 + $0x214] sm:$0xf]
      %v859 = vld [vmem:[%s1 + $0x218] sm:$0xf]
      %v860 = vld [vmem:[%s1 + $0x21c] sm:$0xf]
      %v861 = vld [vmem:[%s1 + $0x220] sm:$0xf]
      %v862 = vld [vmem:[%s1 + $0x224] sm:$0xf]
      %v863 = vld [vmem:[%s1 + $0x228] sm:$0xf]
      %v864 = vld [vmem:[%s1 + $0x22c] sm:$0xf]
      %v865 = vld [vmem:[%s1 + $0x230] sm:$0xf]
      %v866 = vld [vmem:[%s1 + $0x234] sm:$0xf]
      %v867 = vld [vmem:[%s1 + $0x238] sm:$0xf]
      %v868 = vld [vmem:[%s1 + $0x23c] sm:$0xf]
      %v869 = vpack.c.b16 %v311, %v309
      %v870 = vpack.c.b16 %v683, %v677
      %v871 = vpack.c.b16 %v684, %v678
      %v872 = vpack.c.b16 %v439, %v437
      %v873 = vpack.c.b16 %v685, %v679
      %v874 = vpack.c.b16 %v686, %v680
      %v875 = vpack.c.b16 %v567, %v565
      %v876 = vpack.c.b16 %v687, %v681
      %v877 = vpack.c.b16 %v688, %v682
      %v878 = vpack.c.b16 %v315, %v313
      %v879 = vpack.c.b16 %v695, %v689
      %v880 = vpack.c.b16 %v696, %v690
      %v881 = vpack.c.b16 %v443, %v441
      %v882 = vpack.c.b16 %v697, %v691
      %v883 = vpack.c.b16 %v698, %v692
      %v884 = vpack.c.b16 %v571, %v569
      %v885 = vpack.c.b16 %v699, %v693
      %v886 = vpack.c.b16 %v700, %v694
      %v887 = vpack.c.b16 %v319, %v317
      %v888 = vpack.c.b16 %v707, %v701
      %v889 = vpack.c.b16 %v708, %v702
      %v890 = vpack.c.b16 %v447, %v445
      %v891 = vpack.c.b16 %v709, %v703
      %v892 = vpack.c.b16 %v710, %v704
      %v893 = vpack.c.b16 %v575, %v573
      %v894 = vpack.c.b16 %v711, %v705
      %v895 = vpack.c.b16 %v712, %v706
      %v896 = vpack.c.b16 %v323, %v321
      %v897 = vpack.c.b16 %v719, %v713
      %v898 = vpack.c.b16 %v720, %v714
      %v899 = vpack.c.b16 %v451, %v449
      %v900 = vpack.c.b16 %v721, %v715
      %v901 = vpack.c.b16 %v722, %v716
      %v902 = vpack.c.b16 %v579, %v577
      %v903 = vpack.c.b16 %v723, %v717
      %v904 = vpack.c.b16 %v724, %v718
      %v1085 = vunpack.c.l.b16 %v725
      %v1086 = vunpack.c.l.b16 %v726
      %v1087 = vunpack.c.l.b16 %v727
      %v1088 = vunpack.c.l.b16 %v728
      %v1089 = vunpack.c.l.b16 %v729
      %v1090 = vunpack.c.l.b16 %v730
      %v1091 = vunpack.c.l.b16 %v731
      %v1092 = vunpack.c.l.b16 %v732
      %v1093 = vunpack.c.l.b16 %v733
      %v1094 = vunpack.c.l.b16 %v734
      %v1095 = vunpack.c.l.b16 %v735
      %v1096 = vunpack.c.l.b16 %v736
      %v1097 = vunpack.c.l.b16 %v737
      %v1098 = vunpack.c.l.b16 %v738
      %v1099 = vunpack.c.l.b16 %v739
      %v1100 = vunpack.c.l.b16 %v740
      %v1101 = vunpack.c.l.b16 %v741
      %v1102 = vunpack.c.l.b16 %v742
      %v1103 = vunpack.c.l.b16 %v743
      %v1104 = vunpack.c.l.b16 %v744
      %v1105 = vunpack.c.l.b16 %v745
      %v1106 = vunpack.c.l.b16 %v746
      %v1107 = vunpack.c.l.b16 %v747
      %v1108 = vunpack.c.l.b16 %v748
      %v1109 = vunpack.c.l.b16 %v749
      %v1110 = vunpack.c.l.b16 %v750
      %v1111 = vunpack.c.l.b16 %v751
      %v1112 = vunpack.c.l.b16 %v752
      %v1113 = vunpack.c.l.b16 %v753
      %v1114 = vunpack.c.l.b16 %v754
      %v1115 = vunpack.c.l.b16 %v755
      %v1116 = vunpack.c.l.b16 %v756
      %v1117 = vunpack.c.l.b16 %v757
      %v1118 = vunpack.c.l.b16 %v758
      %v1119 = vunpack.c.l.b16 %v759
      %v1120 = vunpack.c.l.b16 %v760
      %v1121 = vunpack.c.l.b16 %v761
      %v1122 = vunpack.c.l.b16 %v762
      %v1123 = vunpack.c.l.b16 %v763
      %v1124 = vunpack.c.l.b16 %v764
      %v1125 = vunpack.c.l.b16 %v765
      %v1126 = vunpack.c.l.b16 %v766
      %v1127 = vunpack.c.l.b16 %v767
      %v1128 = vunpack.c.l.b16 %v768
      %v1129 = vunpack.c.l.b16 %v769
      %v1130 = vunpack.c.l.b16 %v770
      %v1131 = vunpack.c.l.b16 %v771
      %v1132 = vunpack.c.l.b16 %v772
      %v1133 = vunpack.c.l.b16 %v773
      %v1134 = vunpack.c.l.b16 %v774
      %v1135 = vunpack.c.l.b16 %v775
      %v1136 = vunpack.c.l.b16 %v776
      %v1137 = vunpack.c.l.b16 %v777
      %v1138 = vunpack.c.l.b16 %v778
      %v1139 = vunpack.c.l.b16 %v779
      %v1140 = vunpack.c.l.b16 %v780
      %v1141 = vunpack.c.l.b16 %v781
      %v1142 = vunpack.c.l.b16 %v782
      %v1143 = vunpack.c.l.b16 %v783
      %v1144 = vunpack.c.l.b16 %v784
      %v1145 = vunpack.c.l.b16 %v785
      %v1146 = vunpack.c.l.b16 %v786
      %v1147 = vunpack.c.l.b16 %v787
      %v1148 = vunpack.c.l.b16 %v788
      %v1149 = vunpack.c.l.b16 %v789
      %v1150 = vunpack.c.l.b16 %v790
      %v1151 = vunpack.c.l.b16 %v791
      %v1152 = vunpack.c.l.b16 %v792
      %v1153 = vunpack.c.l.b16 %v793
      %v1154 = vunpack.c.l.b16 %v794
      %v1155 = vunpack.c.l.b16 %v795
      %v1156 = vunpack.c.l.b16 %v796
      %v1157 = vunpack.c.l.b16 %v797
      %v1158 = vunpack.c.l.b16 %v798
      %v1159 = vunpack.c.l.b16 %v799
      %v1160 = vunpack.c.l.b16 %v800
      %v1161 = vunpack.c.l.b16 %v801
      %v1162 = vunpack.c.l.b16 %v802
      %v1163 = vunpack.c.l.b16 %v803
      %v1164 = vunpack.c.l.b16 %v804
      %v1165 = vunpack.c.l.b16 %v805
      %v1166 = vunpack.c.l.b16 %v806
      %v1167 = vunpack.c.l.b16 %v807
      %v1168 = vunpack.c.l.b16 %v808
      %v1169 = vunpack.c.l.b16 %v809
      %v1170 = vunpack.c.l.b16 %v810
      %v1171 = vunpack.c.l.b16 %v811
      %v1172 = vunpack.c.l.b16 %v812
      %v1173 = vunpack.c.l.b16 %v813
      %v1174 = vunpack.c.l.b16 %v814
      %v1175 = vunpack.c.l.b16 %v815
      %v1176 = vunpack.c.l.b16 %v816
      %v1177 = vunpack.c.l.b16 %v817
      %v1178 = vunpack.c.l.b16 %v818
      %v1179 = vunpack.c.l.b16 %v819
      %v1180 = vunpack.c.l.b16 %v820
      %v1181 = vunpack.c.l.b16 %v821
      %v1182 = vunpack.c.l.b16 %v822
      %v1183 = vunpack.c.l.b16 %v823
      %v1184 = vunpack.c.l.b16 %v824
      %v1185 = vunpack.c.l.b16 %v825
      %v1186 = vunpack.c.l.b16 %v826
      %v1187 = vunpack.c.l.b16 %v827
      %v1188 = vunpack.c.l.b16 %v828
      %v1189 = vunpack.c.l.b16 %v829
      %v1190 = vunpack.c.l.b16 %v830
      %v1191 = vunpack.c.l.b16 %v831
      %v1192 = vunpack.c.l.b16 %v832
      %v1193 = vunpack.c.l.b16 %v833
      %v1194 = vunpack.c.l.b16 %v834
      %v1195 = vunpack.c.l.b16 %v835
      %v1196 = vunpack.c.l.b16 %v836
      %v1197 = vunpack.c.l.b16 %v837
      %v1198 = vunpack.c.l.b16 %v838
      %v1199 = vunpack.c.l.b16 %v839
      %v1200 = vunpack.c.l.b16 %v840
      %v1201 = vunpack.c.l.b16 %v841
      %v1202 = vunpack.c.l.b16 %v842
      %v1203 = vunpack.c.l.b16 %v843
      %v1204 = vunpack.c.l.b16 %v844
      %v1205 = vunpack.c.l.b16 %v845
      %v1206 = vunpack.c.l.b16 %v846
      %v1207 = vunpack.c.l.b16 %v847
      %v1208 = vunpack.c.l.b16 %v848
      %v1209 = vunpack.c.l.b16 %v849
      %v1210 = vunpack.c.l.b16 %v850
      %v1211 = vunpack.c.l.b16 %v851
      %v1212 = vunpack.c.l.b16 %v852
      %v1213 = vunpack.c.l.b16 %v853
      %v1214 = vunpack.c.l.b16 %v854
      %v1215 = vunpack.c.l.b16 %v855
      %v1216 = vunpack.c.l.b16 %v856
      %v1217 = vunpack.c.l.b16 %v857
      %v1218 = vunpack.c.l.b16 %v858
      %v1219 = vunpack.c.l.b16 %v859
      %v1220 = vunpack.c.l.b16 %v860
      %v1221 = vunpack.c.l.b16 %v861
      %v1222 = vunpack.c.l.b16 %v862
      %v1223 = vunpack.c.l.b16 %v863
      %v1224 = vunpack.c.l.b16 %v864
      %v1225 = vunpack.c.l.b16 %v865
      %v1226 = vunpack.c.l.b16 %v866
      %v1227 = vunpack.c.l.b16 %v867
      %v1228 = vunpack.c.l.b16 %v868
      %v1229 = vpack.c.b16 %v1086, %v1085
      %v1230 = vpack.c.b16 %v1088, %v1087
      %v1231 = vpack.c.b16 %v1090, %v1089
      %v1232 = vpack.c.b16 %v1092, %v1091
      %v1233 = vpack.c.b16 %v1094, %v1093
      %v1234 = vpack.c.b16 %v1096, %v1095
      %v1235 = vpack.c.b16 %v1098, %v1097
      %v1236 = vpack.c.b16 %v1100, %v1099
      %v1237 = vpack.c.b16 %v1102, %v1101
      %v1238 = vpack.c.b16 %v1104, %v1103
      %v1239 = vpack.c.b16 %v1106, %v1105
      %v1240 = vpack.c.b16 %v1108, %v1107
      %v1241 = vpack.c.b16 %v1110, %v1109
      %v1242 = vpack.c.b16 %v1112, %v1111
      %v1243 = vpack.c.b16 %v1114, %v1113
      %v1244 = vpack.c.b16 %v1116, %v1115
      %v1245 = vpack.c.b16 %v1118, %v1117
      %v1246 = vpack.c.b16 %v1120, %v1119
      %v1247 = vpack.c.b16 %v1122, %v1121
      %v1248 = vpack.c.b16 %v1124, %v1123
      %v1249 = vpack.c.b16 %v1126, %v1125
      %v1250 = vpack.c.b16 %v1128, %v1127
      %v1251 = vpack.c.b16 %v1130, %v1129
      %v1252 = vpack.c.b16 %v1132, %v1131
      %v1253 = vpack.c.b16 %v1134, %v1133
      %v1254 = vpack.c.b16 %v1136, %v1135
      %v1255 = vpack.c.b16 %v1138, %v1137
      %v1256 = vpack.c.b16 %v1140, %v1139
      %v1257 = vpack.c.b16 %v1142, %v1141
      %v1258 = vpack.c.b16 %v1144, %v1143
      %v1259 = vpack.c.b16 %v1146, %v1145
      %v1260 = vpack.c.b16 %v1148, %v1147
      %v1261 = vpack.c.b16 %v1150, %v1149
      %v1262 = vpack.c.b16 %v1152, %v1151
      %v1263 = vpack.c.b16 %v1154, %v1153
      %v1264 = vpack.c.b16 %v1156, %v1155
      %v1265 = vpack.c.b16 %v1158, %v1157
      %v1266 = vpack.c.b16 %v1160, %v1159
      %v1267 = vpack.c.b16 %v1162, %v1161
      %v1268 = vpack.c.b16 %v1164, %v1163
      %v1269 = vpack.c.b16 %v1166, %v1165
      %v1270 = vpack.c.b16 %v1168, %v1167
      %v1271 = vpack.c.b16 %v1170, %v1169
      %v1272 = vpack.c.b16 %v1172, %v1171
      %v1273 = vpack.c.b16 %v1174, %v1173
      %v1274 = vpack.c.b16 %v1176, %v1175
      %v1275 = vpack.c.b16 %v1178, %v1177
      %v1276 = vpack.c.b16 %v1180, %v1179
      %v1277 = vpack.c.b16 %v1182, %v1181
      %v1278 = vpack.c.b16 %v1184, %v1183
      %v1279 = vpack.c.b16 %v1186, %v1185
      %v1280 = vpack.c.b16 %v1188, %v1187
      %v1281 = vpack.c.b16 %v1190, %v1189
      %v1282 = vpack.c.b16 %v1192, %v1191
      %v1283 = vpack.c.b16 %v1194, %v1193
      %v1284 = vpack.c.b16 %v1196, %v1195
      %v1285 = vpack.c.b16 %v1198, %v1197
      %v1286 = vpack.c.b16 %v1200, %v1199
      %v1287 = vpack.c.b16 %v1202, %v1201
      %v1288 = vpack.c.b16 %v1204, %v1203
      %v1289 = vpack.c.b16 %v1206, %v1205
      %v1290 = vpack.c.b16 %v1208, %v1207
      %v1291 = vpack.c.b16 %v1210, %v1209
      %v1292 = vpack.c.b16 %v1212, %v1211
      %v1293 = vpack.c.b16 %v1214, %v1213
      %v1294 = vpack.c.b16 %v1216, %v1215
      %v1295 = vpack.c.b16 %v1218, %v1217
      %v1296 = vpack.c.b16 %v1220, %v1219
      %v1297 = vpack.c.b16 %v1222, %v1221
      %v1298 = vpack.c.b16 %v1224, %v1223
      %v1299 = vpack.c.b16 %v1226, %v1225
      %v1300 = vpack.c.b16 %v1228, %v1227
      %1373 = vmatprep.subr.bf16.mxu0 0
      %1374 = vmatpush1.bf16.msra.mxu0 %v1236
      %1375 = vmatprep.subr.bf16.mxu0 0
      %1376 = vmatpush1.bf16.msra.mxu0 %v1235
      %1377 = vmatprep.subr.bf16.mxu0 0
      %1378 = vmatpush1.bf16.msra.mxu0 %v1234
      %1379 = vmatprep.subr.bf16.mxu0 0
      %1380 = vmatpush1.bf16.msra.mxu0 %v1233
      %1381 = vmatprep.subr.bf16.mxu0 0
      %1382 = vmatpush1.bf16.msra.mxu0 %v1232
      %1383 = vmatprep.subr.bf16.mxu0 0
      %1384 = vmatpush1.bf16.msra.mxu0 %v1231
      %1385 = vmatprep.subr.bf16.mxu0 0
      %1386 = vmatpush1.bf16.msra.mxu0 %v1230
      %1387 = vmatprep.subr.bf16.mxu0 0
      %1388 = vmatpush1.bf16.msra.mxu0 %v1229
      %1389 = vmatprep.subr.bf16.mxu0 0
      %1390 = vmatpush2.bf16.msra.mxu0 %v1244
      %1391 = vmatprep.subr.bf16.mxu0 0
      %1392 = vmatpush2.bf16.msra.mxu0 %v1243
      %1393 = vmatprep.subr.bf16.mxu0 0
      %1394 = vmatpush2.bf16.msra.mxu0 %v1242
      %1395 = vmatprep.subr.bf16.mxu0 0
      %1396 = vmatpush2.bf16.msra.mxu0 %v1241
      %1397 = vmatprep.subr.bf16.mxu0 0
      %1398 = vmatpush2.bf16.msra.mxu0 %v1240
      %1399 = vmatprep.subr.bf16.mxu0 0
      %1400 = vmatpush2.bf16.msra.mxu0 %v1239
      %1401 = vmatprep.subr.bf16.mxu0 0
      %1402 = vmatpush2.bf16.msra.mxu0 %v1238
      %1403 = vmatprep.subr.bf16.mxu0 0
      %1404 = vmatpush2.bf16.msra.mxu0 %v1237
      %1405 = vmatprep.mubr.bf16.mxu0 %v870
      %1406 = vmatmul.mubr.bf16.gmra.mxu0 %v869
      %v1407 = vpop.f32.mrf.mxu0
      %v1408 = vadd.f32 0.0, %v1407
      %v1409 = vpop.f32.mrf.mxu0
      %v1410 = vpop.f32.mrf.mxu0
      %v1411 = vadd.f32 0.0, %v1410
      %v1412 = vpop.f32.mrf.mxu0
      %1413 = vmatprep.mubr.bf16.mxu0 %v879
      %1414 = vmatmul.mubr.bf16.gmra.mxu0 %v878
      %v1415 = vpop.f32.mrf.mxu0
      %v1416 = vadd.f32 0.0, %v1415
      %v1417 = vpop.f32.mrf.mxu0
      %v1418 = vpop.f32.mrf.mxu0
      %v1419 = vadd.f32 0.0, %v1418
      %v1420 = vpop.f32.mrf.mxu0
      %1421 = vmatprep.mubr.bf16.mxu0 %v888
      %1422 = vmatmul.mubr.bf16.gmra.mxu0 %v887
      %v1423 = vpop.f32.mrf.mxu0
      %v1424 = vadd.f32 0.0, %v1423
      %v1425 = vpop.f32.mrf.mxu0
      %v1426 = vpop.f32.mrf.mxu0
      %v1427 = vadd.f32 0.0, %v1426
      %v1428 = vpop.f32.mrf.mxu0
      %1429 = vmatprep.mubr.bf16.mxu0 %v897
      %1430 = vmatmul.mubr.bf16.gmra.mxu0 %v896
      %v1431 = vpop.f32.mrf.mxu0
      %v1432 = vadd.f32 0.0, %v1431
      %v1433 = vpop.f32.mrf.mxu0
      %v1434 = vpop.f32.mrf.mxu0
      %v1435 = vadd.f32 0.0, %v1434
      %v1436 = vpop.f32.mrf.mxu0
      %1437 = vdwg.mxu0
      %1438 = vmatprep.subr.bf16.mxu0 0
      %1439 = vmatpush1.bf16.msra.mxu0 %v1252
      %1440 = vmatprep.subr.bf16.mxu0 0
      %1441 = vmatpush1.bf16.msra.mxu0 %v1251
      %1442 = vmatprep.subr.bf16.mxu0 0
      %1443 = vmatpush1.bf16.msra.mxu0 %v1250
      %1444 = vmatprep.subr.bf16.mxu0 0
      %1445 = vmatpush1.bf16.msra.mxu0 %v1249
      %1446 = vmatprep.subr.bf16.mxu0 0
      %1447 = vmatpush1.bf16.msra.mxu0 %v1248
      %1448 = vmatprep.subr.bf16.mxu0 0
      %1449 = vmatpush1.bf16.msra.mxu0 %v1247
      %1450 = vmatprep.subr.bf16.mxu0 0
      %1451 = vmatpush1.bf16.msra.mxu0 %v1246
      %1452 = vmatprep.subr.bf16.mxu0 0
      %1453 = vmatpush1.bf16.msra.mxu0 %v1245
      %1454 = vmatprep.subr.bf16.mxu0 0
      %1455 = vmatpush2.bf16.msra.mxu0 %v1260
      %1456 = vmatprep.subr.bf16.mxu0 0
      %1457 = vmatpush2.bf16.msra.mxu0 %v1259
      %1458 = vmatprep.subr.bf16.mxu0 0
      %1459 = vmatpush2.bf16.msra.mxu0 %v1258
      %1460 = vmatprep.subr.bf16.mxu0 0
      %1461 = vmatpush2.bf16.msra.mxu0 %v1257
      %1462 = vmatprep.subr.bf16.mxu0 0
      %1463 = vmatpush2.bf16.msra.mxu0 %v1256
      %1464 = vmatprep.subr.bf16.mxu0 0
      %1465 = vmatpush2.bf16.msra.mxu0 %v1255
      %1466 = vmatprep.subr.bf16.mxu0 0
      %1467 = vmatpush2.bf16.msra.mxu0 %v1254
      %1468 = vmatprep.subr.bf16.mxu0 0
      %1469 = vmatpush2.bf16.msra.mxu0 %v1253
      %1470 = vmatprep.mubr.bf16.mxu0 %v872
      %1471 = vmatmul.mubr.bf16.gmra.mxu0 %v871
      %v1472 = vpop.f32.mrf.mxu0
      %v1473 = vadd.f32 %v1408, %v1472
      %v1474 = vpop.f32.mrf.mxu0
      %v1475 = vpop.f32.mrf.mxu0
      %v1476 = vadd.f32 %v1411, %v1475
      %v1477 = vpop.f32.mrf.mxu0
      %1478 = vmatprep.mubr.bf16.mxu0 %v881
      %1479 = vmatmul.mubr.bf16.gmra.mxu0 %v880
      %v1480 = vpop.f32.mrf.mxu0
      %v1481 = vadd.f32 %v1416, %v1480
      %v1482 = vpop.f32.mrf.mxu0
      %v1483 = vpop.f32.mrf.mxu0
      %v1484 = vadd.f32 %v1419, %v1483
      %v1485 = vpop.f32.mrf.mxu0
      %1486 = vmatprep.mubr.bf16.mxu0 %v890
      %1487 = vmatmul.mubr.bf16.gmra.mxu0 %v889
      %v1488 = vpop.f32.mrf.mxu0
      %v1489 = vadd.f32 %v1424, %v1488
      %v1490 = vpop.f32.mrf.mxu0
      %v1491 = vpop.f32.mrf.mxu0
      %v1492 = vadd.f32 %v1427, %v1491
      %v1493 = vpop.f32.mrf.mxu0
      %1494 = vmatprep.mubr.bf16.mxu0 %v899
      %1495 = vmatmul.mubr.bf16.gmra.mxu0 %v898
      %v1496 = vpop.f32.mrf.mxu0
      %v1497 = vadd.f32 %v1432, %v1496
      %v1498 = vpop.f32.mrf.mxu0
      %v1499 = vpop.f32.mrf.mxu0
      %v1500 = vadd.f32 %v1435, %v1499
      %v1501 = vpop.f32.mrf.mxu0
      %1502 = vdwg.mxu0
      %1503 = vmatprep.subr.bf16.mxu0 0
      %1504 = vmatpush1.bf16.msra.mxu0 %v1268
      %1505 = vmatprep.subr.bf16.mxu0 0
      %1506 = vmatpush1.bf16.msra.mxu0 %v1267
      %1507 = vmatprep.subr.bf16.mxu0 0
      %1508 = vmatpush1.bf16.msra.mxu0 %v1266
      %1509 = vmatprep.subr.bf16.mxu0 0
      %1510 = vmatpush1.bf16.msra.mxu0 %v1265
      %1511 = vmatprep.subr.bf16.mxu0 0
      %1512 = vmatpush1.bf16.msra.mxu0 %v1264
      %1513 = vmatprep.subr.bf16.mxu0 0
      %1514 = vmatpush1.bf16.msra.mxu0 %v1263
      %1515 = vmatprep.subr.bf16.mxu0 0
      %1516 = vmatpush1.bf16.msra.mxu0 %v1262
      %1517 = vmatprep.subr.bf16.mxu0 0
      %1518 = vmatpush1.bf16.msra.mxu0 %v1261
      %1519 = vmatprep.subr.bf16.mxu0 0
      %1520 = vmatpush2.bf16.msra.mxu0 %v1276
      %1521 = vmatprep.subr.bf16.mxu0 0
      %1522 = vmatpush2.bf16.msra.mxu0 %v1275
      %1523 = vmatprep.subr.bf16.mxu0 0
      %1524 = vmatpush2.bf16.msra.mxu0 %v1274
      %1525 = vmatprep.subr.bf16.mxu0 0
      %1526 = vmatpush2.bf16.msra.mxu0 %v1273
      %1527 = vmatprep.subr.bf16.mxu0 0
      %1528 = vmatpush2.bf16.msra.mxu0 %v1272
      %1529 = vmatprep.subr.bf16.mxu0 0
      %1530 = vmatpush2.bf16.msra.mxu0 %v1271
      %1531 = vmatprep.subr.bf16.mxu0 0
      %1532 = vmatpush2.bf16.msra.mxu0 %v1270
      %1533 = vmatprep.subr.bf16.mxu0 0
      %1534 = vmatpush2.bf16.msra.mxu0 %v1269
      %1535 = vmatprep.mubr.bf16.mxu0 %v874
      %1536 = vmatmul.mubr.bf16.gmra.mxu0 %v873
      %v1537 = vpop.f32.mrf.mxu0
      %v1538 = vadd.f32 %v1473, %v1537
      %v1539 = vpop.f32.mrf.mxu0
      %v1540 = vpop.f32.mrf.mxu0
      %v1541 = vadd.f32 %v1476, %v1540
      %v1542 = vpop.f32.mrf.mxu0
      %1543 = vmatprep.mubr.bf16.mxu0 %v883
      %1544 = vmatmul.mubr.bf16.gmra.mxu0 %v882
      %v1545 = vpop.f32.mrf.mxu0
      %v1546 = vadd.f32 %v1481, %v1545
      %v1547 = vpop.f32.mrf.mxu0
      %v1548 = vpop.f32.mrf.mxu0
      %v1549 = vadd.f32 %v1484, %v1548
      %v1550 = vpop.f32.mrf.mxu0
      %1551 = vmatprep.mubr.bf16.mxu0 %v892
      %1552 = vmatmul.mubr.bf16.gmra.mxu0 %v891
      %v1553 = vpop.f32.mrf.mxu0
      %v1554 = vadd.f32 %v1489, %v1553
      %v1555 = vpop.f32.mrf.mxu0
      %v1556 = vpop.f32.mrf.mxu0
      %v1557 = vadd.f32 %v1492, %v1556
      %v1558 = vpop.f32.mrf.mxu0
      %1559 = vmatprep.mubr.bf16.mxu0 %v901
      %1560 = vmatmul.mubr.bf16.gmra.mxu0 %v900
      %v1561 = vpop.f32.mrf.mxu0
      %v1562 = vadd.f32 %v1497, %v1561
      %v1563 = vpop.f32.mrf.mxu0
      %v1564 = vpop.f32.mrf.mxu0
      %v1565 = vadd.f32 %v1500, %v1564
      %v1566 = vpop.f32.mrf.mxu0
      %1567 = vdwg.mxu0
      %1568 = vmatprep.subr.bf16.mxu0 0
      %1569 = vmatpush1.bf16.msra.mxu0 %v1284
      %1570 = vmatprep.subr.bf16.mxu0 0
      %1571 = vmatpush1.bf16.msra.mxu0 %v1283
      %1572 = vmatprep.subr.bf16.mxu0 0
      %1573 = vmatpush1.bf16.msra.mxu0 %v1282
      %1574 = vmatprep.subr.bf16.mxu0 0
      %1575 = vmatpush1.bf16.msra.mxu0 %v1281
      %1576 = vmatprep.subr.bf16.mxu0 0
      %1577 = vmatpush1.bf16.msra.mxu0 %v1280
      %1578 = vmatprep.subr.bf16.mxu0 0
      %1579 = vmatpush1.bf16.msra.mxu0 %v1279
      %1580 = vmatprep.subr.bf16.mxu0 0
      %1581 = vmatpush1.bf16.msra.mxu0 %v1278
      %1582 = vmatprep.subr.bf16.mxu0 0
      %1583 = vmatpush1.bf16.msra.mxu0 %v1277
      %1584 = vmatprep.subr.bf16.mxu0 0
      %1585 = vmatpush2.bf16.msra.mxu0 %v1292
      %1586 = vmatprep.subr.bf16.mxu0 0
      %1587 = vmatpush2.bf16.msra.mxu0 %v1291
      %1588 = vmatprep.subr.bf16.mxu0 0
      %1589 = vmatpush2.bf16.msra.mxu0 %v1290
      %1590 = vmatprep.subr.bf16.mxu0 0
      %1591 = vmatpush2.bf16.msra.mxu0 %v1289
      %1592 = vmatprep.subr.bf16.mxu0 0
      %1593 = vmatpush2.bf16.msra.mxu0 %v1288
      %1594 = vmatprep.subr.bf16.mxu0 0
      %1595 = vmatpush2.bf16.msra.mxu0 %v1287
      %1596 = vmatprep.subr.bf16.mxu0 0
      %1597 = vmatpush2.bf16.msra.mxu0 %v1286
      %1598 = vmatprep.subr.bf16.mxu0 0
      %1599 = vmatpush2.bf16.msra.mxu0 %v1285
      %1600 = vmatprep.mubr.bf16.mxu0 %v876
      %1601 = vmatmul.mubr.bf16.gmra.mxu0 %v875
      %v1602 = vpop.f32.mrf.mxu0
      %v1603 = vadd.f32 %v1538, %v1602
      %v1604 = vpop.f32.mrf.mxu0
      %v1605 = vpop.f32.mrf.mxu0
      %v1606 = vadd.f32 %v1541, %v1605
      %v1607 = vpop.f32.mrf.mxu0
      %1608 = vmatprep.mubr.bf16.mxu0 %v885
      %1609 = vmatmul.mubr.bf16.gmra.mxu0 %v884
      %v1610 = vpop.f32.mrf.mxu0
      %v1611 = vadd.f32 %v1546, %v1610
      %v1612 = vpop.f32.mrf.mxu0
      %v1613 = vpop.f32.mrf.mxu0
      %v1614 = vadd.f32 %v1549, %v1613
      %v1615 = vpop.f32.mrf.mxu0
      %1616 = vmatprep.mubr.bf16.mxu0 %v894
      %1617 = vmatmul.mubr.bf16.gmra.mxu0 %v893
      %v1618 = vpop.f32.mrf.mxu0
      %v1619 = vadd.f32 %v1554, %v1618
      %v1620 = vpop.f32.mrf.mxu0
      %v1621 = vpop.f32.mrf.mxu0
      %v1622 = vadd.f32 %v1557, %v1621
      %v1623 = vpop.f32.mrf.mxu0
      %1624 = vmatprep.mubr.bf16.mxu0 %v903
      %1625 = vmatmul.mubr.bf16.gmra.mxu0 %v902
      %v1626 = vpop.f32.mrf.mxu0
      %v1627 = vadd.f32 %v1562, %v1626
      %v1628 = vpop.f32.mrf.mxu0
      %v1629 = vpop.f32.mrf.mxu0
      %v1630 = vadd.f32 %v1565, %v1629
      %v1631 = vpop.f32.mrf.mxu0
      %1632 = vdwg.mxu0
      %1633 = vmatprep.subr.bf16.mxu0 0
      %1634 = vmatpush1.bf16.msra.mxu0 %v1300
      %1635 = vmatprep.subr.bf16.mxu0 0
      %1636 = vmatpush1.bf16.msra.mxu0 %v1299
      %1637 = vmatprep.subr.bf16.mxu0 0
      %1638 = vmatpush1.bf16.msra.mxu0 %v1298
      %1639 = vmatprep.subr.bf16.mxu0 0
      %1640 = vmatpush1.bf16.msra.mxu0 %v1297
      %1641 = vmatprep.subr.bf16.mxu0 0
      %1642 = vmatpush1.bf16.msra.mxu0 %v1296
      %1643 = vmatprep.subr.bf16.mxu0 0
      %1644 = vmatpush1.bf16.msra.mxu0 %v1295
      %1645 = vmatprep.subr.bf16.mxu0 0
      %1646 = vmatpush1.bf16.msra.mxu0 %v1294
      %1647 = vmatprep.subr.bf16.mxu0 0
      %1648 = vmatpush1.bf16.msra.mxu0 %v1293
      %1649 = vmatprep.subr.bf16.mxu0 0
      %1650 = vmatpush2.bf16.msra.mxu0 0
      %1651 = vmatprep.subr.bf16.mxu0 0
      %1652 = vmatpush2.bf16.msra.mxu0 0
      %1653 = vmatprep.subr.bf16.mxu0 0
      %1654 = vmatpush2.bf16.msra.mxu0 0
      %1655 = vmatprep.subr.bf16.mxu0 0
      %1656 = vmatpush2.bf16.msra.mxu0 0
      %1657 = vmatprep.subr.bf16.mxu0 0
      %1658 = vmatpush2.bf16.msra.mxu0 0
      %1659 = vmatprep.subr.bf16.mxu0 0
      %1660 = vmatpush2.bf16.msra.mxu0 0
      %1661 = vmatprep.subr.bf16.mxu0 0
      %1662 = vmatpush2.bf16.msra.mxu0 0
      %1663 = vmatprep.subr.bf16.mxu0 0
      %1664 = vmatpush2.bf16.msra.mxu0 0
      %1665 = vmatprep.mubr.bf16.mxu0 0
      %1666 = vmatmul.mubr.bf16.gmra.mxu0 %v877
      %v1667 = vpop.f32.mrf.mxu0
      %v1668 = vadd.f32 %v1603, %v1667
      %v1669 = vpop.f32.mrf.mxu0
      %v1670 = vpop.f32.mrf.mxu0
      %v1671 = vadd.f32 %v1606, %v1670
      %v1672 = vpop.f32.mrf.mxu0
      %1673 = vmatprep.mubr.bf16.mxu0 0
      %1674 = vmatmul.mubr.bf16.gmra.mxu0 %v886
      %v1675 = vpop.f32.mrf.mxu0
      %v1676 = vadd.f32 %v1611, %v1675
      %v1677 = vpop.f32.mrf.mxu0
      %v1678 = vpop.f32.mrf.mxu0
      %v1679 = vadd.f32 %v1614, %v1678
      %v1680 = vpop.f32.mrf.mxu0
      %1681 = vmatprep.mubr.bf16.mxu0 0
      %1682 = vmatmul.mubr.bf16.gmra.mxu0 %v895
      %v1683 = vpop.f32.mrf.mxu0
      %v1684 = vadd.f32 %v1619, %v1683
      %v1685 = vpop.f32.mrf.mxu0
      %v1686 = vpop.f32.mrf.mxu0
      %v1687 = vadd.f32 %v1622, %v1686
      %v1688 = vpop.f32.mrf.mxu0
      %1689 = vmatprep.mubr.bf16.mxu0 0
      %1690 = vmatmul.mubr.bf16.gmra.mxu0 %v904
      %v1691 = vpop.f32.mrf.mxu0
      %v1692 = vadd.f32 %v1627, %v1691
      %v1693 = vpop.f32.mrf.mxu0
      %v1694 = vpop.f32.mrf.mxu0
      %v1695 = vadd.f32 %v1630, %v1694
      %v1696 = vpop.f32.mrf.mxu0
      %1697 = vdwg.mxu0
      %v1698 = vld [vmem:[%s2] sm:$0x1]
      %v1700 = vlaneseq
      %v1701 = vshrl.u32 %v1700, 7
      %v1702 = vsub.s32 0, %v1701
      %v1703 = vrot.slane %v1698, %v1702
      %v1705 = vadd.f32 %v1668, %v1703
      %v1706 = vadd.f32 %v1671, %v1703
      %v1707 = vadd.f32 %v1676, %v1703
      %v1708 = vadd.f32 %v1679, %v1703
      %v1709 = vadd.f32 %v1684, %v1703
      %v1710 = vadd.f32 %v1687, %v1703
      %v1711 = vadd.f32 %v1692, %v1703
      %v1712 = vadd.f32 %v1695, %v1703
      %v1713 = vld [vmem:[%s212] sm:$0xf]
      %v1714 = vld [vmem:[%s212 + $0x4] sm:$0xf]
      %v1715 = vld [vmem:[%s212 + $0x8] sm:$0xf]
      %v1716 = vld [vmem:[%s212 + $0xc] sm:$0xf]
      %v1717 = vld [vmem:[%s212 + $0x10] sm:$0xf]
      %v1718 = vld [vmem:[%s212 + $0x14] sm:$0xf]
      %v1719 = vld [vmem:[%s212 + $0x18] sm:$0xf]
      %v1720 = vld [vmem:[%s212 + $0x1c] sm:$0xf]
      %v1721 = vunpack.c.l.bf16 %v1713
      %v1722 = vunpack.c.l.bf16 %v1714
      %v1723 = vunpack.c.l.bf16 %v1715
      %v1724 = vunpack.c.l.bf16 %v1716
      %v1725 = vunpack.c.l.bf16 %v1717
      %v1726 = vunpack.c.l.bf16 %v1718
      %v1727 = vunpack.c.l.bf16 %v1719
      %v1728 = vunpack.c.l.bf16 %v1720
      %v1729 = vadd.f32 %v1705, %v1721
      %v1730 = vadd.f32 %v1706, %v1722
      %v1731 = vadd.f32 %v1707, %v1723
      %v1732 = vadd.f32 %v1708, %v1724
      %v1733 = vadd.f32 %v1709, %v1725
      %v1734 = vadd.f32 %v1710, %v1726
      %v1735 = vadd.f32 %v1711, %v1727
      %v1736 = vadd.f32 %v1712, %v1728
      %v1737 = vpack.c.bf16 %v1729, %v1729
      %v1738 = vpack.c.bf16 %v1730, %v1730
      %v1739 = vpack.c.bf16 %v1731, %v1731
      %v1740 = vpack.c.bf16 %v1732, %v1732
      %v1741 = vpack.c.bf16 %v1733, %v1733
      %v1742 = vpack.c.bf16 %v1734, %v1734
      %v1743 = vpack.c.bf16 %v1735, %v1735
      %v1744 = vpack.c.bf16 %v1736, %v1736
      %vm1745 = vcmask 257024
      %1746 = vst.msk [vmem:[%s217] sm:$0xf] %vm1745, %v1737
      %1747 = vst.msk [vmem:[%s217 + $0x4] sm:$0xf] %vm1745, %v1738
      %1748 = vst.msk [vmem:[%s217 + $0x8] sm:$0xf] %vm1745, %v1739
      %1749 = vst.msk [vmem:[%s217 + $0xc] sm:$0xf] %vm1745, %v1740
      %1750 = vst.msk [vmem:[%s217 + $0x10] sm:$0xf] %vm1745, %v1741
      %1751 = vst.msk [vmem:[%s217 + $0x14] sm:$0xf] %vm1745, %v1742
      %1752 = vst.msk [vmem:[%s217 + $0x18] sm:$0xf] %vm1745, %v1743
      %1753 = vst.msk [vmem:[%s217 + $0x1c] sm:$0xf] %vm1745, %v1744
      %p1754 = scmp.lt.s32.totalorder %s15, 1
      %s1755 = scalar_select %p1754, %s15, 1
      %s1756 = smul.addr %s1755, 8
      %s1757 = smul.addr %s1756, 4
      %s1758 = scalar_lea.vmem %s4, %s1757
      // Predicated region
      $region37: #{generator_forward.14} parent=35 // pred_check
        %p1759 = pneg %p127
      $region38: #{generator_forward.14} parent=35 // pred_check_branch
        %1761 = sbr.rel (%p1759) target = $region40
      $region39: #{generator_forward.14} parent=35 // pred_region
        _
      $region40: #{generator_forward.14} parent=35 // pred_fallthru
        _
    $region36: #{generator_forward.14} parent=5 // pred_fallthru
      _
    %p1762 = scmp.le.s32.totalorder 2, %s10
    // Predicated region
    $region41: #{generator_forward.14} parent=5 // pred_check
      %p1763 = pneg %p1762
    $region42: #{generator_forward.14} parent=5 // pred_check_branch
      %1765 = sbr.rel (%p1763) target = $region44
    $region43: #{generator_forward.14} parent=5 // pred_region
      %s1766 = ssub.s32 %s10, 2
      // Predicated region
      $region45: #{generator_forward.14} parent=43 // pred_check
        %p1767 = pneg %p133
      $region46: #{generator_forward.14} parent=43 // pred_check_branch
        %1769 = sbr.rel (%p1767) target = $region48
      $region47: #{generator_forward.14} parent=43 // pred_region
        %p1770 = scmp.lt.s32.totalorder %s16, 1
        %s1771 = scalar_select %p1770, %s16, 1
        %s1772 = smul.addr %s1771, 8
        %s1773 = smul.addr %s1772, 4
        %s1774 = scalar_lea.vmem %s4, %s1773
      $region48: #{generator_forward.14} parent=43 // pred_fallthru
        _
    $region44: #{generator_forward.14} parent=5 // pred_fallthru
      _
  $region6: #{generator_forward.14} parent=0 // loop_footer
    %s14 = sadd.s32 1, %s10
  $region7: #{generator_forward.14} parent=0 // loop_footer_branch
    %9 = sbr.rel target = $region3
  $region8: #{generator_forward.14} parent=0 // loop_exit
    _

// kernel: generator_forward.18
$region0: #{generator_forward.18}
  #allocation0 [shape = 'u32[]', space=smem, size = 0x4, offset = 0x4, fixed_abs, tag = 'smem constant byte address 0x4 - core index']
  #allocation1 [shape = 'u32[144,128]{1,0:T(1,128)}', space=vmem, size = 0x12000, scoped, tag = 'internal scratch']
  %s0 = inlined_call_operand.vmem [shape: bf16[512,64], index: 0, kind: input, shape index: {}]
  %s1 = inlined_call_operand.vmem [shape: bf16[64,32], index: 1, kind: input, shape index: {}]
  %s2 = inlined_call_operand.vmem [shape: f32[1,32], index: 2, kind: input, shape index: {}]
  %s3 = inlined_call_operand.vmem [shape: bf16[512,32], index: 3, kind: output, shape index: {}]
  %s4 = sld [smem:[#allocation0]]
  $region22: #{generator_forward.18} parent=0
    _
  %s6 = ssub.s32 1, %s4
  %s7 = scalar_select 0, %s6, %s4
  // Predicated region
  $region2: #{generator_forward.18} parent=0 // pred_check
    _
  $region3: #{generator_forward.18} parent=0 // pred_check_branch
    %9 = sbr.rel (0) target = $region5
  $region4: #{generator_forward.18} parent=0 // pred_region
    _
  $region5: #{generator_forward.18} parent=0 // pred_fallthru
    _
  // Predicated region
  $region6: #{generator_forward.18} parent=0 // pred_check
    _
  $region7: #{generator_forward.18} parent=0 // pred_check_branch
    %11 = sbr.rel (0) target = $region9
  $region8: #{generator_forward.18} parent=0 // pred_region
    _
  $region9: #{generator_forward.18} parent=0 // pred_fallthru
    _
  // Predicated region
  $region10: #{generator_forward.18} parent=0 // pred_check
    _
  $region11: #{generator_forward.18} parent=0 // pred_check_branch
    %13 = sbr.rel (0) target = $region13
  $region12: #{generator_forward.18} parent=0 // pred_region
    _
  $region13: #{generator_forward.18} parent=0 // pred_fallthru
    _
  %v15 = vld [vmem:[%s0] sm:$0xf]
  %v16 = vld [vmem:[%s0 + $0x4] sm:$0xf]
  %v17 = vld [vmem:[%s0 + $0x8] sm:$0xf]
  %v18 = vld [vmem:[%s0 + $0xc] sm:$0xf]
  %v19 = vld [vmem:[%s0 + $0x10] sm:$0xf]
  %v20 = vld [vmem:[%s0 + $0x14] sm:$0xf]
  %v21 = vld [vmem:[%s0 + $0x18] sm:$0xf]
  %v22 = vld [vmem:[%s0 + $0x1c] sm:$0xf]
  %v23 = vld [vmem:[%s0 + $0x20] sm:$0xf]
  %v24 = vld [vmem:[%s0 + $0x24] sm:$0xf]
  %v25 = vld [vmem:[%s0 + $0x28] sm:$0xf]
  %v26 = vld [vmem:[%s0 + $0x2c] sm:$0xf]
  %v27 = vld [vmem:[%s0 + $0x30] sm:$0xf]
  %v28 = vld [vmem:[%s0 + $0x34] sm:$0xf]
  %v29 = vld [vmem:[%s0 + $0x38] sm:$0xf]
  %v30 = vld [vmem:[%s0 + $0x3c] sm:$0xf]
  %v31 = vld [vmem:[%s0 + $0x40] sm:$0xf]
  %v32 = vld [vmem:[%s0 + $0x44] sm:$0xf]
  %v33 = vld [vmem:[%s0 + $0x48] sm:$0xf]
  %v34 = vld [vmem:[%s0 + $0x4c] sm:$0xf]
  %v35 = vld [vmem:[%s0 + $0x50] sm:$0xf]
  %v36 = vld [vmem:[%s0 + $0x54] sm:$0xf]
  %v37 = vld [vmem:[%s0 + $0x58] sm:$0xf]
  %v38 = vld [vmem:[%s0 + $0x5c] sm:$0xf]
  %v39 = vld [vmem:[%s0 + $0x60] sm:$0xf]
  %v40 = vld [vmem:[%s0 + $0x64] sm:$0xf]
  %v41 = vld [vmem:[%s0 + $0x68] sm:$0xf]
  %v42 = vld [vmem:[%s0 + $0x6c] sm:$0xf]
  %v43 = vld [vmem:[%s0 + $0x70] sm:$0xf]
  %v44 = vld [vmem:[%s0 + $0x74] sm:$0xf]
  %v45 = vld [vmem:[%s0 + $0x78] sm:$0xf]
  %v46 = vld [vmem:[%s0 + $0x7c] sm:$0xf]
  %v47 = vld [vmem:[%s0 + $0x80] sm:$0xf]
  %v48 = vld [vmem:[%s0 + $0x84] sm:$0xf]
  %v49 = vld [vmem:[%s0 + $0x88] sm:$0xf]
  %v50 = vld [vmem:[%s0 + $0x8c] sm:$0xf]
  %v51 = vld [vmem:[%s0 + $0x90] sm:$0xf]
  %v52 = vld [vmem:[%s0 + $0x94] sm:$0xf]
  %v53 = vld [vmem:[%s0 + $0x98] sm:$0xf]
  %v54 = vld [vmem:[%s0 + $0x9c] sm:$0xf]
  %v55 = vld [vmem:[%s0 + $0xa0] sm:$0xf]
  %v56 = vld [vmem:[%s0 + $0xa4] sm:$0xf]
  %v57 = vld [vmem:[%s0 + $0xa8] sm:$0xf]
  %v58 = vld [vmem:[%s0 + $0xac] sm:$0xf]
  %v59 = vld [vmem:[%s0 + $0xb0] sm:$0xf]
  %v60 = vld [vmem:[%s0 + $0xb4] sm:$0xf]
  %v61 = vld [vmem:[%s0 + $0xb8] sm:$0xf]
  %v62 = vld [vmem:[%s0 + $0xbc] sm:$0xf]
  %v63 = vld [vmem:[%s0 + $0xc0] sm:$0xf]
  %v64 = vld [vmem:[%s0 + $0xc4] sm:$0xf]
  %v65 = vld [vmem:[%s0 + $0xc8] sm:$0xf]
  %v66 = vld [vmem:[%s0 + $0xcc] sm:$0xf]
  %v67 = vld [vmem:[%s0 + $0xd0] sm:$0xf]
  %v68 = vld [vmem:[%s0 + $0xd4] sm:$0xf]
  %v69 = vld [vmem:[%s0 + $0xd8] sm:$0xf]
  %v70 = vld [vmem:[%s0 + $0xdc] sm:$0xf]
  %v71 = vld [vmem:[%s0 + $0xe0] sm:$0xf]
  %v72 = vld [vmem:[%s0 + $0xe4] sm:$0xf]
  %v73 = vld [vmem:[%s0 + $0xe8] sm:$0xf]
  %v74 = vld [vmem:[%s0 + $0xec] sm:$0xf]
  %v75 = vld [vmem:[%s0 + $0xf0] sm:$0xf]
  %v76 = vld [vmem:[%s0 + $0xf4] sm:$0xf]
  %v77 = vld [vmem:[%s0 + $0xf8] sm:$0xf]
  %v78 = vld [vmem:[%s0 + $0xfc] sm:$0xf]
  %v79 = vld [vmem:[%s1] sm:$0xf]
  %v80 = vld [vmem:[%s1 + $0x4] sm:$0xf]
  %v81 = vld [vmem:[%s1 + $0x8] sm:$0xf]
  %v82 = vld [vmem:[%s1 + $0xc] sm:$0xf]
  %v83 = vld [vmem:[%s1 + $0x10] sm:$0xf]
  %v84 = vld [vmem:[%s1 + $0x14] sm:$0xf]
  %v85 = vld [vmem:[%s1 + $0x18] sm:$0xf]
  %v86 = vld [vmem:[%s1 + $0x1c] sm:$0xf]
  %v87 = vld [vmem:[%s2] sm:$0x1]
  %v89 = vlaneseq
  %v90 = vshrl.u32 %v89, 7
  %v91 = vsub.s32 0, %v90
  %v92 = vrot.slane %v87, %v91
  %v158 = vunpack.c.l.b16 %v15
  %v159 = vunpack.c.l.b16 %v16
  %v160 = vunpack.c.l.b16 %v17
  %v161 = vunpack.c.l.b16 %v18
  %v162 = vunpack.c.l.b16 %v19
  %v163 = vunpack.c.l.b16 %v20
  %v164 = vunpack.c.l.b16 %v21
  %v165 = vunpack.c.l.b16 %v22
  %v166 = vunpack.c.l.b16 %v23
  %v167 = vunpack.c.l.b16 %v24
  %v168 = vunpack.c.l.b16 %v25
  %v169 = vunpack.c.l.b16 %v26
  %v170 = vunpack.c.l.b16 %v27
  %v171 = vunpack.c.l.b16 %v28
  %v172 = vunpack.c.l.b16 %v29
  %v173 = vunpack.c.l.b16 %v30
  %v174 = vunpack.c.l.b16 %v31
  %v175 = vunpack.c.l.b16 %v32
  %v176 = vunpack.c.l.b16 %v33
  %v177 = vunpack.c.l.b16 %v34
  %v178 = vunpack.c.l.b16 %v35
  %v179 = vunpack.c.l.b16 %v36
  %v180 = vunpack.c.l.b16 %v37
  %v181 = vunpack.c.l.b16 %v38
  %v182 = vunpack.c.l.b16 %v39
  %v183 = vunpack.c.l.b16 %v40
  %v184 = vunpack.c.l.b16 %v41
  %v185 = vunpack.c.l.b16 %v42
  %v186 = vunpack.c.l.b16 %v43
  %v187 = vunpack.c.l.b16 %v44
  %v188 = vunpack.c.l.b16 %v45
  %v189 = vunpack.c.l.b16 %v46
  %v190 = vunpack.c.l.b16 %v47
  %v191 = vunpack.c.l.b16 %v48
  %v192 = vunpack.c.l.b16 %v49
  %v193 = vunpack.c.l.b16 %v50
  %v194 = vunpack.c.l.b16 %v51
  %v195 = vunpack.c.l.b16 %v52
  %v196 = vunpack.c.l.b16 %v53
  %v197 = vunpack.c.l.b16 %v54
  %v198 = vunpack.c.l.b16 %v55
  %v199 = vunpack.c.l.b16 %v56
  %v200 = vunpack.c.l.b16 %v57
  %v201 = vunpack.c.l.b16 %v58
  %v202 = vunpack.c.l.b16 %v59
  %v203 = vunpack.c.l.b16 %v60
  %v204 = vunpack.c.l.b16 %v61
  %v205 = vunpack.c.l.b16 %v62
  %v206 = vunpack.c.l.b16 %v63
  %v207 = vunpack.c.l.b16 %v64
  %v208 = vunpack.c.l.b16 %v65
  %v209 = vunpack.c.l.b16 %v66
  %v210 = vunpack.c.l.b16 %v67
  %v211 = vunpack.c.l.b16 %v68
  %v212 = vunpack.c.l.b16 %v69
  %v213 = vunpack.c.l.b16 %v70
  %v214 = vunpack.c.l.b16 %v71
  %v215 = vunpack.c.l.b16 %v72
  %v216 = vunpack.c.l.b16 %v73
  %v217 = vunpack.c.l.b16 %v74
  %v218 = vunpack.c.l.b16 %v75
  %v219 = vunpack.c.l.b16 %v76
  %v220 = vunpack.c.l.b16 %v77
  %v221 = vunpack.c.l.b16 %v78
  %v222 = vpack.c.b16 %v159, %v158
  %v223 = vpack.c.b16 %v161, %v160
  %v224 = vpack.c.b16 %v163, %v162
  %v225 = vpack.c.b16 %v165, %v164
  %v226 = vpack.c.b16 %v167, %v166
  %v227 = vpack.c.b16 %v169, %v168
  %v228 = vpack.c.b16 %v171, %v170
  %v229 = vpack.c.b16 %v173, %v172
  %v230 = vpack.c.b16 %v175, %v174
  %v231 = vpack.c.b16 %v177, %v176
  %v232 = vpack.c.b16 %v179, %v178
  %v233 = vpack.c.b16 %v181, %v180
  %v234 = vpack.c.b16 %v183, %v182
  %v235 = vpack.c.b16 %v185, %v184
  %v236 = vpack.c.b16 %v187, %v186
  %v237 = vpack.c.b16 %v189, %v188
  %v238 = vpack.c.b16 %v191, %v190
  %v239 = vpack.c.b16 %v193, %v192
  %v240 = vpack.c.b16 %v195, %v194
  %v241 = vpack.c.b16 %v197, %v196
  %v242 = vpack.c.b16 %v199, %v198
  %v243 = vpack.c.b16 %v201, %v200
  %v244 = vpack.c.b16 %v203, %v202
  %v245 = vpack.c.b16 %v205, %v204
  %v246 = vpack.c.b16 %v207, %v206
  %v247 = vpack.c.b16 %v209, %v208
  %v248 = vpack.c.b16 %v211, %v210
  %v249 = vpack.c.b16 %v213, %v212
  %v250 = vpack.c.b16 %v215, %v214
  %v251 = vpack.c.b16 %v217, %v216
  %v252 = vpack.c.b16 %v219, %v218
  %v253 = vpack.c.b16 %v221, %v220
  %v262 = vunpack.c.l.b16 %v79
  %v263 = vunpack.c.l.b16 %v80
  %v264 = vunpack.c.l.b16 %v81
  %v265 = vunpack.c.l.b16 %v82
  %v266 = vunpack.c.l.b16 %v83
  %v267 = vunpack.c.l.b16 %v84
  %v268 = vunpack.c.l.b16 %v85
  %v269 = vunpack.c.l.b16 %v86
  %v270 = vpack.c.b16 %v263, %v262
  %v271 = vpack.c.b16 %v265, %v264
  %v272 = vpack.c.b16 %v267, %v266
  %v273 = vpack.c.b16 %v269, %v268
  %vm278 = vcmask 523264
  %v280 = vsel %vm278, %v222, 0
  %v283 = vsel %vm278, %v223, 0
  %v286 = vsel %vm278, %v224, 0
  %v289 = vsel %vm278, %v225, 0
  %v292 = vsel %vm278, %v226, 0
  %v295 = vsel %vm278, %v227, 0
  %v298 = vsel %vm278, %v228, 0
  %v301 = vsel %vm278, %v229, 0
  %v304 = vsel %vm278, %v230, 0
  %v307 = vsel %vm278, %v231, 0
  %v310 = vsel %vm278, %v232, 0
  %v313 = vsel %vm278, %v233, 0
  %v316 = vsel %vm278, %v234, 0
  %v319 = vsel %vm278, %v235, 0
  %v322 = vsel %vm278, %v236, 0
  %v325 = vsel %vm278, %v237, 0
  %v328 = vsel %vm278, %v238, 0
  %v331 = vsel %vm278, %v239, 0
  %v334 = vsel %vm278, %v240, 0
  %v337 = vsel %vm278, %v241, 0
  %v340 = vsel %vm278, %v242, 0
  %v343 = vsel %vm278, %v243, 0
  %v346 = vsel %vm278, %v244, 0
  %v349 = vsel %vm278, %v245, 0
  %v352 = vsel %vm278, %v246, 0
  %v355 = vsel %vm278, %v247, 0
  %v358 = vsel %vm278, %v248, 0
  %v361 = vsel %vm278, %v249, 0
  %v364 = vsel %vm278, %v250, 0
  %v367 = vsel %vm278, %v251, 0
  %v370 = vsel %vm278, %v252, 0
  %v373 = vsel %vm278, %v253, 0
  %375 = vmatprep.subr.bf16.mxu0 0
  %376 = vmatpush1.bf16.msra.mxu0 0
  %377 = vmatprep.subr.bf16.mxu0 0
  %378 = vmatpush1.bf16.msra.mxu0 0
  %379 = vmatprep.subr.bf16.mxu0 0
  %380 = vmatpush1.bf16.msra.mxu0 0
  %381 = vmatprep.subr.bf16.mxu0 0
  %382 = vmatpush1.bf16.msra.mxu0 0
  %383 = vmatprep.subr.bf16.mxu0 0
  %384 = vmatpush1.bf16.msra.mxu0 %v273
  %385 = vmatprep.subr.bf16.mxu0 0
  %386 = vmatpush1.bf16.msra.mxu0 %v272
  %387 = vmatprep.subr.bf16.mxu0 0
  %388 = vmatpush1.bf16.msra.mxu0 %v271
  %389 = vmatprep.subr.bf16.mxu0 0
  %390 = vmatpush1.bf16.msra.mxu0 %v270
  %391 = vmatprep.subr.bf16.mxu0 0
  %392 = vmatpush2.bf16.msra.mxu0 0
  %393 = vmatprep.subr.bf16.mxu0 0
  %394 = vmatpush2.bf16.msra.mxu0 0
  %395 = vmatprep.subr.bf16.mxu0 0
  %396 = vmatpush2.bf16.msra.mxu0 0
  %397 = vmatprep.subr.bf16.mxu0 0
  %398 = vmatpush2.bf16.msra.mxu0 0
  %399 = vmatprep.subr.bf16.mxu0 0
  %400 = vmatpush2.bf16.msra.mxu0 0
  %401 = vmatprep.subr.bf16.mxu0 0
  %402 = vmatpush2.bf16.msra.mxu0 0
  %403 = vmatprep.subr.bf16.mxu0 0
  %404 = vmatpush2.bf16.msra.mxu0 0
  %405 = vmatprep.subr.bf16.mxu0 0
  %406 = vmatpush2.bf16.msra.mxu0 0
  %407 = vmatprep.mubr.bf16.mxu0 0
  %408 = vmatmul.mubr.bf16.gmra.mxu0 %v280
  %v409 = vpop.f32.mrf.mxu0
  %v410 = vadd.f32 %v92, %v409
  %v411 = vpop.f32.mrf.mxu0
  %v412 = vpop.f32.mrf.mxu0
  %v413 = vadd.f32 %v92, %v412
  %v414 = vpop.f32.mrf.mxu0
  %415 = vmatprep.mubr.bf16.mxu0 0
  %416 = vmatmul.mubr.bf16.gmra.mxu0 %v283
  %v417 = vpop.f32.mrf.mxu0
  %v418 = vadd.f32 %v92, %v417
  %v419 = vpop.f32.mrf.mxu0
  %v420 = vpop.f32.mrf.mxu0
  %v421 = vadd.f32 %v92, %v420
  %v422 = vpop.f32.mrf.mxu0
  %423 = vmatprep.mubr.bf16.mxu0 0
  %424 = vmatmul.mubr.bf16.gmra.mxu0 %v286
  %v425 = vpop.f32.mrf.mxu0
  %v426 = vadd.f32 %v92, %v425
  %v427 = vpop.f32.mrf.mxu0
  %v428 = vpop.f32.mrf.mxu0
  %v429 = vadd.f32 %v92, %v428
  %v430 = vpop.f32.mrf.mxu0
  %431 = vmatprep.mubr.bf16.mxu0 0
  %432 = vmatmul.mubr.bf16.gmra.mxu0 %v289
  %v433 = vpop.f32.mrf.mxu0
  %v434 = vadd.f32 %v92, %v433
  %v435 = vpop.f32.mrf.mxu0
  %v436 = vpop.f32.mrf.mxu0
  %v437 = vadd.f32 %v92, %v436
  %v438 = vpop.f32.mrf.mxu0
  %439 = vmatprep.mubr.bf16.mxu0 0
  %440 = vmatmul.mubr.bf16.gmra.mxu0 %v292
  %v441 = vpop.f32.mrf.mxu0
  %v442 = vadd.f32 %v92, %v441
  %v443 = vpop.f32.mrf.mxu0
  %v444 = vpop.f32.mrf.mxu0
  %v445 = vadd.f32 %v92, %v444
  %v446 = vpop.f32.mrf.mxu0
  %447 = vmatprep.mubr.bf16.mxu0 0
  %448 = vmatmul.mubr.bf16.gmra.mxu0 %v295
  %v449 = vpop.f32.mrf.mxu0
  %v450 = vadd.f32 %v92, %v449
  %v451 = vpop.f32.mrf.mxu0
  %v452 = vpop.f32.mrf.mxu0
  %v453 = vadd.f32 %v92, %v452
  %v454 = vpop.f32.mrf.mxu0
  %455 = vmatprep.mubr.bf16.mxu0 0
  %456 = vmatmul.mubr.bf16.gmra.mxu0 %v298
  %v457 = vpop.f32.mrf.mxu0
  %v458 = vadd.f32 %v92, %v457
  %v459 = vpop.f32.mrf.mxu0
  %v460 = vpop.f32.mrf.mxu0
  %v461 = vadd.f32 %v92, %v460
  %v462 = vpop.f32.mrf.mxu0
  %463 = vmatprep.mubr.bf16.mxu0 0
  %464 = vmatmul.mubr.bf16.gmra.mxu0 %v301
  %v465 = vpop.f32.mrf.mxu0
  %v466 = vadd.f32 %v92, %v465
  %v467 = vpop.f32.mrf.mxu0
  %v468 = vpop.f32.mrf.mxu0
  %v469 = vadd.f32 %v92, %v468
  %v470 = vpop.f32.mrf.mxu0
  %471 = vmatprep.mubr.bf16.mxu0 0
  %472 = vmatmul.mubr.bf16.gmra.mxu0 %v304
  %v473 = vpop.f32.mrf.mxu0
  %v474 = vadd.f32 %v92, %v473
  %v475 = vpop.f32.mrf.mxu0
  %v476 = vpop.f32.mrf.mxu0
  %v477 = vadd.f32 %v92, %v476
  %v478 = vpop.f32.mrf.mxu0
  %479 = vmatprep.mubr.bf16.mxu0 0
  %480 = vmatmul.mubr.bf16.gmra.mxu0 %v307
  %v481 = vpop.f32.mrf.mxu0
  %v482 = vadd.f32 %v92, %v481
  %v483 = vpop.f32.mrf.mxu0
  %v484 = vpop.f32.mrf.mxu0
  %v485 = vadd.f32 %v92, %v484
  %v486 = vpop.f32.mrf.mxu0
  %487 = vmatprep.mubr.bf16.mxu0 0
  %488 = vmatmul.mubr.bf16.gmra.mxu0 %v310
  %v489 = vpop.f32.mrf.mxu0
  %v490 = vadd.f32 %v92, %v489
  %v491 = vpop.f32.mrf.mxu0
  %v492 = vpop.f32.mrf.mxu0
  %v493 = vadd.f32 %v92, %v492
  %v494 = vpop.f32.mrf.mxu0
  %495 = vmatprep.mubr.bf16.mxu0 0
  %496 = vmatmul.mubr.bf16.gmra.mxu0 %v313
  %v497 = vpop.f32.mrf.mxu0
  %v498 = vadd.f32 %v92, %v497
  %v499 = vpop.f32.mrf.mxu0
  %v500 = vpop.f32.mrf.mxu0
  %v501 = vadd.f32 %v92, %v500
  %v502 = vpop.f32.mrf.mxu0
  %503 = vmatprep.mubr.bf16.mxu0 0
  %504 = vmatmul.mubr.bf16.gmra.mxu0 %v316
  %v505 = vpop.f32.mrf.mxu0
  %v506 = vadd.f32 %v92, %v505
  %v507 = vpop.f32.mrf.mxu0
  %v508 = vpop.f32.mrf.mxu0
  %v509 = vadd.f32 %v92, %v508
  %v510 = vpop.f32.mrf.mxu0
  %511 = vmatprep.mubr.bf16.mxu0 0
  %512 = vmatmul.mubr.bf16.gmra.mxu0 %v319
  %v513 = vpop.f32.mrf.mxu0
  %v514 = vadd.f32 %v92, %v513
  %v515 = vpop.f32.mrf.mxu0
  %v516 = vpop.f32.mrf.mxu0
  %v517 = vadd.f32 %v92, %v516
  %v518 = vpop.f32.mrf.mxu0
  %519 = vmatprep.mubr.bf16.mxu0 0
  %520 = vmatmul.mubr.bf16.gmra.mxu0 %v322
  %v521 = vpop.f32.mrf.mxu0
  %v522 = vadd.f32 %v92, %v521
  %v523 = vpop.f32.mrf.mxu0
  %v524 = vpop.f32.mrf.mxu0
  %v525 = vadd.f32 %v92, %v524
  %v526 = vpop.f32.mrf.mxu0
  %527 = vmatprep.mubr.bf16.mxu0 0
  %528 = vmatmul.mubr.bf16.gmra.mxu0 %v325
  %v529 = vpop.f32.mrf.mxu0
  %v530 = vadd.f32 %v92, %v529
  %v531 = vpop.f32.mrf.mxu0
  %v532 = vpop.f32.mrf.mxu0
  %v533 = vadd.f32 %v92, %v532
  %v534 = vpop.f32.mrf.mxu0
  %535 = vmatprep.mubr.bf16.mxu0 0
  %536 = vmatmul.mubr.bf16.gmra.mxu0 %v328
  %v537 = vpop.f32.mrf.mxu0
  %v538 = vadd.f32 %v92, %v537
  %v539 = vpop.f32.mrf.mxu0
  %v540 = vpop.f32.mrf.mxu0
  %v541 = vadd.f32 %v92, %v540
  %v542 = vpop.f32.mrf.mxu0
  %543 = vmatprep.mubr.bf16.mxu0 0
  %544 = vmatmul.mubr.bf16.gmra.mxu0 %v331
  %v545 = vpop.f32.mrf.mxu0
  %v546 = vadd.f32 %v92, %v545
  %v547 = vpop.f32.mrf.mxu0
  %v548 = vpop.f32.mrf.mxu0
  %v549 = vadd.f32 %v92, %v548
  %v550 = vpop.f32.mrf.mxu0
  %551 = vmatprep.mubr.bf16.mxu0 0
  %552 = vmatmul.mubr.bf16.gmra.mxu0 %v334
  %v553 = vpop.f32.mrf.mxu0
  %v554 = vadd.f32 %v92, %v553
  %v555 = vpop.f32.mrf.mxu0
  %v556 = vpop.f32.mrf.mxu0
  %v557 = vadd.f32 %v92, %v556
  %v558 = vpop.f32.mrf.mxu0
  %559 = vmatprep.mubr.bf16.mxu0 0
  %560 = vmatmul.mubr.bf16.gmra.mxu0 %v337
  %v561 = vpop.f32.mrf.mxu0
  %v562 = vadd.f32 %v92, %v561
  %v563 = vpop.f32.mrf.mxu0
  %v564 = vpop.f32.mrf.mxu0
  %v565 = vadd.f32 %v92, %v564
  %v566 = vpop.f32.mrf.mxu0
  %567 = vmatprep.mubr.bf16.mxu0 0
  %568 = vmatmul.mubr.bf16.gmra.mxu0 %v340
  %v569 = vpop.f32.mrf.mxu0
  %v570 = vadd.f32 %v92, %v569
  %v571 = vpop.f32.mrf.mxu0
  %v572 = vpop.f32.mrf.mxu0
  %v573 = vadd.f32 %v92, %v572
  %v574 = vpop.f32.mrf.mxu0
  %575 = vmatprep.mubr.bf16.mxu0 0
  %576 = vmatmul.mubr.bf16.gmra.mxu0 %v343
  %v577 = vpop.f32.mrf.mxu0
  %v578 = vadd.f32 %v92, %v577
  %v579 = vpop.f32.mrf.mxu0
  %v580 = vpop.f32.mrf.mxu0
  %v581 = vadd.f32 %v92, %v580
  %v582 = vpop.f32.mrf.mxu0
  %583 = vmatprep.mubr.bf16.mxu0 0
  %584 = vmatmul.mubr.bf16.gmra.mxu0 %v346
  %v585 = vpop.f32.mrf.mxu0
  %v586 = vadd.f32 %v92, %v585
  %v587 = vpop.f32.mrf.mxu0
  %v588 = vpop.f32.mrf.mxu0
  %v589 = vadd.f32 %v92, %v588
  %v590 = vpop.f32.mrf.mxu0
  %591 = vmatprep.mubr.bf16.mxu0 0
  %592 = vmatmul.mubr.bf16.gmra.mxu0 %v349
  %v593 = vpop.f32.mrf.mxu0
  %v594 = vadd.f32 %v92, %v593
  %v595 = vpop.f32.mrf.mxu0
  %v596 = vpop.f32.mrf.mxu0
  %v597 = vadd.f32 %v92, %v596
  %v598 = vpop.f32.mrf.mxu0
  %599 = vmatprep.mubr.bf16.mxu0 0
  %600 = vmatmul.mubr.bf16.gmra.mxu0 %v352
  %v601 = vpop.f32.mrf.mxu0
  %v602 = vadd.f32 %v92, %v601
  %v603 = vpop.f32.mrf.mxu0
  %v604 = vpop.f32.mrf.mxu0
  %v605 = vadd.f32 %v92, %v604
  %v606 = vpop.f32.mrf.mxu0
  %607 = vmatprep.mubr.bf16.mxu0 0
  %608 = vmatmul.mubr.bf16.gmra.mxu0 %v355
  %v609 = vpop.f32.mrf.mxu0
  %v610 = vadd.f32 %v92, %v609
  %v611 = vpop.f32.mrf.mxu0
  %v612 = vpop.f32.mrf.mxu0
  %v613 = vadd.f32 %v92, %v612
  %v614 = vpop.f32.mrf.mxu0
  %615 = vmatprep.mubr.bf16.mxu0 0
  %616 = vmatmul.mubr.bf16.gmra.mxu0 %v358
  %v617 = vpop.f32.mrf.mxu0
  %v618 = vadd.f32 %v92, %v617
  %v619 = vpop.f32.mrf.mxu0
  %v620 = vpop.f32.mrf.mxu0
  %v621 = vadd.f32 %v92, %v620
  %v622 = vpop.f32.mrf.mxu0
  %623 = vmatprep.mubr.bf16.mxu0 0
  %624 = vmatmul.mubr.bf16.gmra.mxu0 %v361
  %v625 = vpop.f32.mrf.mxu0
  %v626 = vadd.f32 %v92, %v625
  %v627 = vpop.f32.mrf.mxu0
  %v628 = vpop.f32.mrf.mxu0
  %v629 = vadd.f32 %v92, %v628
  %v630 = vpop.f32.mrf.mxu0
  %631 = vmatprep.mubr.bf16.mxu0 0
  %632 = vmatmul.mubr.bf16.gmra.mxu0 %v364
  %v633 = vpop.f32.mrf.mxu0
  %v634 = vadd.f32 %v92, %v633
  %v635 = vpop.f32.mrf.mxu0
  %v636 = vpop.f32.mrf.mxu0
  %v637 = vadd.f32 %v92, %v636
  %v638 = vpop.f32.mrf.mxu0
  %639 = vmatprep.mubr.bf16.mxu0 0
  %640 = vmatmul.mubr.bf16.gmra.mxu0 %v367
  %v641 = vpop.f32.mrf.mxu0
  %v642 = vadd.f32 %v92, %v641
  %v643 = vpop.f32.mrf.mxu0
  %v644 = vpop.f32.mrf.mxu0
  %v645 = vadd.f32 %v92, %v644
  %v646 = vpop.f32.mrf.mxu0
  %647 = vmatprep.mubr.bf16.mxu0 0
  %648 = vmatmul.mubr.bf16.gmra.mxu0 %v370
  %v649 = vpop.f32.mrf.mxu0
  %v650 = vadd.f32 %v92, %v649
  %v651 = vpop.f32.mrf.mxu0
  %v652 = vpop.f32.mrf.mxu0
  %v653 = vadd.f32 %v92, %v652
  %v654 = vpop.f32.mrf.mxu0
  %655 = vmatprep.mubr.bf16.mxu0 0
  %656 = vmatmul.mubr.bf16.gmra.mxu0 %v373
  %v657 = vpop.f32.mrf.mxu0
  %v658 = vadd.f32 %v92, %v657
  %v659 = vpop.f32.mrf.mxu0
  %v660 = vpop.f32.mrf.mxu0
  %v661 = vadd.f32 %v92, %v660
  %v662 = vpop.f32.mrf.mxu0
  %663 = vdwg.mxu0
  %v664 = vmax.f32 %v410, 0.0
  %v665 = vmax.f32 %v413, 0.0
  %v666 = vmax.f32 %v418, 0.0
  %v667 = vmax.f32 %v421, 0.0
  %v668 = vmax.f32 %v426, 0.0
  %v669 = vmax.f32 %v429, 0.0
  %v670 = vmax.f32 %v434, 0.0
  %v671 = vmax.f32 %v437, 0.0
  %v672 = vmax.f32 %v442, 0.0
  %v673 = vmax.f32 %v445, 0.0
  %v674 = vmax.f32 %v450, 0.0
  %v675 = vmax.f32 %v453, 0.0
  %v676 = vmax.f32 %v458, 0.0
  %v677 = vmax.f32 %v461, 0.0
  %v678 = vmax.f32 %v466, 0.0
  %v679 = vmax.f32 %v469, 0.0
  %v680 = vmax.f32 %v474, 0.0
  %v681 = vmax.f32 %v477, 0.0
  %v682 = vmax.f32 %v482, 0.0
  %v683 = vmax.f32 %v485, 0.0
  %v684 = vmax.f32 %v490, 0.0
  %v685 = vmax.f32 %v493, 0.0
  %v686 = vmax.f32 %v498, 0.0
  %v687 = vmax.f32 %v501, 0.0
  %v688 = vmax.f32 %v506, 0.0
  %v689 = vmax.f32 %v509, 0.0
  %v690 = vmax.f32 %v514, 0.0
  %v691 = vmax.f32 %v517, 0.0
  %v692 = vmax.f32 %v522, 0.0
  %v693 = vmax.f32 %v525, 0.0
  %v694 = vmax.f32 %v530, 0.0
  %v695 = vmax.f32 %v533, 0.0
  %v696 = vmax.f32 %v538, 0.0
  %v697 = vmax.f32 %v541, 0.0
  %v698 = vmax.f32 %v546, 0.0
  %v699 = vmax.f32 %v549, 0.0
  %v700 = vmax.f32 %v554, 0.0
  %v701 = vmax.f32 %v557, 0.0
  %v702 = vmax.f32 %v562, 0.0
  %v703 = vmax.f32 %v565, 0.0
  %v704 = vmax.f32 %v570, 0.0
  %v705 = vmax.f32 %v573, 0.0
  %v706 = vmax.f32 %v578, 0.0
  %v707 = vmax.f32 %v581, 0.0
  %v708 = vmax.f32 %v586, 0.0
  %v709 = vmax.f32 %v589, 0.0
  %v710 = vmax.f32 %v594, 0.0
  %v711 = vmax.f32 %v597, 0.0
  %v712 = vmax.f32 %v602, 0.0
  %v713 = vmax.f32 %v605, 0.0
  %v714 = vmax.f32 %v610, 0.0
  %v715 = vmax.f32 %v613, 0.0
  %v716 = vmax.f32 %v618, 0.0
  %v717 = vmax.f32 %v621, 0.0
  %v718 = vmax.f32 %v626, 0.0
  %v719 = vmax.f32 %v629, 0.0
  %v720 = vmax.f32 %v634, 0.0
  %v721 = vmax.f32 %v637, 0.0
  %v722 = vmax.f32 %v642, 0.0
  %v723 = vmax.f32 %v645, 0.0
  %v724 = vmax.f32 %v650, 0.0
  %v725 = vmax.f32 %v653, 0.0
  %v726 = vmax.f32 %v658, 0.0
  %v727 = vmax.f32 %v661, 0.0
  %v728 = vpack.c.bf16 %v665, %v664
  %v729 = vpack.c.bf16 %v667, %v666
  %v730 = vpack.c.bf16 %v669, %v668
  %v731 = vpack.c.bf16 %v671, %v670
  %v732 = vpack.c.bf16 %v673, %v672
  %v733 = vpack.c.bf16 %v675, %v674
  %v734 = vpack.c.bf16 %v677, %v676
  %v735 = vpack.c.bf16 %v679, %v678
  %v736 = vpack.c.bf16 %v681, %v680
  %v737 = vpack.c.bf16 %v683, %v682
  %v738 = vpack.c.bf16 %v685, %v684
  %v739 = vpack.c.bf16 %v687, %v686
  %v740 = vpack.c.bf16 %v689, %v688
  %v741 = vpack.c.bf16 %v691, %v690
  %v742 = vpack.c.bf16 %v693, %v692
  %v743 = vpack.c.bf16 %v695, %v694
  %v744 = vpack.c.bf16 %v697, %v696
  %v745 = vpack.c.bf16 %v699, %v698
  %v746 = vpack.c.bf16 %v701, %v700
  %v747 = vpack.c.bf16 %v703, %v702
  %v748 = vpack.c.bf16 %v705, %v704
  %v749 = vpack.c.bf16 %v707, %v706
  %v750 = vpack.c.bf16 %v709, %v708
  %v751 = vpack.c.bf16 %v711, %v710
  %v752 = vpack.c.bf16 %v713, %v712
  %v753 = vpack.c.bf16 %v715, %v714
  %v754 = vpack.c.bf16 %v717, %v716
  %v755 = vpack.c.bf16 %v719, %v718
  %v756 = vpack.c.bf16 %v721, %v720
  %v757 = vpack.c.bf16 %v723, %v722
  %v758 = vpack.c.bf16 %v725, %v724
  %v759 = vpack.c.bf16 %v727, %v726
  %v792 = vunpack.c.l.b16 %v728
  %v793 = vunpack.c.h.b16 %v728
  %v794 = vunpack.c.l.b16 %v729
  %v795 = vunpack.c.h.b16 %v729
  %v796 = vunpack.c.l.b16 %v730
  %v797 = vunpack.c.h.b16 %v730
  %v798 = vunpack.c.l.b16 %v731
  %v799 = vunpack.c.h.b16 %v731
  %v800 = vunpack.c.l.b16 %v732
  %v801 = vunpack.c.h.b16 %v732
  %v802 = vunpack.c.l.b16 %v733
  %v803 = vunpack.c.h.b16 %v733
  %v804 = vunpack.c.l.b16 %v734
  %v805 = vunpack.c.h.b16 %v734
  %v806 = vunpack.c.l.b16 %v735
  %v807 = vunpack.c.h.b16 %v735
  %v808 = vunpack.c.l.b16 %v736
  %v809 = vunpack.c.h.b16 %v736
  %v810 = vunpack.c.l.b16 %v737
  %v811 = vunpack.c.h.b16 %v737
  %v812 = vunpack.c.l.b16 %v738
  %v813 = vunpack.c.h.b16 %v738
  %v814 = vunpack.c.l.b16 %v739
  %v815 = vunpack.c.h.b16 %v739
  %v816 = vunpack.c.l.b16 %v740
  %v817 = vunpack.c.h.b16 %v740
  %v818 = vunpack.c.l.b16 %v741
  %v819 = vunpack.c.h.b16 %v741
  %v820 = vunpack.c.l.b16 %v742
  %v821 = vunpack.c.h.b16 %v742
  %v822 = vunpack.c.l.b16 %v743
  %v823 = vunpack.c.h.b16 %v743
  %v824 = vunpack.c.l.b16 %v744
  %v825 = vunpack.c.h.b16 %v744
  %v826 = vunpack.c.l.b16 %v745
  %v827 = vunpack.c.h.b16 %v745
  %v828 = vunpack.c.l.b16 %v746
  %v829 = vunpack.c.h.b16 %v746
  %v830 = vunpack.c.l.b16 %v747
  %v831 = vunpack.c.h.b16 %v747
  %v832 = vunpack.c.l.b16 %v748
  %v833 = vunpack.c.h.b16 %v748
  %v834 = vunpack.c.l.b16 %v749
  %v835 = vunpack.c.h.b16 %v749
  %v836 = vunpack.c.l.b16 %v750
  %v837 = vunpack.c.h.b16 %v750
  %v838 = vunpack.c.l.b16 %v751
  %v839 = vunpack.c.h.b16 %v751
  %v840 = vunpack.c.l.b16 %v752
  %v841 = vunpack.c.h.b16 %v752
  %v842 = vunpack.c.l.b16 %v753
  %v843 = vunpack.c.h.b16 %v753
  %v844 = vunpack.c.l.b16 %v754
  %v845 = vunpack.c.h.b16 %v754
  %v846 = vunpack.c.l.b16 %v755
  %v847 = vunpack.c.h.b16 %v755
  %v848 = vunpack.c.l.b16 %v756
  %v849 = vunpack.c.h.b16 %v756
  %v850 = vunpack.c.l.b16 %v757
  %v851 = vunpack.c.h.b16 %v757
  %v852 = vunpack.c.l.b16 %v758
  %v853 = vunpack.c.h.b16 %v758
  %v854 = vunpack.c.l.b16 %v759
  %v855 = vunpack.c.h.b16 %v759
  %v856 = vpack.c.b16 %v792, %v792
  %v857 = vpack.c.b16 %v793, %v793
  %v858 = vpack.c.b16 %v794, %v794
  %v859 = vpack.c.b16 %v795, %v795
  %v860 = vpack.c.b16 %v796, %v796
  %v861 = vpack.c.b16 %v797, %v797
  %v862 = vpack.c.b16 %v798, %v798
  %v863 = vpack.c.b16 %v799, %v799
  %v864 = vpack.c.b16 %v800, %v800
  %v865 = vpack.c.b16 %v801, %v801
  %v866 = vpack.c.b16 %v802, %v802
  %v867 = vpack.c.b16 %v803, %v803
  %v868 = vpack.c.b16 %v804, %v804
  %v869 = vpack.c.b16 %v805, %v805
  %v870 = vpack.c.b16 %v806, %v806
  %v871 = vpack.c.b16 %v807, %v807
  %v872 = vpack.c.b16 %v808, %v808
  %v873 = vpack.c.b16 %v809, %v809
  %v874 = vpack.c.b16 %v810, %v810
  %v875 = vpack.c.b16 %v811, %v811
  %v876 = vpack.c.b16 %v812, %v812
  %v877 = vpack.c.b16 %v813, %v813
  %v878 = vpack.c.b16 %v814, %v814
  %v879 = vpack.c.b16 %v815, %v815
  %v880 = vpack.c.b16 %v816, %v816
  %v881 = vpack.c.b16 %v817, %v817
  %v882 = vpack.c.b16 %v818, %v818
  %v883 = vpack.c.b16 %v819, %v819
  %v884 = vpack.c.b16 %v820, %v820
  %v885 = vpack.c.b16 %v821, %v821
  %v886 = vpack.c.b16 %v822, %v822
  %v887 = vpack.c.b16 %v823, %v823
  %v888 = vpack.c.b16 %v824, %v824
  %v889 = vpack.c.b16 %v825, %v825
  %v890 = vpack.c.b16 %v826, %v826
  %v891 = vpack.c.b16 %v827, %v827
  %v892 = vpack.c.b16 %v828, %v828
  %v893 = vpack.c.b16 %v829, %v829
  %v894 = vpack.c.b16 %v830, %v830
  %v895 = vpack.c.b16 %v831, %v831
  %v896 = vpack.c.b16 %v832, %v832
  %v897 = vpack.c.b16 %v833, %v833
  %v898 = vpack.c.b16 %v834, %v834
  %v899 = vpack.c.b16 %v835, %v835
  %v900 = vpack.c.b16 %v836, %v836
  %v901 = vpack.c.b16 %v837, %v837
  %v902 = vpack.c.b16 %v838, %v838
  %v903 = vpack.c.b16 %v839, %v839
  %v904 = vpack.c.b16 %v840, %v840
  %v905 = vpack.c.b16 %v841, %v841
  %v906 = vpack.c.b16 %v842, %v842
  %v907 = vpack.c.b16 %v843, %v843
  %v908 = vpack.c.b16 %v844, %v844
  %v909 = vpack.c.b16 %v845, %v845
  %v910 = vpack.c.b16 %v846, %v846
  %v911 = vpack.c.b16 %v847, %v847
  %v912 = vpack.c.b16 %v848, %v848
  %v913 = vpack.c.b16 %v849, %v849
  %v914 = vpack.c.b16 %v850, %v850
  %v915 = vpack.c.b16 %v851, %v851
  %v916 = vpack.c.b16 %v852, %v852
  %v917 = vpack.c.b16 %v853, %v853
  %v918 = vpack.c.b16 %v854, %v854
  %v919 = vpack.c.b16 %v855, %v855
  %vm984 = vcmask 257024
  %985 = vst.msk [vmem:[%s3] sm:$0xf] %vm984, %v856
  %986 = vst.msk [vmem:[%s3 + $0x4] sm:$0xf] %vm984, %v857
  %987 = vst.msk [vmem:[%s3 + $0x8] sm:$0xf] %vm984, %v858
  %988 = vst.msk [vmem:[%s3 + $0xc] sm:$0xf] %vm984, %v859
  %989 = vst.msk [vmem:[%s3 + $0x10] sm:$0xf] %vm984, %v860
  %990 = vst.msk [vmem:[%s3 + $0x14] sm:$0xf] %vm984, %v861
  %991 = vst.msk [vmem:[%s3 + $0x18] sm:$0xf] %vm984, %v862
  %992 = vst.msk [vmem:[%s3 + $0x1c] sm:$0xf] %vm984, %v863
  %993 = vst.msk [vmem:[%s3 + $0x20] sm:$0xf] %vm984, %v864
  %994 = vst.msk [vmem:[%s3 + $0x24] sm:$0xf] %vm984, %v865
  %995 = vst.msk [vmem:[%s3 + $0x28] sm:$0xf] %vm984, %v866
  %996 = vst.msk [vmem:[%s3 + $0x2c] sm:$0xf] %vm984, %v867
  %997 = vst.msk [vmem:[%s3 + $0x30] sm:$0xf] %vm984, %v868
  %998 = vst.msk [vmem:[%s3 + $0x34] sm:$0xf] %vm984, %v869
  %999 = vst.msk [vmem:[%s3 + $0x38] sm:$0xf] %vm984, %v870
  %1000 = vst.msk [vmem:[%s3 + $0x3c] sm:$0xf] %vm984, %v871
  %1001 = vst.msk [vmem:[%s3 + $0x40] sm:$0xf] %vm984, %v872
  %1002 = vst.msk [vmem:[%s3 + $0x44] sm:$0xf] %vm984, %v873
  %1003 = vst.msk [vmem:[%s3 + $0x48] sm:$0xf] %vm984, %v874
  %1004 = vst.msk [vmem:[%s3 + $0x4c] sm:$0xf] %vm984, %v875
  %1005 = vst.msk [vmem:[%s3 + $0x50] sm:$0xf] %vm984, %v876
  %1006 = vst.msk [vmem:[%s3 + $0x54] sm:$0xf] %vm984, %v877
  %1007 = vst.msk [vmem:[%s3 + $0x58] sm:$0xf] %vm984, %v878
  %1008 = vst.msk [vmem:[%s3 + $0x5c] sm:$0xf] %vm984, %v879
  %1009 = vst.msk [vmem:[%s3 + $0x60] sm:$0xf] %vm984, %v880
  %1010 = vst.msk [vmem:[%s3 + $0x64] sm:$0xf] %vm984, %v881
  %1011 = vst.msk [vmem:[%s3 + $0x68] sm:$0xf] %vm984, %v882
  %1012 = vst.msk [vmem:[%s3 + $0x6c] sm:$0xf] %vm984, %v883
  %1013 = vst.msk [vmem:[%s3 + $0x70] sm:$0xf] %vm984, %v884
  %1014 = vst.msk [vmem:[%s3 + $0x74] sm:$0xf] %vm984, %v885
  %1015 = vst.msk [vmem:[%s3 + $0x78] sm:$0xf] %vm984, %v886
  %1016 = vst.msk [vmem:[%s3 + $0x7c] sm:$0xf] %vm984, %v887
  %1017 = vst.msk [vmem:[%s3 + $0x80] sm:$0xf] %vm984, %v888
  %1018 = vst.msk [vmem:[%s3 + $0x84] sm:$0xf] %vm984, %v889
  %1019 = vst.msk [vmem:[%s3 + $0x88] sm:$0xf] %vm984, %v890
  %1020 = vst.msk [vmem:[%s3 + $0x8c] sm:$0xf] %vm984, %v891
  %1021 = vst.msk [vmem:[%s3 + $0x90] sm:$0xf] %vm984, %v892
  %1022 = vst.msk [vmem:[%s3 + $0x94] sm:$0xf] %vm984, %v893
  %1023 = vst.msk [vmem:[%s3 + $0x98] sm:$0xf] %vm984, %v894
  %1024 = vst.msk [vmem:[%s3 + $0x9c] sm:$0xf] %vm984, %v895
  %1025 = vst.msk [vmem:[%s3 + $0xa0] sm:$0xf] %vm984, %v896
  %1026 = vst.msk [vmem:[%s3 + $0xa4] sm:$0xf] %vm984, %v897
  %1027 = vst.msk [vmem:[%s3 + $0xa8] sm:$0xf] %vm984, %v898
  %1028 = vst.msk [vmem:[%s3 + $0xac] sm:$0xf] %vm984, %v899
  %1029 = vst.msk [vmem:[%s3 + $0xb0] sm:$0xf] %vm984, %v900
  %1030 = vst.msk [vmem:[%s3 + $0xb4] sm:$0xf] %vm984, %v901
  %1031 = vst.msk [vmem:[%s3 + $0xb8] sm:$0xf] %vm984, %v902
  %1032 = vst.msk [vmem:[%s3 + $0xbc] sm:$0xf] %vm984, %v903
  %1033 = vst.msk [vmem:[%s3 + $0xc0] sm:$0xf] %vm984, %v904
  %1034 = vst.msk [vmem:[%s3 + $0xc4] sm:$0xf] %vm984, %v905
  %1035 = vst.msk [vmem:[%s3 + $0xc8] sm:$0xf] %vm984, %v906
  %1036 = vst.msk [vmem:[%s3 + $0xcc] sm:$0xf] %vm984, %v907
  %1037 = vst.msk [vmem:[%s3 + $0xd0] sm:$0xf] %vm984, %v908
  %1038 = vst.msk [vmem:[%s3 + $0xd4] sm:$0xf] %vm984, %v909
  %1039 = vst.msk [vmem:[%s3 + $0xd8] sm:$0xf] %vm984, %v910
  %1040 = vst.msk [vmem:[%s3 + $0xdc] sm:$0xf] %vm984, %v911
  %1041 = vst.msk [vmem:[%s3 + $0xe0] sm:$0xf] %vm984, %v912
  %1042 = vst.msk [vmem:[%s3 + $0xe4] sm:$0xf] %vm984, %v913
  %1043 = vst.msk [vmem:[%s3 + $0xe8] sm:$0xf] %vm984, %v914
  %1044 = vst.msk [vmem:[%s3 + $0xec] sm:$0xf] %vm984, %v915
  %1045 = vst.msk [vmem:[%s3 + $0xf0] sm:$0xf] %vm984, %v916
  %1046 = vst.msk [vmem:[%s3 + $0xf4] sm:$0xf] %vm984, %v917
  %1047 = vst.msk [vmem:[%s3 + $0xf8] sm:$0xf] %vm984, %v918
  %1048 = vst.msk [vmem:[%s3 + $0xfc] sm:$0xf] %vm984, %v919
  // Predicated region
  $region14: #{generator_forward.18} parent=0 // pred_check
    _
  $region15: #{generator_forward.18} parent=0 // pred_check_branch
    %1050 = sbr.rel (0) target = $region17
  $region16: #{generator_forward.18} parent=0 // pred_region
    _
  $region17: #{generator_forward.18} parent=0 // pred_fallthru
    _
  // Predicated region
  $region18: #{generator_forward.18} parent=0 // pred_check
    _
  $region19: #{generator_forward.18} parent=0 // pred_check_branch
    %1052 = sbr.rel (0) target = $region21
  $region20: #{generator_forward.18} parent=0 // pred_region
    _
  $region21: #{generator_forward.18} parent=0 // pred_fallthru
    _

// kernel: generator_forward.19
$region0: #{generator_forward.19}
  #allocation0 [shape = 'u32[]', space=smem, size = 0x4, offset = 0x4, fixed_abs, tag = 'smem constant byte address 0x4 - core index']
  #allocation1 [shape = 'u32[144,128]{1,0:T(1,128)}', space=vmem, size = 0x12000, scoped, tag = 'internal scratch']
  %s0 = inlined_call_operand.vmem [shape: bf16[2048,392], index: 0, kind: input, shape index: {}]
  %s1 = inlined_call_operand.vmem [shape: bf16[392,3], index: 1, kind: input, shape index: {}]
  %s2 = inlined_call_operand.vmem [shape: f32[1,3], index: 2, kind: input, shape index: {}]
  %s3 = inlined_call_operand.vmem [shape: bf16[2048,3], index: 3, kind: output, shape index: {}]
  %s4 = sld [smem:[#allocation0]]
  $region45: #{generator_forward.19} parent=0
    _
  %s6 = ssub.s32 1, %s4
  %s7 = scalar_select 0, %s6, %s4
  loop: start=0, step=1, limit=6
  $region2: #{generator_forward.19} parent=0 // loop_pre_header
    _
  $region3: #{generator_forward.19} parent=0 // loop_header
    %s9 = sphi 0, %s13
    %p10 = scmp.ge.s32.totalorder %s9, 6
    %s19 = sphi 0, %s21
    %s22 = sphi 0, %s19
    %s23 = sphi 0, %s22
    %s39 = sphi 0, %s23
    %s43 = sphi 0, %s43
    %s45 = sphi 0, %s43
    %s46 = sphi 0, %s45
    %s60 = sphi 0, %s46
    %s64 = sphi 0, %s64
    %s66 = sphi 0, %s64
    %s67 = sphi 0, %s66
    %s81 = sphi 0, %s67
    %s87 = sphi 0, %s89
    %s90 = sphi 0, %s87
    %s91 = sphi 0, %s90
    %s107 = sphi 0, %s91
  $region4: #{generator_forward.19} parent=0 // loop_header_branch
    %12 = sbr.rel (%p10) target = $region8
  $region5: #{generator_forward.19} parent=0 // loop_body
    %s14 = ssub.s32 %s9, 1
    %s15 = ssub.s32 %s9, 2
    %s16 = sadd.s32 %s9, 1
    %s17 = ssub.s32 %s9, %s16
    %p18 = scmp.eq.s32.totalorder %s17, 0
    %s20 = sadd.s32 %s19, 1
    %s21 = scalar_select %p18, %s19, %s20
    %p24 = pneg %p18
    %p25 = scmp.eq.s32.totalorder %s9, 3
    %p26 = por %p24, %p25
    %p27 = scmp.ne.s32.totalorder %s19, %s22
    %p28 = scmp.eq.s32.totalorder %s9, 0
    %p29 = por %p27, %p28
    %p30 = scmp.ne.s32.totalorder %s19, %s22
    %p31 = scmp.eq.s32.totalorder %s14, 3
    %p32 = por %p30, %p31
    %p33 = scmp.ne.s32.totalorder %s22, %s23
    %p34 = scmp.eq.s32.totalorder %s14, 0
    %p35 = por %p33, %p34
    %p36 = scmp.ne.s32.totalorder %s22, %s23
    %p37 = scmp.eq.s32.totalorder %s15, 3
    %p38 = por %p36, %p37
    %p40 = scmp.ne.s32.totalorder %s23, %s39
    %p41 = scmp.eq.s32.totalorder %s15, 0
    %p42 = por %p40, %p41
    %s44 = sadd.s32 %s43, 1
    %p47 = scmp.eq.s32.totalorder %s9, 3
    %p48 = scmp.ne.s32.totalorder %s43, %s45
    %p49 = scmp.eq.s32.totalorder %s9, 0
    %p50 = por %p48, %p49
    %p51 = scmp.ne.s32.totalorder %s43, %s45
    %p52 = scmp.eq.s32.totalorder %s14, 3
    %p53 = por %p51, %p52
    %p54 = scmp.ne.s32.totalorder %s45, %s46
    %p55 = scmp.eq.s32.totalorder %s14, 0
    %p56 = por %p54, %p55
    %p57 = scmp.ne.s32.totalorder %s45, %s46
    %p58 = scmp.eq.s32.totalorder %s15, 3
    %p59 = por %p57, %p58
    %p61 = scmp.ne.s32.totalorder %s46, %s60
    %p62 = scmp.eq.s32.totalorder %s15, 0
    %p63 = por %p61, %p62
    %s65 = sadd.s32 %s64, 1
    %p68 = scmp.eq.s32.totalorder %s9, 3
    %p69 = scmp.ne.s32.totalorder %s64, %s66
    %p70 = scmp.eq.s32.totalorder %s9, 0
    %p71 = por %p69, %p70
    %p72 = scmp.ne.s32.totalorder %s64, %s66
    %p73 = scmp.eq.s32.totalorder %s14, 3
    %p74 = por %p72, %p73
    %p75 = scmp.ne.s32.totalorder %s66, %s67
    %p76 = scmp.eq.s32.totalorder %s14, 0
    %p77 = por %p75, %p76
    %p78 = scmp.ne.s32.totalorder %s66, %s67
    %p79 = scmp.eq.s32.totalorder %s15, 3
    %p80 = por %p78, %p79
    %p82 = scmp.ne.s32.totalorder %s67, %s81
    %p83 = scmp.eq.s32.totalorder %s15, 0
    %p84 = por %p82, %p83
    %s85 = ssub.s32 %s9, %s16
    %p86 = scmp.eq.s32.totalorder %s85, 0
    %s88 = sadd.s32 %s87, 1
    %s89 = scalar_select %p86, %s87, %s88
    %p92 = pneg %p86
    %p93 = scmp.eq.s32.totalorder %s9, 3
    %p94 = por %p92, %p93
    %p95 = scmp.ne.s32.totalorder %s87, %s90
    %p96 = scmp.eq.s32.totalorder %s9, 0
    %p97 = por %p95, %p96
    %p98 = scmp.ne.s32.totalorder %s87, %s90
    %p99 = scmp.eq.s32.totalorder %s14, 3
    %p100 = por %p98, %p99
    %p101 = scmp.ne.s32.totalorder %s90, %s91
    %p102 = scmp.eq.s32.totalorder %s14, 0
    %p103 = por %p101, %p102
    %p104 = scmp.ne.s32.totalorder %s90, %s91
    %p105 = scmp.eq.s32.totalorder %s15, 3
    %p106 = por %p104, %p105
    %p108 = scmp.ne.s32.totalorder %s91, %s107
    %p109 = scmp.eq.s32.totalorder %s15, 0
    %p110 = por %p108, %p109
    %p111 = scmp.le.s32.totalorder 1, %s9
    %p112 = scmp.lt.s32.totalorder %s9, 5
    %p113 = pnand %p111, %p112
    %p114 = pneg %p113
    // Predicated region
    $region9: #{generator_forward.19} parent=5 // pred_check
      _
    $region10: #{generator_forward.19} parent=5 // pred_check_branch
      %116 = sbr.rel (%p113) target = $region12
    $region11: #{generator_forward.19} parent=5 // pred_region
      %s117 = ssub.s32 %s9, 1
      // Predicated region
      $region13: #{generator_forward.19} parent=11 // pred_check
        %p118 = pneg %p56
      $region14: #{generator_forward.19} parent=11 // pred_check_branch
        %120 = sbr.rel (%p118) target = $region16
      $region15: #{generator_forward.19} parent=11 // pred_region
        _
      $region16: #{generator_forward.19} parent=11 // pred_fallthru
        _
      // Predicated region
      $region17: #{generator_forward.19} parent=11 // pred_check
        %p121 = pneg %p77
      $region18: #{generator_forward.19} parent=11 // pred_check_branch
        %123 = sbr.rel (%p121) target = $region20
      $region19: #{generator_forward.19} parent=11 // pred_region
        _
      $region20: #{generator_forward.19} parent=11 // pred_fallthru
        _
    $region12: #{generator_forward.19} parent=5 // pred_fallthru
      _
    %p124 = scmp.lt.s32.totalorder %s9, 4
    // Predicated region
    $region21: #{generator_forward.19} parent=5 // pred_check
      %p125 = pneg %p124
    $region22: #{generator_forward.19} parent=5 // pred_check_branch
      %127 = sbr.rel (%p125) target = $region24
    $region23: #{generator_forward.19} parent=5 // pred_region
      // Predicated region
      $region25: #{generator_forward.19} parent=23 // pred_check
        %p128 = pneg %p29
      $region26: #{generator_forward.19} parent=23 // pred_check_branch
        %130 = sbr.rel (%p128) target = $region28
      $region27: #{generator_forward.19} parent=23 // pred_region
        %s131 = smul.u32 64, %s9
        %p132 = scmp.lt.s32.totalorder %s131, 255
        %s133 = scalar_select %p132, %s131, 255
        %s134 = smul.addr %s133, 4
        %s135 = smul.addr %s134, 4
        %s136 = scalar_lea.vmem %s0, %s135
        %s137 = smul.u32 64, %s9
      $region28: #{generator_forward.19} parent=23 // pred_fallthru
        _
    $region24: #{generator_forward.19} parent=5 // pred_fallthru
      _
    %p138 = scmp.le.s32.totalorder 1, %s9
    %p139 = scmp.lt.s32.totalorder %s9, 5
    %p140 = pnand %p138, %p139
    %p141 = pneg %p140
    // Predicated region
    $region29: #{generator_forward.19} parent=5 // pred_check
      _
    $region30: #{generator_forward.19} parent=5 // pred_check_branch
      %143 = sbr.rel (%p140) target = $region32
    $region31: #{generator_forward.19} parent=5 // pred_region
      %s144 = ssub.s32 %s9, 1
      %s145 = smul.u32 64, %s14
      %p146 = scmp.lt.s32.totalorder %s145, 255
      %s147 = scalar_select %p146, %s145, 255
      %s148 = smul.addr %s147, 4
      %s149 = smul.addr %s148, 4
      %s150 = scalar_lea.vmem %s0, %s149
      %p151 = pneg %p35
      %p152 = pneg %p32
      %p153 = pneg %p56
      %p154 = pneg %p53
      %p155 = pneg %p77
      %p156 = pneg %p74
      %p157 = pneg %p103
      %p158 = pneg %p100
      %s159 = smul.u32 64, %s14
      %p160 = scmp.lt.s32.totalorder %s159, 255
      %s161 = scalar_select %p160, %s159, 255
      %s162 = smul.addr %s161, 4
      %s163 = scalar_lea.vmem %s3, %s162
      %s164 = smul.u32 64, %s14
      %p165 = scmp.lt.s32.totalorder %s164, 255
      %s166 = scalar_select %p165, %s164, 255
      %s167 = smul.addr %s166, 4
      %s168 = smul.addr %s167, 4
      %s169 = scalar_lea.vmem %s0, %s168
      %s170 = smul.u32 64, %s14
      %s171 = smul.u32 64, %s14
      %p172 = scmp.lt.s32.totalorder %s171, 255
      %s173 = scalar_select %p172, %s171, 255
      %s174 = smul.addr %s173, 4
      %s175 = scalar_lea.vmem %s3, %s174
      %s176 = smul.u32 64, %s14
      %v178 = vld [vmem:[%s169] sm:$0xff]
      %v179 = vld [vmem:[%s169 + $0x8] sm:$0xff]
      %v180 = vld [vmem:[%s169 + $0x10] sm:$0xff]
      %v181 = vld [vmem:[%s169 + $0x18] sm:$0xff]
      %v182 = vld [vmem:[%s169 + $0x20] sm:$0xff]
      %v183 = vld [vmem:[%s169 + $0x28] sm:$0xff]
      %v184 = vld [vmem:[%s169 + $0x30] sm:$0xff]
      %v185 = vld [vmem:[%s169 + $0x38] sm:$0xff]
      %v186 = vld [vmem:[%s169 + $0x40] sm:$0xff]
      %v187 = vld [vmem:[%s169 + $0x48] sm:$0xff]
      %v188 = vld [vmem:[%s169 + $0x50] sm:$0xff]
      %v189 = vld [vmem:[%s169 + $0x58] sm:$0xff]
      %v190 = vld [vmem:[%s169 + $0x60] sm:$0xff]
      %v191 = vld [vmem:[%s169 + $0x68] sm:$0xff]
      %v192 = vld [vmem:[%s169 + $0x70] sm:$0xff]
      %v193 = vld [vmem:[%s169 + $0x78] sm:$0xff]
      %v194 = vld [vmem:[%s169 + $0x80] sm:$0xff]
      %v195 = vld [vmem:[%s169 + $0x88] sm:$0xff]
      %v196 = vld [vmem:[%s169 + $0x90] sm:$0xff]
      %v197 = vld [vmem:[%s169 + $0x98] sm:$0xff]
      %v198 = vld [vmem:[%s169 + $0xa0] sm:$0xff]
      %v199 = vld [vmem:[%s169 + $0xa8] sm:$0xff]
      %v200 = vld [vmem:[%s169 + $0xb0] sm:$0xff]
      %v201 = vld [vmem:[%s169 + $0xb8] sm:$0xff]
      %v202 = vld [vmem:[%s169 + $0xc0] sm:$0xff]
      %v203 = vld [vmem:[%s169 + $0xc8] sm:$0xff]
      %v204 = vld [vmem:[%s169 + $0xd0] sm:$0xff]
      %v205 = vld [vmem:[%s169 + $0xd8] sm:$0xff]
      %v206 = vld [vmem:[%s169 + $0xe0] sm:$0xff]
      %v207 = vld [vmem:[%s169 + $0xe8] sm:$0xff]
      %v208 = vld [vmem:[%s169 + $0xf0] sm:$0xff]
      %v209 = vld [vmem:[%s169 + $0xf8] sm:$0xff]
      %v210 = vld [vmem:[%s169 + $0x100] sm:$0xff]
      %v211 = vld [vmem:[%s169 + $0x108] sm:$0xff]
      %v212 = vld [vmem:[%s169 + $0x110] sm:$0xff]
      %v213 = vld [vmem:[%s169 + $0x118] sm:$0xff]
      %v214 = vld [vmem:[%s169 + $0x120] sm:$0xff]
      %v215 = vld [vmem:[%s169 + $0x128] sm:$0xff]
      %v216 = vld [vmem:[%s169 + $0x130] sm:$0xff]
      %v217 = vld [vmem:[%s169 + $0x138] sm:$0xff]
      %v218 = vld [vmem:[%s169 + $0x140] sm:$0xff]
      %v219 = vld [vmem:[%s169 + $0x148] sm:$0xff]
      %v220 = vld [vmem:[%s169 + $0x150] sm:$0xff]
      %v221 = vld [vmem:[%s169 + $0x158] sm:$0xff]
      %v222 = vld [vmem:[%s169 + $0x160] sm:$0xff]
      %v223 = vld [vmem:[%s169 + $0x168] sm:$0xff]
      %v224 = vld [vmem:[%s169 + $0x170] sm:$0xff]
      %v225 = vld [vmem:[%s169 + $0x178] sm:$0xff]
      %v226 = vld [vmem:[%s169 + $0x180] sm:$0xff]
      %v227 = vld [vmem:[%s169 + $0x188] sm:$0xff]
      %v228 = vld [vmem:[%s169 + $0x190] sm:$0xff]
      %v229 = vld [vmem:[%s169 + $0x198] sm:$0xff]
      %v230 = vld [vmem:[%s169 + $0x1a0] sm:$0xff]
      %v231 = vld [vmem:[%s169 + $0x1a8] sm:$0xff]
      %v232 = vld [vmem:[%s169 + $0x1b0] sm:$0xff]
      %v233 = vld [vmem:[%s169 + $0x1b8] sm:$0xff]
      %v234 = vld [vmem:[%s169 + $0x1c0] sm:$0xff]
      %v235 = vld [vmem:[%s169 + $0x1c8] sm:$0xff]
      %v236 = vld [vmem:[%s169 + $0x1d0] sm:$0xff]
      %v237 = vld [vmem:[%s169 + $0x1d8] sm:$0xff]
      %v238 = vld [vmem:[%s169 + $0x1e0] sm:$0xff]
      %v239 = vld [vmem:[%s169 + $0x1e8] sm:$0xff]
      %v240 = vld [vmem:[%s169 + $0x1f0] sm:$0xff]
      %v241 = vld [vmem:[%s169 + $0x1f8] sm:$0xff]
      %v242 = vld [vmem:[%s169 + $0x200] sm:$0xff]
      %v243 = vld [vmem:[%s169 + $0x208] sm:$0xff]
      %v244 = vld [vmem:[%s169 + $0x210] sm:$0xff]
      %v245 = vld [vmem:[%s169 + $0x218] sm:$0xff]
      %v246 = vld [vmem:[%s169 + $0x220] sm:$0xff]
      %v247 = vld [vmem:[%s169 + $0x228] sm:$0xff]
      %v248 = vld [vmem:[%s169 + $0x230] sm:$0xff]
      %v249 = vld [vmem:[%s169 + $0x238] sm:$0xff]
      %v250 = vld [vmem:[%s169 + $0x240] sm:$0xff]
      %v251 = vld [vmem:[%s169 + $0x248] sm:$0xff]
      %v252 = vld [vmem:[%s169 + $0x250] sm:$0xff]
      %v253 = vld [vmem:[%s169 + $0x258] sm:$0xff]
      %v254 = vld [vmem:[%s169 + $0x260] sm:$0xff]
      %v255 = vld [vmem:[%s169 + $0x268] sm:$0xff]
      %v256 = vld [vmem:[%s169 + $0x270] sm:$0xff]
      %v257 = vld [vmem:[%s169 + $0x278] sm:$0xff]
      %v258 = vld [vmem:[%s169 + $0x280] sm:$0xff]
      %v259 = vld [vmem:[%s169 + $0x288] sm:$0xff]
      %v260 = vld [vmem:[%s169 + $0x290] sm:$0xff]
      %v261 = vld [vmem:[%s169 + $0x298] sm:$0xff]
      %v262 = vld [vmem:[%s169 + $0x2a0] sm:$0xff]
      %v263 = vld [vmem:[%s169 + $0x2a8] sm:$0xff]
      %v264 = vld [vmem:[%s169 + $0x2b0] sm:$0xff]
      %v265 = vld [vmem:[%s169 + $0x2b8] sm:$0xff]
      %v266 = vld [vmem:[%s169 + $0x2c0] sm:$0xff]
      %v267 = vld [vmem:[%s169 + $0x2c8] sm:$0xff]
      %v268 = vld [vmem:[%s169 + $0x2d0] sm:$0xff]
      %v269 = vld [vmem:[%s169 + $0x2d8] sm:$0xff]
      %v270 = vld [vmem:[%s169 + $0x2e0] sm:$0xff]
      %v271 = vld [vmem:[%s169 + $0x2e8] sm:$0xff]
      %v272 = vld [vmem:[%s169 + $0x2f0] sm:$0xff]
      %v273 = vld [vmem:[%s169 + $0x2f8] sm:$0xff]
      %v274 = vld [vmem:[%s169 + $0x300] sm:$0xff]
      %v275 = vld [vmem:[%s169 + $0x308] sm:$0xff]
      %v276 = vld [vmem:[%s169 + $0x310] sm:$0xff]
      %v277 = vld [vmem:[%s169 + $0x318] sm:$0xff]
      %v278 = vld [vmem:[%s169 + $0x320] sm:$0xff]
      %v279 = vld [vmem:[%s169 + $0x328] sm:$0xff]
      %v280 = vld [vmem:[%s169 + $0x330] sm:$0xff]
      %v281 = vld [vmem:[%s169 + $0x338] sm:$0xff]
      %v282 = vld [vmem:[%s169 + $0x340] sm:$0xff]
      %v283 = vld [vmem:[%s169 + $0x348] sm:$0xff]
      %v284 = vld [vmem:[%s169 + $0x350] sm:$0xff]
      %v285 = vld [vmem:[%s169 + $0x358] sm:$0xff]
      %v286 = vld [vmem:[%s169 + $0x360] sm:$0xff]
      %v287 = vld [vmem:[%s169 + $0x368] sm:$0xff]
      %v288 = vld [vmem:[%s169 + $0x370] sm:$0xff]
      %v289 = vld [vmem:[%s169 + $0x378] sm:$0xff]
      %v290 = vld [vmem:[%s169 + $0x380] sm:$0xff]
      %v291 = vld [vmem:[%s169 + $0x388] sm:$0xff]
      %v292 = vld [vmem:[%s169 + $0x390] sm:$0xff]
      %v293 = vld [vmem:[%s169 + $0x398] sm:$0xff]
      %v294 = vld [vmem:[%s169 + $0x3a0] sm:$0xff]
      %v295 = vld [vmem:[%s169 + $0x3a8] sm:$0xff]
      %v296 = vld [vmem:[%s169 + $0x3b0] sm:$0xff]
      %v297 = vld [vmem:[%s169 + $0x3b8] sm:$0xff]
      %v298 = vld [vmem:[%s169 + $0x3c0] sm:$0xff]
      %v299 = vld [vmem:[%s169 + $0x3c8] sm:$0xff]
      %v300 = vld [vmem:[%s169 + $0x3d0] sm:$0xff]
      %v301 = vld [vmem:[%s169 + $0x3d8] sm:$0xff]
      %v302 = vld [vmem:[%s169 + $0x3e0] sm:$0xff]
      %v303 = vld [vmem:[%s169 + $0x3e8] sm:$0xff]
      %v304 = vld [vmem:[%s169 + $0x3f0] sm:$0xff]
      %v305 = vld [vmem:[%s169 + $0x3f8] sm:$0xff]
      %v306 = vld [vmem:[%s1] sm:$0xf]
      %v307 = vld [vmem:[%s1 + $0x4] sm:$0xf]
      %v308 = vld [vmem:[%s1 + $0x8] sm:$0xf]
      %v309 = vld [vmem:[%s1 + $0xc] sm:$0xf]
      %v310 = vld [vmem:[%s1 + $0x10] sm:$0xf]
      %v311 = vld [vmem:[%s1 + $0x14] sm:$0xf]
      %v312 = vld [vmem:[%s1 + $0x18] sm:$0xf]
      %v313 = vld [vmem:[%s1 + $0x1c] sm:$0xf]
      %v314 = vld [vmem:[%s1 + $0x20] sm:$0xf]
      %v315 = vld [vmem:[%s1 + $0x24] sm:$0xf]
      %v316 = vld [vmem:[%s1 + $0x28] sm:$0xf]
      %v317 = vld [vmem:[%s1 + $0x2c] sm:$0xf]
      %v318 = vld [vmem:[%s1 + $0x30] sm:$0xf]
      %v319 = vld [vmem:[%s1 + $0x34] sm:$0xf]
      %v320 = vld [vmem:[%s1 + $0x38] sm:$0xf]
      %v321 = vld [vmem:[%s1 + $0x3c] sm:$0xf]
      %v322 = vld [vmem:[%s1 + $0x40] sm:$0xf]
      %v323 = vld [vmem:[%s1 + $0x44] sm:$0xf]
      %v324 = vld [vmem:[%s1 + $0x48] sm:$0xf]
      %v325 = vld [vmem:[%s1 + $0x4c] sm:$0xf]
      %v326 = vld [vmem:[%s1 + $0x50] sm:$0xf]
      %v327 = vld [vmem:[%s1 + $0x54] sm:$0xf]
      %v328 = vld [vmem:[%s1 + $0x58] sm:$0xf]
      %v329 = vld [vmem:[%s1 + $0x5c] sm:$0xf]
      %v330 = vld [vmem:[%s1 + $0x60] sm:$0xf]
      %v331 = vld [vmem:[%s1 + $0x64] sm:$0xf]
      %v332 = vld [vmem:[%s1 + $0x68] sm:$0xf]
      %v333 = vld [vmem:[%s1 + $0x6c] sm:$0xf]
      %v334 = vld [vmem:[%s1 + $0x70] sm:$0xf]
      %v335 = vld [vmem:[%s1 + $0x74] sm:$0xf]
      %v336 = vld [vmem:[%s1 + $0x78] sm:$0xf]
      %v337 = vld [vmem:[%s1 + $0x7c] sm:$0xf]
      %v338 = vld [vmem:[%s1 + $0x80] sm:$0xf]
      %v339 = vld [vmem:[%s1 + $0x84] sm:$0xf]
      %v340 = vld [vmem:[%s1 + $0x88] sm:$0xf]
      %v341 = vld [vmem:[%s1 + $0x8c] sm:$0xf]
      %v342 = vld [vmem:[%s1 + $0x90] sm:$0xf]
      %v343 = vld [vmem:[%s1 + $0x94] sm:$0xf]
      %v344 = vld [vmem:[%s1 + $0x98] sm:$0xf]
      %v345 = vld [vmem:[%s1 + $0x9c] sm:$0xf]
      %v346 = vld [vmem:[%s1 + $0xa0] sm:$0xf]
      %v347 = vld [vmem:[%s1 + $0xa4] sm:$0xf]
      %v348 = vld [vmem:[%s1 + $0xa8] sm:$0xf]
      %v349 = vld [vmem:[%s1 + $0xac] sm:$0xf]
      %v350 = vld [vmem:[%s1 + $0xb0] sm:$0xf]
      %v351 = vld [vmem:[%s1 + $0xb4] sm:$0xf]
      %v352 = vld [vmem:[%s1 + $0xb8] sm:$0xf]
      %v353 = vld [vmem:[%s1 + $0xbc] sm:$0xf]
      %v354 = vld [vmem:[%s1 + $0xc0] sm:$0xf]
      %v355 = vld [vmem:[%s2] sm:$0x1]
      %v357 = vlaneseq
      %v358 = vshrl.u32 %v357, 7
      %v359 = vsub.s32 0, %v358
      %v360 = vrot.slane %v355, %v359
      %v490 = vunpack.c.l.b16 %v178
      %v491 = vunpack.c.h.b16 %v178
      %v492 = vunpack.c.l.b16 %v179
      %v493 = vunpack.c.h.b16 %v179
      %v494 = vunpack.c.l.b16 %v180
      %v495 = vunpack.c.h.b16 %v180
      %v496 = vunpack.c.l.b16 %v181
      %v497 = vunpack.c.h.b16 %v181
      %v498 = vunpack.c.l.b16 %v182
      %v499 = vunpack.c.h.b16 %v182
      %v500 = vunpack.c.l.b16 %v183
      %v501 = vunpack.c.h.b16 %v183
      %v502 = vunpack.c.l.b16 %v184
      %v503 = vunpack.c.h.b16 %v184
      %v504 = vunpack.c.l.b16 %v185
      %v505 = vunpack.c.h.b16 %v185
      %v506 = vunpack.c.l.b16 %v186
      %v507 = vunpack.c.h.b16 %v186
      %v508 = vunpack.c.l.b16 %v187
      %v509 = vunpack.c.h.b16 %v187
      %v510 = vunpack.c.l.b16 %v188
      %v511 = vunpack.c.h.b16 %v188
      %v512 = vunpack.c.l.b16 %v189
      %v513 = vunpack.c.h.b16 %v189
      %v514 = vunpack.c.l.b16 %v190
      %v515 = vunpack.c.h.b16 %v190
      %v516 = vunpack.c.l.b16 %v191
      %v517 = vunpack.c.h.b16 %v191
      %v518 = vunpack.c.l.b16 %v192
      %v519 = vunpack.c.h.b16 %v192
      %v520 = vunpack.c.l.b16 %v193
      %v521 = vunpack.c.h.b16 %v193
      %v522 = vunpack.c.l.b16 %v194
      %v523 = vunpack.c.h.b16 %v194
      %v524 = vunpack.c.l.b16 %v195
      %v525 = vunpack.c.h.b16 %v195
      %v526 = vunpack.c.l.b16 %v196
      %v527 = vunpack.c.h.b16 %v196
      %v528 = vunpack.c.l.b16 %v197
      %v529 = vunpack.c.h.b16 %v197
      %v530 = vunpack.c.l.b16 %v198
      %v531 = vunpack.c.h.b16 %v198
      %v532 = vunpack.c.l.b16 %v199
      %v533 = vunpack.c.h.b16 %v199
      %v534 = vunpack.c.l.b16 %v200
      %v535 = vunpack.c.h.b16 %v200
      %v536 = vunpack.c.l.b16 %v201
      %v537 = vunpack.c.h.b16 %v201
      %v538 = vunpack.c.l.b16 %v202
      %v539 = vunpack.c.h.b16 %v202
      %v540 = vunpack.c.l.b16 %v203
      %v541 = vunpack.c.h.b16 %v203
      %v542 = vunpack.c.l.b16 %v204
      %v543 = vunpack.c.h.b16 %v204
      %v544 = vunpack.c.l.b16 %v205
      %v545 = vunpack.c.h.b16 %v205
      %v546 = vunpack.c.l.b16 %v206
      %v547 = vunpack.c.h.b16 %v206
      %v548 = vunpack.c.l.b16 %v207
      %v549 = vunpack.c.h.b16 %v207
      %v550 = vunpack.c.l.b16 %v208
      %v551 = vunpack.c.h.b16 %v208
      %v552 = vunpack.c.l.b16 %v209
      %v553 = vunpack.c.h.b16 %v209
      %v554 = vunpack.c.l.b16 %v210
      %v555 = vunpack.c.h.b16 %v210
      %v556 = vunpack.c.l.b16 %v211
      %v557 = vunpack.c.h.b16 %v211
      %v558 = vunpack.c.l.b16 %v212
      %v559 = vunpack.c.h.b16 %v212
      %v560 = vunpack.c.l.b16 %v213
      %v561 = vunpack.c.h.b16 %v213
      %v562 = vunpack.c.l.b16 %v214
      %v563 = vunpack.c.h.b16 %v214
      %v564 = vunpack.c.l.b16 %v215
      %v565 = vunpack.c.h.b16 %v215
      %v566 = vunpack.c.l.b16 %v216
      %v567 = vunpack.c.h.b16 %v216
      %v568 = vunpack.c.l.b16 %v217
      %v569 = vunpack.c.h.b16 %v217
      %v570 = vunpack.c.l.b16 %v218
      %v571 = vunpack.c.h.b16 %v218
      %v572 = vunpack.c.l.b16 %v219
      %v573 = vunpack.c.h.b16 %v219
      %v574 = vunpack.c.l.b16 %v220
      %v575 = vunpack.c.h.b16 %v220
      %v576 = vunpack.c.l.b16 %v221
      %v577 = vunpack.c.h.b16 %v221
      %v578 = vunpack.c.l.b16 %v222
      %v579 = vunpack.c.h.b16 %v222
      %v580 = vunpack.c.l.b16 %v223
      %v581 = vunpack.c.h.b16 %v223
      %v582 = vunpack.c.l.b16 %v224
      %v583 = vunpack.c.h.b16 %v224
      %v584 = vunpack.c.l.b16 %v225
      %v585 = vunpack.c.h.b16 %v225
      %v586 = vunpack.c.l.b16 %v226
      %v587 = vunpack.c.h.b16 %v226
      %v588 = vunpack.c.l.b16 %v227
      %v589 = vunpack.c.h.b16 %v227
      %v590 = vunpack.c.l.b16 %v228
      %v591 = vunpack.c.h.b16 %v228
      %v592 = vunpack.c.l.b16 %v229
      %v593 = vunpack.c.h.b16 %v229
      %v594 = vunpack.c.l.b16 %v230
      %v595 = vunpack.c.h.b16 %v230
      %v596 = vunpack.c.l.b16 %v231
      %v597 = vunpack.c.h.b16 %v231
      %v598 = vunpack.c.l.b16 %v232
      %v599 = vunpack.c.h.b16 %v232
      %v600 = vunpack.c.l.b16 %v233
      %v601 = vunpack.c.h.b16 %v233
      %v602 = vunpack.c.l.b16 %v234
      %v603 = vunpack.c.h.b16 %v234
      %v604 = vunpack.c.l.b16 %v235
      %v605 = vunpack.c.h.b16 %v235
      %v606 = vunpack.c.l.b16 %v236
      %v607 = vunpack.c.h.b16 %v236
      %v608 = vunpack.c.l.b16 %v237
      %v609 = vunpack.c.h.b16 %v237
      %v610 = vunpack.c.l.b16 %v238
      %v611 = vunpack.c.h.b16 %v238
      %v612 = vunpack.c.l.b16 %v239
      %v613 = vunpack.c.h.b16 %v239
      %v614 = vunpack.c.l.b16 %v240
      %v615 = vunpack.c.h.b16 %v240
      %v616 = vunpack.c.l.b16 %v241
      %v617 = vunpack.c.h.b16 %v241
      %v618 = vunpack.c.l.b16 %v242
      %v619 = vunpack.c.h.b16 %v242
      %v620 = vunpack.c.l.b16 %v243
      %v621 = vunpack.c.h.b16 %v243
      %v622 = vunpack.c.l.b16 %v244
      %v623 = vunpack.c.h.b16 %v244
      %v624 = vunpack.c.l.b16 %v245
      %v625 = vunpack.c.h.b16 %v245
      %v626 = vunpack.c.l.b16 %v246
      %v627 = vunpack.c.h.b16 %v246
      %v628 = vunpack.c.l.b16 %v247
      %v629 = vunpack.c.h.b16 %v247
      %v630 = vunpack.c.l.b16 %v248
      %v631 = vunpack.c.h.b16 %v248
      %v632 = vunpack.c.l.b16 %v249
      %v633 = vunpack.c.h.b16 %v249
      %v634 = vunpack.c.l.b16 %v250
      %v635 = vunpack.c.h.b16 %v250
      %v636 = vunpack.c.l.b16 %v251
      %v637 = vunpack.c.h.b16 %v251
      %v638 = vunpack.c.l.b16 %v252
      %v639 = vunpack.c.h.b16 %v252
      %v640 = vunpack.c.l.b16 %v253
      %v641 = vunpack.c.h.b16 %v253
      %v642 = vunpack.c.l.b16 %v254
      %v643 = vunpack.c.h.b16 %v254
      %v644 = vunpack.c.l.b16 %v255
      %v645 = vunpack.c.h.b16 %v255
      %v646 = vunpack.c.l.b16 %v256
      %v647 = vunpack.c.h.b16 %v256
      %v648 = vunpack.c.l.b16 %v257
      %v649 = vunpack.c.h.b16 %v257
      %v650 = vunpack.c.l.b16 %v258
      %v651 = vunpack.c.h.b16 %v258
      %v652 = vunpack.c.l.b16 %v259
      %v653 = vunpack.c.h.b16 %v259
      %v654 = vunpack.c.l.b16 %v260
      %v655 = vunpack.c.h.b16 %v260
      %v656 = vunpack.c.l.b16 %v261
      %v657 = vunpack.c.h.b16 %v261
      %v658 = vunpack.c.l.b16 %v262
      %v659 = vunpack.c.h.b16 %v262
      %v660 = vunpack.c.l.b16 %v263
      %v661 = vunpack.c.h.b16 %v263
      %v662 = vunpack.c.l.b16 %v264
      %v663 = vunpack.c.h.b16 %v264
      %v664 = vunpack.c.l.b16 %v265
      %v665 = vunpack.c.h.b16 %v265
      %v666 = vunpack.c.l.b16 %v266
      %v667 = vunpack.c.h.b16 %v266
      %v668 = vunpack.c.l.b16 %v267
      %v669 = vunpack.c.h.b16 %v267
      %v670 = vunpack.c.l.b16 %v268
      %v671 = vunpack.c.h.b16 %v268
      %v672 = vunpack.c.l.b16 %v269
      %v673 = vunpack.c.h.b16 %v269
      %v674 = vunpack.c.l.b16 %v270
      %v675 = vunpack.c.h.b16 %v270
      %v676 = vunpack.c.l.b16 %v271
      %v677 = vunpack.c.h.b16 %v271
      %v678 = vunpack.c.l.b16 %v272
      %v679 = vunpack.c.h.b16 %v272
      %v680 = vunpack.c.l.b16 %v273
      %v681 = vunpack.c.h.b16 %v273
      %v682 = vunpack.c.l.b16 %v274
      %v683 = vunpack.c.h.b16 %v274
      %v684 = vunpack.c.l.b16 %v275
      %v685 = vunpack.c.h.b16 %v275
      %v686 = vunpack.c.l.b16 %v276
      %v687 = vunpack.c.h.b16 %v276
      %v688 = vunpack.c.l.b16 %v277
      %v689 = vunpack.c.h.b16 %v277
      %v690 = vunpack.c.l.b16 %v278
      %v691 = vunpack.c.h.b16 %v278
      %v692 = vunpack.c.l.b16 %v279
      %v693 = vunpack.c.h.b16 %v279
      %v694 = vunpack.c.l.b16 %v280
      %v695 = vunpack.c.h.b16 %v280
      %v696 = vunpack.c.l.b16 %v281
      %v697 = vunpack.c.h.b16 %v281
      %v698 = vunpack.c.l.b16 %v282
      %v699 = vunpack.c.h.b16 %v282
      %v700 = vunpack.c.l.b16 %v283
      %v701 = vunpack.c.h.b16 %v283
      %v702 = vunpack.c.l.b16 %v284
      %v703 = vunpack.c.h.b16 %v284
      %v704 = vunpack.c.l.b16 %v285
      %v705 = vunpack.c.h.b16 %v285
      %v706 = vunpack.c.l.b16 %v286
      %v707 = vunpack.c.h.b16 %v286
      %v708 = vunpack.c.l.b16 %v287
      %v709 = vunpack.c.h.b16 %v287
      %v710 = vunpack.c.l.b16 %v288
      %v711 = vunpack.c.h.b16 %v288
      %v712 = vunpack.c.l.b16 %v289
      %v713 = vunpack.c.h.b16 %v289
      %v714 = vunpack.c.l.b16 %v290
      %v715 = vunpack.c.h.b16 %v290
      %v716 = vunpack.c.l.b16 %v291
      %v717 = vunpack.c.h.b16 %v291
      %v718 = vunpack.c.l.b16 %v292
      %v719 = vunpack.c.h.b16 %v292
      %v720 = vunpack.c.l.b16 %v293
      %v721 = vunpack.c.h.b16 %v293
      %v722 = vunpack.c.l.b16 %v294
      %v723 = vunpack.c.h.b16 %v294
      %v724 = vunpack.c.l.b16 %v295
      %v725 = vunpack.c.h.b16 %v295
      %v726 = vunpack.c.l.b16 %v296
      %v727 = vunpack.c.h.b16 %v296
      %v728 = vunpack.c.l.b16 %v297
      %v729 = vunpack.c.h.b16 %v297
      %v730 = vunpack.c.l.b16 %v298
      %v731 = vunpack.c.h.b16 %v298
      %v732 = vunpack.c.l.b16 %v299
      %v733 = vunpack.c.h.b16 %v299
      %v734 = vunpack.c.l.b16 %v300
      %v735 = vunpack.c.h.b16 %v300
      %v736 = vunpack.c.l.b16 %v301
      %v737 = vunpack.c.h.b16 %v301
      %v738 = vunpack.c.l.b16 %v302
      %v739 = vunpack.c.h.b16 %v302
      %v740 = vunpack.c.l.b16 %v303
      %v741 = vunpack.c.h.b16 %v303
      %v742 = vunpack.c.l.b16 %v304
      %v743 = vunpack.c.h.b16 %v304
      %v744 = vunpack.c.l.b16 %v305
      %v745 = vunpack.c.h.b16 %v305
      %v746 = vpack.c.b16 %v494, %v490
      %v747 = vpack.c.b16 %v495, %v491
      %v748 = vpack.c.b16 %v496, %v492
      %v749 = vpack.c.b16 %v497, %v493
      %v750 = vpack.c.b16 %v502, %v498
      %v751 = vpack.c.b16 %v503, %v499
      %v752 = vpack.c.b16 %v504, %v500
      %v753 = vpack.c.b16 %v505, %v501
      %v754 = vpack.c.b16 %v510, %v506
      %v755 = vpack.c.b16 %v511, %v507
      %v756 = vpack.c.b16 %v512, %v508
      %v757 = vpack.c.b16 %v513, %v509
      %v758 = vpack.c.b16 %v518, %v514
      %v759 = vpack.c.b16 %v519, %v515
      %v760 = vpack.c.b16 %v520, %v516
      %v761 = vpack.c.b16 %v521, %v517
      %v762 = vpack.c.b16 %v526, %v522
      %v763 = vpack.c.b16 %v527, %v523
      %v764 = vpack.c.b16 %v528, %v524
      %v765 = vpack.c.b16 %v529, %v525
      %v766 = vpack.c.b16 %v534, %v530
      %v767 = vpack.c.b16 %v535, %v531
      %v768 = vpack.c.b16 %v536, %v532
      %v769 = vpack.c.b16 %v537, %v533
      %v770 = vpack.c.b16 %v542, %v538
      %v771 = vpack.c.b16 %v543, %v539
      %v772 = vpack.c.b16 %v544, %v540
      %v773 = vpack.c.b16 %v545, %v541
      %v774 = vpack.c.b16 %v550, %v546
      %v775 = vpack.c.b16 %v551, %v547
      %v776 = vpack.c.b16 %v552, %v548
      %v777 = vpack.c.b16 %v553, %v549
      %v778 = vpack.c.b16 %v558, %v554
      %v779 = vpack.c.b16 %v559, %v555
      %v780 = vpack.c.b16 %v560, %v556
      %v781 = vpack.c.b16 %v561, %v557
      %v782 = vpack.c.b16 %v566, %v562
      %v783 = vpack.c.b16 %v567, %v563
      %v784 = vpack.c.b16 %v568, %v564
      %v785 = vpack.c.b16 %v569, %v565
      %v786 = vpack.c.b16 %v574, %v570
      %v787 = vpack.c.b16 %v575, %v571
      %v788 = vpack.c.b16 %v576, %v572
      %v789 = vpack.c.b16 %v577, %v573
      %v790 = vpack.c.b16 %v582, %v578
      %v791 = vpack.c.b16 %v583, %v579
      %v792 = vpack.c.b16 %v584, %v580
      %v793 = vpack.c.b16 %v585, %v581
      %v794 = vpack.c.b16 %v590, %v586
      %v795 = vpack.c.b16 %v591, %v587
      %v796 = vpack.c.b16 %v592, %v588
      %v797 = vpack.c.b16 %v593, %v589
      %v798 = vpack.c.b16 %v598, %v594
      %v799 = vpack.c.b16 %v599, %v595
      %v800 = vpack.c.b16 %v600, %v596
      %v801 = vpack.c.b16 %v601, %v597
      %v802 = vpack.c.b16 %v606, %v602
      %v803 = vpack.c.b16 %v607, %v603
      %v804 = vpack.c.b16 %v608, %v604
      %v805 = vpack.c.b16 %v609, %v605
      %v806 = vpack.c.b16 %v614, %v610
      %v807 = vpack.c.b16 %v615, %v611
      %v808 = vpack.c.b16 %v616, %v612
      %v809 = vpack.c.b16 %v617, %v613
      %v810 = vpack.c.b16 %v622, %v618
      %v811 = vpack.c.b16 %v623, %v619
      %v812 = vpack.c.b16 %v624, %v620
      %v813 = vpack.c.b16 %v625, %v621
      %v814 = vpack.c.b16 %v630, %v626
      %v815 = vpack.c.b16 %v631, %v627
      %v816 = vpack.c.b16 %v632, %v628
      %v817 = vpack.c.b16 %v633, %v629
      %v818 = vpack.c.b16 %v638, %v634
      %v819 = vpack.c.b16 %v639, %v635
      %v820 = vpack.c.b16 %v640, %v636
      %v821 = vpack.c.b16 %v641, %v637
      %v822 = vpack.c.b16 %v646, %v642
      %v823 = vpack.c.b16 %v647, %v643
      %v824 = vpack.c.b16 %v648, %v644
      %v825 = vpack.c.b16 %v649, %v645
      %v826 = vpack.c.b16 %v654, %v650
      %v827 = vpack.c.b16 %v655, %v651
      %v828 = vpack.c.b16 %v656, %v652
      %v829 = vpack.c.b16 %v657, %v653
      %v830 = vpack.c.b16 %v662, %v658
      %v831 = vpack.c.b16 %v663, %v659
      %v832 = vpack.c.b16 %v664, %v660
      %v833 = vpack.c.b16 %v665, %v661
      %v834 = vpack.c.b16 %v670, %v666
      %v835 = vpack.c.b16 %v671, %v667
      %v836 = vpack.c.b16 %v672, %v668
      %v837 = vpack.c.b16 %v673, %v669
      %v838 = vpack.c.b16 %v678, %v674
      %v839 = vpack.c.b16 %v679, %v675
      %v840 = vpack.c.b16 %v680, %v676
      %v841 = vpack.c.b16 %v681, %v677
      %v842 = vpack.c.b16 %v686, %v682
      %v843 = vpack.c.b16 %v687, %v683
      %v844 = vpack.c.b16 %v688, %v684
      %v845 = vpack.c.b16 %v689, %v685
      %v846 = vpack.c.b16 %v694, %v690
      %v847 = vpack.c.b16 %v695, %v691
      %v848 = vpack.c.b16 %v696, %v692
      %v849 = vpack.c.b16 %v697, %v693
      %v850 = vpack.c.b16 %v702, %v698
      %v851 = vpack.c.b16 %v703, %v699
      %v852 = vpack.c.b16 %v704, %v700
      %v853 = vpack.c.b16 %v705, %v701
      %v854 = vpack.c.b16 %v710, %v706
      %v855 = vpack.c.b16 %v711, %v707
      %v856 = vpack.c.b16 %v712, %v708
      %v857 = vpack.c.b16 %v713, %v709
      %v858 = vpack.c.b16 %v718, %v714
      %v859 = vpack.c.b16 %v719, %v715
      %v860 = vpack.c.b16 %v720, %v716
      %v861 = vpack.c.b16 %v721, %v717
      %v862 = vpack.c.b16 %v726, %v722
      %v863 = vpack.c.b16 %v727, %v723
      %v864 = vpack.c.b16 %v728, %v724
      %v865 = vpack.c.b16 %v729, %v725
      %v866 = vpack.c.b16 %v734, %v730
      %v867 = vpack.c.b16 %v735, %v731
      %v868 = vpack.c.b16 %v736, %v732
      %v869 = vpack.c.b16 %v737, %v733
      %v870 = vpack.c.b16 %v742, %v738
      %v871 = vpack.c.b16 %v743, %v739
      %v872 = vpack.c.b16 %v744, %v740
      %v873 = vpack.c.b16 %v745, %v741
      %v1019 = vunpack.c.l.b16 %v306
      %v1020 = vunpack.c.l.b16 %v307
      %v1021 = vunpack.c.l.b16 %v308
      %v1022 = vunpack.c.l.b16 %v309
      %v1023 = vunpack.c.l.b16 %v310
      %v1024 = vunpack.c.l.b16 %v311
      %v1025 = vunpack.c.l.b16 %v312
      %v1026 = vunpack.c.l.b16 %v313
      %v1027 = vunpack.c.l.b16 %v314
      %v1028 = vunpack.c.l.b16 %v315
      %v1029 = vunpack.c.l.b16 %v316
      %v1030 = vunpack.c.l.b16 %v317
      %v1031 = vunpack.c.l.b16 %v318
      %v1032 = vunpack.c.l.b16 %v319
      %v1033 = vunpack.c.l.b16 %v320
      %v1034 = vunpack.c.l.b16 %v321
      %v1035 = vunpack.c.l.b16 %v322
      %v1036 = vunpack.c.l.b16 %v323
      %v1037 = vunpack.c.l.b16 %v324
      %v1038 = vunpack.c.l.b16 %v325
      %v1039 = vunpack.c.l.b16 %v326
      %v1040 = vunpack.c.l.b16 %v327
      %v1041 = vunpack.c.l.b16 %v328
      %v1042 = vunpack.c.l.b16 %v329
      %v1043 = vunpack.c.l.b16 %v330
      %v1044 = vunpack.c.l.b16 %v331
      %v1045 = vunpack.c.l.b16 %v332
      %v1046 = vunpack.c.l.b16 %v333
      %v1047 = vunpack.c.l.b16 %v334
      %v1048 = vunpack.c.l.b16 %v335
      %v1049 = vunpack.c.l.b16 %v336
      %v1050 = vunpack.c.l.b16 %v337
      %v1051 = vunpack.c.l.b16 %v338
      %v1052 = vunpack.c.l.b16 %v339
      %v1053 = vunpack.c.l.b16 %v340
      %v1054 = vunpack.c.l.b16 %v341
      %v1055 = vunpack.c.l.b16 %v342
      %v1056 = vunpack.c.l.b16 %v343
      %v1057 = vunpack.c.l.b16 %v344
      %v1058 = vunpack.c.l.b16 %v345
      %v1059 = vunpack.c.l.b16 %v346
      %v1060 = vunpack.c.l.b16 %v347
      %v1061 = vunpack.c.l.b16 %v348
      %v1062 = vunpack.c.l.b16 %v349
      %v1063 = vunpack.c.l.b16 %v350
      %v1064 = vunpack.c.l.b16 %v351
      %v1065 = vunpack.c.l.b16 %v352
      %v1066 = vunpack.c.l.b16 %v353
      %v1067 = vunpack.c.l.b16 %v354
      %v1068 = vpack.c.b16 %v1020, %v1019
      %v1069 = vpack.c.b16 %v1022, %v1021
      %v1070 = vpack.c.b16 %v1024, %v1023
      %v1071 = vpack.c.b16 %v1026, %v1025
      %v1072 = vpack.c.b16 %v1028, %v1027
      %v1073 = vpack.c.b16 %v1030, %v1029
      %v1074 = vpack.c.b16 %v1032, %v1031
      %v1075 = vpack.c.b16 %v1034, %v1033
      %v1076 = vpack.c.b16 %v1036, %v1035
      %v1077 = vpack.c.b16 %v1038, %v1037
      %v1078 = vpack.c.b16 %v1040, %v1039
      %v1079 = vpack.c.b16 %v1042, %v1041
      %v1080 = vpack.c.b16 %v1044, %v1043
      %v1081 = vpack.c.b16 %v1046, %v1045
      %v1082 = vpack.c.b16 %v1048, %v1047
      %v1083 = vpack.c.b16 %v1050, %v1049
      %v1084 = vpack.c.b16 %v1052, %v1051
      %v1085 = vpack.c.b16 %v1054, %v1053
      %v1086 = vpack.c.b16 %v1056, %v1055
      %v1087 = vpack.c.b16 %v1058, %v1057
      %v1088 = vpack.c.b16 %v1060, %v1059
      %v1089 = vpack.c.b16 %v1062, %v1061
      %v1090 = vpack.c.b16 %v1064, %v1063
      %v1091 = vpack.c.b16 %v1066, %v1065
      %v1092 = vpack.c.b16 %v1067, %v1067
      %vm1117 = vcmask 64512
      %v1119 = vsel %vm1117, %v749, 0
      %v1122 = vsel %vm1117, %v753, 0
      %v1125 = vsel %vm1117, %v757, 0
      %v1128 = vsel %vm1117, %v761, 0
      %v1131 = vsel %vm1117, %v765, 0
      %v1134 = vsel %vm1117, %v769, 0
      %v1137 = vsel %vm1117, %v773, 0
      %v1140 = vsel %vm1117, %v777, 0
      %v1143 = vsel %vm1117, %v781, 0
      %v1146 = vsel %vm1117, %v785, 0
      %v1149 = vsel %vm1117, %v789, 0
      %v1152 = vsel %vm1117, %v793, 0
      %v1155 = vsel %vm1117, %v797, 0
      %v1158 = vsel %vm1117, %v801, 0
      %v1161 = vsel %vm1117, %v805, 0
      %v1164 = vsel %vm1117, %v809, 0
      %v1167 = vsel %vm1117, %v813, 0
      %v1170 = vsel %vm1117, %v817, 0
      %v1173 = vsel %vm1117, %v821, 0
      %v1176 = vsel %vm1117, %v825, 0
      %v1179 = vsel %vm1117, %v829, 0
      %v1182 = vsel %vm1117, %v833, 0
      %v1185 = vsel %vm1117, %v837, 0
      %v1188 = vsel %vm1117, %v841, 0
      %v1191 = vsel %vm1117, %v845, 0
      %v1194 = vsel %vm1117, %v849, 0
      %v1197 = vsel %vm1117, %v853, 0
      %v1200 = vsel %vm1117, %v857, 0
      %v1203 = vsel %vm1117, %v861, 0
      %v1206 = vsel %vm1117, %v865, 0
      %v1209 = vsel %vm1117, %v869, 0
      %v1212 = vsel %vm1117, %v873, 0
      %vm1214 = vcmask 1043456
      %v1216 = vsel %vm1214, %v1092, 0
      %1218 = vmatprep.subr.bf16.mxu0 0
      %1219 = vmatpush1.bf16.msra.mxu0 %v1075
      %1220 = vmatprep.subr.bf16.mxu0 0
      %1221 = vmatpush1.bf16.msra.mxu0 %v1074
      %1222 = vmatprep.subr.bf16.mxu0 0
      %1223 = vmatpush1.bf16.msra.mxu0 %v1073
      %1224 = vmatprep.subr.bf16.mxu0 0
      %1225 = vmatpush1.bf16.msra.mxu0 %v1072
      %1226 = vmatprep.subr.bf16.mxu0 0
      %1227 = vmatpush1.bf16.msra.mxu0 %v1071
      %1228 = vmatprep.subr.bf16.mxu0 0
      %1229 = vmatpush1.bf16.msra.mxu0 %v1070
      %1230 = vmatprep.subr.bf16.mxu0 0
      %1231 = vmatpush1.bf16.msra.mxu0 %v1069
      %1232 = vmatprep.subr.bf16.mxu0 0
      %1233 = vmatpush1.bf16.msra.mxu0 %v1068
      %1234 = vmatprep.subr.bf16.mxu0 0
      %1235 = vmatpush2.bf16.msra.mxu0 %v1083
      %1236 = vmatprep.subr.bf16.mxu0 0
      %1237 = vmatpush2.bf16.msra.mxu0 %v1082
      %1238 = vmatprep.subr.bf16.mxu0 0
      %1239 = vmatpush2.bf16.msra.mxu0 %v1081
      %1240 = vmatprep.subr.bf16.mxu0 0
      %1241 = vmatpush2.bf16.msra.mxu0 %v1080
      %1242 = vmatprep.subr.bf16.mxu0 0
      %1243 = vmatpush2.bf16.msra.mxu0 %v1079
      %1244 = vmatprep.subr.bf16.mxu0 0
      %1245 = vmatpush2.bf16.msra.mxu0 %v1078
      %1246 = vmatprep.subr.bf16.mxu0 0
      %1247 = vmatpush2.bf16.msra.mxu0 %v1077
      %1248 = vmatprep.subr.bf16.mxu0 0
      %1249 = vmatpush2.bf16.msra.mxu0 %v1076
      %1250 = vmatprep.mubr.bf16.mxu0 %v747
      %1251 = vmatmul.mubr.bf16.gmra.mxu0 %v746
      %v1252 = vpop.f32.mrf.mxu0
      %v1253 = vadd.f32 %v360, %v1252
      %v1254 = vpop.f32.mrf.mxu0
      %v1255 = vpop.f32.mrf.mxu0
      %v1256 = vadd.f32 %v360, %v1255
      %v1257 = vpop.f32.mrf.mxu0
      %1258 = vmatprep.mubr.bf16.mxu0 %v751
      %1259 = vmatmul.mubr.bf16.gmra.mxu0 %v750
      %v1260 = vpop.f32.mrf.mxu0
      %v1261 = vadd.f32 %v360, %v1260
      %v1262 = vpop.f32.mrf.mxu0
      %v1263 = vpop.f32.mrf.mxu0
      %v1264 = vadd.f32 %v360, %v1263
      %v1265 = vpop.f32.mrf.mxu0
      %1266 = vmatprep.mubr.bf16.mxu0 %v755
      %1267 = vmatmul.mubr.bf16.gmra.mxu0 %v754
      %v1268 = vpop.f32.mrf.mxu0
      %v1269 = vadd.f32 %v360, %v1268
      %v1270 = vpop.f32.mrf.mxu0
      %v1271 = vpop.f32.mrf.mxu0
      %v1272 = vadd.f32 %v360, %v1271
      %v1273 = vpop.f32.mrf.mxu0
      %1274 = vmatprep.mubr.bf16.mxu0 %v759
      %1275 = vmatmul.mubr.bf16.gmra.mxu0 %v758
      %v1276 = vpop.f32.mrf.mxu0
      %v1277 = vadd.f32 %v360, %v1276
      %v1278 = vpop.f32.mrf.mxu0
      %v1279 = vpop.f32.mrf.mxu0
      %v1280 = vadd.f32 %v360, %v1279
      %v1281 = vpop.f32.mrf.mxu0
      %1282 = vmatprep.mubr.bf16.mxu0 %v763
      %1283 = vmatmul.mubr.bf16.gmra.mxu0 %v762
      %v1284 = vpop.f32.mrf.mxu0
      %v1285 = vadd.f32 %v360, %v1284
      %v1286 = vpop.f32.mrf.mxu0
      %v1287 = vpop.f32.mrf.mxu0
      %v1288 = vadd.f32 %v360, %v1287
      %v1289 = vpop.f32.mrf.mxu0
      %1290 = vmatprep.mubr.bf16.mxu0 %v767
      %1291 = vmatmul.mubr.bf16.gmra.mxu0 %v766
      %v1292 = vpop.f32.mrf.mxu0
      %v1293 = vadd.f32 %v360, %v1292
      %v1294 = vpop.f32.mrf.mxu0
      %v1295 = vpop.f32.mrf.mxu0
      %v1296 = vadd.f32 %v360, %v1295
      %v1297 = vpop.f32.mrf.mxu0
      %1298 = vmatprep.mubr.bf16.mxu0 %v771
      %1299 = vmatmul.mubr.bf16.gmra.mxu0 %v770
      %v1300 = vpop.f32.mrf.mxu0
      %v1301 = vadd.f32 %v360, %v1300
      %v1302 = vpop.f32.mrf.mxu0
      %v1303 = vpop.f32.mrf.mxu0
      %v1304 = vadd.f32 %v360, %v1303
      %v1305 = vpop.f32.mrf.mxu0
      %1306 = vmatprep.mubr.bf16.mxu0 %v775
      %1307 = vmatmul.mubr.bf16.gmra.mxu0 %v774
      %v1308 = vpop.f32.mrf.mxu0
      %v1309 = vadd.f32 %v360, %v1308
      %v1310 = vpop.f32.mrf.mxu0
      %v1311 = vpop.f32.mrf.mxu0
      %v1312 = vadd.f32 %v360, %v1311
      %v1313 = vpop.f32.mrf.mxu0
      %1314 = vmatprep.mubr.bf16.mxu0 %v779
      %1315 = vmatmul.mubr.bf16.gmra.mxu0 %v778
      %v1316 = vpop.f32.mrf.mxu0
      %v1317 = vadd.f32 %v360, %v1316
      %v1318 = vpop.f32.mrf.mxu0
      %v1319 = vpop.f32.mrf.mxu0
      %v1320 = vadd.f32 %v360, %v1319
      %v1321 = vpop.f32.mrf.mxu0
      %1322 = vmatprep.mubr.bf16.mxu0 %v783
      %1323 = vmatmul.mubr.bf16.gmra.mxu0 %v782
      %v1324 = vpop.f32.mrf.mxu0
      %v1325 = vadd.f32 %v360, %v1324
      %v1326 = vpop.f32.mrf.mxu0
      %v1327 = vpop.f32.mrf.mxu0
      %v1328 = vadd.f32 %v360, %v1327
      %v1329 = vpop.f32.mrf.mxu0
      %1330 = vmatprep.mubr.bf16.mxu0 %v787
      %1331 = vmatmul.mubr.bf16.gmra.mxu0 %v786
      %v1332 = vpop.f32.mrf.mxu0
      %v1333 = vadd.f32 %v360, %v1332
      %v1334 = vpop.f32.mrf.mxu0
      %v1335 = vpop.f32.mrf.mxu0
      %v1336 = vadd.f32 %v360, %v1335
      %v1337 = vpop.f32.mrf.mxu0
      %1338 = vmatprep.mubr.bf16.mxu0 %v791
      %1339 = vmatmul.mubr.bf16.gmra.mxu0 %v790
      %v1340 = vpop.f32.mrf.mxu0
      %v1341 = vadd.f32 %v360, %v1340
      %v1342 = vpop.f32.mrf.mxu0
      %v1343 = vpop.f32.mrf.mxu0
      %v1344 = vadd.f32 %v360, %v1343
      %v1345 = vpop.f32.mrf.mxu0
      %1346 = vmatprep.mubr.bf16.mxu0 %v795
      %1347 = vmatmul.mubr.bf16.gmra.mxu0 %v794
      %v1348 = vpop.f32.mrf.mxu0
      %v1349 = vadd.f32 %v360, %v1348
      %v1350 = vpop.f32.mrf.mxu0
      %v1351 = vpop.f32.mrf.mxu0
      %v1352 = vadd.f32 %v360, %v1351
      %v1353 = vpop.f32.mrf.mxu0
      %1354 = vmatprep.mubr.bf16.mxu0 %v799
      %1355 = vmatmul.mubr.bf16.gmra.mxu0 %v798
      %v1356 = vpop.f32.mrf.mxu0
      %v1357 = vadd.f32 %v360, %v1356
      %v1358 = vpop.f32.mrf.mxu0
      %v1359 = vpop.f32.mrf.mxu0
      %v1360 = vadd.f32 %v360, %v1359
      %v1361 = vpop.f32.mrf.mxu0
      %1362 = vmatprep.mubr.bf16.mxu0 %v803
      %1363 = vmatmul.mubr.bf16.gmra.mxu0 %v802
      %v1364 = vpop.f32.mrf.mxu0
      %v1365 = vadd.f32 %v360, %v1364
      %v1366 = vpop.f32.mrf.mxu0
      %v1367 = vpop.f32.mrf.mxu0
      %v1368 = vadd.f32 %v360, %v1367
      %v1369 = vpop.f32.mrf.mxu0
      %1370 = vmatprep.mubr.bf16.mxu0 %v807
      %1371 = vmatmul.mubr.bf16.gmra.mxu0 %v806
      %v1372 = vpop.f32.mrf.mxu0
      %v1373 = vadd.f32 %v360, %v1372
      %v1374 = vpop.f32.mrf.mxu0
      %v1375 = vpop.f32.mrf.mxu0
      %v1376 = vadd.f32 %v360, %v1375
      %v1377 = vpop.f32.mrf.mxu0
      %1378 = vmatprep.mubr.bf16.mxu0 %v811
      %1379 = vmatmul.mubr.bf16.gmra.mxu0 %v810
      %v1380 = vpop.f32.mrf.mxu0
      %v1381 = vadd.f32 %v360, %v1380
      %v1382 = vpop.f32.mrf.mxu0
      %v1383 = vpop.f32.mrf.mxu0
      %v1384 = vadd.f32 %v360, %v1383
      %v1385 = vpop.f32.mrf.mxu0
      %1386 = vmatprep.mubr.bf16.mxu0 %v815
      %1387 = vmatmul.mubr.bf16.gmra.mxu0 %v814
      %v1388 = vpop.f32.mrf.mxu0
      %v1389 = vadd.f32 %v360, %v1388
      %v1390 = vpop.f32.mrf.mxu0
      %v1391 = vpop.f32.mrf.mxu0
      %v1392 = vadd.f32 %v360, %v1391
      %v1393 = vpop.f32.mrf.mxu0
      %1394 = vmatprep.mubr.bf16.mxu0 %v819
      %1395 = vmatmul.mubr.bf16.gmra.mxu0 %v818
      %v1396 = vpop.f32.mrf.mxu0
      %v1397 = vadd.f32 %v360, %v1396
      %v1398 = vpop.f32.mrf.mxu0
      %v1399 = vpop.f32.mrf.mxu0
      %v1400 = vadd.f32 %v360, %v1399
      %v1401 = vpop.f32.mrf.mxu0
      %1402 = vmatprep.mubr.bf16.mxu0 %v823
      %1403 = vmatmul.mubr.bf16.gmra.mxu0 %v822
      %v1404 = vpop.f32.mrf.mxu0
      %v1405 = vadd.f32 %v360, %v1404
      %v1406 = vpop.f32.mrf.mxu0
      %v1407 = vpop.f32.mrf.mxu0
      %v1408 = vadd.f32 %v360, %v1407
      %v1409 = vpop.f32.mrf.mxu0
      %1410 = vmatprep.mubr.bf16.mxu0 %v827
      %1411 = vmatmul.mubr.bf16.gmra.mxu0 %v826
      %v1412 = vpop.f32.mrf.mxu0
      %v1413 = vadd.f32 %v360, %v1412
      %v1414 = vpop.f32.mrf.mxu0
      %v1415 = vpop.f32.mrf.mxu0
      %v1416 = vadd.f32 %v360, %v1415
      %v1417 = vpop.f32.mrf.mxu0
      %1418 = vmatprep.mubr.bf16.mxu0 %v831
      %1419 = vmatmul.mubr.bf16.gmra.mxu0 %v830
      %v1420 = vpop.f32.mrf.mxu0
      %v1421 = vadd.f32 %v360, %v1420
      %v1422 = vpop.f32.mrf.mxu0
      %v1423 = vpop.f32.mrf.mxu0
      %v1424 = vadd.f32 %v360, %v1423
      %v1425 = vpop.f32.mrf.mxu0
      %1426 = vmatprep.mubr.bf16.mxu0 %v835
      %1427 = vmatmul.mubr.bf16.gmra.mxu0 %v834
      %v1428 = vpop.f32.mrf.mxu0
      %v1429 = vadd.f32 %v360, %v1428
      %v1430 = vpop.f32.mrf.mxu0
      %v1431 = vpop.f32.mrf.mxu0
      %v1432 = vadd.f32 %v360, %v1431
      %v1433 = vpop.f32.mrf.mxu0
      %1434 = vmatprep.mubr.bf16.mxu0 %v839
      %1435 = vmatmul.mubr.bf16.gmra.mxu0 %v838
      %v1436 = vpop.f32.mrf.mxu0
      %v1437 = vadd.f32 %v360, %v1436
      %v1438 = vpop.f32.mrf.mxu0
      %v1439 = vpop.f32.mrf.mxu0
      %v1440 = vadd.f32 %v360, %v1439
      %v1441 = vpop.f32.mrf.mxu0
      %1442 = vmatprep.mubr.bf16.mxu0 %v843
      %1443 = vmatmul.mubr.bf16.gmra.mxu0 %v842
      %v1444 = vpop.f32.mrf.mxu0
      %v1445 = vadd.f32 %v360, %v1444
      %v1446 = vpop.f32.mrf.mxu0
      %v1447 = vpop.f32.mrf.mxu0
      %v1448 = vadd.f32 %v360, %v1447
      %v1449 = vpop.f32.mrf.mxu0
      %1450 = vmatprep.mubr.bf16.mxu0 %v847
      %1451 = vmatmul.mubr.bf16.gmra.mxu0 %v846
      %v1452 = vpop.f32.mrf.mxu0
      %v1453 = vadd.f32 %v360, %v1452
      %v1454 = vpop.f32.mrf.mxu0
      %v1455 = vpop.f32.mrf.mxu0
      %v1456 = vadd.f32 %v360, %v1455
      %v1457 = vpop.f32.mrf.mxu0
      %1458 = vmatprep.mubr.bf16.mxu0 %v851
      %1459 = vmatmul.mubr.bf16.gmra.mxu0 %v850
      %v1460 = vpop.f32.mrf.mxu0
      %v1461 = vadd.f32 %v360, %v1460
      %v1462 = vpop.f32.mrf.mxu0
      %v1463 = vpop.f32.mrf.mxu0
      %v1464 = vadd.f32 %v360, %v1463
      %v1465 = vpop.f32.mrf.mxu0
      %1466 = vmatprep.mubr.bf16.mxu0 %v855
      %1467 = vmatmul.mubr.bf16.gmra.mxu0 %v854
      %v1468 = vpop.f32.mrf.mxu0
      %v1469 = vadd.f32 %v360, %v1468
      %v1470 = vpop.f32.mrf.mxu0
      %v1471 = vpop.f32.mrf.mxu0
      %v1472 = vadd.f32 %v360, %v1471
      %v1473 = vpop.f32.mrf.mxu0
      %1474 = vmatprep.mubr.bf16.mxu0 %v859
      %1475 = vmatmul.mubr.bf16.gmra.mxu0 %v858
      %v1476 = vpop.f32.mrf.mxu0
      %v1477 = vadd.f32 %v360, %v1476
      %v1478 = vpop.f32.mrf.mxu0
      %v1479 = vpop.f32.mrf.mxu0
      %v1480 = vadd.f32 %v360, %v1479
      %v1481 = vpop.f32.mrf.mxu0
      %1482 = vmatprep.mubr.bf16.mxu0 %v863
      %1483 = vmatmul.mubr.bf16.gmra.mxu0 %v862
      %v1484 = vpop.f32.mrf.mxu0
      %v1485 = vadd.f32 %v360, %v1484
      %v1486 = vpop.f32.mrf.mxu0
      %v1487 = vpop.f32.mrf.mxu0
      %v1488 = vadd.f32 %v360, %v1487
      %v1489 = vpop.f32.mrf.mxu0
      %1490 = vmatprep.mubr.bf16.mxu0 %v867
      %1491 = vmatmul.mubr.bf16.gmra.mxu0 %v866
      %v1492 = vpop.f32.mrf.mxu0
      %v1493 = vadd.f32 %v360, %v1492
      %v1494 = vpop.f32.mrf.mxu0
      %v1495 = vpop.f32.mrf.mxu0
      %v1496 = vadd.f32 %v360, %v1495
      %v1497 = vpop.f32.mrf.mxu0
      %1498 = vmatprep.mubr.bf16.mxu0 %v871
      %1499 = vmatmul.mubr.bf16.gmra.mxu0 %v870
      %v1500 = vpop.f32.mrf.mxu0
      %v1501 = vadd.f32 %v360, %v1500
      %v1502 = vpop.f32.mrf.mxu0
      %v1503 = vpop.f32.mrf.mxu0
      %v1504 = vadd.f32 %v360, %v1503
      %v1505 = vpop.f32.mrf.mxu0
      %1506 = vdwg.mxu0
      %1507 = vmatprep.subr.bf16.mxu0 0
      %1508 = vmatpush1.bf16.msra.mxu0 %v1091
      %1509 = vmatprep.subr.bf16.mxu0 0
      %1510 = vmatpush1.bf16.msra.mxu0 %v1090
      %1511 = vmatprep.subr.bf16.mxu0 0
      %1512 = vmatpush1.bf16.msra.mxu0 %v1089
      %1513 = vmatprep.subr.bf16.mxu0 0
      %1514 = vmatpush1.bf16.msra.mxu0 %v1088
      %1515 = vmatprep.subr.bf16.mxu0 0
      %1516 = vmatpush1.bf16.msra.mxu0 %v1087
      %1517 = vmatprep.subr.bf16.mxu0 0
      %1518 = vmatpush1.bf16.msra.mxu0 %v1086
      %1519 = vmatprep.subr.bf16.mxu0 0
      %1520 = vmatpush1.bf16.msra.mxu0 %v1085
      %1521 = vmatprep.subr.bf16.mxu0 0
      %1522 = vmatpush1.bf16.msra.mxu0 %v1084
      %1523 = vmatprep.subr.bf16.mxu0 0
      %1524 = vmatpush2.bf16.msra.mxu0 0
      %1525 = vmatprep.subr.bf16.mxu0 0
      %1526 = vmatpush2.bf16.msra.mxu0 0
      %1527 = vmatprep.subr.bf16.mxu0 0
      %1528 = vmatpush2.bf16.msra.mxu0 0
      %1529 = vmatprep.subr.bf16.mxu0 0
      %1530 = vmatpush2.bf16.msra.mxu0 0
      %1531 = vmatprep.subr.bf16.mxu0 0
      %1532 = vmatpush2.bf16.msra.mxu0 0
      %1533 = vmatprep.subr.bf16.mxu0 0
      %1534 = vmatpush2.bf16.msra.mxu0 0
      %1535 = vmatprep.subr.bf16.mxu0 0
      %1536 = vmatpush2.bf16.msra.mxu0 0
      %1537 = vmatprep.subr.bf16.mxu0 0
      %1538 = vmatpush2.bf16.msra.mxu0 %v1216
      %1539 = vmatprep.mubr.bf16.mxu0 %v1119
      %1540 = vmatmul.mubr.bf16.gmra.mxu0 %v748
      %v1541 = vpop.f32.mrf.mxu0
      %v1542 = vadd.f32 %v1253, %v1541
      %v1543 = vpop.f32.mrf.mxu0
      %v1544 = vpop.f32.mrf.mxu0
      %v1545 = vadd.f32 %v1256, %v1544
      %v1546 = vpop.f32.mrf.mxu0
      %1547 = vmatprep.mubr.bf16.mxu0 %v1122
      %1548 = vmatmul.mubr.bf16.gmra.mxu0 %v752
      %v1549 = vpop.f32.mrf.mxu0
      %v1550 = vadd.f32 %v1261, %v1549
      %v1551 = vpop.f32.mrf.mxu0
      %v1552 = vpop.f32.mrf.mxu0
      %v1553 = vadd.f32 %v1264, %v1552
      %v1554 = vpop.f32.mrf.mxu0
      %1555 = vmatprep.mubr.bf16.mxu0 %v1125
      %1556 = vmatmul.mubr.bf16.gmra.mxu0 %v756
      %v1557 = vpop.f32.mrf.mxu0
      %v1558 = vadd.f32 %v1269, %v1557
      %v1559 = vpop.f32.mrf.mxu0
      %v1560 = vpop.f32.mrf.mxu0
      %v1561 = vadd.f32 %v1272, %v1560
      %v1562 = vpop.f32.mrf.mxu0
      %1563 = vmatprep.mubr.bf16.mxu0 %v1128
      %1564 = vmatmul.mubr.bf16.gmra.mxu0 %v760
      %v1565 = vpop.f32.mrf.mxu0
      %v1566 = vadd.f32 %v1277, %v1565
      %v1567 = vpop.f32.mrf.mxu0
      %v1568 = vpop.f32.mrf.mxu0
      %v1569 = vadd.f32 %v1280, %v1568
      %v1570 = vpop.f32.mrf.mxu0
      %1571 = vmatprep.mubr.bf16.mxu0 %v1131
      %1572 = vmatmul.mubr.bf16.gmra.mxu0 %v764
      %v1573 = vpop.f32.mrf.mxu0
      %v1574 = vadd.f32 %v1285, %v1573
      %v1575 = vpop.f32.mrf.mxu0
      %v1576 = vpop.f32.mrf.mxu0
      %v1577 = vadd.f32 %v1288, %v1576
      %v1578 = vpop.f32.mrf.mxu0
      %1579 = vmatprep.mubr.bf16.mxu0 %v1134
      %1580 = vmatmul.mubr.bf16.gmra.mxu0 %v768
      %v1581 = vpop.f32.mrf.mxu0
      %v1582 = vadd.f32 %v1293, %v1581
      %v1583 = vpop.f32.mrf.mxu0
      %v1584 = vpop.f32.mrf.mxu0
      %v1585 = vadd.f32 %v1296, %v1584
      %v1586 = vpop.f32.mrf.mxu0
      %1587 = vmatprep.mubr.bf16.mxu0 %v1137
      %1588 = vmatmul.mubr.bf16.gmra.mxu0 %v772
      %v1589 = vpop.f32.mrf.mxu0
      %v1590 = vadd.f32 %v1301, %v1589
      %v1591 = vpop.f32.mrf.mxu0
      %v1592 = vpop.f32.mrf.mxu0
      %v1593 = vadd.f32 %v1304, %v1592
      %v1594 = vpop.f32.mrf.mxu0
      %1595 = vmatprep.mubr.bf16.mxu0 %v1140
      %1596 = vmatmul.mubr.bf16.gmra.mxu0 %v776
      %v1597 = vpop.f32.mrf.mxu0
      %v1598 = vadd.f32 %v1309, %v1597
      %v1599 = vpop.f32.mrf.mxu0
      %v1600 = vpop.f32.mrf.mxu0
      %v1601 = vadd.f32 %v1312, %v1600
      %v1602 = vpop.f32.mrf.mxu0
      %1603 = vmatprep.mubr.bf16.mxu0 %v1143
      %1604 = vmatmul.mubr.bf16.gmra.mxu0 %v780
      %v1605 = vpop.f32.mrf.mxu0
      %v1606 = vadd.f32 %v1317, %v1605
      %v1607 = vpop.f32.mrf.mxu0
      %v1608 = vpop.f32.mrf.mxu0
      %v1609 = vadd.f32 %v1320, %v1608
      %v1610 = vpop.f32.mrf.mxu0
      %1611 = vmatprep.mubr.bf16.mxu0 %v1146
      %1612 = vmatmul.mubr.bf16.gmra.mxu0 %v784
      %v1613 = vpop.f32.mrf.mxu0
      %v1614 = vadd.f32 %v1325, %v1613
      %v1615 = vpop.f32.mrf.mxu0
      %v1616 = vpop.f32.mrf.mxu0
      %v1617 = vadd.f32 %v1328, %v1616
      %v1618 = vpop.f32.mrf.mxu0
      %1619 = vmatprep.mubr.bf16.mxu0 %v1149
      %1620 = vmatmul.mubr.bf16.gmra.mxu0 %v788
      %v1621 = vpop.f32.mrf.mxu0
      %v1622 = vadd.f32 %v1333, %v1621
      %v1623 = vpop.f32.mrf.mxu0
      %v1624 = vpop.f32.mrf.mxu0
      %v1625 = vadd.f32 %v1336, %v1624
      %v1626 = vpop.f32.mrf.mxu0
      %1627 = vmatprep.mubr.bf16.mxu0 %v1152
      %1628 = vmatmul.mubr.bf16.gmra.mxu0 %v792
      %v1629 = vpop.f32.mrf.mxu0
      %v1630 = vadd.f32 %v1341, %v1629
      %v1631 = vpop.f32.mrf.mxu0
      %v1632 = vpop.f32.mrf.mxu0
      %v1633 = vadd.f32 %v1344, %v1632
      %v1634 = vpop.f32.mrf.mxu0
      %1635 = vmatprep.mubr.bf16.mxu0 %v1155
      %1636 = vmatmul.mubr.bf16.gmra.mxu0 %v796
      %v1637 = vpop.f32.mrf.mxu0
      %v1638 = vadd.f32 %v1349, %v1637
      %v1639 = vpop.f32.mrf.mxu0
      %v1640 = vpop.f32.mrf.mxu0
      %v1641 = vadd.f32 %v1352, %v1640
      %v1642 = vpop.f32.mrf.mxu0
      %1643 = vmatprep.mubr.bf16.mxu0 %v1158
      %1644 = vmatmul.mubr.bf16.gmra.mxu0 %v800
      %v1645 = vpop.f32.mrf.mxu0
      %v1646 = vadd.f32 %v1357, %v1645
      %v1647 = vpop.f32.mrf.mxu0
      %v1648 = vpop.f32.mrf.mxu0
      %v1649 = vadd.f32 %v1360, %v1648
      %v1650 = vpop.f32.mrf.mxu0
      %1651 = vmatprep.mubr.bf16.mxu0 %v1161
      %1652 = vmatmul.mubr.bf16.gmra.mxu0 %v804
      %v1653 = vpop.f32.mrf.mxu0
      %v1654 = vadd.f32 %v1365, %v1653
      %v1655 = vpop.f32.mrf.mxu0
      %v1656 = vpop.f32.mrf.mxu0
      %v1657 = vadd.f32 %v1368, %v1656
      %v1658 = vpop.f32.mrf.mxu0
      %1659 = vmatprep.mubr.bf16.mxu0 %v1164
      %1660 = vmatmul.mubr.bf16.gmra.mxu0 %v808
      %v1661 = vpop.f32.mrf.mxu0
      %v1662 = vadd.f32 %v1373, %v1661
      %v1663 = vpop.f32.mrf.mxu0
      %v1664 = vpop.f32.mrf.mxu0
      %v1665 = vadd.f32 %v1376, %v1664
      %v1666 = vpop.f32.mrf.mxu0
      %1667 = vmatprep.mubr.bf16.mxu0 %v1167
      %1668 = vmatmul.mubr.bf16.gmra.mxu0 %v812
      %v1669 = vpop.f32.mrf.mxu0
      %v1670 = vadd.f32 %v1381, %v1669
      %v1671 = vpop.f32.mrf.mxu0
      %v1672 = vpop.f32.mrf.mxu0
      %v1673 = vadd.f32 %v1384, %v1672
      %v1674 = vpop.f32.mrf.mxu0
      %1675 = vmatprep.mubr.bf16.mxu0 %v1170
      %1676 = vmatmul.mubr.bf16.gmra.mxu0 %v816
      %v1677 = vpop.f32.mrf.mxu0
      %v1678 = vadd.f32 %v1389, %v1677
      %v1679 = vpop.f32.mrf.mxu0
      %v1680 = vpop.f32.mrf.mxu0
      %v1681 = vadd.f32 %v1392, %v1680
      %v1682 = vpop.f32.mrf.mxu0
      %1683 = vmatprep.mubr.bf16.mxu0 %v1173
      %1684 = vmatmul.mubr.bf16.gmra.mxu0 %v820
      %v1685 = vpop.f32.mrf.mxu0
      %v1686 = vadd.f32 %v1397, %v1685
      %v1687 = vpop.f32.mrf.mxu0
      %v1688 = vpop.f32.mrf.mxu0
      %v1689 = vadd.f32 %v1400, %v1688
      %v1690 = vpop.f32.mrf.mxu0
      %1691 = vmatprep.mubr.bf16.mxu0 %v1176
      %1692 = vmatmul.mubr.bf16.gmra.mxu0 %v824
      %v1693 = vpop.f32.mrf.mxu0
      %v1694 = vadd.f32 %v1405, %v1693
      %v1695 = vpop.f32.mrf.mxu0
      %v1696 = vpop.f32.mrf.mxu0
      %v1697 = vadd.f32 %v1408, %v1696
      %v1698 = vpop.f32.mrf.mxu0
      %1699 = vmatprep.mubr.bf16.mxu0 %v1179
      %1700 = vmatmul.mubr.bf16.gmra.mxu0 %v828
      %v1701 = vpop.f32.mrf.mxu0
      %v1702 = vadd.f32 %v1413, %v1701
      %v1703 = vpop.f32.mrf.mxu0
      %v1704 = vpop.f32.mrf.mxu0
      %v1705 = vadd.f32 %v1416, %v1704
      %v1706 = vpop.f32.mrf.mxu0
      %1707 = vmatprep.mubr.bf16.mxu0 %v1182
      %1708 = vmatmul.mubr.bf16.gmra.mxu0 %v832
      %v1709 = vpop.f32.mrf.mxu0
      %v1710 = vadd.f32 %v1421, %v1709
      %v1711 = vpop.f32.mrf.mxu0
      %v1712 = vpop.f32.mrf.mxu0
      %v1713 = vadd.f32 %v1424, %v1712
      %v1714 = vpop.f32.mrf.mxu0
      %1715 = vmatprep.mubr.bf16.mxu0 %v1185
      %1716 = vmatmul.mubr.bf16.gmra.mxu0 %v836
      %v1717 = vpop.f32.mrf.mxu0
      %v1718 = vadd.f32 %v1429, %v1717
      %v1719 = vpop.f32.mrf.mxu0
      %v1720 = vpop.f32.mrf.mxu0
      %v1721 = vadd.f32 %v1432, %v1720
      %v1722 = vpop.f32.mrf.mxu0
      %1723 = vmatprep.mubr.bf16.mxu0 %v1188
      %1724 = vmatmul.mubr.bf16.gmra.mxu0 %v840
      %v1725 = vpop.f32.mrf.mxu0
      %v1726 = vadd.f32 %v1437, %v1725
      %v1727 = vpop.f32.mrf.mxu0
      %v1728 = vpop.f32.mrf.mxu0
      %v1729 = vadd.f32 %v1440, %v1728
      %v1730 = vpop.f32.mrf.mxu0
      %1731 = vmatprep.mubr.bf16.mxu0 %v1191
      %1732 = vmatmul.mubr.bf16.gmra.mxu0 %v844
      %v1733 = vpop.f32.mrf.mxu0
      %v1734 = vadd.f32 %v1445, %v1733
      %v1735 = vpop.f32.mrf.mxu0
      %v1736 = vpop.f32.mrf.mxu0
      %v1737 = vadd.f32 %v1448, %v1736
      %v1738 = vpop.f32.mrf.mxu0
      %1739 = vmatprep.mubr.bf16.mxu0 %v1194
      %1740 = vmatmul.mubr.bf16.gmra.mxu0 %v848
      %v1741 = vpop.f32.mrf.mxu0
      %v1742 = vadd.f32 %v1453, %v1741
      %v1743 = vpop.f32.mrf.mxu0
      %v1744 = vpop.f32.mrf.mxu0
      %v1745 = vadd.f32 %v1456, %v1744
      %v1746 = vpop.f32.mrf.mxu0
      %1747 = vmatprep.mubr.bf16.mxu0 %v1197
      %1748 = vmatmul.mubr.bf16.gmra.mxu0 %v852
      %v1749 = vpop.f32.mrf.mxu0
      %v1750 = vadd.f32 %v1461, %v1749
      %v1751 = vpop.f32.mrf.mxu0
      %v1752 = vpop.f32.mrf.mxu0
      %v1753 = vadd.f32 %v1464, %v1752
      %v1754 = vpop.f32.mrf.mxu0
      %1755 = vmatprep.mubr.bf16.mxu0 %v1200
      %1756 = vmatmul.mubr.bf16.gmra.mxu0 %v856
      %v1757 = vpop.f32.mrf.mxu0
      %v1758 = vadd.f32 %v1469, %v1757
      %v1759 = vpop.f32.mrf.mxu0
      %v1760 = vpop.f32.mrf.mxu0
      %v1761 = vadd.f32 %v1472, %v1760
      %v1762 = vpop.f32.mrf.mxu0
      %1763 = vmatprep.mubr.bf16.mxu0 %v1203
      %1764 = vmatmul.mubr.bf16.gmra.mxu0 %v860
      %v1765 = vpop.f32.mrf.mxu0
      %v1766 = vadd.f32 %v1477, %v1765
      %v1767 = vpop.f32.mrf.mxu0
      %v1768 = vpop.f32.mrf.mxu0
      %v1769 = vadd.f32 %v1480, %v1768
      %v1770 = vpop.f32.mrf.mxu0
      %1771 = vmatprep.mubr.bf16.mxu0 %v1206
      %1772 = vmatmul.mubr.bf16.gmra.mxu0 %v864
      %v1773 = vpop.f32.mrf.mxu0
      %v1774 = vadd.f32 %v1485, %v1773
      %v1775 = vpop.f32.mrf.mxu0
      %v1776 = vpop.f32.mrf.mxu0
      %v1777 = vadd.f32 %v1488, %v1776
      %v1778 = vpop.f32.mrf.mxu0
      %1779 = vmatprep.mubr.bf16.mxu0 %v1209
      %1780 = vmatmul.mubr.bf16.gmra.mxu0 %v868
      %v1781 = vpop.f32.mrf.mxu0
      %v1782 = vadd.f32 %v1493, %v1781
      %v1783 = vpop.f32.mrf.mxu0
      %v1784 = vpop.f32.mrf.mxu0
      %v1785 = vadd.f32 %v1496, %v1784
      %v1786 = vpop.f32.mrf.mxu0
      %1787 = vmatprep.mubr.bf16.mxu0 %v1212
      %1788 = vmatmul.mubr.bf16.gmra.mxu0 %v872
      %v1789 = vpop.f32.mrf.mxu0
      %v1790 = vadd.f32 %v1501, %v1789
      %v1791 = vpop.f32.mrf.mxu0
      %v1792 = vpop.f32.mrf.mxu0
      %v1793 = vadd.f32 %v1504, %v1792
      %v1794 = vpop.f32.mrf.mxu0
      %1795 = vdwg.mxu0
      %v1796 = vpack.c.bf16 %v1545, %v1542
      %v1797 = vpack.c.bf16 %v1553, %v1550
      %v1798 = vpack.c.bf16 %v1561, %v1558
      %v1799 = vpack.c.bf16 %v1569, %v1566
      %v1800 = vpack.c.bf16 %v1577, %v1574
      %v1801 = vpack.c.bf16 %v1585, %v1582
      %v1802 = vpack.c.bf16 %v1593, %v1590
      %v1803 = vpack.c.bf16 %v1601, %v1598
      %v1804 = vpack.c.bf16 %v1609, %v1606
      %v1805 = vpack.c.bf16 %v1617, %v1614
      %v1806 = vpack.c.bf16 %v1625, %v1622
      %v1807 = vpack.c.bf16 %v1633, %v1630
      %v1808 = vpack.c.bf16 %v1641, %v1638
      %v1809 = vpack.c.bf16 %v1649, %v1646
      %v1810 = vpack.c.bf16 %v1657, %v1654
      %v1811 = vpack.c.bf16 %v1665, %v1662
      %v1812 = vpack.c.bf16 %v1673, %v1670
      %v1813 = vpack.c.bf16 %v1681, %v1678
      %v1814 = vpack.c.bf16 %v1689, %v1686
      %v1815 = vpack.c.bf16 %v1697, %v1694
      %v1816 = vpack.c.bf16 %v1705, %v1702
      %v1817 = vpack.c.bf16 %v1713, %v1710
      %v1818 = vpack.c.bf16 %v1721, %v1718
      %v1819 = vpack.c.bf16 %v1729, %v1726
      %v1820 = vpack.c.bf16 %v1737, %v1734
      %v1821 = vpack.c.bf16 %v1745, %v1742
      %v1822 = vpack.c.bf16 %v1753, %v1750
      %v1823 = vpack.c.bf16 %v1761, %v1758
      %v1824 = vpack.c.bf16 %v1769, %v1766
      %v1825 = vpack.c.bf16 %v1777, %v1774
      %v1826 = vpack.c.bf16 %v1785, %v1782
      %v1827 = vpack.c.bf16 %v1793, %v1790
      %v1860 = vunpack.c.l.b16 %v1796
      %v1861 = vunpack.c.h.b16 %v1796
      %v1862 = vunpack.c.l.b16 %v1797
      %v1863 = vunpack.c.h.b16 %v1797
      %v1864 = vunpack.c.l.b16 %v1798
      %v1865 = vunpack.c.h.b16 %v1798
      %v1866 = vunpack.c.l.b16 %v1799
      %v1867 = vunpack.c.h.b16 %v1799
      %v1868 = vunpack.c.l.b16 %v1800
      %v1869 = vunpack.c.h.b16 %v1800
      %v1870 = vunpack.c.l.b16 %v1801
      %v1871 = vunpack.c.h.b16 %v1801
      %v1872 = vunpack.c.l.b16 %v1802
      %v1873 = vunpack.c.h.b16 %v1802
      %v1874 = vunpack.c.l.b16 %v1803
      %v1875 = vunpack.c.h.b16 %v1803
      %v1876 = vunpack.c.l.b16 %v1804
      %v1877 = vunpack.c.h.b16 %v1804
      %v1878 = vunpack.c.l.b16 %v1805
      %v1879 = vunpack.c.h.b16 %v1805
      %v1880 = vunpack.c.l.b16 %v1806
      %v1881 = vunpack.c.h.b16 %v1806
      %v1882 = vunpack.c.l.b16 %v1807
      %v1883 = vunpack.c.h.b16 %v1807
      %v1884 = vunpack.c.l.b16 %v1808
      %v1885 = vunpack.c.h.b16 %v1808
      %v1886 = vunpack.c.l.b16 %v1809
      %v1887 = vunpack.c.h.b16 %v1809
      %v1888 = vunpack.c.l.b16 %v1810
      %v1889 = vunpack.c.h.b16 %v1810
      %v1890 = vunpack.c.l.b16 %v1811
      %v1891 = vunpack.c.h.b16 %v1811
      %v1892 = vunpack.c.l.b16 %v1812
      %v1893 = vunpack.c.h.b16 %v1812
      %v1894 = vunpack.c.l.b16 %v1813
      %v1895 = vunpack.c.h.b16 %v1813
      %v1896 = vunpack.c.l.b16 %v1814
      %v1897 = vunpack.c.h.b16 %v1814
      %v1898 = vunpack.c.l.b16 %v1815
      %v1899 = vunpack.c.h.b16 %v1815
      %v1900 = vunpack.c.l.b16 %v1816
      %v1901 = vunpack.c.h.b16 %v1816
      %v1902 = vunpack.c.l.b16 %v1817
      %v1903 = vunpack.c.h.b16 %v1817
      %v1904 = vunpack.c.l.b16 %v1818
      %v1905 = vunpack.c.h.b16 %v1818
      %v1906 = vunpack.c.l.b16 %v1819
      %v1907 = vunpack.c.h.b16 %v1819
      %v1908 = vunpack.c.l.b16 %v1820
      %v1909 = vunpack.c.h.b16 %v1820
      %v1910 = vunpack.c.l.b16 %v1821
      %v1911 = vunpack.c.h.b16 %v1821
      %v1912 = vunpack.c.l.b16 %v1822
      %v1913 = vunpack.c.h.b16 %v1822
      %v1914 = vunpack.c.l.b16 %v1823
      %v1915 = vunpack.c.h.b16 %v1823
      %v1916 = vunpack.c.l.b16 %v1824
      %v1917 = vunpack.c.h.b16 %v1824
      %v1918 = vunpack.c.l.b16 %v1825
      %v1919 = vunpack.c.h.b16 %v1825
      %v1920 = vunpack.c.l.b16 %v1826
      %v1921 = vunpack.c.h.b16 %v1826
      %v1922 = vunpack.c.l.b16 %v1827
      %v1923 = vunpack.c.h.b16 %v1827
      %v1924 = vpack.c.b16 %v1860, %v1860
      %v1925 = vpack.c.b16 %v1861, %v1861
      %v1926 = vpack.c.b16 %v1862, %v1862
      %v1927 = vpack.c.b16 %v1863, %v1863
      %v1928 = vpack.c.b16 %v1864, %v1864
      %v1929 = vpack.c.b16 %v1865, %v1865
      %v1930 = vpack.c.b16 %v1866, %v1866
      %v1931 = vpack.c.b16 %v1867, %v1867
      %v1932 = vpack.c.b16 %v1868, %v1868
      %v1933 = vpack.c.b16 %v1869, %v1869
      %v1934 = vpack.c.b16 %v1870, %v1870
      %v1935 = vpack.c.b16 %v1871, %v1871
      %v1936 = vpack.c.b16 %v1872, %v1872
      %v1937 = vpack.c.b16 %v1873, %v1873
      %v1938 = vpack.c.b16 %v1874, %v1874
      %v1939 = vpack.c.b16 %v1875, %v1875
      %v1940 = vpack.c.b16 %v1876, %v1876
      %v1941 = vpack.c.b16 %v1877, %v1877
      %v1942 = vpack.c.b16 %v1878, %v1878
      %v1943 = vpack.c.b16 %v1879, %v1879
      %v1944 = vpack.c.b16 %v1880, %v1880
      %v1945 = vpack.c.b16 %v1881, %v1881
      %v1946 = vpack.c.b16 %v1882, %v1882
      %v1947 = vpack.c.b16 %v1883, %v1883
      %v1948 = vpack.c.b16 %v1884, %v1884
      %v1949 = vpack.c.b16 %v1885, %v1885
      %v1950 = vpack.c.b16 %v1886, %v1886
      %v1951 = vpack.c.b16 %v1887, %v1887
      %v1952 = vpack.c.b16 %v1888, %v1888
      %v1953 = vpack.c.b16 %v1889, %v1889
      %v1954 = vpack.c.b16 %v1890, %v1890
      %v1955 = vpack.c.b16 %v1891, %v1891
      %v1956 = vpack.c.b16 %v1892, %v1892
      %v1957 = vpack.c.b16 %v1893, %v1893
      %v1958 = vpack.c.b16 %v1894, %v1894
      %v1959 = vpack.c.b16 %v1895, %v1895
      %v1960 = vpack.c.b16 %v1896, %v1896
      %v1961 = vpack.c.b16 %v1897, %v1897
      %v1962 = vpack.c.b16 %v1898, %v1898
      %v1963 = vpack.c.b16 %v1899, %v1899
      %v1964 = vpack.c.b16 %v1900, %v1900
      %v1965 = vpack.c.b16 %v1901, %v1901
      %v1966 = vpack.c.b16 %v1902, %v1902
      %v1967 = vpack.c.b16 %v1903, %v1903
      %v1968 = vpack.c.b16 %v1904, %v1904
      %v1969 = vpack.c.b16 %v1905, %v1905
      %v1970 = vpack.c.b16 %v1906, %v1906
      %v1971 = vpack.c.b16 %v1907, %v1907
      %v1972 = vpack.c.b16 %v1908, %v1908
      %v1973 = vpack.c.b16 %v1909, %v1909
      %v1974 = vpack.c.b16 %v1910, %v1910
      %v1975 = vpack.c.b16 %v1911, %v1911
      %v1976 = vpack.c.b16 %v1912, %v1912
      %v1977 = vpack.c.b16 %v1913, %v1913
      %v1978 = vpack.c.b16 %v1914, %v1914
      %v1979 = vpack.c.b16 %v1915, %v1915
      %v1980 = vpack.c.b16 %v1916, %v1916
      %v1981 = vpack.c.b16 %v1917, %v1917
      %v1982 = vpack.c.b16 %v1918, %v1918
      %v1983 = vpack.c.b16 %v1919, %v1919
      %v1984 = vpack.c.b16 %v1920, %v1920
      %v1985 = vpack.c.b16 %v1921, %v1921
      %v1986 = vpack.c.b16 %v1922, %v1922
      %v1987 = vpack.c.b16 %v1923, %v1923
      %vm2052 = vcmask 19456
      %2053 = vst.msk [vmem:[%s175] sm:$0xf] %vm2052, %v1924
      %2054 = vst.msk [vmem:[%s175 + $0x4] sm:$0xf] %vm2052, %v1925
      %2055 = vst.msk [vmem:[%s175 + $0x8] sm:$0xf] %vm2052, %v1926
      %2056 = vst.msk [vmem:[%s175 + $0xc] sm:$0xf] %vm2052, %v1927
      %2057 = vst.msk [vmem:[%s175 + $0x10] sm:$0xf] %vm2052, %v1928
      %2058 = vst.msk [vmem:[%s175 + $0x14] sm:$0xf] %vm2052, %v1929
      %2059 = vst.msk [vmem:[%s175 + $0x18] sm:$0xf] %vm2052, %v1930
      %2060 = vst.msk [vmem:[%s175 + $0x1c] sm:$0xf] %vm2052, %v1931
      %2061 = vst.msk [vmem:[%s175 + $0x20] sm:$0xf] %vm2052, %v1932
      %2062 = vst.msk [vmem:[%s175 + $0x24] sm:$0xf] %vm2052, %v1933
      %2063 = vst.msk [vmem:[%s175 + $0x28] sm:$0xf] %vm2052, %v1934
      %2064 = vst.msk [vmem:[%s175 + $0x2c] sm:$0xf] %vm2052, %v1935
      %2065 = vst.msk [vmem:[%s175 + $0x30] sm:$0xf] %vm2052, %v1936
      %2066 = vst.msk [vmem:[%s175 + $0x34] sm:$0xf] %vm2052, %v1937
      %2067 = vst.msk [vmem:[%s175 + $0x38] sm:$0xf] %vm2052, %v1938
      %2068 = vst.msk [vmem:[%s175 + $0x3c] sm:$0xf] %vm2052, %v1939
      %2069 = vst.msk [vmem:[%s175 + $0x40] sm:$0xf] %vm2052, %v1940
      %2070 = vst.msk [vmem:[%s175 + $0x44] sm:$0xf] %vm2052, %v1941
      %2071 = vst.msk [vmem:[%s175 + $0x48] sm:$0xf] %vm2052, %v1942
      %2072 = vst.msk [vmem:[%s175 + $0x4c] sm:$0xf] %vm2052, %v1943
      %2073 = vst.msk [vmem:[%s175 + $0x50] sm:$0xf] %vm2052, %v1944
      %2074 = vst.msk [vmem:[%s175 + $0x54] sm:$0xf] %vm2052, %v1945
      %2075 = vst.msk [vmem:[%s175 + $0x58] sm:$0xf] %vm2052, %v1946
      %2076 = vst.msk [vmem:[%s175 + $0x5c] sm:$0xf] %vm2052, %v1947
      %2077 = vst.msk [vmem:[%s175 + $0x60] sm:$0xf] %vm2052, %v1948
      %2078 = vst.msk [vmem:[%s175 + $0x64] sm:$0xf] %vm2052, %v1949
      %2079 = vst.msk [vmem:[%s175 + $0x68] sm:$0xf] %vm2052, %v1950
      %2080 = vst.msk [vmem:[%s175 + $0x6c] sm:$0xf] %vm2052, %v1951
      %2081 = vst.msk [vmem:[%s175 + $0x70] sm:$0xf] %vm2052, %v1952
      %2082 = vst.msk [vmem:[%s175 + $0x74] sm:$0xf] %vm2052, %v1953
      %2083 = vst.msk [vmem:[%s175 + $0x78] sm:$0xf] %vm2052, %v1954
      %2084 = vst.msk [vmem:[%s175 + $0x7c] sm:$0xf] %vm2052, %v1955
      %2085 = vst.msk [vmem:[%s175 + $0x80] sm:$0xf] %vm2052, %v1956
      %2086 = vst.msk [vmem:[%s175 + $0x84] sm:$0xf] %vm2052, %v1957
      %2087 = vst.msk [vmem:[%s175 + $0x88] sm:$0xf] %vm2052, %v1958
      %2088 = vst.msk [vmem:[%s175 + $0x8c] sm:$0xf] %vm2052, %v1959
      %2089 = vst.msk [vmem:[%s175 + $0x90] sm:$0xf] %vm2052, %v1960
      %2090 = vst.msk [vmem:[%s175 + $0x94] sm:$0xf] %vm2052, %v1961
      %2091 = vst.msk [vmem:[%s175 + $0x98] sm:$0xf] %vm2052, %v1962
      %2092 = vst.msk [vmem:[%s175 + $0x9c] sm:$0xf] %vm2052, %v1963
      %2093 = vst.msk [vmem:[%s175 + $0xa0] sm:$0xf] %vm2052, %v1964
      %2094 = vst.msk [vmem:[%s175 + $0xa4] sm:$0xf] %vm2052, %v1965
      %2095 = vst.msk [vmem:[%s175 + $0xa8] sm:$0xf] %vm2052, %v1966
      %2096 = vst.msk [vmem:[%s175 + $0xac] sm:$0xf] %vm2052, %v1967
      %2097 = vst.msk [vmem:[%s175 + $0xb0] sm:$0xf] %vm2052, %v1968
      %2098 = vst.msk [vmem:[%s175 + $0xb4] sm:$0xf] %vm2052, %v1969
      %2099 = vst.msk [vmem:[%s175 + $0xb8] sm:$0xf] %vm2052, %v1970
      %2100 = vst.msk [vmem:[%s175 + $0xbc] sm:$0xf] %vm2052, %v1971
      %2101 = vst.msk [vmem:[%s175 + $0xc0] sm:$0xf] %vm2052, %v1972
      %2102 = vst.msk [vmem:[%s175 + $0xc4] sm:$0xf] %vm2052, %v1973
      %2103 = vst.msk [vmem:[%s175 + $0xc8] sm:$0xf] %vm2052, %v1974
      %2104 = vst.msk [vmem:[%s175 + $0xcc] sm:$0xf] %vm2052, %v1975
      %2105 = vst.msk [vmem:[%s175 + $0xd0] sm:$0xf] %vm2052, %v1976
      %2106 = vst.msk [vmem:[%s175 + $0xd4] sm:$0xf] %vm2052, %v1977
      %2107 = vst.msk [vmem:[%s175 + $0xd8] sm:$0xf] %vm2052, %v1978
      %2108 = vst.msk [vmem:[%s175 + $0xdc] sm:$0xf] %vm2052, %v1979
      %2109 = vst.msk [vmem:[%s175 + $0xe0] sm:$0xf] %vm2052, %v1980
      %2110 = vst.msk [vmem:[%s175 + $0xe4] sm:$0xf] %vm2052, %v1981
      %2111 = vst.msk [vmem:[%s175 + $0xe8] sm:$0xf] %vm2052, %v1982
      %2112 = vst.msk [vmem:[%s175 + $0xec] sm:$0xf] %vm2052, %v1983
      %2113 = vst.msk [vmem:[%s175 + $0xf0] sm:$0xf] %vm2052, %v1984
      %2114 = vst.msk [vmem:[%s175 + $0xf4] sm:$0xf] %vm2052, %v1985
      %2115 = vst.msk [vmem:[%s175 + $0xf8] sm:$0xf] %vm2052, %v1986
      %2116 = vst.msk [vmem:[%s175 + $0xfc] sm:$0xf] %vm2052, %v1987
      %s2117 = smul.u32 64, %s14
      %p2118 = scmp.lt.s32.totalorder %s2117, 255
      %s2119 = scalar_select %p2118, %s2117, 255
      %s2120 = smul.addr %s2119, 4
      %s2121 = scalar_lea.vmem %s3, %s2120
      // Predicated region
      $region33: #{generator_forward.19} parent=31 // pred_check
        %p2122 = pneg %p100
      $region34: #{generator_forward.19} parent=31 // pred_check_branch
        %2124 = sbr.rel (%p2122) target = $region36
      $region35: #{generator_forward.19} parent=31 // pred_region
        %s2125 = smul.u32 64, %s14
      $region36: #{generator_forward.19} parent=31 // pred_fallthru
        _
    $region32: #{generator_forward.19} parent=5 // pred_fallthru
      _
    %p2126 = scmp.le.s32.totalorder 2, %s9
    // Predicated region
    $region37: #{generator_forward.19} parent=5 // pred_check
      %p2127 = pneg %p2126
    $region38: #{generator_forward.19} parent=5 // pred_check_branch
      %2129 = sbr.rel (%p2127) target = $region40
    $region39: #{generator_forward.19} parent=5 // pred_region
      %s2130 = ssub.s32 %s9, 2
      // Predicated region
      $region41: #{generator_forward.19} parent=39 // pred_check
        %p2131 = pneg %p106
      $region42: #{generator_forward.19} parent=39 // pred_check_branch
        %2133 = sbr.rel (%p2131) target = $region44
      $region43: #{generator_forward.19} parent=39 // pred_region
        %s2134 = smul.u32 64, %s15
        %p2135 = scmp.lt.s32.totalorder %s2134, 255
        %s2136 = scalar_select %p2135, %s2134, 255
        %s2137 = smul.addr %s2136, 4
        %s2138 = scalar_lea.vmem %s3, %s2137
      $region44: #{generator_forward.19} parent=39 // pred_fallthru
        _
    $region40: #{generator_forward.19} parent=5 // pred_fallthru
      _
  $region6: #{generator_forward.19} parent=0 // loop_footer
    %s13 = sadd.s32 1, %s9
  $region7: #{generator_forward.19} parent=0 // loop_footer_branch
    %8 = sbr.rel target = $region3
  $region8: #{generator_forward.19} parent=0 // loop_exit
    _

</llo_original>
